<compile_context>
chip_gen: v6e
topology: v6e:2x2x1
jax: 0.10.0
libtpu: 0.0.40
codegen_flags: <defaults>
</compile_context>

<pallas_src>
import jax
import jax.numpy as jnp
from jax import lax
from jax.experimental import pallas as pl
from jax.experimental.pallas import tpu as pltpu


def _gelu_exact(x):
    # matches torch.nn.GELU() default (erf-based)
    return 0.5 * x * (1.0 + lax.erf(x / jnp.sqrt(jnp.asarray(2.0, x.dtype))))


def _bn_scale_bias(bn):
    gamma, beta, mean, var, eps = bn
    s = gamma / jnp.sqrt(var + eps)
    return s.astype(jnp.float32), (beta - mean * s).astype(jnp.float32)


def _fold_bn_dw(w_c1kk, bn):
    """Depthwise conv weight (C,1,k,k) + eval-mode BN -> weight (k,k,C), bias (C,)."""
    s, b = _bn_scale_bias(bn)
    w = jnp.transpose(w_c1kk[:, 0].astype(jnp.float32) * s[:, None, None], (1, 2, 0))
    return w, b


def _make_kernel(K1, K7, H, W, C, CH, TH):
    P1, P7 = K1 // 2, K7 // 2
    TH_EXT = TH + 2 * P7            # rows of t needed per output tile (halo P7 each side)
    ROWS_IN = TH_EXT + K1 - 1       # padded input rows needed per tile

    def kernel(x_ref, wtm_ref, btm_ref, w7_ref, w1_ref, b1_ref, w2_ref, b2_ref, o_ref):
        i = pl.program_id(1)
        row0 = pl.multiple_of(i * TH, TH)   # row offset into the (P1+P7)-padded input frame

        # One aligned load of the entire input row band this tile needs (no W-offset slices).
        xin = x_ref[pl.ds(row0, ROWS_IN), :, :].astype(jnp.float32)   # (ROWS_IN, W, C)
        wtm = wtm_ref[...]                                            # (K1, K1, C), hoisted
        w7 = w7_ref[...]                                              # (K7, K7, C), hoisted
        col = lax.broadcasted_iota(jnp.int32, (W, 1), 0)

        # ---- token mixer: fused depthwise K1xK1 conv, bias in the accumulator init ----
        # kw shifts = XLU rolls of the whole band; circular wrap is cancelled by zeroing the
        # wrapped columns in the per-tap (W,C) weight (acts as the conv's zero W-padding).
        acc = jnp.broadcast_to(btm_ref[...], (TH_EXT, W, C)).astype(jnp.float32)
        for kw in range(K1):
            band = xin if kw == P1 else pltpu.roll(xin, (P1 - kw) % W, axis=1)
            valid = (col + (kw - P1) >= 0) & (col + (kw - P1) < W)
            for kh in range(K1):
                w_eff = wtm[kh, kw] if kw == P1 else jnp.where(valid, wtm[kh, kw], 0.0)
                acc = acc + band[kh:kh + TH_EXT] * w_eff
        # rows of t outside the image act as the 7x7 conv's zero padding -> mask them
        g = i * TH - P7 + lax.broadcasted_iota(jnp.int32, (TH_EXT, 1, 1), 0)
        t_ext = jnp.where((g >= 0) & (g < H), acc, 0.0)

        # ---- ConvMLP depthwise 7x7 (BN folded into weight, its bias folded into fc1 bias) ----
        z = jnp.zeros((TH, W, C), jnp.float32)
        for kw in range(K7):
            band = t_ext if kw == P7 else pltpu.roll(t_ext, (P7 - kw) % W, axis=1)
            valid = (col + (kw - P7) >= 0) & (col + (kw - P7) < W)
            for kh in range(K7):
                w_eff = w7[kh, kw] if kw == P7 else jnp.where(valid, w7[kh, kw], 0.0)
                z = z + band[kh:kh + TH] * w_eff

        # ---- 1x1 convs on the MXU (weights pre-cast to the MXU dtype in the wrapper);
        #      exact GELU between; block layer scale folded into fc2; f32 accumulation ----
        zf = z.reshape(TH * W, C)
        h = jnp.dot(zf.astype(w1_ref.dtype), w1_ref[...],
                    preferred_element_type=jnp.float32) + b1_ref[...]
        h = _gelu_exact(h)
        y = jnp.dot(h.astype(w2_ref.dtype), w2_ref[...],
                    preferred_element_type=jnp.float32) + b2_ref[...]

        # ---- residual with t (leading-dim slice, no relayout) ----
        o_ref[...] = (t_ext[P7:P7 + TH] + y.reshape(TH, W, C)).astype(o_ref.dtype)

    return kernel


def rep_mixer_block(x_nchw, params, *, kernel_size=3, tile_h_max=32,
                    io_dtype=jnp.float32, mxu_dtype=jnp.float32):
    N, C, H, W = x_nchw.shape
    K1, K7 = kernel_size, 7
    P1, P7 = K1 // 2, K7 // 2
    assert W >= K7, "roll-based kw shifts assume W >= 7"
    CH = params["fc1_w"].shape[0]

    # ---- fold token mixer: identity + ls1*(mixer - norm), all BNs -> one dw conv ----
    w3, b3 = _fold_bn_dw(params["mixer_conv_w"], params["mixer_conv_bn"])     # K1xK1 branch
    ws, bs = _fold_bn_dw(params["mixer_scale_w"], params["mixer_scale_bn"])   # 1x1 scale branch
    s_sk, b_sk = _bn_scale_bias(params["mixer_skip_bn"])                      # mixer identity BN
    s_nm, b_nm = _bn_scale_bias(params["norm_bn"])                            # norm branch BN
    ls1 = params["ls1"].astype(jnp.float32)
    w_mix = w3.at[P1, P1].add(ws[0, 0] + s_sk - s_nm)                         # mixer - norm
    b_mix = b3 + bs + b_sk - b_nm
    w_tm = (ls1 * w_mix).at[P1, P1].add(1.0)                                  # + identity
    b_tm = (ls1 * b_mix).reshape(1, C)

    # ---- ConvMLP: fold BN into 7x7, its bias into fc1's bias, layer scale ls2 into fc2 ----
    w7, b7 = _fold_bn_dw(params["mlp_conv_w"], params["mlp_conv_bn"])
    w1 = jnp.transpose(params["fc1_w"][:, :, 0, 0]).astype(jnp.float32)       # (C, CH)
    b1 = (b7 @ w1 + params["fc1_b"].astype(jnp.float32)).reshape(1, CH)
    ls2 = params["ls2"].astype(jnp.float32)
    w2 = jnp.transpose(params["fc2_w"][:, :, 0, 0]).astype(jnp.float32) * ls2[None, :]
    b2 = (ls2 * params["fc2_b"].astype(jnp.float32)).reshape(1, C)
    w1m, w2m = w1.astype(mxu_dtype), w2.astype(mxu_dtype)   # MXU inputs; f32 accumulation

    # ---- layout: single NCHW->NHWC pass, H padded by P1+P7 (halo); NO W padding needed ----
    x = jnp.transpose(x_nchw, (0, 2, 3, 1)).astype(io_dtype)
    x_pad = jnp.pad(x, ((0, 0), (P1 + P7, P1 + P7), (0, 0), (0, 0)))
    HP = H + 2 * (P1 + P7)

    # ---- pick the largest H tile (divisor of H, <= tile_h_max) whose working set fits VMEM ----
    try:
        vmem_cap = int(pltpu.get_tpu_info().vmem_capacity_bytes)
    except Exception:
        vmem_cap = 64 * 2**20                  # conservative (v7x-sized) fallback
    budget = int(vmem_cap * 0.85)              # leave headroom for compiler-internal scratch
    esz = jnp.dtype(io_dtype).itemsize
    msz = jnp.dtype(mxu_dtype).itemsize

    def vmem_need(th):
        th_ext = th + 2 * P7
        rows_in = th_ext + K1 - 1
        frame = 2 * HP * W * C * esz                         # double-buffered resident frame
        out_t = 2 * th * W * C * esz                         # double-buffered output tile
        live = (3 * rows_in + 2 * th) * W * C * 4 + th * W * CH * 4   # f32 values / spills
        wgts = 2 * ((K1 * K1 + K7 * K7 + 2) * C + CH) * 4 + 4 * C * CH * msz
        return frame + out_t + live + wgts

    TH = next((th for th in range(min(tile_h_max, H), 0, -1)
               if H % th == 0 and vmem_need(th) <= budget), None)
    assert TH is not None, "no H tile fits the VMEM budget"
    vmem_limit = int(min(budget, max(2 * vmem_need(TH), 32 * 2**20)))

    kernel = _make_kernel(K1, K7, H, W, C, CH, TH)
    out = pl.pallas_call(
        kernel,
        out_shape=jax.ShapeDtypeStruct((N, H, W, C), io_dtype),
        grid=(N, H // TH),
        in_specs=[
            # full padded frame stays VMEM-resident while the H-tile axis iterates
            pl.BlockSpec((None, HP, W, C), lambda n, i: (n, 0, 0, 0)),
            pl.BlockSpec((K1, K1, C), lambda n, i: (0, 0, 0)),
            pl.BlockSpec((1, C), lambda n, i: (0, 0)),
            pl.BlockSpec((K7, K7, C), lambda n, i: (0, 0, 0)),
            pl.BlockSpec((C, CH), lambda n, i: (0, 0)),
            pl.BlockSpec((1, CH), lambda n, i: (0, 0)),
            pl.BlockSpec((CH, C), lambda n, i: (0, 0)),
            pl.BlockSpec((1, C), lambda n, i: (0, 0)),
        ],
        out_specs=pl.BlockSpec((None, TH, W, C), lambda n, i: (n, i, 0, 0)),
        compiler_params=pltpu.CompilerParams(
            # N axis "parallel" (v7x megacore shards by image); H-tile axis "arbitrary" so
            # the two cores never re-DMA the same resident frame.
            dimension_semantics=("parallel", "arbitrary"),
            vmem_limit_bytes=vmem_limit),
    )(x_pad, w_tm, b_tm, w7, w1m, b1, w2m, b2)
    return jnp.transpose(out, (0, 3, 1, 2))  # back to NCHW


def reference(x, params, kernel_size=3):
    """Plain-JAX replica of the PyTorch RepMixerBlock forward (eval mode)."""
    _, C, _, _ = x.shape
    K1 = kernel_size
    x = x.astype(jnp.float32)

    def dwconv(v, w, pad):
        return lax.conv_general_dilated(
            v, w.astype(jnp.float32), (1, 1), ((pad, pad), (pad, pad)),
            dimension_numbers=("NCHW", "OIHW", "NCHW"), feature_group_count=C)

    def conv1x1(v, w, b):
        y = lax.conv_general_dilated(
            v, w.astype(jnp.float32), (1, 1), ((0, 0), (0, 0)),
            dimension_numbers=("NCHW", "OIHW", "NCHW"))
        return y + b[None, :, None, None]

    def bn(v, p):
        g, b, m, var, eps = p
        s = g / jnp.sqrt(var + eps)
        return v * s[None, :, None, None] + (b - m * s)[None, :, None, None]

    norm_out = bn(x, params["norm_bn"])
    mixer_out = (bn(x, params["mixer_skip_bn"])
                 + bn(dwconv(x, params["mixer_scale_w"], 0), params["mixer_scale_bn"])
                 + bn(dwconv(x, params["mixer_conv_w"], K1 // 2), params["mixer_conv_bn"]))
    t = x + params["ls1"][None, :, None, None] * (mixer_out - norm_out)

    z = bn(dwconv(t, params["mlp_conv_w"], 3), params["mlp_conv_bn"])
    h = _gelu_exact(conv1x1(z, params["fc1_w"], params["fc1_b"]))
    m = conv1x1(h, params["fc2_w"], params["fc2_b"])
    # TODO(synk): Dropout / StochasticDepth(drop_path) are identity in eval mode (not modeled).
    return t + params["ls2"][None, :, None, None] * m


if __name__ == "__main__":
    key = jax.random.PRNGKey(0)
    N, C, H, W = 2, 4, 16, 16
    K1, CH = 3, 16  # dim=4, kernel_size=3, mlp_ratio=4.0 -> hidden=16

    keys = iter(jax.random.split(key, 32))

    def nrm(shape, scale=1.0):
        return scale * jax.random.normal(next(keys), shape, jnp.float32)

    def bn_params():
        return (1.0 + 0.1 * nrm((C,)), 0.1 * nrm((C,)), 0.1 * nrm((C,)),
                jnp.abs(nrm((C,))) + 0.5, 1e-5)

    params = {
        "norm_bn": bn_params(),
        "mixer_skip_bn": bn_params(),
        "mixer_scale_w": 0.3 * nrm((C, 1, 1, 1)),
        "mixer_scale_bn": bn_params(),
        "mixer_conv_w": 0.2 * nrm((C, 1, K1, K1)),
        "mixer_conv_bn": bn_params(),
        "ls1": 0.5 + 0.1 * nrm((C,)),
        "mlp_conv_w": 0.1 * nrm((C, 1, 7, 7)),
        "mlp_conv_bn": bn_params(),
        "fc1_w": 0.2 * nrm((CH, C, 1, 1)),
        "fc1_b": 0.1 * nrm((CH,)),
        "fc2_w": 0.2 * nrm((C, CH, 1, 1)),
        "fc2_b": 0.1 * nrm((C,)),
        "ls2": 0.5 + 0.1 * nrm((C,)),
    }
    x = nrm((N, C, H, W))
    ref = reference(x, params, kernel_size=K1)

    # f32 path: tight check against the f32 reference.
    out = jax.block_until_ready(rep_mixer_block(x, params, kernel_size=K1))
    assert out.shape == ref.shape, (out.shape, ref.shape)
    max_err = float(jnp.max(jnp.abs(out - ref)))
    assert jnp.allclose(out, ref, atol=2e-4, rtol=2e-4), f"f32 max abs err {max_err}"

    # bf16 HBM I/O + bf16 MXU inputs (f32 accumulation): the recommended production config.
    out_bf16 = jax.block_until_ready(
        rep_mixer_block(x, params, kernel_size=K1,
                        io_dtype=jnp.bfloat16, mxu_dtype=jnp.bfloat16))
    max_err_bf16 = float(jnp.max(jnp.abs(out_bf16.astype(jnp.float32) - ref)))
    assert jnp.allclose(out_bf16.astype(jnp.float32), ref, atol=5e-2, rtol=5e-2), \
        f"bf16 max abs err {max_err_bf16}"

    print("KERNEL_OK")
</pallas_src>

<mosaic_0001>
module attributes {stable_mosaic.version = 11 : i64} {
  func.func @kernel(%arg0: i32, %arg1: i32, %arg2: memref<1x24x16x4xf32, #tpu.memory_space<vmem>>, %arg3: memref<3x3x4xf32, #tpu.memory_space<vmem>>, %arg4: memref<1x4xf32, #tpu.memory_space<vmem>>, %arg5: memref<7x7x4xf32, #tpu.memory_space<vmem>>, %arg6: memref<4x16xf32, #tpu.memory_space<vmem>>, %arg7: memref<1x16xf32, #tpu.memory_space<vmem>>, %arg8: memref<16x4xf32, #tpu.memory_space<vmem>>, %arg9: memref<1x4xf32, #tpu.memory_space<vmem>>, %arg10: memref<1x16x16x4xf32, #tpu.memory_space<vmem>>) attributes {dimension_semantics = [#tpu.dimension_semantics<parallel>, #tpu.dimension_semantics<arbitrary>], iteration_bounds = array<i64: 2, 1>, scalar_prefetch = 0 : i64, scratch_operands = 0 : i64, tpu.core_type = #tpu.core_type<tc>, window_params = [{transform_indices = @transform_0, window_bounds = array<i64: 1, 24, 16, 4>}, {pipeline_mode = #tpu.pipeline_mode<synchronous>, transform_indices = @transform_1, window_bounds = array<i64: 3, 3, 4>}, {pipeline_mode = #tpu.pipeline_mode<synchronous>, transform_indices = @transform_2, window_bounds = array<i64: 1, 4>}, {pipeline_mode = #tpu.pipeline_mode<synchronous>, transform_indices = @transform_3, window_bounds = array<i64: 7, 7, 4>}, {pipeline_mode = #tpu.pipeline_mode<synchronous>, transform_indices = @transform_4, window_bounds = array<i64: 4, 16>}, {pipeline_mode = #tpu.pipeline_mode<synchronous>, transform_indices = @transform_5, window_bounds = array<i64: 1, 16>}, {pipeline_mode = #tpu.pipeline_mode<synchronous>, transform_indices = @transform_6, window_bounds = array<i64: 16, 4>}, {pipeline_mode = #tpu.pipeline_mode<synchronous>, transform_indices = @transform_7, window_bounds = array<i64: 1, 4>}, {transform_indices = @transform_8, window_bounds = array<i64: 1, 16, 16, 4>}]} {
    %c16_i32 = arith.constant 16 : i32
    %0 = arith.muli %arg1, %c16_i32 : i32
    %1 = tpu.assume_multiple %0, 16 : i32
    %c0 = arith.constant 0 : index
    %2 = arith.index_cast %1 : i32 to index
    %c0_0 = arith.constant 0 : index
    %c0_1 = arith.constant 0 : index
    %3 = vector.load %arg2[%c0, %2, %c0_0, %c0_1] : memref<1x24x16x4xf32, #tpu.memory_space<vmem>>, vector<1x24x16x4xf32>
    %4 = vector.shape_cast %3 : vector<1x24x16x4xf32> to vector<24x16x4xf32>
    %c0_2 = arith.constant 0 : index
    %c0_3 = arith.constant 0 : index
    %c0_4 = arith.constant 0 : index
    %5 = vector.load %arg3[%c0_2, %c0_3, %c0_4] : memref<3x3x4xf32, #tpu.memory_space<vmem>>, vector<3x3x4xf32>
    %c0_5 = arith.constant 0 : index
    %c0_6 = arith.constant 0 : index
    %c0_7 = arith.constant 0 : index
    %6 = vector.load %arg5[%c0_5, %c0_6, %c0_7] : memref<7x7x4xf32, #tpu.memory_space<vmem>>, vector<7x7x4xf32>
    %7 = tpu.iota {dimensions = array<i32: 0>} : vector<16x1xi32>
    %c0_8 = arith.constant 0 : index
    %c0_9 = arith.constant 0 : index
    %8 = vector.load %arg4[%c0_8, %c0_9] : memref<1x4xf32, #tpu.memory_space<vmem>>, vector<1x4xf32>
    %9 = vector.shape_cast %8 : vector<1x4xf32> to vector<1x1x4xf32>
    %10 = vector.broadcast %9 : vector<1x1x4xf32> to vector<22x16x4xf32>
    %c1_i32 = arith.constant 1 : i32
    %11 = tpu.dynamic_rotate %4 by %c1_i32 dim 1 : vector<24x16x4xf32>, i32 -> vector<24x16x4xf32>
    %c-1_i32 = arith.constant -1 : i32
    %12 = vector.broadcast %c-1_i32 : i32 to vector<16x1xi32>
    %13 = arith.addi %7, %12 : vector<16x1xi32>
    %c0_i32 = arith.constant 0 : i32
    %14 = vector.broadcast %c0_i32 : i32 to vector<16x1xi32>
    %15 = arith.cmpi sge, %13, %14 : vector<16x1xi32>
    %c-1_i32_10 = arith.constant -1 : i32
    %16 = vector.broadcast %c-1_i32_10 : i32 to vector<16x1xi32>
    %17 = arith.addi %7, %16 : vector<16x1xi32>
    %c16_i32_11 = arith.constant 16 : i32
    %18 = vector.broadcast %c16_i32_11 : i32 to vector<16x1xi32>
    %19 = arith.cmpi slt, %17, %18 : vector<16x1xi32>
    %20 = arith.andi %15, %19 : vector<16x1xi1>
    %21 = vector.extract_strided_slice %5 {offsets = [0, 0, 0], sizes = [1, 1, 4], strides = [1, 1, 1]} : vector<3x3x4xf32> to vector<1x1x4xf32>
    %22 = vector.shape_cast %21 : vector<1x1x4xf32> to vector<4xf32>
    %cst = arith.constant 0.000000e+00 : f32
    %23 = vector.shape_cast %20 : vector<16x1xi1> to vector<16x1xi1>
    %24 = vector.broadcast %23 : vector<16x1xi1> to vector<16x4xi1>
    %25 = vector.shape_cast %22 : vector<4xf32> to vector<1x4xf32>
    %26 = vector.broadcast %25 : vector<1x4xf32> to vector<16x4xf32>
    %27 = vector.broadcast %cst : f32 to vector<16x4xf32>
    %28 = arith.select %24, %26, %27 : vector<16x4xi1>, vector<16x4xf32>
    %29 = vector.extract_strided_slice %11 {offsets = [0, 0, 0], sizes = [22, 16, 4], strides = [1, 1, 1]} : vector<24x16x4xf32> to vector<22x16x4xf32>
    %30 = vector.shape_cast %28 : vector<16x4xf32> to vector<1x16x4xf32>
    %31 = vector.broadcast %30 : vector<1x16x4xf32> to vector<22x16x4xf32>
    %32 = arith.mulf %29, %31 : vector<22x16x4xf32>
    %33 = arith.addf %10, %32 : vector<22x16x4xf32>
    %34 = vector.extract_strided_slice %5 {offsets = [1, 0, 0], sizes = [1, 1, 4], strides = [1, 1, 1]} : vector<3x3x4xf32> to vector<1x1x4xf32>
    %35 = vector.shape_cast %34 : vector<1x1x4xf32> to vector<4xf32>
    %cst_12 = arith.constant 0.000000e+00 : f32
    %36 = vector.shape_cast %20 : vector<16x1xi1> to vector<16x1xi1>
    %37 = vector.broadcast %36 : vector<16x1xi1> to vector<16x4xi1>
    %38 = vector.shape_cast %35 : vector<4xf32> to vector<1x4xf32>
    %39 = vector.broadcast %38 : vector<1x4xf32> to vector<16x4xf32>
    %40 = vector.broadcast %cst_12 : f32 to vector<16x4xf32>
    %41 = arith.select %37, %39, %40 : vector<16x4xi1>, vector<16x4xf32>
    %42 = vector.extract_strided_slice %11 {offsets = [1, 0, 0], sizes = [22, 16, 4], strides = [1, 1, 1]} : vector<24x16x4xf32> to vector<22x16x4xf32>
    %43 = vector.shape_cast %41 : vector<16x4xf32> to vector<1x16x4xf32>
    %44 = vector.broadcast %43 : vector<1x16x4xf32> to vector<22x16x4xf32>
    %45 = arith.mulf %42, %44 : vector<22x16x4xf32>
    %46 = arith.addf %33, %45 : vector<22x16x4xf32>
    %47 = vector.extract_strided_slice %5 {offsets = [2, 0, 0], sizes = [1, 1, 4], strides = [1, 1, 1]} : vector<3x3x4xf32> to vector<1x1x4xf32>
    %48 = vector.shape_cast %47 : vector<1x1x4xf32> to vector<4xf32>
    %cst_13 = arith.constant 0.000000e+00 : f32
    %49 = vector.shape_cast %20 : vector<16x1xi1> to vector<16x1xi1>
    %50 = vector.broadcast %49 : vector<16x1xi1> to vector<16x4xi1>
    %51 = vector.shape_cast %48 : vector<4xf32> to vector<1x4xf32>
    %52 = vector.broadcast %51 : vector<1x4xf32> to vector<16x4xf32>
    %53 = vector.broadcast %cst_13 : f32 to vector<16x4xf32>
    %54 = arith.select %50, %52, %53 : vector<16x4xi1>, vector<16x4xf32>
    %55 = vector.extract_strided_slice %11 {offsets = [2, 0, 0], sizes = [22, 16, 4], strides = [1, 1, 1]} : vector<24x16x4xf32> to vector<22x16x4xf32>
    %56 = vector.shape_cast %54 : vector<16x4xf32> to vector<1x16x4xf32>
    %57 = vector.broadcast %56 : vector<1x16x4xf32> to vector<22x16x4xf32>
    %58 = arith.mulf %55, %57 : vector<22x16x4xf32>
    %59 = arith.addf %46, %58 : vector<22x16x4xf32>
    %60 = vector.extract_strided_slice %5 {offsets = [0, 1, 0], sizes = [1, 1, 4], strides = [1, 1, 1]} : vector<3x3x4xf32> to vector<1x1x4xf32>
    %61 = vector.shape_cast %60 : vector<1x1x4xf32> to vector<4xf32>
    %62 = vector.extract_strided_slice %4 {offsets = [0, 0, 0], sizes = [22, 16, 4], strides = [1, 1, 1]} : vector<24x16x4xf32> to vector<22x16x4xf32>
    %63 = vector.shape_cast %61 : vector<4xf32> to vector<1x1x4xf32>
    %64 = vector.broadcast %63 : vector<1x1x4xf32> to vector<22x16x4xf32>
    %65 = arith.mulf %62, %64 : vector<22x16x4xf32>
    %66 = arith.addf %59, %65 : vector<22x16x4xf32>
    %67 = vector.extract_strided_slice %5 {offsets = [1, 1, 0], sizes = [1, 1, 4], strides = [1, 1, 1]} : vector<3x3x4xf32> to vector<1x1x4xf32>
    %68 = vector.shape_cast %67 : vector<1x1x4xf32> to vector<4xf32>
    %69 = vector.extract_strided_slice %4 {offsets = [1, 0, 0], sizes = [22, 16, 4], strides = [1, 1, 1]} : vector<24x16x4xf32> to vector<22x16x4xf32>
    %70 = vector.shape_cast %68 : vector<4xf32> to vector<1x1x4xf32>
    %71 = vector.broadcast %70 : vector<1x1x4xf32> to vector<22x16x4xf32>
    %72 = arith.mulf %69, %71 : vector<22x16x4xf32>
    %73 = arith.addf %66, %72 : vector<22x16x4xf32>
    %74 = vector.extract_strided_slice %5 {offsets = [2, 1, 0], sizes = [1, 1, 4], strides = [1, 1, 1]} : vector<3x3x4xf32> to vector<1x1x4xf32>
    %75 = vector.shape_cast %74 : vector<1x1x4xf32> to vector<4xf32>
    %76 = vector.extract_strided_slice %4 {offsets = [2, 0, 0], sizes = [22, 16, 4], strides = [1, 1, 1]} : vector<24x16x4xf32> to vector<22x16x4xf32>
    %77 = vector.shape_cast %75 : vector<4xf32> to vector<1x1x4xf32>
    %78 = vector.broadcast %77 : vector<1x1x4xf32> to vector<22x16x4xf32>
    %79 = arith.mulf %76, %78 : vector<22x16x4xf32>
    %80 = arith.addf %73, %79 : vector<22x16x4xf32>
    %c15_i32 = arith.constant 15 : i32
    %81 = tpu.dynamic_rotate %4 by %c15_i32 dim 1 : vector<24x16x4xf32>, i32 -> vector<24x16x4xf32>
    %c1_i32_14 = arith.constant 1 : i32
    %82 = vector.broadcast %c1_i32_14 : i32 to vector<16x1xi32>
    %83 = arith.addi %7, %82 : vector<16x1xi32>
    %c0_i32_15 = arith.constant 0 : i32
    %84 = vector.broadcast %c0_i32_15 : i32 to vector<16x1xi32>
    %85 = arith.cmpi sge, %83, %84 : vector<16x1xi32>
    %c1_i32_16 = arith.constant 1 : i32
    %86 = vector.broadcast %c1_i32_16 : i32 to vector<16x1xi32>
    %87 = arith.addi %7, %86 : vector<16x1xi32>
    %c16_i32_17 = arith.constant 16 : i32
    %88 = vector.broadcast %c16_i32_17 : i32 to vector<16x1xi32>
    %89 = arith.cmpi slt, %87, %88 : vector<16x1xi32>
    %90 = arith.andi %85, %89 : vector<16x1xi1>
    %91 = vector.extract_strided_slice %5 {offsets = [0, 2, 0], sizes = [1, 1, 4], strides = [1, 1, 1]} : vector<3x3x4xf32> to vector<1x1x4xf32>
    %92 = vector.shape_cast %91 : vector<1x1x4xf32> to vector<4xf32>
    %cst_18 = arith.constant 0.000000e+00 : f32
    %93 = vector.shape_cast %90 : vector<16x1xi1> to vector<16x1xi1>
    %94 = vector.broadcast %93 : vector<16x1xi1> to vector<16x4xi1>
    %95 = vector.shape_cast %92 : vector<4xf32> to vector<1x4xf32>
    %96 = vector.broadcast %95 : vector<1x4xf32> to vector<16x4xf32>
    %97 = vector.broadcast %cst_18 : f32 to vector<16x4xf32>
    %98 = arith.select %94, %96, %97 : vector<16x4xi1>, vector<16x4xf32>
    %99 = vector.extract_strided_slice %81 {offsets = [0, 0, 0], sizes = [22, 16, 4], strides = [1, 1, 1]} : vector<24x16x4xf32> to vector<22x16x4xf32>
    %100 = vector.shape_cast %98 : vector<16x4xf32> to vector<1x16x4xf32>
    %101 = vector.broadcast %100 : vector<1x16x4xf32> to vector<22x16x4xf32>
    %102 = arith.mulf %99, %101 : vector<22x16x4xf32>
    %103 = arith.addf %80, %102 : vector<22x16x4xf32>
    %104 = vector.extract_strided_slice %5 {offsets = [1, 2, 0], sizes = [1, 1, 4], strides = [1, 1, 1]} : vector<3x3x4xf32> to vector<1x1x4xf32>
    %105 = vector.shape_cast %104 : vector<1x1x4xf32> to vector<4xf32>
    %cst_19 = arith.constant 0.000000e+00 : f32
    %106 = vector.shape_cast %90 : vector<16x1xi1> to vector<16x1xi1>
    %107 = vector.broadcast %106 : vector<16x1xi1> to vector<16x4xi1>
    %108 = vector.shape_cast %105 : vector<4xf32> to vector<1x4xf32>
    %109 = vector.broadcast %108 : vector<1x4xf32> to vector<16x4xf32>
    %110 = vector.broadcast %cst_19 : f32 to vector<16x4xf32>
    %111 = arith.select %107, %109, %110 : vector<16x4xi1>, vector<16x4xf32>
    %112 = vector.extract_strided_slice %81 {offsets = [1, 0, 0], sizes = [22, 16, 4], strides = [1, 1, 1]} : vector<24x16x4xf32> to vector<22x16x4xf32>
    %113 = vector.shape_cast %111 : vector<16x4xf32> to vector<1x16x4xf32>
    %114 = vector.broadcast %113 : vector<1x16x4xf32> to vector<22x16x4xf32>
    %115 = arith.mulf %112, %114 : vector<22x16x4xf32>
    %116 = arith.addf %103, %115 : vector<22x16x4xf32>
    %117 = vector.extract_strided_slice %5 {offsets = [2, 2, 0], sizes = [1, 1, 4], strides = [1, 1, 1]} : vector<3x3x4xf32> to vector<1x1x4xf32>
    %118 = vector.shape_cast %117 : vector<1x1x4xf32> to vector<4xf32>
    %cst_20 = arith.constant 0.000000e+00 : f32
    %119 = vector.shape_cast %90 : vector<16x1xi1> to vector<16x1xi1>
    %120 = vector.broadcast %119 : vector<16x1xi1> to vector<16x4xi1>
    %121 = vector.shape_cast %118 : vector<4xf32> to vector<1x4xf32>
    %122 = vector.broadcast %121 : vector<1x4xf32> to vector<16x4xf32>
    %123 = vector.broadcast %cst_20 : f32 to vector<16x4xf32>
    %124 = arith.select %120, %122, %123 : vector<16x4xi1>, vector<16x4xf32>
    %125 = vector.extract_strided_slice %81 {offsets = [2, 0, 0], sizes = [22, 16, 4], strides = [1, 1, 1]} : vector<24x16x4xf32> to vector<22x16x4xf32>
    %126 = vector.shape_cast %124 : vector<16x4xf32> to vector<1x16x4xf32>
    %127 = vector.broadcast %126 : vector<1x16x4xf32> to vector<22x16x4xf32>
    %128 = arith.mulf %125, %127 : vector<22x16x4xf32>
    %129 = arith.addf %116, %128 : vector<22x16x4xf32>
    %c16_i32_21 = arith.constant 16 : i32
    %130 = arith.muli %arg1, %c16_i32_21 : i32
    %c3_i32 = arith.constant 3 : i32
    %131 = arith.subi %130, %c3_i32 : i32
    %132 = tpu.iota {dimensions = array<i32: 0>} : vector<22x1x1xi32>
    %133 = vector.broadcast %131 : i32 to vector<22x1x1xi32>
    %134 = arith.addi %133, %132 : vector<22x1x1xi32>
    %c0_i32_22 = arith.constant 0 : i32
    %135 = vector.broadcast %c0_i32_22 : i32 to vector<22x1x1xi32>
    %136 = arith.cmpi sge, %134, %135 : vector<22x1x1xi32>
    %c16_i32_23 = arith.constant 16 : i32
    %137 = vector.broadcast %c16_i32_23 : i32 to vector<22x1x1xi32>
    %138 = arith.cmpi slt, %134, %137 : vector<22x1x1xi32>
    %139 = arith.andi %136, %138 : vector<22x1x1xi1>
    %cst_24 = arith.constant 0.000000e+00 : f32
    %140 = vector.shape_cast %139 : vector<22x1x1xi1> to vector<22x1x1xi1>
    %141 = vector.broadcast %140 : vector<22x1x1xi1> to vector<22x16x4xi1>
    %142 = vector.broadcast %cst_24 : f32 to vector<22x16x4xf32>
    %143 = arith.select %141, %129, %142 : vector<22x16x4xi1>, vector<22x16x4xf32>
    %cst_25 = arith.constant 0.000000e+00 : f32
    %144 = vector.broadcast %cst_25 : f32 to vector<16x16x4xf32>
    %c3_i32_26 = arith.constant 3 : i32
    %145 = tpu.dynamic_rotate %143 by %c3_i32_26 dim 1 : vector<22x16x4xf32>, i32 -> vector<22x16x4xf32>
    %c-3_i32 = arith.constant -3 : i32
    %146 = vector.broadcast %c-3_i32 : i32 to vector<16x1xi32>
    %147 = arith.addi %7, %146 : vector<16x1xi32>
    %c0_i32_27 = arith.constant 0 : i32
    %148 = vector.broadcast %c0_i32_27 : i32 to vector<16x1xi32>
    %149 = arith.cmpi sge, %147, %148 : vector<16x1xi32>
    %c-3_i32_28 = arith.constant -3 : i32
    %150 = vector.broadcast %c-3_i32_28 : i32 to vector<16x1xi32>
    %151 = arith.addi %7, %150 : vector<16x1xi32>
    %c16_i32_29 = arith.constant 16 : i32
    %152 = vector.broadcast %c16_i32_29 : i32 to vector<16x1xi32>
    %153 = arith.cmpi slt, %151, %152 : vector<16x1xi32>
    %154 = arith.andi %149, %153 : vector<16x1xi1>
    %155 = vector.extract_strided_slice %6 {offsets = [0, 0, 0], sizes = [1, 1, 4], strides = [1, 1, 1]} : vector<7x7x4xf32> to vector<1x1x4xf32>
    %156 = vector.shape_cast %155 : vector<1x1x4xf32> to vector<4xf32>
    %cst_30 = arith.constant 0.000000e+00 : f32
    %157 = vector.shape_cast %154 : vector<16x1xi1> to vector<16x1xi1>
    %158 = vector.broadcast %157 : vector<16x1xi1> to vector<16x4xi1>
    %159 = vector.shape_cast %156 : vector<4xf32> to vector<1x4xf32>
    %160 = vector.broadcast %159 : vector<1x4xf32> to vector<16x4xf32>
    %161 = vector.broadcast %cst_30 : f32 to vector<16x4xf32>
    %162 = arith.select %158, %160, %161 : vector<16x4xi1>, vector<16x4xf32>
    %163 = vector.extract_strided_slice %145 {offsets = [0, 0, 0], sizes = [16, 16, 4], strides = [1, 1, 1]} : vector<22x16x4xf32> to vector<16x16x4xf32>
    %164 = vector.shape_cast %162 : vector<16x4xf32> to vector<1x16x4xf32>
    %165 = vector.broadcast %164 : vector<1x16x4xf32> to vector<16x16x4xf32>
    %166 = arith.mulf %163, %165 : vector<16x16x4xf32>
    %167 = arith.addf %144, %166 : vector<16x16x4xf32>
    %168 = vector.extract_strided_slice %6 {offsets = [1, 0, 0], sizes = [1, 1, 4], strides = [1, 1, 1]} : vector<7x7x4xf32> to vector<1x1x4xf32>
    %169 = vector.shape_cast %168 : vector<1x1x4xf32> to vector<4xf32>
    %cst_31 = arith.constant 0.000000e+00 : f32
    %170 = vector.shape_cast %154 : vector<16x1xi1> to vector<16x1xi1>
    %171 = vector.broadcast %170 : vector<16x1xi1> to vector<16x4xi1>
    %172 = vector.shape_cast %169 : vector<4xf32> to vector<1x4xf32>
    %173 = vector.broadcast %172 : vector<1x4xf32> to vector<16x4xf32>
    %174 = vector.broadcast %cst_31 : f32 to vector<16x4xf32>
    %175 = arith.select %171, %173, %174 : vector<16x4xi1>, vector<16x4xf32>
    %176 = vector.extract_strided_slice %145 {offsets = [1, 0, 0], sizes = [16, 16, 4], strides = [1, 1, 1]} : vector<22x16x4xf32> to vector<16x16x4xf32>
    %177 = vector.shape_cast %175 : vector<16x4xf32> to vector<1x16x4xf32>
    %178 = vector.broadcast %177 : vector<1x16x4xf32> to vector<16x16x4xf32>
    %179 = arith.mulf %176, %178 : vector<16x16x4xf32>
    %180 = arith.addf %167, %179 : vector<16x16x4xf32>
    %181 = vector.extract_strided_slice %6 {offsets = [2, 0, 0], sizes = [1, 1, 4], strides = [1, 1, 1]} : vector<7x7x4xf32> to vector<1x1x4xf32>
    %182 = vector.shape_cast %181 : vector<1x1x4xf32> to vector<4xf32>
    %cst_32 = arith.constant 0.000000e+00 : f32
    %183 = vector.shape_cast %154 : vector<16x1xi1> to vector<16x1xi1>
    %184 = vector.broadcast %183 : vector<16x1xi1> to vector<16x4xi1>
    %185 = vector.shape_cast %182 : vector<4xf32> to vector<1x4xf32>
    %186 = vector.broadcast %185 : vector<1x4xf32> to vector<16x4xf32>
    %187 = vector.broadcast %cst_32 : f32 to vector<16x4xf32>
    %188 = arith.select %184, %186, %187 : vector<16x4xi1>, vector<16x4xf32>
    %189 = vector.extract_strided_slice %145 {offsets = [2, 0, 0], sizes = [16, 16, 4], strides = [1, 1, 1]} : vector<22x16x4xf32> to vector<16x16x4xf32>
    %190 = vector.shape_cast %188 : vector<16x4xf32> to vector<1x16x4xf32>
    %191 = vector.broadcast %190 : vector<1x16x4xf32> to vector<16x16x4xf32>
    %192 = arith.mulf %189, %191 : vector<16x16x4xf32>
    %193 = arith.addf %180, %192 : vector<16x16x4xf32>
    %194 = vector.extract_strided_slice %6 {offsets = [3, 0, 0], sizes = [1, 1, 4], strides = [1, 1, 1]} : vector<7x7x4xf32> to vector<1x1x4xf32>
    %195 = vector.shape_cast %194 : vector<1x1x4xf32> to vector<4xf32>
    %cst_33 = arith.constant 0.000000e+00 : f32
    %196 = vector.shape_cast %154 : vector<16x1xi1> to vector<16x1xi1>
    %197 = vector.broadcast %196 : vector<16x1xi1> to vector<16x4xi1>
    %198 = vector.shape_cast %195 : vector<4xf32> to vector<1x4xf32>
    %199 = vector.broadcast %198 : vector<1x4xf32> to vector<16x4xf32>
    %200 = vector.broadcast %cst_33 : f32 to vector<16x4xf32>
    %201 = arith.select %197, %199, %200 : vector<16x4xi1>, vector<16x4xf32>
    %202 = vector.extract_strided_slice %145 {offsets = [3, 0, 0], sizes = [16, 16, 4], strides = [1, 1, 1]} : vector<22x16x4xf32> to vector<16x16x4xf32>
    %203 = vector.shape_cast %201 : vector<16x4xf32> to vector<1x16x4xf32>
    %204 = vector.broadcast %203 : vector<1x16x4xf32> to vector<16x16x4xf32>
    %205 = arith.mulf %202, %204 : vector<16x16x4xf32>
    %206 = arith.addf %193, %205 : vector<16x16x4xf32>
    %207 = vector.extract_strided_slice %6 {offsets = [4, 0, 0], sizes = [1, 1, 4], strides = [1, 1, 1]} : vector<7x7x4xf32> to vector<1x1x4xf32>
    %208 = vector.shape_cast %207 : vector<1x1x4xf32> to vector<4xf32>
    %cst_34 = arith.constant 0.000000e+00 : f32
    %209 = vector.shape_cast %154 : vector<16x1xi1> to vector<16x1xi1>
    %210 = vector.broadcast %209 : vector<16x1xi1> to vector<16x4xi1>
    %211 = vector.shape_cast %208 : vector<4xf32> to vector<1x4xf32>
    %212 = vector.broadcast %211 : vector<1x4xf32> to vector<16x4xf32>
    %213 = vector.broadcast %cst_34 : f32 to vector<16x4xf32>
    %214 = arith.select %210, %212, %213 : vector<16x4xi1>, vector<16x4xf32>
    %215 = vector.extract_strided_slice %145 {offsets = [4, 0, 0], sizes = [16, 16, 4], strides = [1, 1, 1]} : vector<22x16x4xf32> to vector<16x16x4xf32>
    %216 = vector.shape_cast %214 : vector<16x4xf32> to vector<1x16x4xf32>
    %217 = vector.broadcast %216 : vector<1x16x4xf32> to vector<16x16x4xf32>
    %218 = arith.mulf %215, %217 : vector<16x16x4xf32>
    %219 = arith.addf %206, %218 : vector<16x16x4xf32>
    %220 = vector.extract_strided_slice %6 {offsets = [5, 0, 0], sizes = [1, 1, 4], strides = [1, 1, 1]} : vector<7x7x4xf32> to vector<1x1x4xf32>
    %221 = vector.shape_cast %220 : vector<1x1x4xf32> to vector<4xf32>
    %cst_35 = arith.constant 0.000000e+00 : f32
    %222 = vector.shape_cast %154 : vector<16x1xi1> to vector<16x1xi1>
    %223 = vector.broadcast %222 : vector<16x1xi1> to vector<16x4xi1>
    %224 = vector.shape_cast %221 : vector<4xf32> to vector<1x4xf32>
    %225 = vector.broadcast %224 : vector<1x4xf32> to vector<16x4xf32>
    %226 = vector.broadcast %cst_35 : f32 to vector<16x4xf32>
    %227 = arith.select %223, %225, %226 : vector<16x4xi1>, vector<16x4xf32>
    %228 = vector.extract_strided_slice %145 {offsets = [5, 0, 0], sizes = [16, 16, 4], strides = [1, 1, 1]} : vector<22x16x4xf32> to vector<16x16x4xf32>
    %229 = vector.shape_cast %227 : vector<16x4xf32> to vector<1x16x4xf32>
    %230 = vector.broadcast %229 : vector<1x16x4xf32> to vector<16x16x4xf32>
    %231 = arith.mulf %228, %230 : vector<16x16x4xf32>
    %232 = arith.addf %219, %231 : vector<16x16x4xf32>
    %233 = vector.extract_strided_slice %6 {offsets = [6, 0, 0], sizes = [1, 1, 4], strides = [1, 1, 1]} : vector<7x7x4xf32> to vector<1x1x4xf32>
    %234 = vector.shape_cast %233 : vector<1x1x4xf32> to vector<4xf32>
    %cst_36 = arith.constant 0.000000e+00 : f32
    %235 = vector.shape_cast %154 : vector<16x1xi1> to vector<16x1xi1>
    %236 = vector.broadcast %235 : vector<16x1xi1> to vector<16x4xi1>
    %237 = vector.shape_cast %234 : vector<4xf32> to vector<1x4xf32>
    %238 = vector.broadcast %237 : vector<1x4xf32> to vector<16x4xf32>
    %239 = vector.broadcast %cst_36 : f32 to vector<16x4xf32>
    %240 = arith.select %236, %238, %239 : vector<16x4xi1>, vector<16x4xf32>
    %241 = vector.extract_strided_slice %145 {offsets = [6, 0, 0], sizes = [16, 16, 4], strides = [1, 1, 1]} : vector<22x16x4xf32> to vector<16x16x4xf32>
    %242 = vector.shape_cast %240 : vector<16x4xf32> to vector<1x16x4xf32>
    %243 = vector.broadcast %242 : vector<1x16x4xf32> to vector<16x16x4xf32>
    %244 = arith.mulf %241, %243 : vector<16x16x4xf32>
    %245 = arith.addf %232, %244 : vector<16x16x4xf32>
    %c2_i32 = arith.constant 2 : i32
    %246 = tpu.dynamic_rotate %143 by %c2_i32 dim 1 : vector<22x16x4xf32>, i32 -> vector<22x16x4xf32>
    %c-2_i32 = arith.constant -2 : i32
    %247 = vector.broadcast %c-2_i32 : i32 to vector<16x1xi32>
    %248 = arith.addi %7, %247 : vector<16x1xi32>
    %c0_i32_37 = arith.constant 0 : i32
    %249 = vector.broadcast %c0_i32_37 : i32 to vector<16x1xi32>
    %250 = arith.cmpi sge, %248, %249 : vector<16x1xi32>
    %c-2_i32_38 = arith.constant -2 : i32
    %251 = vector.broadcast %c-2_i32_38 : i32 to vector<16x1xi32>
    %252 = arith.addi %7, %251 : vector<16x1xi32>
    %c16_i32_39 = arith.constant 16 : i32
    %253 = vector.broadcast %c16_i32_39 : i32 to vector<16x1xi32>
    %254 = arith.cmpi slt, %252, %253 : vector<16x1xi32>
    %255 = arith.andi %250, %254 : vector<16x1xi1>
    %256 = vector.extract_strided_slice %6 {offsets = [0, 1, 0], sizes = [1, 1, 4], strides = [1, 1, 1]} : vector<7x7x4xf32> to vector<1x1x4xf32>
    %257 = vector.shape_cast %256 : vector<1x1x4xf32> to vector<4xf32>
    %cst_40 = arith.constant 0.000000e+00 : f32
    %258 = vector.shape_cast %255 : vector<16x1xi1> to vector<16x1xi1>
    %259 = vector.broadcast %258 : vector<16x1xi1> to vector<16x4xi1>
    %260 = vector.shape_cast %257 : vector<4xf32> to vector<1x4xf32>
    %261 = vector.broadcast %260 : vector<1x4xf32> to vector<16x4xf32>
    %262 = vector.broadcast %cst_40 : f32 to vector<16x4xf32>
    %263 = arith.select %259, %261, %262 : vector<16x4xi1>, vector<16x4xf32>
    %264 = vector.extract_strided_slice %246 {offsets = [0, 0, 0], sizes = [16, 16, 4], strides = [1, 1, 1]} : vector<22x16x4xf32> to vector<16x16x4xf32>
    %265 = vector.shape_cast %263 : vector<16x4xf32> to vector<1x16x4xf32>
    %266 = vector.broadcast %265 : vector<1x16x4xf32> to vector<16x16x4xf32>
    %267 = arith.mulf %264, %266 : vector<16x16x4xf32>
    %268 = arith.addf %245, %267 : vector<16x16x4xf32>
    %269 = vector.extract_strided_slice %6 {offsets = [1, 1, 0], sizes = [1, 1, 4], strides = [1, 1, 1]} : vector<7x7x4xf32> to vector<1x1x4xf32>
    %270 = vector.shape_cast %269 : vector<1x1x4xf32> to vector<4xf32>
    %cst_41 = arith.constant 0.000000e+00 : f32
    %271 = vector.shape_cast %255 : vector<16x1xi1> to vector<16x1xi1>
    %272 = vector.broadcast %271 : vector<16x1xi1> to vector<16x4xi1>
    %273 = vector.shape_cast %270 : vector<4xf32> to vector<1x4xf32>
    %274 = vector.broadcast %273 : vector<1x4xf32> to vector<16x4xf32>
    %275 = vector.broadcast %cst_41 : f32 to vector<16x4xf32>
    %276 = arith.select %272, %274, %275 : vector<16x4xi1>, vector<16x4xf32>
    %277 = vector.extract_strided_slice %246 {offsets = [1, 0, 0], sizes = [16, 16, 4], strides = [1, 1, 1]} : vector<22x16x4xf32> to vector<16x16x4xf32>
    %278 = vector.shape_cast %276 : vector<16x4xf32> to vector<1x16x4xf32>
    %279 = vector.broadcast %278 : vector<1x16x4xf32> to vector<16x16x4xf32>
    %280 = arith.mulf %277, %279 : vector<16x16x4xf32>
    %281 = arith.addf %268, %280 : vector<16x16x4xf32>
    %282 = vector.extract_strided_slice %6 {offsets = [2, 1, 0], sizes = [1, 1, 4], strides = [1, 1, 1]} : vector<7x7x4xf32> to vector<1x1x4xf32>
    %283 = vector.shape_cast %282 : vector<1x1x4xf32> to vector<4xf32>
    %cst_42 = arith.constant 0.000000e+00 : f32
    %284 = vector.shape_cast %255 : vector<16x1xi1> to vector<16x1xi1>
    %285 = vector.broadcast %284 : vector<16x1xi1> to vector<16x4xi1>
    %286 = vector.shape_cast %283 : vector<4xf32> to vector<1x4xf32>
    %287 = vector.broadcast %286 : vector<1x4xf32> to vector<16x4xf32>
    %288 = vector.broadcast %cst_42 : f32 to vector<16x4xf32>
    %289 = arith.select %285, %287, %288 : vector<16x4xi1>, vector<16x4xf32>
    %290 = vector.extract_strided_slice %246 {offsets = [2, 0, 0], sizes = [16, 16, 4], strides = [1, 1, 1]} : vector<22x16x4xf32> to vector<16x16x4xf32>
    %291 = vector.shape_cast %289 : vector<16x4xf32> to vector<1x16x4xf32>
    %292 = vector.broadcast %291 : vector<1x16x4xf32> to vector<16x16x4xf32>
    %293 = arith.mulf %290, %292 : vector<16x16x4xf32>
    %294 = arith.addf %281, %293 : vector<16x16x4xf32>
    %295 = vector.extract_strided_slice %6 {offsets = [3, 1, 0], sizes = [1, 1, 4], strides = [1, 1, 1]} : vector<7x7x4xf32> to vector<1x1x4xf32>
    %296 = vector.shape_cast %295 : vector<1x1x4xf32> to vector<4xf32>
    %cst_43 = arith.constant 0.000000e+00 : f32
    %297 = vector.shape_cast %255 : vector<16x1xi1> to vector<16x1xi1>
    %298 = vector.broadcast %297 : vector<16x1xi1> to vector<16x4xi1>
    %299 = vector.shape_cast %296 : vector<4xf32> to vector<1x4xf32>
    %300 = vector.broadcast %299 : vector<1x4xf32> to vector<16x4xf32>
    %301 = vector.broadcast %cst_43 : f32 to vector<16x4xf32>
    %302 = arith.select %298, %300, %301 : vector<16x4xi1>, vector<16x4xf32>
    %303 = vector.extract_strided_slice %246 {offsets = [3, 0, 0], sizes = [16, 16, 4], strides = [1, 1, 1]} : vector<22x16x4xf32> to vector<16x16x4xf32>
    %304 = vector.shape_cast %302 : vector<16x4xf32> to vector<1x16x4xf32>
    %305 = vector.broadcast %304 : vector<1x16x4xf32> to vector<16x16x4xf32>
    %306 = arith.mulf %303, %305 : vector<16x16x4xf32>
    %307 = arith.addf %294, %306 : vector<16x16x4xf32>
    %308 = vector.extract_strided_slice %6 {offsets = [4, 1, 0], sizes = [1, 1, 4], strides = [1, 1, 1]} : vector<7x7x4xf32> to vector<1x1x4xf32>
    %309 = vector.shape_cast %308 : vector<1x1x4xf32> to vector<4xf32>
    %cst_44 = arith.constant 0.000000e+00 : f32
    %310 = vector.shape_cast %255 : vector<16x1xi1> to vector<16x1xi1>
    %311 = vector.broadcast %310 : vector<16x1xi1> to vector<16x4xi1>
    %312 = vector.shape_cast %309 : vector<4xf32> to vector<1x4xf32>
    %313 = vector.broadcast %312 : vector<1x4xf32> to vector<16x4xf32>
    %314 = vector.broadcast %cst_44 : f32 to vector<16x4xf32>
    %315 = arith.select %311, %313, %314 : vector<16x4xi1>, vector<16x4xf32>
    %316 = vector.extract_strided_slice %246 {offsets = [4, 0, 0], sizes = [16, 16, 4], strides = [1, 1, 1]} : vector<22x16x4xf32> to vector<16x16x4xf32>
    %317 = vector.shape_cast %315 : vector<16x4xf32> to vector<1x16x4xf32>
    %318 = vector.broadcast %317 : vector<1x16x4xf32> to vector<16x16x4xf32>
    %319 = arith.mulf %316, %318 : vector<16x16x4xf32>
    %320 = arith.addf %307, %319 : vector<16x16x4xf32>
    %321 = vector.extract_strided_slice %6 {offsets = [5, 1, 0], sizes = [1, 1, 4], strides = [1, 1, 1]} : vector<7x7x4xf32> to vector<1x1x4xf32>
    %322 = vector.shape_cast %321 : vector<1x1x4xf32> to vector<4xf32>
    %cst_45 = arith.constant 0.000000e+00 : f32
    %323 = vector.shape_cast %255 : vector<16x1xi1> to vector<16x1xi1>
    %324 = vector.broadcast %323 : vector<16x1xi1> to vector<16x4xi1>
    %325 = vector.shape_cast %322 : vector<4xf32> to vector<1x4xf32>
    %326 = vector.broadcast %325 : vector<1x4xf32> to vector<16x4xf32>
    %327 = vector.broadcast %cst_45 : f32 to vector<16x4xf32>
    %328 = arith.select %324, %326, %327 : vector<16x4xi1>, vector<16x4xf32>
    %329 = vector.extract_strided_slice %246 {offsets = [5, 0, 0], sizes = [16, 16, 4], strides = [1, 1, 1]} : vector<22x16x4xf32> to vector<16x16x4xf32>
    %330 = vector.shape_cast %328 : vector<16x4xf32> to vector<1x16x4xf32>
    %331 = vector.broadcast %330 : vector<1x16x4xf32> to vector<16x16x4xf32>
    %332 = arith.mulf %329, %331 : vector<16x16x4xf32>
    %333 = arith.addf %320, %332 : vector<16x16x4xf32>
    %334 = vector.extract_strided_slice %6 {offsets = [6, 1, 0], sizes = [1, 1, 4], strides = [1, 1, 1]} : vector<7x7x4xf32> to vector<1x1x4xf32>
    %335 = vector.shape_cast %334 : vector<1x1x4xf32> to vector<4xf32>
    %cst_46 = arith.constant 0.000000e+00 : f32
    %336 = vector.shape_cast %255 : vector<16x1xi1> to vector<16x1xi1>
    %337 = vector.broadcast %336 : vector<16x1xi1> to vector<16x4xi1>
    %338 = vector.shape_cast %335 : vector<4xf32> to vector<1x4xf32>
    %339 = vector.broadcast %338 : vector<1x4xf32> to vector<16x4xf32>
    %340 = vector.broadcast %cst_46 : f32 to vector<16x4xf32>
    %341 = arith.select %337, %339, %340 : vector<16x4xi1>, vector<16x4xf32>
    %342 = vector.extract_strided_slice %246 {offsets = [6, 0, 0], sizes = [16, 16, 4], strides = [1, 1, 1]} : vector<22x16x4xf32> to vector<16x16x4xf32>
    %343 = vector.shape_cast %341 : vector<16x4xf32> to vector<1x16x4xf32>
    %344 = vector.broadcast %343 : vector<1x16x4xf32> to vector<16x16x4xf32>
    %345 = arith.mulf %342, %344 : vector<16x16x4xf32>
    %346 = arith.addf %333, %345 : vector<16x16x4xf32>
    %c1_i32_47 = arith.constant 1 : i32
    %347 = tpu.dynamic_rotate %143 by %c1_i32_47 dim 1 : vector<22x16x4xf32>, i32 -> vector<22x16x4xf32>
    %c-1_i32_48 = arith.constant -1 : i32
    %348 = vector.broadcast %c-1_i32_48 : i32 to vector<16x1xi32>
    %349 = arith.addi %7, %348 : vector<16x1xi32>
    %c0_i32_49 = arith.constant 0 : i32
    %350 = vector.broadcast %c0_i32_49 : i32 to vector<16x1xi32>
    %351 = arith.cmpi sge, %349, %350 : vector<16x1xi32>
    %c-1_i32_50 = arith.constant -1 : i32
    %352 = vector.broadcast %c-1_i32_50 : i32 to vector<16x1xi32>
    %353 = arith.addi %7, %352 : vector<16x1xi32>
    %c16_i32_51 = arith.constant 16 : i32
    %354 = vector.broadcast %c16_i32_51 : i32 to vector<16x1xi32>
    %355 = arith.cmpi slt, %353, %354 : vector<16x1xi32>
    %356 = arith.andi %351, %355 : vector<16x1xi1>
    %357 = vector.extract_strided_slice %6 {offsets = [0, 2, 0], sizes = [1, 1, 4], strides = [1, 1, 1]} : vector<7x7x4xf32> to vector<1x1x4xf32>
    %358 = vector.shape_cast %357 : vector<1x1x4xf32> to vector<4xf32>
    %cst_52 = arith.constant 0.000000e+00 : f32
    %359 = vector.shape_cast %356 : vector<16x1xi1> to vector<16x1xi1>
    %360 = vector.broadcast %359 : vector<16x1xi1> to vector<16x4xi1>
    %361 = vector.shape_cast %358 : vector<4xf32> to vector<1x4xf32>
    %362 = vector.broadcast %361 : vector<1x4xf32> to vector<16x4xf32>
    %363 = vector.broadcast %cst_52 : f32 to vector<16x4xf32>
    %364 = arith.select %360, %362, %363 : vector<16x4xi1>, vector<16x4xf32>
    %365 = vector.extract_strided_slice %347 {offsets = [0, 0, 0], sizes = [16, 16, 4], strides = [1, 1, 1]} : vector<22x16x4xf32> to vector<16x16x4xf32>
    %366 = vector.shape_cast %364 : vector<16x4xf32> to vector<1x16x4xf32>
    %367 = vector.broadcast %366 : vector<1x16x4xf32> to vector<16x16x4xf32>
    %368 = arith.mulf %365, %367 : vector<16x16x4xf32>
    %369 = arith.addf %346, %368 : vector<16x16x4xf32>
    %370 = vector.extract_strided_slice %6 {offsets = [1, 2, 0], sizes = [1, 1, 4], strides = [1, 1, 1]} : vector<7x7x4xf32> to vector<1x1x4xf32>
    %371 = vector.shape_cast %370 : vector<1x1x4xf32> to vector<4xf32>
    %cst_53 = arith.constant 0.000000e+00 : f32
    %372 = vector.shape_cast %356 : vector<16x1xi1> to vector<16x1xi1>
    %373 = vector.broadcast %372 : vector<16x1xi1> to vector<16x4xi1>
    %374 = vector.shape_cast %371 : vector<4xf32> to vector<1x4xf32>
    %375 = vector.broadcast %374 : vector<1x4xf32> to vector<16x4xf32>
    %376 = vector.broadcast %cst_53 : f32 to vector<16x4xf32>
    %377 = arith.select %373, %375, %376 : vector<16x4xi1>, vector<16x4xf32>
    %378 = vector.extract_strided_slice %347 {offsets = [1, 0, 0], sizes = [16, 16, 4], strides = [1, 1, 1]} : vector<22x16x4xf32> to vector<16x16x4xf32>
    %379 = vector.shape_cast %377 : vector<16x4xf32> to vector<1x16x4xf32>
    %380 = vector.broadcast %379 : vector<1x16x4xf32> to vector<16x16x4xf32>
    %381 = arith.mulf %378, %380 : vector<16x16x4xf32>
    %382 = arith.addf %369, %381 : vector<16x16x4xf32>
    %383 = vector.extract_strided_slice %6 {offsets = [2, 2, 0], sizes = [1, 1, 4], strides = [1, 1, 1]} : vector<7x7x4xf32> to vector<1x1x4xf32>
    %384 = vector.shape_cast %383 : vector<1x1x4xf32> to vector<4xf32>
    %cst_54 = arith.constant 0.000000e+00 : f32
    %385 = vector.shape_cast %356 : vector<16x1xi1> to vector<16x1xi1>
    %386 = vector.broadcast %385 : vector<16x1xi1> to vector<16x4xi1>
    %387 = vector.shape_cast %384 : vector<4xf32> to vector<1x4xf32>
    %388 = vector.broadcast %387 : vector<1x4xf32> to vector<16x4xf32>
    %389 = vector.broadcast %cst_54 : f32 to vector<16x4xf32>
    %390 = arith.select %386, %388, %389 : vector<16x4xi1>, vector<16x4xf32>
    %391 = vector.extract_strided_slice %347 {offsets = [2, 0, 0], sizes = [16, 16, 4], strides = [1, 1, 1]} : vector<22x16x4xf32> to vector<16x16x4xf32>
    %392 = vector.shape_cast %390 : vector<16x4xf32> to vector<1x16x4xf32>
    %393 = vector.broadcast %392 : vector<1x16x4xf32> to vector<16x16x4xf32>
    %394 = arith.mulf %391, %393 : vector<16x16x4xf32>
    %395 = arith.addf %382, %394 : vector<16x16x4xf32>
    %396 = vector.extract_strided_slice %6 {offsets = [3, 2, 0], sizes = [1, 1, 4], strides = [1, 1, 1]} : vector<7x7x4xf32> to vector<1x1x4xf32>
    %397 = vector.shape_cast %396 : vector<1x1x4xf32> to vector<4xf32>
    %cst_55 = arith.constant 0.000000e+00 : f32
    %398 = vector.shape_cast %356 : vector<16x1xi1> to vector<16x1xi1>
    %399 = vector.broadcast %398 : vector<16x1xi1> to vector<16x4xi1>
    %400 = vector.shape_cast %397 : vector<4xf32> to vector<1x4xf32>
    %401 = vector.broadcast %400 : vector<1x4xf32> to vector<16x4xf32>
    %402 = vector.broadcast %cst_55 : f32 to vector<16x4xf32>
    %403 = arith.select %399, %401, %402 : vector<16x4xi1>, vector<16x4xf32>
    %404 = vector.extract_strided_slice %347 {offsets = [3, 0, 0], sizes = [16, 16, 4], strides = [1, 1, 1]} : vector<22x16x4xf32> to vector<16x16x4xf32>
    %405 = vector.shape_cast %403 : vector<16x4xf32> to vector<1x16x4xf32>
    %406 = vector.broadcast %405 : vector<1x16x4xf32> to vector<16x16x4xf32>
    %407 = arith.mulf %404, %406 : vector<16x16x4xf32>
    %408 = arith.addf %395, %407 : vector<16x16x4xf32>
    %409 = vector.extract_strided_slice %6 {offsets = [4, 2, 0], sizes = [1, 1, 4], strides = [1, 1, 1]} : vector<7x7x4xf32> to vector<1x1x4xf32>
    %410 = vector.shape_cast %409 : vector<1x1x4xf32> to vector<4xf32>
    %cst_56 = arith.constant 0.000000e+00 : f32
    %411 = vector.shape_cast %356 : vector<16x1xi1> to vector<16x1xi1>
    %412 = vector.broadcast %411 : vector<16x1xi1> to vector<16x4xi1>
    %413 = vector.shape_cast %410 : vector<4xf32> to vector<1x4xf32>
    %414 = vector.broadcast %413 : vector<1x4xf32> to vector<16x4xf32>
    %415 = vector.broadcast %cst_56 : f32 to vector<16x4xf32>
    %416 = arith.select %412, %414, %415 : vector<16x4xi1>, vector<16x4xf32>
    %417 = vector.extract_strided_slice %347 {offsets = [4, 0, 0], sizes = [16, 16, 4], strides = [1, 1, 1]} : vector<22x16x4xf32> to vector<16x16x4xf32>
    %418 = vector.shape_cast %416 : vector<16x4xf32> to vector<1x16x4xf32>
    %419 = vector.broadcast %418 : vector<1x16x4xf32> to vector<16x16x4xf32>
    %420 = arith.mulf %417, %419 : vector<16x16x4xf32>
    %421 = arith.addf %408, %420 : vector<16x16x4xf32>
    %422 = vector.extract_strided_slice %6 {offsets = [5, 2, 0], sizes = [1, 1, 4], strides = [1, 1, 1]} : vector<7x7x4xf32> to vector<1x1x4xf32>
    %423 = vector.shape_cast %422 : vector<1x1x4xf32> to vector<4xf32>
    %cst_57 = arith.constant 0.000000e+00 : f32
    %424 = vector.shape_cast %356 : vector<16x1xi1> to vector<16x1xi1>
    %425 = vector.broadcast %424 : vector<16x1xi1> to vector<16x4xi1>
    %426 = vector.shape_cast %423 : vector<4xf32> to vector<1x4xf32>
    %427 = vector.broadcast %426 : vector<1x4xf32> to vector<16x4xf32>
    %428 = vector.broadcast %cst_57 : f32 to vector<16x4xf32>
    %429 = arith.select %425, %427, %428 : vector<16x4xi1>, vector<16x4xf32>
    %430 = vector.extract_strided_slice %347 {offsets = [5, 0, 0], sizes = [16, 16, 4], strides = [1, 1, 1]} : vector<22x16x4xf32> to vector<16x16x4xf32>
    %431 = vector.shape_cast %429 : vector<16x4xf32> to vector<1x16x4xf32>
    %432 = vector.broadcast %431 : vector<1x16x4xf32> to vector<16x16x4xf32>
    %433 = arith.mulf %430, %432 : vector<16x16x4xf32>
    %434 = arith.addf %421, %433 : vector<16x16x4xf32>
    %435 = vector.extract_strided_slice %6 {offsets = [6, 2, 0], sizes = [1, 1, 4], strides = [1, 1, 1]} : vector<7x7x4xf32> to vector<1x1x4xf32>
    %436 = vector.shape_cast %435 : vector<1x1x4xf32> to vector<4xf32>
    %cst_58 = arith.constant 0.000000e+00 : f32
    %437 = vector.shape_cast %356 : vector<16x1xi1> to vector<16x1xi1>
    %438 = vector.broadcast %437 : vector<16x1xi1> to vector<16x4xi1>
    %439 = vector.shape_cast %436 : vector<4xf32> to vector<1x4xf32>
    %440 = vector.broadcast %439 : vector<1x4xf32> to vector<16x4xf32>
    %441 = vector.broadcast %cst_58 : f32 to vector<16x4xf32>
    %442 = arith.select %438, %440, %441 : vector<16x4xi1>, vector<16x4xf32>
    %443 = vector.extract_strided_slice %347 {offsets = [6, 0, 0], sizes = [16, 16, 4], strides = [1, 1, 1]} : vector<22x16x4xf32> to vector<16x16x4xf32>
    %444 = vector.shape_cast %442 : vector<16x4xf32> to vector<1x16x4xf32>
    %445 = vector.broadcast %444 : vector<1x16x4xf32> to vector<16x16x4xf32>
    %446 = arith.mulf %443, %445 : vector<16x16x4xf32>
    %447 = arith.addf %434, %446 : vector<16x16x4xf32>
    %448 = vector.extract_strided_slice %6 {offsets = [0, 3, 0], sizes = [1, 1, 4], strides = [1, 1, 1]} : vector<7x7x4xf32> to vector<1x1x4xf32>
    %449 = vector.shape_cast %448 : vector<1x1x4xf32> to vector<4xf32>
    %450 = vector.extract_strided_slice %143 {offsets = [0, 0, 0], sizes = [16, 16, 4], strides = [1, 1, 1]} : vector<22x16x4xf32> to vector<16x16x4xf32>
    %451 = vector.shape_cast %449 : vector<4xf32> to vector<1x1x4xf32>
    %452 = vector.broadcast %451 : vector<1x1x4xf32> to vector<16x16x4xf32>
    %453 = arith.mulf %450, %452 : vector<16x16x4xf32>
    %454 = arith.addf %447, %453 : vector<16x16x4xf32>
    %455 = vector.extract_strided_slice %6 {offsets = [1, 3, 0], sizes = [1, 1, 4], strides = [1, 1, 1]} : vector<7x7x4xf32> to vector<1x1x4xf32>
    %456 = vector.shape_cast %455 : vector<1x1x4xf32> to vector<4xf32>
    %457 = vector.extract_strided_slice %143 {offsets = [1, 0, 0], sizes = [16, 16, 4], strides = [1, 1, 1]} : vector<22x16x4xf32> to vector<16x16x4xf32>
    %458 = vector.shape_cast %456 : vector<4xf32> to vector<1x1x4xf32>
    %459 = vector.broadcast %458 : vector<1x1x4xf32> to vector<16x16x4xf32>
    %460 = arith.mulf %457, %459 : vector<16x16x4xf32>
    %461 = arith.addf %454, %460 : vector<16x16x4xf32>
    %462 = vector.extract_strided_slice %6 {offsets = [2, 3, 0], sizes = [1, 1, 4], strides = [1, 1, 1]} : vector<7x7x4xf32> to vector<1x1x4xf32>
    %463 = vector.shape_cast %462 : vector<1x1x4xf32> to vector<4xf32>
    %464 = vector.extract_strided_slice %143 {offsets = [2, 0, 0], sizes = [16, 16, 4], strides = [1, 1, 1]} : vector<22x16x4xf32> to vector<16x16x4xf32>
    %465 = vector.shape_cast %463 : vector<4xf32> to vector<1x1x4xf32>
    %466 = vector.broadcast %465 : vector<1x1x4xf32> to vector<16x16x4xf32>
    %467 = arith.mulf %464, %466 : vector<16x16x4xf32>
    %468 = arith.addf %461, %467 : vector<16x16x4xf32>
    %469 = vector.extract_strided_slice %6 {offsets = [3, 3, 0], sizes = [1, 1, 4], strides = [1, 1, 1]} : vector<7x7x4xf32> to vector<1x1x4xf32>
    %470 = vector.shape_cast %469 : vector<1x1x4xf32> to vector<4xf32>
    %471 = vector.extract_strided_slice %143 {offsets = [3, 0, 0], sizes = [16, 16, 4], strides = [1, 1, 1]} : vector<22x16x4xf32> to vector<16x16x4xf32>
    %472 = vector.shape_cast %470 : vector<4xf32> to vector<1x1x4xf32>
    %473 = vector.broadcast %472 : vector<1x1x4xf32> to vector<16x16x4xf32>
    %474 = arith.mulf %471, %473 : vector<16x16x4xf32>
    %475 = arith.addf %468, %474 : vector<16x16x4xf32>
    %476 = vector.extract_strided_slice %6 {offsets = [4, 3, 0], sizes = [1, 1, 4], strides = [1, 1, 1]} : vector<7x7x4xf32> to vector<1x1x4xf32>
    %477 = vector.shape_cast %476 : vector<1x1x4xf32> to vector<4xf32>
    %478 = vector.extract_strided_slice %143 {offsets = [4, 0, 0], sizes = [16, 16, 4], strides = [1, 1, 1]} : vector<22x16x4xf32> to vector<16x16x4xf32>
    %479 = vector.shape_cast %477 : vector<4xf32> to vector<1x1x4xf32>
    %480 = vector.broadcast %479 : vector<1x1x4xf32> to vector<16x16x4xf32>
    %481 = arith.mulf %478, %480 : vector<16x16x4xf32>
    %482 = arith.addf %475, %481 : vector<16x16x4xf32>
    %483 = vector.extract_strided_slice %6 {offsets = [5, 3, 0], sizes = [1, 1, 4], strides = [1, 1, 1]} : vector<7x7x4xf32> to vector<1x1x4xf32>
    %484 = vector.shape_cast %483 : vector<1x1x4xf32> to vector<4xf32>
    %485 = vector.extract_strided_slice %143 {offsets = [5, 0, 0], sizes = [16, 16, 4], strides = [1, 1, 1]} : vector<22x16x4xf32> to vector<16x16x4xf32>
    %486 = vector.shape_cast %484 : vector<4xf32> to vector<1x1x4xf32>
    %487 = vector.broadcast %486 : vector<1x1x4xf32> to vector<16x16x4xf32>
    %488 = arith.mulf %485, %487 : vector<16x16x4xf32>
    %489 = arith.addf %482, %488 : vector<16x16x4xf32>
    %490 = vector.extract_strided_slice %6 {offsets = [6, 3, 0], sizes = [1, 1, 4], strides = [1, 1, 1]} : vector<7x7x4xf32> to vector<1x1x4xf32>
    %491 = vector.shape_cast %490 : vector<1x1x4xf32> to vector<4xf32>
    %492 = vector.extract_strided_slice %143 {offsets = [6, 0, 0], sizes = [16, 16, 4], strides = [1, 1, 1]} : vector<22x16x4xf32> to vector<16x16x4xf32>
    %493 = vector.shape_cast %491 : vector<4xf32> to vector<1x1x4xf32>
    %494 = vector.broadcast %493 : vector<1x1x4xf32> to vector<16x16x4xf32>
    %495 = arith.mulf %492, %494 : vector<16x16x4xf32>
    %496 = arith.addf %489, %495 : vector<16x16x4xf32>
    %c15_i32_59 = arith.constant 15 : i32
    %497 = tpu.dynamic_rotate %143 by %c15_i32_59 dim 1 : vector<22x16x4xf32>, i32 -> vector<22x16x4xf32>
    %c1_i32_60 = arith.constant 1 : i32
    %498 = vector.broadcast %c1_i32_60 : i32 to vector<16x1xi32>
    %499 = arith.addi %7, %498 : vector<16x1xi32>
    %c0_i32_61 = arith.constant 0 : i32
    %500 = vector.broadcast %c0_i32_61 : i32 to vector<16x1xi32>
    %501 = arith.cmpi sge, %499, %500 : vector<16x1xi32>
    %c1_i32_62 = arith.constant 1 : i32
    %502 = vector.broadcast %c1_i32_62 : i32 to vector<16x1xi32>
    %503 = arith.addi %7, %502 : vector<16x1xi32>
    %c16_i32_63 = arith.constant 16 : i32
    %504 = vector.broadcast %c16_i32_63 : i32 to vector<16x1xi32>
    %505 = arith.cmpi slt, %503, %504 : vector<16x1xi32>
    %506 = arith.andi %501, %505 : vector<16x1xi1>
    %507 = vector.extract_strided_slice %6 {offsets = [0, 4, 0], sizes = [1, 1, 4], strides = [1, 1, 1]} : vector<7x7x4xf32> to vector<1x1x4xf32>
    %508 = vector.shape_cast %507 : vector<1x1x4xf32> to vector<4xf32>
    %cst_64 = arith.constant 0.000000e+00 : f32
    %509 = vector.shape_cast %506 : vector<16x1xi1> to vector<16x1xi1>
    %510 = vector.broadcast %509 : vector<16x1xi1> to vector<16x4xi1>
    %511 = vector.shape_cast %508 : vector<4xf32> to vector<1x4xf32>
    %512 = vector.broadcast %511 : vector<1x4xf32> to vector<16x4xf32>
    %513 = vector.broadcast %cst_64 : f32 to vector<16x4xf32>
    %514 = arith.select %510, %512, %513 : vector<16x4xi1>, vector<16x4xf32>
    %515 = vector.extract_strided_slice %497 {offsets = [0, 0, 0], sizes = [16, 16, 4], strides = [1, 1, 1]} : vector<22x16x4xf32> to vector<16x16x4xf32>
    %516 = vector.shape_cast %514 : vector<16x4xf32> to vector<1x16x4xf32>
    %517 = vector.broadcast %516 : vector<1x16x4xf32> to vector<16x16x4xf32>
    %518 = arith.mulf %515, %517 : vector<16x16x4xf32>
    %519 = arith.addf %496, %518 : vector<16x16x4xf32>
    %520 = vector.extract_strided_slice %6 {offsets = [1, 4, 0], sizes = [1, 1, 4], strides = [1, 1, 1]} : vector<7x7x4xf32> to vector<1x1x4xf32>
    %521 = vector.shape_cast %520 : vector<1x1x4xf32> to vector<4xf32>
    %cst_65 = arith.constant 0.000000e+00 : f32
    %522 = vector.shape_cast %506 : vector<16x1xi1> to vector<16x1xi1>
    %523 = vector.broadcast %522 : vector<16x1xi1> to vector<16x4xi1>
    %524 = vector.shape_cast %521 : vector<4xf32> to vector<1x4xf32>
    %525 = vector.broadcast %524 : vector<1x4xf32> to vector<16x4xf32>
    %526 = vector.broadcast %cst_65 : f32 to vector<16x4xf32>
    %527 = arith.select %523, %525, %526 : vector<16x4xi1>, vector<16x4xf32>
    %528 = vector.extract_strided_slice %497 {offsets = [1, 0, 0], sizes = [16, 16, 4], strides = [1, 1, 1]} : vector<22x16x4xf32> to vector<16x16x4xf32>
    %529 = vector.shape_cast %527 : vector<16x4xf32> to vector<1x16x4xf32>
    %530 = vector.broadcast %529 : vector<1x16x4xf32> to vector<16x16x4xf32>
    %531 = arith.mulf %528, %530 : vector<16x16x4xf32>
    %532 = arith.addf %519, %531 : vector<16x16x4xf32>
    %533 = vector.extract_strided_slice %6 {offsets = [2, 4, 0], sizes = [1, 1, 4], strides = [1, 1, 1]} : vector<7x7x4xf32> to vector<1x1x4xf32>
    %534 = vector.shape_cast %533 : vector<1x1x4xf32> to vector<4xf32>
    %cst_66 = arith.constant 0.000000e+00 : f32
    %535 = vector.shape_cast %506 : vector<16x1xi1> to vector<16x1xi1>
    %536 = vector.broadcast %535 : vector<16x1xi1> to vector<16x4xi1>
    %537 = vector.shape_cast %534 : vector<4xf32> to vector<1x4xf32>
    %538 = vector.broadcast %537 : vector<1x4xf32> to vector<16x4xf32>
    %539 = vector.broadcast %cst_66 : f32 to vector<16x4xf32>
    %540 = arith.select %536, %538, %539 : vector<16x4xi1>, vector<16x4xf32>
    %541 = vector.extract_strided_slice %497 {offsets = [2, 0, 0], sizes = [16, 16, 4], strides = [1, 1, 1]} : vector<22x16x4xf32> to vector<16x16x4xf32>
    %542 = vector.shape_cast %540 : vector<16x4xf32> to vector<1x16x4xf32>
    %543 = vector.broadcast %542 : vector<1x16x4xf32> to vector<16x16x4xf32>
    %544 = arith.mulf %541, %543 : vector<16x16x4xf32>
    %545 = arith.addf %532, %544 : vector<16x16x4xf32>
    %546 = vector.extract_strided_slice %6 {offsets = [3, 4, 0], sizes = [1, 1, 4], strides = [1, 1, 1]} : vector<7x7x4xf32> to vector<1x1x4xf32>
    %547 = vector.shape_cast %546 : vector<1x1x4xf32> to vector<4xf32>
    %cst_67 = arith.constant 0.000000e+00 : f32
    %548 = vector.shape_cast %506 : vector<16x1xi1> to vector<16x1xi1>
    %549 = vector.broadcast %548 : vector<16x1xi1> to vector<16x4xi1>
    %550 = vector.shape_cast %547 : vector<4xf32> to vector<1x4xf32>
    %551 = vector.broadcast %550 : vector<1x4xf32> to vector<16x4xf32>
    %552 = vector.broadcast %cst_67 : f32 to vector<16x4xf32>
    %553 = arith.select %549, %551, %552 : vector<16x4xi1>, vector<16x4xf32>
    %554 = vector.extract_strided_slice %497 {offsets = [3, 0, 0], sizes = [16, 16, 4], strides = [1, 1, 1]} : vector<22x16x4xf32> to vector<16x16x4xf32>
    %555 = vector.shape_cast %553 : vector<16x4xf32> to vector<1x16x4xf32>
    %556 = vector.broadcast %555 : vector<1x16x4xf32> to vector<16x16x4xf32>
    %557 = arith.mulf %554, %556 : vector<16x16x4xf32>
    %558 = arith.addf %545, %557 : vector<16x16x4xf32>
    %559 = vector.extract_strided_slice %6 {offsets = [4, 4, 0], sizes = [1, 1, 4], strides = [1, 1, 1]} : vector<7x7x4xf32> to vector<1x1x4xf32>
    %560 = vector.shape_cast %559 : vector<1x1x4xf32> to vector<4xf32>
    %cst_68 = arith.constant 0.000000e+00 : f32
    %561 = vector.shape_cast %506 : vector<16x1xi1> to vector<16x1xi1>
    %562 = vector.broadcast %561 : vector<16x1xi1> to vector<16x4xi1>
    %563 = vector.shape_cast %560 : vector<4xf32> to vector<1x4xf32>
    %564 = vector.broadcast %563 : vector<1x4xf32> to vector<16x4xf32>
    %565 = vector.broadcast %cst_68 : f32 to vector<16x4xf32>
    %566 = arith.select %562, %564, %565 : vector<16x4xi1>, vector<16x4xf32>
    %567 = vector.extract_strided_slice %497 {offsets = [4, 0, 0], sizes = [16, 16, 4], strides = [1, 1, 1]} : vector<22x16x4xf32> to vector<16x16x4xf32>
    %568 = vector.shape_cast %566 : vector<16x4xf32> to vector<1x16x4xf32>
    %569 = vector.broadcast %568 : vector<1x16x4xf32> to vector<16x16x4xf32>
    %570 = arith.mulf %567, %569 : vector<16x16x4xf32>
    %571 = arith.addf %558, %570 : vector<16x16x4xf32>
    %572 = vector.extract_strided_slice %6 {offsets = [5, 4, 0], sizes = [1, 1, 4], strides = [1, 1, 1]} : vector<7x7x4xf32> to vector<1x1x4xf32>
    %573 = vector.shape_cast %572 : vector<1x1x4xf32> to vector<4xf32>
    %cst_69 = arith.constant 0.000000e+00 : f32
    %574 = vector.shape_cast %506 : vector<16x1xi1> to vector<16x1xi1>
    %575 = vector.broadcast %574 : vector<16x1xi1> to vector<16x4xi1>
    %576 = vector.shape_cast %573 : vector<4xf32> to vector<1x4xf32>
    %577 = vector.broadcast %576 : vector<1x4xf32> to vector<16x4xf32>
    %578 = vector.broadcast %cst_69 : f32 to vector<16x4xf32>
    %579 = arith.select %575, %577, %578 : vector<16x4xi1>, vector<16x4xf32>
    %580 = vector.extract_strided_slice %497 {offsets = [5, 0, 0], sizes = [16, 16, 4], strides = [1, 1, 1]} : vector<22x16x4xf32> to vector<16x16x4xf32>
    %581 = vector.shape_cast %579 : vector<16x4xf32> to vector<1x16x4xf32>
    %582 = vector.broadcast %581 : vector<1x16x4xf32> to vector<16x16x4xf32>
    %583 = arith.mulf %580, %582 : vector<16x16x4xf32>
    %584 = arith.addf %571, %583 : vector<16x16x4xf32>
    %585 = vector.extract_strided_slice %6 {offsets = [6, 4, 0], sizes = [1, 1, 4], strides = [1, 1, 1]} : vector<7x7x4xf32> to vector<1x1x4xf32>
    %586 = vector.shape_cast %585 : vector<1x1x4xf32> to vector<4xf32>
    %cst_70 = arith.constant 0.000000e+00 : f32
    %587 = vector.shape_cast %506 : vector<16x1xi1> to vector<16x1xi1>
    %588 = vector.broadcast %587 : vector<16x1xi1> to vector<16x4xi1>
    %589 = vector.shape_cast %586 : vector<4xf32> to vector<1x4xf32>
    %590 = vector.broadcast %589 : vector<1x4xf32> to vector<16x4xf32>
    %591 = vector.broadcast %cst_70 : f32 to vector<16x4xf32>
    %592 = arith.select %588, %590, %591 : vector<16x4xi1>, vector<16x4xf32>
    %593 = vector.extract_strided_slice %497 {offsets = [6, 0, 0], sizes = [16, 16, 4], strides = [1, 1, 1]} : vector<22x16x4xf32> to vector<16x16x4xf32>
    %594 = vector.shape_cast %592 : vector<16x4xf32> to vector<1x16x4xf32>
    %595 = vector.broadcast %594 : vector<1x16x4xf32> to vector<16x16x4xf32>
    %596 = arith.mulf %593, %595 : vector<16x16x4xf32>
    %597 = arith.addf %584, %596 : vector<16x16x4xf32>
    %c14_i32 = arith.constant 14 : i32
    %598 = tpu.dynamic_rotate %143 by %c14_i32 dim 1 : vector<22x16x4xf32>, i32 -> vector<22x16x4xf32>
    %c2_i32_71 = arith.constant 2 : i32
    %599 = vector.broadcast %c2_i32_71 : i32 to vector<16x1xi32>
    %600 = arith.addi %7, %599 : vector<16x1xi32>
    %c0_i32_72 = arith.constant 0 : i32
    %601 = vector.broadcast %c0_i32_72 : i32 to vector<16x1xi32>
    %602 = arith.cmpi sge, %600, %601 : vector<16x1xi32>
    %c2_i32_73 = arith.constant 2 : i32
    %603 = vector.broadcast %c2_i32_73 : i32 to vector<16x1xi32>
    %604 = arith.addi %7, %603 : vector<16x1xi32>
    %c16_i32_74 = arith.constant 16 : i32
    %605 = vector.broadcast %c16_i32_74 : i32 to vector<16x1xi32>
    %606 = arith.cmpi slt, %604, %605 : vector<16x1xi32>
    %607 = arith.andi %602, %606 : vector<16x1xi1>
    %608 = vector.extract_strided_slice %6 {offsets = [0, 5, 0], sizes = [1, 1, 4], strides = [1, 1, 1]} : vector<7x7x4xf32> to vector<1x1x4xf32>
    %609 = vector.shape_cast %608 : vector<1x1x4xf32> to vector<4xf32>
    %cst_75 = arith.constant 0.000000e+00 : f32
    %610 = vector.shape_cast %607 : vector<16x1xi1> to vector<16x1xi1>
    %611 = vector.broadcast %610 : vector<16x1xi1> to vector<16x4xi1>
    %612 = vector.shape_cast %609 : vector<4xf32> to vector<1x4xf32>
    %613 = vector.broadcast %612 : vector<1x4xf32> to vector<16x4xf32>
    %614 = vector.broadcast %cst_75 : f32 to vector<16x4xf32>
    %615 = arith.select %611, %613, %614 : vector<16x4xi1>, vector<16x4xf32>
    %616 = vector.extract_strided_slice %598 {offsets = [0, 0, 0], sizes = [16, 16, 4], strides = [1, 1, 1]} : vector<22x16x4xf32> to vector<16x16x4xf32>
    %617 = vector.shape_cast %615 : vector<16x4xf32> to vector<1x16x4xf32>
    %618 = vector.broadcast %617 : vector<1x16x4xf32> to vector<16x16x4xf32>
    %619 = arith.mulf %616, %618 : vector<16x16x4xf32>
    %620 = arith.addf %597, %619 : vector<16x16x4xf32>
    %621 = vector.extract_strided_slice %6 {offsets = [1, 5, 0], sizes = [1, 1, 4], strides = [1, 1, 1]} : vector<7x7x4xf32> to vector<1x1x4xf32>
    %622 = vector.shape_cast %621 : vector<1x1x4xf32> to vector<4xf32>
    %cst_76 = arith.constant 0.000000e+00 : f32
    %623 = vector.shape_cast %607 : vector<16x1xi1> to vector<16x1xi1>
    %624 = vector.broadcast %623 : vector<16x1xi1> to vector<16x4xi1>
    %625 = vector.shape_cast %622 : vector<4xf32> to vector<1x4xf32>
    %626 = vector.broadcast %625 : vector<1x4xf32> to vector<16x4xf32>
    %627 = vector.broadcast %cst_76 : f32 to vector<16x4xf32>
    %628 = arith.select %624, %626, %627 : vector<16x4xi1>, vector<16x4xf32>
    %629 = vector.extract_strided_slice %598 {offsets = [1, 0, 0], sizes = [16, 16, 4], strides = [1, 1, 1]} : vector<22x16x4xf32> to vector<16x16x4xf32>
    %630 = vector.shape_cast %628 : vector<16x4xf32> to vector<1x16x4xf32>
    %631 = vector.broadcast %630 : vector<1x16x4xf32> to vector<16x16x4xf32>
    %632 = arith.mulf %629, %631 : vector<16x16x4xf32>
    %633 = arith.addf %620, %632 : vector<16x16x4xf32>
    %634 = vector.extract_strided_slice %6 {offsets = [2, 5, 0], sizes = [1, 1, 4], strides = [1, 1, 1]} : vector<7x7x4xf32> to vector<1x1x4xf32>
    %635 = vector.shape_cast %634 : vector<1x1x4xf32> to vector<4xf32>
    %cst_77 = arith.constant 0.000000e+00 : f32
    %636 = vector.shape_cast %607 : vector<16x1xi1> to vector<16x1xi1>
    %637 = vector.broadcast %636 : vector<16x1xi1> to vector<16x4xi1>
    %638 = vector.shape_cast %635 : vector<4xf32> to vector<1x4xf32>
    %639 = vector.broadcast %638 : vector<1x4xf32> to vector<16x4xf32>
    %640 = vector.broadcast %cst_77 : f32 to vector<16x4xf32>
    %641 = arith.select %637, %639, %640 : vector<16x4xi1>, vector<16x4xf32>
    %642 = vector.extract_strided_slice %598 {offsets = [2, 0, 0], sizes = [16, 16, 4], strides = [1, 1, 1]} : vector<22x16x4xf32> to vector<16x16x4xf32>
    %643 = vector.shape_cast %641 : vector<16x4xf32> to vector<1x16x4xf32>
    %644 = vector.broadcast %643 : vector<1x16x4xf32> to vector<16x16x4xf32>
    %645 = arith.mulf %642, %644 : vector<16x16x4xf32>
    %646 = arith.addf %633, %645 : vector<16x16x4xf32>
    %647 = vector.extract_strided_slice %6 {offsets = [3, 5, 0], sizes = [1, 1, 4], strides = [1, 1, 1]} : vector<7x7x4xf32> to vector<1x1x4xf32>
    %648 = vector.shape_cast %647 : vector<1x1x4xf32> to vector<4xf32>
    %cst_78 = arith.constant 0.000000e+00 : f32
    %649 = vector.shape_cast %607 : vector<16x1xi1> to vector<16x1xi1>
    %650 = vector.broadcast %649 : vector<16x1xi1> to vector<16x4xi1>
    %651 = vector.shape_cast %648 : vector<4xf32> to vector<1x4xf32>
    %652 = vector.broadcast %651 : vector<1x4xf32> to vector<16x4xf32>
    %653 = vector.broadcast %cst_78 : f32 to vector<16x4xf32>
    %654 = arith.select %650, %652, %653 : vector<16x4xi1>, vector<16x4xf32>
    %655 = vector.extract_strided_slice %598 {offsets = [3, 0, 0], sizes = [16, 16, 4], strides = [1, 1, 1]} : vector<22x16x4xf32> to vector<16x16x4xf32>
    %656 = vector.shape_cast %654 : vector<16x4xf32> to vector<1x16x4xf32>
    %657 = vector.broadcast %656 : vector<1x16x4xf32> to vector<16x16x4xf32>
    %658 = arith.mulf %655, %657 : vector<16x16x4xf32>
    %659 = arith.addf %646, %658 : vector<16x16x4xf32>
    %660 = vector.extract_strided_slice %6 {offsets = [4, 5, 0], sizes = [1, 1, 4], strides = [1, 1, 1]} : vector<7x7x4xf32> to vector<1x1x4xf32>
    %661 = vector.shape_cast %660 : vector<1x1x4xf32> to vector<4xf32>
    %cst_79 = arith.constant 0.000000e+00 : f32
    %662 = vector.shape_cast %607 : vector<16x1xi1> to vector<16x1xi1>
    %663 = vector.broadcast %662 : vector<16x1xi1> to vector<16x4xi1>
    %664 = vector.shape_cast %661 : vector<4xf32> to vector<1x4xf32>
    %665 = vector.broadcast %664 : vector<1x4xf32> to vector<16x4xf32>
    %666 = vector.broadcast %cst_79 : f32 to vector<16x4xf32>
    %667 = arith.select %663, %665, %666 : vector<16x4xi1>, vector<16x4xf32>
    %668 = vector.extract_strided_slice %598 {offsets = [4, 0, 0], sizes = [16, 16, 4], strides = [1, 1, 1]} : vector<22x16x4xf32> to vector<16x16x4xf32>
    %669 = vector.shape_cast %667 : vector<16x4xf32> to vector<1x16x4xf32>
    %670 = vector.broadcast %669 : vector<1x16x4xf32> to vector<16x16x4xf32>
    %671 = arith.mulf %668, %670 : vector<16x16x4xf32>
    %672 = arith.addf %659, %671 : vector<16x16x4xf32>
    %673 = vector.extract_strided_slice %6 {offsets = [5, 5, 0], sizes = [1, 1, 4], strides = [1, 1, 1]} : vector<7x7x4xf32> to vector<1x1x4xf32>
    %674 = vector.shape_cast %673 : vector<1x1x4xf32> to vector<4xf32>
    %cst_80 = arith.constant 0.000000e+00 : f32
    %675 = vector.shape_cast %607 : vector<16x1xi1> to vector<16x1xi1>
    %676 = vector.broadcast %675 : vector<16x1xi1> to vector<16x4xi1>
    %677 = vector.shape_cast %674 : vector<4xf32> to vector<1x4xf32>
    %678 = vector.broadcast %677 : vector<1x4xf32> to vector<16x4xf32>
    %679 = vector.broadcast %cst_80 : f32 to vector<16x4xf32>
    %680 = arith.select %676, %678, %679 : vector<16x4xi1>, vector<16x4xf32>
    %681 = vector.extract_strided_slice %598 {offsets = [5, 0, 0], sizes = [16, 16, 4], strides = [1, 1, 1]} : vector<22x16x4xf32> to vector<16x16x4xf32>
    %682 = vector.shape_cast %680 : vector<16x4xf32> to vector<1x16x4xf32>
    %683 = vector.broadcast %682 : vector<1x16x4xf32> to vector<16x16x4xf32>
    %684 = arith.mulf %681, %683 : vector<16x16x4xf32>
    %685 = arith.addf %672, %684 : vector<16x16x4xf32>
    %686 = vector.extract_strided_slice %6 {offsets = [6, 5, 0], sizes = [1, 1, 4], strides = [1, 1, 1]} : vector<7x7x4xf32> to vector<1x1x4xf32>
    %687 = vector.shape_cast %686 : vector<1x1x4xf32> to vector<4xf32>
    %cst_81 = arith.constant 0.000000e+00 : f32
    %688 = vector.shape_cast %607 : vector<16x1xi1> to vector<16x1xi1>
    %689 = vector.broadcast %688 : vector<16x1xi1> to vector<16x4xi1>
    %690 = vector.shape_cast %687 : vector<4xf32> to vector<1x4xf32>
    %691 = vector.broadcast %690 : vector<1x4xf32> to vector<16x4xf32>
    %692 = vector.broadcast %cst_81 : f32 to vector<16x4xf32>
    %693 = arith.select %689, %691, %692 : vector<16x4xi1>, vector<16x4xf32>
    %694 = vector.extract_strided_slice %598 {offsets = [6, 0, 0], sizes = [16, 16, 4], strides = [1, 1, 1]} : vector<22x16x4xf32> to vector<16x16x4xf32>
    %695 = vector.shape_cast %693 : vector<16x4xf32> to vector<1x16x4xf32>
    %696 = vector.broadcast %695 : vector<1x16x4xf32> to vector<16x16x4xf32>
    %697 = arith.mulf %694, %696 : vector<16x16x4xf32>
    %698 = arith.addf %685, %697 : vector<16x16x4xf32>
    %c13_i32 = arith.constant 13 : i32
    %699 = tpu.dynamic_rotate %143 by %c13_i32 dim 1 : vector<22x16x4xf32>, i32 -> vector<22x16x4xf32>
    %c3_i32_82 = arith.constant 3 : i32
    %700 = vector.broadcast %c3_i32_82 : i32 to vector<16x1xi32>
    %701 = arith.addi %7, %700 : vector<16x1xi32>
    %c0_i32_83 = arith.constant 0 : i32
    %702 = vector.broadcast %c0_i32_83 : i32 to vector<16x1xi32>
    %703 = arith.cmpi sge, %701, %702 : vector<16x1xi32>
    %c3_i32_84 = arith.constant 3 : i32
    %704 = vector.broadcast %c3_i32_84 : i32 to vector<16x1xi32>
    %705 = arith.addi %7, %704 : vector<16x1xi32>
    %c16_i32_85 = arith.constant 16 : i32
    %706 = vector.broadcast %c16_i32_85 : i32 to vector<16x1xi32>
    %707 = arith.cmpi slt, %705, %706 : vector<16x1xi32>
    %708 = arith.andi %703, %707 : vector<16x1xi1>
    %709 = vector.extract_strided_slice %6 {offsets = [0, 6, 0], sizes = [1, 1, 4], strides = [1, 1, 1]} : vector<7x7x4xf32> to vector<1x1x4xf32>
    %710 = vector.shape_cast %709 : vector<1x1x4xf32> to vector<4xf32>
    %cst_86 = arith.constant 0.000000e+00 : f32
    %711 = vector.shape_cast %708 : vector<16x1xi1> to vector<16x1xi1>
    %712 = vector.broadcast %711 : vector<16x1xi1> to vector<16x4xi1>
    %713 = vector.shape_cast %710 : vector<4xf32> to vector<1x4xf32>
    %714 = vector.broadcast %713 : vector<1x4xf32> to vector<16x4xf32>
    %715 = vector.broadcast %cst_86 : f32 to vector<16x4xf32>
    %716 = arith.select %712, %714, %715 : vector<16x4xi1>, vector<16x4xf32>
    %717 = vector.extract_strided_slice %699 {offsets = [0, 0, 0], sizes = [16, 16, 4], strides = [1, 1, 1]} : vector<22x16x4xf32> to vector<16x16x4xf32>
    %718 = vector.shape_cast %716 : vector<16x4xf32> to vector<1x16x4xf32>
    %719 = vector.broadcast %718 : vector<1x16x4xf32> to vector<16x16x4xf32>
    %720 = arith.mulf %717, %719 : vector<16x16x4xf32>
    %721 = arith.addf %698, %720 : vector<16x16x4xf32>
    %722 = vector.extract_strided_slice %6 {offsets = [1, 6, 0], sizes = [1, 1, 4], strides = [1, 1, 1]} : vector<7x7x4xf32> to vector<1x1x4xf32>
    %723 = vector.shape_cast %722 : vector<1x1x4xf32> to vector<4xf32>
    %cst_87 = arith.constant 0.000000e+00 : f32
    %724 = vector.shape_cast %708 : vector<16x1xi1> to vector<16x1xi1>
    %725 = vector.broadcast %724 : vector<16x1xi1> to vector<16x4xi1>
    %726 = vector.shape_cast %723 : vector<4xf32> to vector<1x4xf32>
    %727 = vector.broadcast %726 : vector<1x4xf32> to vector<16x4xf32>
    %728 = vector.broadcast %cst_87 : f32 to vector<16x4xf32>
    %729 = arith.select %725, %727, %728 : vector<16x4xi1>, vector<16x4xf32>
    %730 = vector.extract_strided_slice %699 {offsets = [1, 0, 0], sizes = [16, 16, 4], strides = [1, 1, 1]} : vector<22x16x4xf32> to vector<16x16x4xf32>
    %731 = vector.shape_cast %729 : vector<16x4xf32> to vector<1x16x4xf32>
    %732 = vector.broadcast %731 : vector<1x16x4xf32> to vector<16x16x4xf32>
    %733 = arith.mulf %730, %732 : vector<16x16x4xf32>
    %734 = arith.addf %721, %733 : vector<16x16x4xf32>
    %735 = vector.extract_strided_slice %6 {offsets = [2, 6, 0], sizes = [1, 1, 4], strides = [1, 1, 1]} : vector<7x7x4xf32> to vector<1x1x4xf32>
    %736 = vector.shape_cast %735 : vector<1x1x4xf32> to vector<4xf32>
    %cst_88 = arith.constant 0.000000e+00 : f32
    %737 = vector.shape_cast %708 : vector<16x1xi1> to vector<16x1xi1>
    %738 = vector.broadcast %737 : vector<16x1xi1> to vector<16x4xi1>
    %739 = vector.shape_cast %736 : vector<4xf32> to vector<1x4xf32>
    %740 = vector.broadcast %739 : vector<1x4xf32> to vector<16x4xf32>
    %741 = vector.broadcast %cst_88 : f32 to vector<16x4xf32>
    %742 = arith.select %738, %740, %741 : vector<16x4xi1>, vector<16x4xf32>
    %743 = vector.extract_strided_slice %699 {offsets = [2, 0, 0], sizes = [16, 16, 4], strides = [1, 1, 1]} : vector<22x16x4xf32> to vector<16x16x4xf32>
    %744 = vector.shape_cast %742 : vector<16x4xf32> to vector<1x16x4xf32>
    %745 = vector.broadcast %744 : vector<1x16x4xf32> to vector<16x16x4xf32>
    %746 = arith.mulf %743, %745 : vector<16x16x4xf32>
    %747 = arith.addf %734, %746 : vector<16x16x4xf32>
    %748 = vector.extract_strided_slice %6 {offsets = [3, 6, 0], sizes = [1, 1, 4], strides = [1, 1, 1]} : vector<7x7x4xf32> to vector<1x1x4xf32>
    %749 = vector.shape_cast %748 : vector<1x1x4xf32> to vector<4xf32>
    %cst_89 = arith.constant 0.000000e+00 : f32
    %750 = vector.shape_cast %708 : vector<16x1xi1> to vector<16x1xi1>
    %751 = vector.broadcast %750 : vector<16x1xi1> to vector<16x4xi1>
    %752 = vector.shape_cast %749 : vector<4xf32> to vector<1x4xf32>
    %753 = vector.broadcast %752 : vector<1x4xf32> to vector<16x4xf32>
    %754 = vector.broadcast %cst_89 : f32 to vector<16x4xf32>
    %755 = arith.select %751, %753, %754 : vector<16x4xi1>, vector<16x4xf32>
    %756 = vector.extract_strided_slice %699 {offsets = [3, 0, 0], sizes = [16, 16, 4], strides = [1, 1, 1]} : vector<22x16x4xf32> to vector<16x16x4xf32>
    %757 = vector.shape_cast %755 : vector<16x4xf32> to vector<1x16x4xf32>
    %758 = vector.broadcast %757 : vector<1x16x4xf32> to vector<16x16x4xf32>
    %759 = arith.mulf %756, %758 : vector<16x16x4xf32>
    %760 = arith.addf %747, %759 : vector<16x16x4xf32>
    %761 = vector.extract_strided_slice %6 {offsets = [4, 6, 0], sizes = [1, 1, 4], strides = [1, 1, 1]} : vector<7x7x4xf32> to vector<1x1x4xf32>
    %762 = vector.shape_cast %761 : vector<1x1x4xf32> to vector<4xf32>
    %cst_90 = arith.constant 0.000000e+00 : f32
    %763 = vector.shape_cast %708 : vector<16x1xi1> to vector<16x1xi1>
    %764 = vector.broadcast %763 : vector<16x1xi1> to vector<16x4xi1>
    %765 = vector.shape_cast %762 : vector<4xf32> to vector<1x4xf32>
    %766 = vector.broadcast %765 : vector<1x4xf32> to vector<16x4xf32>
    %767 = vector.broadcast %cst_90 : f32 to vector<16x4xf32>
    %768 = arith.select %764, %766, %767 : vector<16x4xi1>, vector<16x4xf32>
    %769 = vector.extract_strided_slice %699 {offsets = [4, 0, 0], sizes = [16, 16, 4], strides = [1, 1, 1]} : vector<22x16x4xf32> to vector<16x16x4xf32>
    %770 = vector.shape_cast %768 : vector<16x4xf32> to vector<1x16x4xf32>
    %771 = vector.broadcast %770 : vector<1x16x4xf32> to vector<16x16x4xf32>
    %772 = arith.mulf %769, %771 : vector<16x16x4xf32>
    %773 = arith.addf %760, %772 : vector<16x16x4xf32>
    %774 = vector.extract_strided_slice %6 {offsets = [5, 6, 0], sizes = [1, 1, 4], strides = [1, 1, 1]} : vector<7x7x4xf32> to vector<1x1x4xf32>
    %775 = vector.shape_cast %774 : vector<1x1x4xf32> to vector<4xf32>
    %cst_91 = arith.constant 0.000000e+00 : f32
    %776 = vector.shape_cast %708 : vector<16x1xi1> to vector<16x1xi1>
    %777 = vector.broadcast %776 : vector<16x1xi1> to vector<16x4xi1>
    %778 = vector.shape_cast %775 : vector<4xf32> to vector<1x4xf32>
    %779 = vector.broadcast %778 : vector<1x4xf32> to vector<16x4xf32>
    %780 = vector.broadcast %cst_91 : f32 to vector<16x4xf32>
    %781 = arith.select %777, %779, %780 : vector<16x4xi1>, vector<16x4xf32>
    %782 = vector.extract_strided_slice %699 {offsets = [5, 0, 0], sizes = [16, 16, 4], strides = [1, 1, 1]} : vector<22x16x4xf32> to vector<16x16x4xf32>
    %783 = vector.shape_cast %781 : vector<16x4xf32> to vector<1x16x4xf32>
    %784 = vector.broadcast %783 : vector<1x16x4xf32> to vector<16x16x4xf32>
    %785 = arith.mulf %782, %784 : vector<16x16x4xf32>
    %786 = arith.addf %773, %785 : vector<16x16x4xf32>
    %787 = vector.extract_strided_slice %6 {offsets = [6, 6, 0], sizes = [1, 1, 4], strides = [1, 1, 1]} : vector<7x7x4xf32> to vector<1x1x4xf32>
    %788 = vector.shape_cast %787 : vector<1x1x4xf32> to vector<4xf32>
    %cst_92 = arith.constant 0.000000e+00 : f32
    %789 = vector.shape_cast %708 : vector<16x1xi1> to vector<16x1xi1>
    %790 = vector.broadcast %789 : vector<16x1xi1> to vector<16x4xi1>
    %791 = vector.shape_cast %788 : vector<4xf32> to vector<1x4xf32>
    %792 = vector.broadcast %791 : vector<1x4xf32> to vector<16x4xf32>
    %793 = vector.broadcast %cst_92 : f32 to vector<16x4xf32>
    %794 = arith.select %790, %792, %793 : vector<16x4xi1>, vector<16x4xf32>
    %795 = vector.extract_strided_slice %699 {offsets = [6, 0, 0], sizes = [16, 16, 4], strides = [1, 1, 1]} : vector<22x16x4xf32> to vector<16x16x4xf32>
    %796 = vector.shape_cast %794 : vector<16x4xf32> to vector<1x16x4xf32>
    %797 = vector.broadcast %796 : vector<1x16x4xf32> to vector<16x16x4xf32>
    %798 = arith.mulf %795, %797 : vector<16x16x4xf32>
    %799 = arith.addf %786, %798 : vector<16x16x4xf32>
    %800 = vector.shape_cast %799 : vector<16x16x4xf32> to vector<256x4xf32>
    %c0_93 = arith.constant 0 : index
    %c0_94 = arith.constant 0 : index
    %801 = vector.load %arg6[%c0_93, %c0_94] : memref<4x16xf32, #tpu.memory_space<vmem>>, vector<4x16xf32>
    %cst_95 = arith.constant dense<0.000000e+00> : vector<256x16xf32>
    %802 = tpu.matmul %800, %801, %cst_95 {dimension_numbers = #tpu.dot_dimension_numbers<[1], [0], [0], [1], [0, 0, 1, 1], [], []>} : vector<256x4xf32>, vector<4x16xf32>, vector<256x16xf32> -> vector<256x16xf32>
    %c0_96 = arith.constant 0 : index
    %c0_97 = arith.constant 0 : index
    %803 = vector.load %arg7[%c0_96, %c0_97] : memref<1x16xf32, #tpu.memory_space<vmem>>, vector<1x16xf32>
    %804 = vector.broadcast %803 : vector<1x16xf32> to vector<256x16xf32>
    %805 = arith.addf %802, %804 : vector<256x16xf32>
    %cst_98 = arith.constant 5.000000e-01 : f32
    %806 = vector.broadcast %cst_98 : f32 to vector<256x16xf32>
    %807 = arith.mulf %806, %805 : vector<256x16xf32>
    %cst_99 = arith.constant 2.000000e+00 : f32
    %808 = math.sqrt %cst_99 : f32
    %809 = vector.broadcast %808 : f32 to vector<256x16xf32>
    %810 = arith.divf %805, %809 : vector<256x16xf32>
    %811 = math.erf %810 : vector<256x16xf32>
    %cst_100 = arith.constant 1.000000e+00 : f32
    %812 = vector.broadcast %cst_100 : f32 to vector<256x16xf32>
    %813 = arith.addf %812, %811 : vector<256x16xf32>
    %814 = arith.mulf %807, %813 : vector<256x16xf32>
    %c0_101 = arith.constant 0 : index
    %c0_102 = arith.constant 0 : index
    %815 = vector.load %arg8[%c0_101, %c0_102] : memref<16x4xf32, #tpu.memory_space<vmem>>, vector<16x4xf32>
    %cst_103 = arith.constant dense<0.000000e+00> : vector<256x4xf32>
    %816 = tpu.matmul %814, %815, %cst_103 {dimension_numbers = #tpu.dot_dimension_numbers<[1], [0], [0], [1], [0, 0, 1, 1], [], []>} : vector<256x16xf32>, vector<16x4xf32>, vector<256x4xf32> -> vector<256x4xf32>
    %c0_104 = arith.constant 0 : index
    %c0_105 = arith.constant 0 : index
    %817 = vector.load %arg9[%c0_104, %c0_105] : memref<1x4xf32, #tpu.memory_space<vmem>>, vector<1x4xf32>
    %818 = vector.broadcast %817 : vector<1x4xf32> to vector<256x4xf32>
    %819 = arith.addf %816, %818 : vector<256x4xf32>
    %820 = vector.extract_strided_slice %143 {offsets = [3, 0, 0], sizes = [16, 16, 4], strides = [1, 1, 1]} : vector<22x16x4xf32> to vector<16x16x4xf32>
    %821 = vector.shape_cast %819 : vector<256x4xf32> to vector<16x16x4xf32>
    %822 = arith.addf %820, %821 : vector<16x16x4xf32>
    %c0_106 = arith.constant 0 : index
    %c0_107 = arith.constant 0 : index
    %c0_108 = arith.constant 0 : index
    %c0_109 = arith.constant 0 : index
    %823 = vector.load %arg10[%c0_106, %c0_107, %c0_108, %c0_109] : memref<1x16x16x4xf32, #tpu.memory_space<vmem>>, vector<1x16x16x4xf32>
    %824 = vector.shape_cast %823 : vector<1x16x16x4xf32> to vector<16x16x4xf32>
    %825 = vector.shape_cast %822 : vector<16x16x4xf32> to vector<1x16x16x4xf32>
    tpu.vector_store %arg10[%c0_106, %c0_107, %c0_108, %c0_109], %825 {strides = array<i32>} : memref<1x16x16x4xf32, #tpu.memory_space<vmem>>, vector<1x16x16x4xf32>,
    return
  }
  func.func @transform_0(%arg0: i32, %arg1: i32) -> (i32, i32, i32, i32) {
    %c0_i32 = arith.constant 0 : i32
    %c0_i32_0 = arith.constant 0 : i32
    %c0_i32_1 = arith.constant 0 : i32
    %c0_i32_2 = arith.constant 0 : i32
    return %arg0, %c0_i32, %c0_i32_0, %c0_i32_1 : i32, i32, i32, i32
  }
  func.func @transform_1(%arg0: i32, %arg1: i32) -> (i32, i32, i32) {
    %c0_i32 = arith.constant 0 : i32
    %c0_i32_0 = arith.constant 0 : i32
    %c0_i32_1 = arith.constant 0 : i32
    %c0_i32_2 = arith.constant 0 : i32
    return %c0_i32, %c0_i32_0, %c0_i32_1 : i32, i32, i32
  }
  func.func @transform_2(%arg0: i32, %arg1: i32) -> (i32, i32) {
    %c0_i32 = arith.constant 0 : i32
    %c0_i32_0 = arith.constant 0 : i32
    %c0_i32_1 = arith.constant 0 : i32
    return %c0_i32, %c0_i32_0 : i32, i32
  }
  func.func @transform_3(%arg0: i32, %arg1: i32) -> (i32, i32, i32) {
    %c0_i32 = arith.constant 0 : i32
    %c0_i32_0 = arith.constant 0 : i32
    %c0_i32_1 = arith.constant 0 : i32
    %c0_i32_2 = arith.constant 0 : i32
    return %c0_i32, %c0_i32_0, %c0_i32_1 : i32, i32, i32
  }
  func.func @transform_4(%arg0: i32, %arg1: i32) -> (i32, i32) {
    %c0_i32 = arith.constant 0 : i32
    %c0_i32_0 = arith.constant 0 : i32
    %c0_i32_1 = arith.constant 0 : i32
    return %c0_i32, %c0_i32_0 : i32, i32
  }
  func.func @transform_5(%arg0: i32, %arg1: i32) -> (i32, i32) {
    %c0_i32 = arith.constant 0 : i32
    %c0_i32_0 = arith.constant 0 : i32
    %c0_i32_1 = arith.constant 0 : i32
    return %c0_i32, %c0_i32_0 : i32, i32
  }
  func.func @transform_6(%arg0: i32, %arg1: i32) -> (i32, i32) {
    %c0_i32 = arith.constant 0 : i32
    %c0_i32_0 = arith.constant 0 : i32
    %c0_i32_1 = arith.constant 0 : i32
    return %c0_i32, %c0_i32_0 : i32, i32
  }
  func.func @transform_7(%arg0: i32, %arg1: i32) -> (i32, i32) {
    %c0_i32 = arith.constant 0 : i32
    %c0_i32_0 = arith.constant 0 : i32
    %c0_i32_1 = arith.constant 0 : i32
    return %c0_i32, %c0_i32_0 : i32, i32
  }
  func.func @transform_8(%arg0: i32, %arg1: i32) -> (i32, i32, i32, i32) {
    %c0_i32 = arith.constant 0 : i32
    %c0_i32_0 = arith.constant 0 : i32
    %c0_i32_1 = arith.constant 0 : i32
    return %arg0, %arg1, %c0_i32, %c0_i32_0 : i32, i32, i32, i32
  }
}

</mosaic_0001>

<llo_original>
// kernel: tpu_custom_call.1
$region0: #{tpu_custom_call.1}
  #allocation0 [shape = 'u32[]', space=smem, size = 0x4, offset = 0x4, fixed_abs, tag = 'smem constant byte address 0x4 - core index']
  #allocation1 [shape = 'u32[144,128]{1,0:T(1,128)}', space=vmem, size = 0x12000, scoped, tag = 'internal scratch']
  %s0 = inlined_call_operand.vmem [shape: f32[2,24,16,4], index: 0, kind: input, shape index: {}]
  %s1 = inlined_call_operand.vmem [shape: f32[3,3,4], index: 1, kind: input, shape index: {}]
  %s2 = inlined_call_operand.vmem [shape: f32[1,4], index: 2, kind: input, shape index: {}]
  %s3 = inlined_call_operand.vmem [shape: f32[7,7,4], index: 3, kind: input, shape index: {}]
  %s4 = inlined_call_operand.vmem [shape: f32[4,16], index: 4, kind: input, shape index: {}]
  %s5 = inlined_call_operand.vmem [shape: f32[1,16], index: 5, kind: input, shape index: {}]
  %s6 = inlined_call_operand.vmem [shape: f32[16,4], index: 6, kind: input, shape index: {}]
  %s7 = inlined_call_operand.vmem [shape: f32[1,4], index: 7, kind: input, shape index: {}]
  %s8 = inlined_call_operand.vmem [shape: f32[2,16,16,4], index: 8, kind: output, shape index: {}]
  %s9 = sld [smem:[#allocation0]]
  $region65: #{tpu_custom_call.1} parent=0
    _
  %s11 = ssub.s32 1, %s9
  %s12 = scalar_select 0, %s11, %s9
  loop: start=0, step=1, limit=4
  $region2: #{tpu_custom_call.1} parent=0 // loop_pre_header
    _
  $region3: #{tpu_custom_call.1} parent=0 // loop_header
    %s14 = sphi 0, %s18
    %p15 = scmp.ge.s32.totalorder %s14, 4
    %s21 = sphi 0, %s33
    %s22 = sphi 0, %s29
    %s23 = sphi 0, %s21
    %s24 = sphi 0, %s22
    %s25 = sphi 0, %s23
    %s26 = sphi 0, %s24
    %s36 = sphi 0, %s38
    %s39 = sphi 0, %s36
    %s40 = sphi 0, %s39
    %s56 = sphi 0, %s40
    %s60 = sphi 0, %s60
    %s62 = sphi 0, %s60
    %s63 = sphi 0, %s62
    %s77 = sphi 0, %s63
    %s81 = sphi 0, %s81
    %s83 = sphi 0, %s81
    %s84 = sphi 0, %s83
    %s98 = sphi 0, %s84
    %s102 = sphi 0, %s102
    %s104 = sphi 0, %s102
    %s105 = sphi 0, %s104
    %s119 = sphi 0, %s105
    %s123 = sphi 0, %s123
    %s125 = sphi 0, %s123
    %s126 = sphi 0, %s125
    %s140 = sphi 0, %s126
    %s144 = sphi 0, %s144
    %s146 = sphi 0, %s144
    %s147 = sphi 0, %s146
    %s161 = sphi 0, %s147
    %s165 = sphi 0, %s165
    %s167 = sphi 0, %s165
    %s168 = sphi 0, %s167
    %s182 = sphi 0, %s168
    %s186 = sphi 0, %s186
    %s188 = sphi 0, %s186
    %s189 = sphi 0, %s188
    %s203 = sphi 0, %s189
    %s211 = sphi 0, %s213
    %s214 = sphi 0, %s211
    %s215 = sphi 0, %s214
    %s231 = sphi 0, %s215
  $region4: #{tpu_custom_call.1} parent=0 // loop_header_branch
    %17 = sbr.rel (%p15) target = $region8
  $region5: #{tpu_custom_call.1} parent=0 // loop_body
    %s19 = ssub.s32 %s14, 1
    %s20 = ssub.s32 %s14, 2
    %s27 = sadd.s32 1, %s22
    %p28 = scmp.ge.s32.totalorder %s27, 1
    %s29 = scalar_select %p28, 0, %s27
    %s30 = sadd.s32 1, %s21
    %s31 = scalar_select %p28, %s30, %s21
    %p32 = scmp.ge.s32.totalorder %s31, 2
    %s33 = scalar_select %p32, 0, %s31
    %s34 = ssub.s32 %s21, %s33
    %p35 = scmp.eq.s32.totalorder %s34, 0
    %s37 = sadd.s32 %s36, 1
    %s38 = scalar_select %p35, %s36, %s37
    %p41 = pneg %p35
    %p42 = scmp.eq.s32.totalorder %s14, 1
    %p43 = por %p41, %p42
    %p44 = scmp.ne.s32.totalorder %s36, %s39
    %p45 = scmp.eq.s32.totalorder %s14, 0
    %p46 = por %p44, %p45
    %p47 = scmp.ne.s32.totalorder %s36, %s39
    %p48 = scmp.eq.s32.totalorder %s19, 1
    %p49 = por %p47, %p48
    %p50 = scmp.ne.s32.totalorder %s39, %s40
    %p51 = scmp.eq.s32.totalorder %s19, 0
    %p52 = por %p50, %p51
    %p53 = scmp.ne.s32.totalorder %s39, %s40
    %p54 = scmp.eq.s32.totalorder %s20, 1
    %p55 = por %p53, %p54
    %p57 = scmp.ne.s32.totalorder %s40, %s56
    %p58 = scmp.eq.s32.totalorder %s20, 0
    %p59 = por %p57, %p58
    %s61 = sadd.s32 %s60, 1
    %p64 = scmp.eq.s32.totalorder %s14, 1
    %p65 = scmp.ne.s32.totalorder %s60, %s62
    %p66 = scmp.eq.s32.totalorder %s14, 0
    %p67 = por %p65, %p66
    %p68 = scmp.ne.s32.totalorder %s60, %s62
    %p69 = scmp.eq.s32.totalorder %s19, 1
    %p70 = por %p68, %p69
    %p71 = scmp.ne.s32.totalorder %s62, %s63
    %p72 = scmp.eq.s32.totalorder %s19, 0
    %p73 = por %p71, %p72
    %p74 = scmp.ne.s32.totalorder %s62, %s63
    %p75 = scmp.eq.s32.totalorder %s20, 1
    %p76 = por %p74, %p75
    %p78 = scmp.ne.s32.totalorder %s63, %s77
    %p79 = scmp.eq.s32.totalorder %s20, 0
    %p80 = por %p78, %p79
    %s82 = sadd.s32 %s81, 1
    %p85 = scmp.eq.s32.totalorder %s14, 1
    %p86 = scmp.ne.s32.totalorder %s81, %s83
    %p87 = scmp.eq.s32.totalorder %s14, 0
    %p88 = por %p86, %p87
    %p89 = scmp.ne.s32.totalorder %s81, %s83
    %p90 = scmp.eq.s32.totalorder %s19, 1
    %p91 = por %p89, %p90
    %p92 = scmp.ne.s32.totalorder %s83, %s84
    %p93 = scmp.eq.s32.totalorder %s19, 0
    %p94 = por %p92, %p93
    %p95 = scmp.ne.s32.totalorder %s83, %s84
    %p96 = scmp.eq.s32.totalorder %s20, 1
    %p97 = por %p95, %p96
    %p99 = scmp.ne.s32.totalorder %s84, %s98
    %p100 = scmp.eq.s32.totalorder %s20, 0
    %p101 = por %p99, %p100
    %s103 = sadd.s32 %s102, 1
    %p106 = scmp.eq.s32.totalorder %s14, 1
    %p107 = scmp.ne.s32.totalorder %s102, %s104
    %p108 = scmp.eq.s32.totalorder %s14, 0
    %p109 = por %p107, %p108
    %p110 = scmp.ne.s32.totalorder %s102, %s104
    %p111 = scmp.eq.s32.totalorder %s19, 1
    %p112 = por %p110, %p111
    %p113 = scmp.ne.s32.totalorder %s104, %s105
    %p114 = scmp.eq.s32.totalorder %s19, 0
    %p115 = por %p113, %p114
    %p116 = scmp.ne.s32.totalorder %s104, %s105
    %p117 = scmp.eq.s32.totalorder %s20, 1
    %p118 = por %p116, %p117
    %p120 = scmp.ne.s32.totalorder %s105, %s119
    %p121 = scmp.eq.s32.totalorder %s20, 0
    %p122 = por %p120, %p121
    %s124 = sadd.s32 %s123, 1
    %p127 = scmp.eq.s32.totalorder %s14, 1
    %p128 = scmp.ne.s32.totalorder %s123, %s125
    %p129 = scmp.eq.s32.totalorder %s14, 0
    %p130 = por %p128, %p129
    %p131 = scmp.ne.s32.totalorder %s123, %s125
    %p132 = scmp.eq.s32.totalorder %s19, 1
    %p133 = por %p131, %p132
    %p134 = scmp.ne.s32.totalorder %s125, %s126
    %p135 = scmp.eq.s32.totalorder %s19, 0
    %p136 = por %p134, %p135
    %p137 = scmp.ne.s32.totalorder %s125, %s126
    %p138 = scmp.eq.s32.totalorder %s20, 1
    %p139 = por %p137, %p138
    %p141 = scmp.ne.s32.totalorder %s126, %s140
    %p142 = scmp.eq.s32.totalorder %s20, 0
    %p143 = por %p141, %p142
    %s145 = sadd.s32 %s144, 1
    %p148 = scmp.eq.s32.totalorder %s14, 1
    %p149 = scmp.ne.s32.totalorder %s144, %s146
    %p150 = scmp.eq.s32.totalorder %s14, 0
    %p151 = por %p149, %p150
    %p152 = scmp.ne.s32.totalorder %s144, %s146
    %p153 = scmp.eq.s32.totalorder %s19, 1
    %p154 = por %p152, %p153
    %p155 = scmp.ne.s32.totalorder %s146, %s147
    %p156 = scmp.eq.s32.totalorder %s19, 0
    %p157 = por %p155, %p156
    %p158 = scmp.ne.s32.totalorder %s146, %s147
    %p159 = scmp.eq.s32.totalorder %s20, 1
    %p160 = por %p158, %p159
    %p162 = scmp.ne.s32.totalorder %s147, %s161
    %p163 = scmp.eq.s32.totalorder %s20, 0
    %p164 = por %p162, %p163
    %s166 = sadd.s32 %s165, 1
    %p169 = scmp.eq.s32.totalorder %s14, 1
    %p170 = scmp.ne.s32.totalorder %s165, %s167
    %p171 = scmp.eq.s32.totalorder %s14, 0
    %p172 = por %p170, %p171
    %p173 = scmp.ne.s32.totalorder %s165, %s167
    %p174 = scmp.eq.s32.totalorder %s19, 1
    %p175 = por %p173, %p174
    %p176 = scmp.ne.s32.totalorder %s167, %s168
    %p177 = scmp.eq.s32.totalorder %s19, 0
    %p178 = por %p176, %p177
    %p179 = scmp.ne.s32.totalorder %s167, %s168
    %p180 = scmp.eq.s32.totalorder %s20, 1
    %p181 = por %p179, %p180
    %p183 = scmp.ne.s32.totalorder %s168, %s182
    %p184 = scmp.eq.s32.totalorder %s20, 0
    %p185 = por %p183, %p184
    %s187 = sadd.s32 %s186, 1
    %p190 = scmp.eq.s32.totalorder %s14, 1
    %p191 = scmp.ne.s32.totalorder %s186, %s188
    %p192 = scmp.eq.s32.totalorder %s14, 0
    %p193 = por %p191, %p192
    %p194 = scmp.ne.s32.totalorder %s186, %s188
    %p195 = scmp.eq.s32.totalorder %s19, 1
    %p196 = por %p194, %p195
    %p197 = scmp.ne.s32.totalorder %s188, %s189
    %p198 = scmp.eq.s32.totalorder %s19, 0
    %p199 = por %p197, %p198
    %p200 = scmp.ne.s32.totalorder %s188, %s189
    %p201 = scmp.eq.s32.totalorder %s20, 1
    %p202 = por %p200, %p201
    %p204 = scmp.ne.s32.totalorder %s189, %s203
    %p205 = scmp.eq.s32.totalorder %s20, 0
    %p206 = por %p204, %p205
    %s207 = ssub.s32 %s21, %s33
    %s208 = ssub.s32 %s22, %s29
    %s209 = sor.u32 %s207, %s208
    %p210 = scmp.eq.s32.totalorder %s209, 0
    %s212 = sadd.s32 %s211, 1
    %s213 = scalar_select %p210, %s211, %s212
    %p216 = pneg %p210
    %p217 = scmp.eq.s32.totalorder %s14, 1
    %p218 = por %p216, %p217
    %p219 = scmp.ne.s32.totalorder %s211, %s214
    %p220 = scmp.eq.s32.totalorder %s14, 0
    %p221 = por %p219, %p220
    %p222 = scmp.ne.s32.totalorder %s211, %s214
    %p223 = scmp.eq.s32.totalorder %s19, 1
    %p224 = por %p222, %p223
    %p225 = scmp.ne.s32.totalorder %s214, %s215
    %p226 = scmp.eq.s32.totalorder %s19, 0
    %p227 = por %p225, %p226
    %p228 = scmp.ne.s32.totalorder %s214, %s215
    %p229 = scmp.eq.s32.totalorder %s20, 1
    %p230 = por %p228, %p229
    %p232 = scmp.ne.s32.totalorder %s215, %s231
    %p233 = scmp.eq.s32.totalorder %s20, 0
    %p234 = por %p232, %p233
    %p235 = scmp.le.s32.totalorder 1, %s14
    %p236 = scmp.lt.s32.totalorder %s14, 3
    %p237 = pnand %p235, %p236
    %p238 = pneg %p237
    // Predicated region
    $region9: #{tpu_custom_call.1} parent=5 // pred_check
      _
    $region10: #{tpu_custom_call.1} parent=5 // pred_check_branch
      %240 = sbr.rel (%p237) target = $region12
    $region11: #{tpu_custom_call.1} parent=5 // pred_region
      %s241 = ssub.s32 %s14, 1
      // Predicated region
      $region13: #{tpu_custom_call.1} parent=11 // pred_check
        %p242 = pneg %p73
      $region14: #{tpu_custom_call.1} parent=11 // pred_check_branch
        %244 = sbr.rel (%p242) target = $region16
      $region15: #{tpu_custom_call.1} parent=11 // pred_region
        _
      $region16: #{tpu_custom_call.1} parent=11 // pred_fallthru
        _
      // Predicated region
      $region17: #{tpu_custom_call.1} parent=11 // pred_check
        %p245 = pneg %p94
      $region18: #{tpu_custom_call.1} parent=11 // pred_check_branch
        %247 = sbr.rel (%p245) target = $region20
      $region19: #{tpu_custom_call.1} parent=11 // pred_region
        _
      $region20: #{tpu_custom_call.1} parent=11 // pred_fallthru
        _
      // Predicated region
      $region21: #{tpu_custom_call.1} parent=11 // pred_check
        %p248 = pneg %p115
      $region22: #{tpu_custom_call.1} parent=11 // pred_check_branch
        %250 = sbr.rel (%p248) target = $region24
      $region23: #{tpu_custom_call.1} parent=11 // pred_region
        _
      $region24: #{tpu_custom_call.1} parent=11 // pred_fallthru
        _
      // Predicated region
      $region25: #{tpu_custom_call.1} parent=11 // pred_check
        %p251 = pneg %p136
      $region26: #{tpu_custom_call.1} parent=11 // pred_check_branch
        %253 = sbr.rel (%p251) target = $region28
      $region27: #{tpu_custom_call.1} parent=11 // pred_region
        _
      $region28: #{tpu_custom_call.1} parent=11 // pred_fallthru
        _
      // Predicated region
      $region29: #{tpu_custom_call.1} parent=11 // pred_check
        %p254 = pneg %p157
      $region30: #{tpu_custom_call.1} parent=11 // pred_check_branch
        %256 = sbr.rel (%p254) target = $region32
      $region31: #{tpu_custom_call.1} parent=11 // pred_region
        _
      $region32: #{tpu_custom_call.1} parent=11 // pred_fallthru
        _
      // Predicated region
      $region33: #{tpu_custom_call.1} parent=11 // pred_check
        %p257 = pneg %p178
      $region34: #{tpu_custom_call.1} parent=11 // pred_check_branch
        %259 = sbr.rel (%p257) target = $region36
      $region35: #{tpu_custom_call.1} parent=11 // pred_region
        _
      $region36: #{tpu_custom_call.1} parent=11 // pred_fallthru
        _
      // Predicated region
      $region37: #{tpu_custom_call.1} parent=11 // pred_check
        %p260 = pneg %p199
      $region38: #{tpu_custom_call.1} parent=11 // pred_check_branch
        %262 = sbr.rel (%p260) target = $region40
      $region39: #{tpu_custom_call.1} parent=11 // pred_region
        _
      $region40: #{tpu_custom_call.1} parent=11 // pred_fallthru
        _
    $region12: #{tpu_custom_call.1} parent=5 // pred_fallthru
      _
    %p263 = scmp.lt.s32.totalorder %s14, 2
    // Predicated region
    $region41: #{tpu_custom_call.1} parent=5 // pred_check
      %p264 = pneg %p263
    $region42: #{tpu_custom_call.1} parent=5 // pred_check_branch
      %266 = sbr.rel (%p264) target = $region44
    $region43: #{tpu_custom_call.1} parent=5 // pred_region
      // Predicated region
      $region45: #{tpu_custom_call.1} parent=43 // pred_check
        %p267 = pneg %p46
      $region46: #{tpu_custom_call.1} parent=43 // pred_check_branch
        %269 = sbr.rel (%p267) target = $region48
      $region47: #{tpu_custom_call.1} parent=43 // pred_region
        %p270 = scmp.lt.s32.totalorder %s21, 1
        %s271 = scalar_select %p270, %s21, 1
        %s272 = smul.addr %s271, 48
        %s273 = smul.addr %s272, 8
        %s274 = scalar_lea.vmem %s0, %s273
      $region48: #{tpu_custom_call.1} parent=43 // pred_fallthru
        _
    $region44: #{tpu_custom_call.1} parent=5 // pred_fallthru
      _
    %p275 = scmp.le.s32.totalorder 1, %s14
    %p276 = scmp.lt.s32.totalorder %s14, 3
    %p277 = pnand %p275, %p276
    %p278 = pneg %p277
    // Predicated region
    $region49: #{tpu_custom_call.1} parent=5 // pred_check
      _
    $region50: #{tpu_custom_call.1} parent=5 // pred_check_branch
      %280 = sbr.rel (%p277) target = $region52
    $region51: #{tpu_custom_call.1} parent=5 // pred_region
      %s281 = ssub.s32 %s14, 1
      %p282 = scmp.lt.s32.totalorder %s23, 1
      %s283 = scalar_select %p282, %s23, 1
      %s284 = smul.addr %s283, 48
      %s285 = smul.addr %s284, 8
      %s286 = scalar_lea.vmem %s0, %s285
      %p287 = pneg %p52
      %p288 = pneg %p49
      %p289 = pneg %p73
      %p290 = pneg %p70
      %p291 = pneg %p94
      %p292 = pneg %p91
      %p293 = pneg %p115
      %p294 = pneg %p112
      %p295 = pneg %p136
      %p296 = pneg %p133
      %p297 = pneg %p157
      %p298 = pneg %p154
      %p299 = pneg %p178
      %p300 = pneg %p175
      %p301 = pneg %p199
      %p302 = pneg %p196
      %p303 = pneg %p227
      %p304 = pneg %p224
      %s305 = smul.u32 16, %s24
      %p306 = scmp.lt.s32.totalorder %s23, 1
      %s307 = scalar_select %p306, %s23, 1
      %p308 = scmp.lt.s32.totalorder %s305, 15
      %s309 = scalar_select %p308, %s305, 15
      %s310 = smul.addr %s309, 2
      %s311 = smul.addr %s307, 32
      %s312 = sadd.s32 %s310, %s311
      %s313 = smul.addr %s312, 8
      %s314 = scalar_lea.vmem %s8, %s313
      %p315 = scmp.lt.s32.totalorder %s23, 1
      %s316 = scalar_select %p315, %s23, 1
      %s317 = smul.addr %s316, 48
      %s318 = smul.addr %s317, 8
      %s319 = scalar_lea.vmem %s0, %s318
      %s320 = smul.u32 16, %s24
      %p321 = scmp.lt.s32.totalorder %s23, 1
      %s322 = scalar_select %p321, %s23, 1
      %p323 = scmp.lt.s32.totalorder %s320, 15
      %s324 = scalar_select %p323, %s320, 15
      %s325 = smul.addr %s324, 2
      %s326 = smul.addr %s322, 32
      %s327 = sadd.s32 %s325, %s326
      %s328 = smul.addr %s327, 8
      %s329 = scalar_lea.vmem %s8, %s328
      %s330 = smul.u32 16, %s24
      %s331 = smul.u32 %s24, 16
      %s332 = smul.u32 %s331, 16
      %s333 = scalar_lea.vmem %s319, %s332
      %v334 = vld [vmem:[%s333] sm:$0xff]
      %v335 = vld [vmem:[%s333 + $0x8] sm:$0xff]
      %v336 = vld [vmem:[%s333 + $0x10] sm:$0xff]
      %v337 = vld [vmem:[%s333 + $0x18] sm:$0xff]
      %v338 = vld [vmem:[%s333 + $0x20] sm:$0xff]
      %v339 = vld [vmem:[%s333 + $0x28] sm:$0xff]
      %v340 = vld [vmem:[%s333 + $0x30] sm:$0xff]
      %v341 = vld [vmem:[%s333 + $0x38] sm:$0xff]
      %v342 = vld [vmem:[%s333 + $0x40] sm:$0xff]
      %v343 = vld [vmem:[%s333 + $0x48] sm:$0xff]
      %v344 = vld [vmem:[%s333 + $0x50] sm:$0xff]
      %v345 = vld [vmem:[%s333 + $0x58] sm:$0xff]
      %v346 = vld [vmem:[%s333 + $0x60] sm:$0xff]
      %v347 = vld [vmem:[%s333 + $0x68] sm:$0xff]
      %v348 = vld [vmem:[%s333 + $0x70] sm:$0xff]
      %v349 = vld [vmem:[%s333 + $0x78] sm:$0xff]
      %v350 = vld [vmem:[%s333 + $0x80] sm:$0xff]
      %v351 = vld [vmem:[%s333 + $0x88] sm:$0xff]
      %v352 = vld [vmem:[%s333 + $0x90] sm:$0xff]
      %v353 = vld [vmem:[%s333 + $0x98] sm:$0xff]
      %v354 = vld [vmem:[%s333 + $0xa0] sm:$0xff]
      %v355 = vld [vmem:[%s333 + $0xa8] sm:$0xff]
      %v356 = vld [vmem:[%s333 + $0xb0] sm:$0xff]
      %v357 = vld [vmem:[%s333 + $0xb8] sm:$0xff]
      %v358 = vld [vmem:[%s333 + $0xc0] sm:$0xff]
      %v359 = vld [vmem:[%s333 + $0xc8] sm:$0xff]
      %v360 = vld [vmem:[%s333 + $0xd0] sm:$0xff]
      %v361 = vld [vmem:[%s333 + $0xd8] sm:$0xff]
      %v362 = vld [vmem:[%s333 + $0xe0] sm:$0xff]
      %v363 = vld [vmem:[%s333 + $0xe8] sm:$0xff]
      %v364 = vld [vmem:[%s333 + $0xf0] sm:$0xff]
      %v365 = vld [vmem:[%s333 + $0xf8] sm:$0xff]
      %v366 = vld [vmem:[%s333 + $0x100] sm:$0xff]
      %v367 = vld [vmem:[%s333 + $0x108] sm:$0xff]
      %v368 = vld [vmem:[%s333 + $0x110] sm:$0xff]
      %v369 = vld [vmem:[%s333 + $0x118] sm:$0xff]
      %v370 = vld [vmem:[%s333 + $0x120] sm:$0xff]
      %v371 = vld [vmem:[%s333 + $0x128] sm:$0xff]
      %v372 = vld [vmem:[%s333 + $0x130] sm:$0xff]
      %v373 = vld [vmem:[%s333 + $0x138] sm:$0xff]
      %v374 = vld [vmem:[%s333 + $0x140] sm:$0xff]
      %v375 = vld [vmem:[%s333 + $0x148] sm:$0xff]
      %v376 = vld [vmem:[%s333 + $0x150] sm:$0xff]
      %v377 = vld [vmem:[%s333 + $0x158] sm:$0xff]
      %v378 = vld [vmem:[%s333 + $0x160] sm:$0xff]
      %v379 = vld [vmem:[%s333 + $0x168] sm:$0xff]
      %v380 = vld [vmem:[%s333 + $0x170] sm:$0xff]
      %v381 = vld [vmem:[%s333 + $0x178] sm:$0xff]
      %v382 = vld [vmem:[%s1] sm:$0x7]
      %v383 = vld [vmem:[%s1 + $0x4] sm:$0x7]
      %v384 = vld [vmem:[%s1 + $0x8] sm:$0x7]
      %v385 = vld [vmem:[%s3] sm:$0x7f]
      %v386 = vld [vmem:[%s3 + $0x8] sm:$0x7f]
      %v387 = vld [vmem:[%s3 + $0x10] sm:$0x7f]
      %v388 = vld [vmem:[%s3 + $0x18] sm:$0x7f]
      %v389 = vld [vmem:[%s3 + $0x20] sm:$0x7f]
      %v390 = vld [vmem:[%s3 + $0x28] sm:$0x7f]
      %v391 = vld [vmem:[%s3 + $0x30] sm:$0x7f]
      %v392 = vlaneseq
      %v393 = vshrl.u32 %v392, 7
      %v394 = vadd.s32 %v393, 8
      %v395 = vld [vmem:[%s2] sm:$0x1]
      %v397 = vlaneseq
      %v398 = vshrl.u32 %v397, 7
      %v399 = vsub.s32 0, %v398
      %v400 = vrot.slane %v395, %v399
      %v402 = vrot.slane %v334, 7
      %v403 = vrot.slane %v336, 7
      %v404 = vrot.slane %v338, 7
      %v405 = vrot.slane %v340, 7
      %v406 = vrot.slane %v342, 7
      %v407 = vrot.slane %v344, 7
      %v408 = vrot.slane %v346, 7
      %v409 = vrot.slane %v348, 7
      %v410 = vrot.slane %v350, 7
      %v411 = vrot.slane %v352, 7
      %v412 = vrot.slane %v354, 7
      %v413 = vrot.slane %v356, 7
      %v414 = vrot.slane %v358, 7
      %v415 = vrot.slane %v360, 7
      %v416 = vrot.slane %v362, 7
      %v417 = vrot.slane %v364, 7
      %v418 = vrot.slane %v366, 7
      %v419 = vrot.slane %v368, 7
      %v420 = vrot.slane %v370, 7
      %v421 = vrot.slane %v372, 7
      %v422 = vrot.slane %v374, 7
      %v423 = vrot.slane %v376, 7
      %v424 = vrot.slane %v378, 7
      %v425 = vrot.slane %v380, 7
      %v426 = vrot.slane %v335, 7
      %v427 = vrot.slane %v337, 7
      %v428 = vrot.slane %v339, 7
      %v429 = vrot.slane %v341, 7
      %v430 = vrot.slane %v343, 7
      %v431 = vrot.slane %v345, 7
      %v432 = vrot.slane %v347, 7
      %v433 = vrot.slane %v349, 7
      %v434 = vrot.slane %v351, 7
      %v435 = vrot.slane %v353, 7
      %v436 = vrot.slane %v355, 7
      %v437 = vrot.slane %v357, 7
      %v438 = vrot.slane %v359, 7
      %v439 = vrot.slane %v361, 7
      %v440 = vrot.slane %v363, 7
      %v441 = vrot.slane %v365, 7
      %v442 = vrot.slane %v367, 7
      %v443 = vrot.slane %v369, 7
      %v444 = vrot.slane %v371, 7
      %v445 = vrot.slane %v373, 7
      %v446 = vrot.slane %v375, 7
      %v447 = vrot.slane %v377, 7
      %v448 = vrot.slane %v379, 7
      %v449 = vrot.slane %v381, 7
      %vm450 = vcmp.lt.s32.totalorder %v393, 1
      %v451 = vsel %vm450, %v402, %v426
      %v452 = vsel %vm450, %v403, %v427
      %v453 = vsel %vm450, %v404, %v428
      %v454 = vsel %vm450, %v405, %v429
      %v455 = vsel %vm450, %v406, %v430
      %v456 = vsel %vm450, %v407, %v431
      %v457 = vsel %vm450, %v408, %v432
      %v458 = vsel %vm450, %v409, %v433
      %v459 = vsel %vm450, %v410, %v434
      %v460 = vsel %vm450, %v411, %v435
      %v461 = vsel %vm450, %v412, %v436
      %v462 = vsel %vm450, %v413, %v437
      %v463 = vsel %vm450, %v414, %v438
      %v464 = vsel %vm450, %v415, %v439
      %v465 = vsel %vm450, %v416, %v440
      %v466 = vsel %vm450, %v417, %v441
      %v467 = vsel %vm450, %v418, %v442
      %v468 = vsel %vm450, %v419, %v443
      %v469 = vsel %vm450, %v420, %v444
      %v470 = vsel %vm450, %v421, %v445
      %v471 = vsel %vm450, %v422, %v446
      %v472 = vsel %vm450, %v423, %v447
      %v473 = vsel %vm450, %v424, %v448
      %v474 = vsel %vm450, %v425, %v449
      %v475 = vsel %vm450, %v426, %v402
      %v476 = vsel %vm450, %v427, %v403
      %v477 = vsel %vm450, %v428, %v404
      %v478 = vsel %vm450, %v429, %v405
      %v479 = vsel %vm450, %v430, %v406
      %v480 = vsel %vm450, %v431, %v407
      %v481 = vsel %vm450, %v432, %v408
      %v482 = vsel %vm450, %v433, %v409
      %v483 = vsel %vm450, %v434, %v410
      %v484 = vsel %vm450, %v435, %v411
      %v485 = vsel %vm450, %v436, %v412
      %v486 = vsel %vm450, %v437, %v413
      %v487 = vsel %vm450, %v438, %v414
      %v488 = vsel %vm450, %v439, %v415
      %v489 = vsel %vm450, %v440, %v416
      %v490 = vsel %vm450, %v441, %v417
      %v491 = vsel %vm450, %v442, %v418
      %v492 = vsel %vm450, %v443, %v419
      %v493 = vsel %vm450, %v444, %v420
      %v494 = vsel %vm450, %v445, %v421
      %v495 = vsel %vm450, %v446, %v422
      %v496 = vsel %vm450, %v447, %v423
      %v497 = vsel %vm450, %v448, %v424
      %v498 = vsel %vm450, %v449, %v425
      %v499 = vadd.s32 %v393, 4294967295
      %v500 = vadd.s32 %v394, 4294967295
      %vm501 = vcmp.ge.s32.totalorder %v499, 0
      %vm502 = vcmp.ge.s32.totalorder %v500, 0
      %vm503 = vcmp.lt.s32.totalorder %v499, 16
      %vm504 = vcmp.lt.s32.totalorder %v500, 16
      %vm505 = vmand %vm501, %vm503
      %vm506 = vmand %vm502, %vm504
      %v507 = vsel %vm505, 1, 0
      %v508 = vsel %vm506, 1, 0
      %vm509 = vcmp.eq.s32.totalorder %v507, 1
      %vm510 = vcmp.eq.s32.totalorder %v508, 1
      %v511 = vlaneseq
      %v512 = vshrl.u32 %v511, 7
      %v513 = vsub.s32 0, %v512
      %v514 = vrot.slane %v382, %v513
      %v515 = vsel %vm509, %v514, 0.0
      %v516 = vsel %vm510, %v514, 0.0
      %v517 = vmul.f32 %v475, %v515
      %v518 = vmul.f32 %v451, %v516
      %v519 = vmul.f32 %v476, %v515
      %v520 = vmul.f32 %v452, %v516
      %v521 = vmul.f32 %v477, %v515
      %v522 = vmul.f32 %v453, %v516
      %v523 = vmul.f32 %v478, %v515
      %v524 = vmul.f32 %v454, %v516
      %v525 = vmul.f32 %v479, %v515
      %v526 = vmul.f32 %v455, %v516
      %v527 = vmul.f32 %v480, %v515
      %v528 = vmul.f32 %v456, %v516
      %v529 = vmul.f32 %v481, %v515
      %v530 = vmul.f32 %v457, %v516
      %v531 = vmul.f32 %v482, %v515
      %v532 = vmul.f32 %v458, %v516
      %v533 = vmul.f32 %v483, %v515
      %v534 = vmul.f32 %v459, %v516
      %v535 = vmul.f32 %v484, %v515
      %v536 = vmul.f32 %v460, %v516
      %v537 = vmul.f32 %v485, %v515
      %v538 = vmul.f32 %v461, %v516
      %v539 = vmul.f32 %v486, %v515
      %v540 = vmul.f32 %v462, %v516
      %v541 = vmul.f32 %v487, %v515
      %v542 = vmul.f32 %v463, %v516
      %v543 = vmul.f32 %v488, %v515
      %v544 = vmul.f32 %v464, %v516
      %v545 = vmul.f32 %v489, %v515
      %v546 = vmul.f32 %v465, %v516
      %v547 = vmul.f32 %v490, %v515
      %v548 = vmul.f32 %v466, %v516
      %v549 = vmul.f32 %v491, %v515
      %v550 = vmul.f32 %v467, %v516
      %v551 = vmul.f32 %v492, %v515
      %v552 = vmul.f32 %v468, %v516
      %v553 = vmul.f32 %v493, %v515
      %v554 = vmul.f32 %v469, %v516
      %v555 = vmul.f32 %v494, %v515
      %v556 = vmul.f32 %v470, %v516
      %v557 = vmul.f32 %v495, %v515
      %v558 = vmul.f32 %v471, %v516
      %v559 = vmul.f32 %v496, %v515
      %v560 = vmul.f32 %v472, %v516
      %v561 = vadd.f32 %v400, %v517
      %v562 = vadd.f32 %v400, %v518
      %v563 = vadd.f32 %v400, %v519
      %v564 = vadd.f32 %v400, %v520
      %v565 = vadd.f32 %v400, %v521
      %v566 = vadd.f32 %v400, %v522
      %v567 = vadd.f32 %v400, %v523
      %v568 = vadd.f32 %v400, %v524
      %v569 = vadd.f32 %v400, %v525
      %v570 = vadd.f32 %v400, %v526
      %v571 = vadd.f32 %v400, %v527
      %v572 = vadd.f32 %v400, %v528
      %v573 = vadd.f32 %v400, %v529
      %v574 = vadd.f32 %v400, %v530
      %v575 = vadd.f32 %v400, %v531
      %v576 = vadd.f32 %v400, %v532
      %v577 = vadd.f32 %v400, %v533
      %v578 = vadd.f32 %v400, %v534
      %v579 = vadd.f32 %v400, %v535
      %v580 = vadd.f32 %v400, %v536
      %v581 = vadd.f32 %v400, %v537
      %v582 = vadd.f32 %v400, %v538
      %v583 = vadd.f32 %v400, %v539
      %v584 = vadd.f32 %v400, %v540
      %v585 = vadd.f32 %v400, %v541
      %v586 = vadd.f32 %v400, %v542
      %v587 = vadd.f32 %v400, %v543
      %v588 = vadd.f32 %v400, %v544
      %v589 = vadd.f32 %v400, %v545
      %v590 = vadd.f32 %v400, %v546
      %v591 = vadd.f32 %v400, %v547
      %v592 = vadd.f32 %v400, %v548
      %v593 = vadd.f32 %v400, %v549
      %v594 = vadd.f32 %v400, %v550
      %v595 = vadd.f32 %v400, %v551
      %v596 = vadd.f32 %v400, %v552
      %v597 = vadd.f32 %v400, %v553
      %v598 = vadd.f32 %v400, %v554
      %v599 = vadd.f32 %v400, %v555
      %v600 = vadd.f32 %v400, %v556
      %v601 = vadd.f32 %v400, %v557
      %v602 = vadd.f32 %v400, %v558
      %v603 = vadd.f32 %v400, %v559
      %v604 = vadd.f32 %v400, %v560
      %v605 = vlaneseq
      %v606 = vshrl.u32 %v605, 7
      %v607 = vsub.s32 0, %v606
      %v608 = vrot.slane %v383, %v607
      %v609 = vsel %vm509, %v608, 0.0
      %v610 = vsel %vm510, %v608, 0.0
      %v611 = vmul.f32 %v476, %v609
      %v612 = vmul.f32 %v452, %v610
      %v613 = vmul.f32 %v477, %v609
      %v614 = vmul.f32 %v453, %v610
      %v615 = vmul.f32 %v478, %v609
      %v616 = vmul.f32 %v454, %v610
      %v617 = vmul.f32 %v479, %v609
      %v618 = vmul.f32 %v455, %v610
      %v619 = vmul.f32 %v480, %v609
      %v620 = vmul.f32 %v456, %v610
      %v621 = vmul.f32 %v481, %v609
      %v622 = vmul.f32 %v457, %v610
      %v623 = vmul.f32 %v482, %v609
      %v624 = vmul.f32 %v458, %v610
      %v625 = vmul.f32 %v483, %v609
      %v626 = vmul.f32 %v459, %v610
      %v627 = vmul.f32 %v484, %v609
      %v628 = vmul.f32 %v460, %v610
      %v629 = vmul.f32 %v485, %v609
      %v630 = vmul.f32 %v461, %v610
      %v631 = vmul.f32 %v486, %v609
      %v632 = vmul.f32 %v462, %v610
      %v633 = vmul.f32 %v487, %v609
      %v634 = vmul.f32 %v463, %v610
      %v635 = vmul.f32 %v488, %v609
      %v636 = vmul.f32 %v464, %v610
      %v637 = vmul.f32 %v489, %v609
      %v638 = vmul.f32 %v465, %v610
      %v639 = vmul.f32 %v490, %v609
      %v640 = vmul.f32 %v466, %v610
      %v641 = vmul.f32 %v491, %v609
      %v642 = vmul.f32 %v467, %v610
      %v643 = vmul.f32 %v492, %v609
      %v644 = vmul.f32 %v468, %v610
      %v645 = vmul.f32 %v493, %v609
      %v646 = vmul.f32 %v469, %v610
      %v647 = vmul.f32 %v494, %v609
      %v648 = vmul.f32 %v470, %v610
      %v649 = vmul.f32 %v495, %v609
      %v650 = vmul.f32 %v471, %v610
      %v651 = vmul.f32 %v496, %v609
      %v652 = vmul.f32 %v472, %v610
      %v653 = vmul.f32 %v497, %v609
      %v654 = vmul.f32 %v473, %v610
      %v655 = vadd.f32 %v561, %v611
      %v656 = vadd.f32 %v562, %v612
      %v657 = vadd.f32 %v563, %v613
      %v658 = vadd.f32 %v564, %v614
      %v659 = vadd.f32 %v565, %v615
      %v660 = vadd.f32 %v566, %v616
      %v661 = vadd.f32 %v567, %v617
      %v662 = vadd.f32 %v568, %v618
      %v663 = vadd.f32 %v569, %v619
      %v664 = vadd.f32 %v570, %v620
      %v665 = vadd.f32 %v571, %v621
      %v666 = vadd.f32 %v572, %v622
      %v667 = vadd.f32 %v573, %v623
      %v668 = vadd.f32 %v574, %v624
      %v669 = vadd.f32 %v575, %v625
      %v670 = vadd.f32 %v576, %v626
      %v671 = vadd.f32 %v577, %v627
      %v672 = vadd.f32 %v578, %v628
      %v673 = vadd.f32 %v579, %v629
      %v674 = vadd.f32 %v580, %v630
      %v675 = vadd.f32 %v581, %v631
      %v676 = vadd.f32 %v582, %v632
      %v677 = vadd.f32 %v583, %v633
      %v678 = vadd.f32 %v584, %v634
      %v679 = vadd.f32 %v585, %v635
      %v680 = vadd.f32 %v586, %v636
      %v681 = vadd.f32 %v587, %v637
      %v682 = vadd.f32 %v588, %v638
      %v683 = vadd.f32 %v589, %v639
      %v684 = vadd.f32 %v590, %v640
      %v685 = vadd.f32 %v591, %v641
      %v686 = vadd.f32 %v592, %v642
      %v687 = vadd.f32 %v593, %v643
      %v688 = vadd.f32 %v594, %v644
      %v689 = vadd.f32 %v595, %v645
      %v690 = vadd.f32 %v596, %v646
      %v691 = vadd.f32 %v597, %v647
      %v692 = vadd.f32 %v598, %v648
      %v693 = vadd.f32 %v599, %v649
      %v694 = vadd.f32 %v600, %v650
      %v695 = vadd.f32 %v601, %v651
      %v696 = vadd.f32 %v602, %v652
      %v697 = vadd.f32 %v603, %v653
      %v698 = vadd.f32 %v604, %v654
      %v699 = vlaneseq
      %v700 = vshrl.u32 %v699, 7
      %v701 = vsub.s32 0, %v700
      %v702 = vrot.slane %v384, %v701
      %v703 = vsel %vm509, %v702, 0.0
      %v704 = vsel %vm510, %v702, 0.0
      %v705 = vmul.f32 %v477, %v703
      %v706 = vmul.f32 %v453, %v704
      %v707 = vmul.f32 %v478, %v703
      %v708 = vmul.f32 %v454, %v704
      %v709 = vmul.f32 %v479, %v703
      %v710 = vmul.f32 %v455, %v704
      %v711 = vmul.f32 %v480, %v703
      %v712 = vmul.f32 %v456, %v704
      %v713 = vmul.f32 %v481, %v703
      %v714 = vmul.f32 %v457, %v704
      %v715 = vmul.f32 %v482, %v703
      %v716 = vmul.f32 %v458, %v704
      %v717 = vmul.f32 %v483, %v703
      %v718 = vmul.f32 %v459, %v704
      %v719 = vmul.f32 %v484, %v703
      %v720 = vmul.f32 %v460, %v704
      %v721 = vmul.f32 %v485, %v703
      %v722 = vmul.f32 %v461, %v704
      %v723 = vmul.f32 %v486, %v703
      %v724 = vmul.f32 %v462, %v704
      %v725 = vmul.f32 %v487, %v703
      %v726 = vmul.f32 %v463, %v704
      %v727 = vmul.f32 %v488, %v703
      %v728 = vmul.f32 %v464, %v704
      %v729 = vmul.f32 %v489, %v703
      %v730 = vmul.f32 %v465, %v704
      %v731 = vmul.f32 %v490, %v703
      %v732 = vmul.f32 %v466, %v704
      %v733 = vmul.f32 %v491, %v703
      %v734 = vmul.f32 %v467, %v704
      %v735 = vmul.f32 %v492, %v703
      %v736 = vmul.f32 %v468, %v704
      %v737 = vmul.f32 %v493, %v703
      %v738 = vmul.f32 %v469, %v704
      %v739 = vmul.f32 %v494, %v703
      %v740 = vmul.f32 %v470, %v704
      %v741 = vmul.f32 %v495, %v703
      %v742 = vmul.f32 %v471, %v704
      %v743 = vmul.f32 %v496, %v703
      %v744 = vmul.f32 %v472, %v704
      %v745 = vmul.f32 %v497, %v703
      %v746 = vmul.f32 %v473, %v704
      %v747 = vmul.f32 %v498, %v703
      %v748 = vmul.f32 %v474, %v704
      %v749 = vadd.f32 %v655, %v705
      %v750 = vadd.f32 %v656, %v706
      %v751 = vadd.f32 %v657, %v707
      %v752 = vadd.f32 %v658, %v708
      %v753 = vadd.f32 %v659, %v709
      %v754 = vadd.f32 %v660, %v710
      %v755 = vadd.f32 %v661, %v711
      %v756 = vadd.f32 %v662, %v712
      %v757 = vadd.f32 %v663, %v713
      %v758 = vadd.f32 %v664, %v714
      %v759 = vadd.f32 %v665, %v715
      %v760 = vadd.f32 %v666, %v716
      %v761 = vadd.f32 %v667, %v717
      %v762 = vadd.f32 %v668, %v718
      %v763 = vadd.f32 %v669, %v719
      %v764 = vadd.f32 %v670, %v720
      %v765 = vadd.f32 %v671, %v721
      %v766 = vadd.f32 %v672, %v722
      %v767 = vadd.f32 %v673, %v723
      %v768 = vadd.f32 %v674, %v724
      %v769 = vadd.f32 %v675, %v725
      %v770 = vadd.f32 %v676, %v726
      %v771 = vadd.f32 %v677, %v727
      %v772 = vadd.f32 %v678, %v728
      %v773 = vadd.f32 %v679, %v729
      %v774 = vadd.f32 %v680, %v730
      %v775 = vadd.f32 %v681, %v731
      %v776 = vadd.f32 %v682, %v732
      %v777 = vadd.f32 %v683, %v733
      %v778 = vadd.f32 %v684, %v734
      %v779 = vadd.f32 %v685, %v735
      %v780 = vadd.f32 %v686, %v736
      %v781 = vadd.f32 %v687, %v737
      %v782 = vadd.f32 %v688, %v738
      %v783 = vadd.f32 %v689, %v739
      %v784 = vadd.f32 %v690, %v740
      %v785 = vadd.f32 %v691, %v741
      %v786 = vadd.f32 %v692, %v742
      %v787 = vadd.f32 %v693, %v743
      %v788 = vadd.f32 %v694, %v744
      %v789 = vadd.f32 %v695, %v745
      %v790 = vadd.f32 %v696, %v746
      %v791 = vadd.f32 %v697, %v747
      %v792 = vadd.f32 %v698, %v748
      %v793 = vlaneseq
      %v794 = vshrl.u32 %v793, 7
      %v795 = vsub.s32 1, %v794
      %v796 = vrot.slane %v382, %v795
      %v797 = vmul.f32 %v334, %v796
      %v798 = vmul.f32 %v335, %v796
      %v799 = vmul.f32 %v336, %v796
      %v800 = vmul.f32 %v337, %v796
      %v801 = vmul.f32 %v338, %v796
      %v802 = vmul.f32 %v339, %v796
      %v803 = vmul.f32 %v340, %v796
      %v804 = vmul.f32 %v341, %v796
      %v805 = vmul.f32 %v342, %v796
      %v806 = vmul.f32 %v343, %v796
      %v807 = vmul.f32 %v344, %v796
      %v808 = vmul.f32 %v345, %v796
      %v809 = vmul.f32 %v346, %v796
      %v810 = vmul.f32 %v347, %v796
      %v811 = vmul.f32 %v348, %v796
      %v812 = vmul.f32 %v349, %v796
      %v813 = vmul.f32 %v350, %v796
      %v814 = vmul.f32 %v351, %v796
      %v815 = vmul.f32 %v352, %v796
      %v816 = vmul.f32 %v353, %v796
      %v817 = vmul.f32 %v354, %v796
      %v818 = vmul.f32 %v355, %v796
      %v819 = vmul.f32 %v356, %v796
      %v820 = vmul.f32 %v357, %v796
      %v821 = vmul.f32 %v358, %v796
      %v822 = vmul.f32 %v359, %v796
      %v823 = vmul.f32 %v360, %v796
      %v824 = vmul.f32 %v361, %v796
      %v825 = vmul.f32 %v362, %v796
      %v826 = vmul.f32 %v363, %v796
      %v827 = vmul.f32 %v364, %v796
      %v828 = vmul.f32 %v365, %v796
      %v829 = vmul.f32 %v366, %v796
      %v830 = vmul.f32 %v367, %v796
      %v831 = vmul.f32 %v368, %v796
      %v832 = vmul.f32 %v369, %v796
      %v833 = vmul.f32 %v370, %v796
      %v834 = vmul.f32 %v371, %v796
      %v835 = vmul.f32 %v372, %v796
      %v836 = vmul.f32 %v373, %v796
      %v837 = vmul.f32 %v374, %v796
      %v838 = vmul.f32 %v375, %v796
      %v839 = vmul.f32 %v376, %v796
      %v840 = vmul.f32 %v377, %v796
      %v841 = vadd.f32 %v749, %v797
      %v842 = vadd.f32 %v750, %v798
      %v843 = vadd.f32 %v751, %v799
      %v844 = vadd.f32 %v752, %v800
      %v845 = vadd.f32 %v753, %v801
      %v846 = vadd.f32 %v754, %v802
      %v847 = vadd.f32 %v755, %v803
      %v848 = vadd.f32 %v756, %v804
      %v849 = vadd.f32 %v757, %v805
      %v850 = vadd.f32 %v758, %v806
      %v851 = vadd.f32 %v759, %v807
      %v852 = vadd.f32 %v760, %v808
      %v853 = vadd.f32 %v761, %v809
      %v854 = vadd.f32 %v762, %v810
      %v855 = vadd.f32 %v763, %v811
      %v856 = vadd.f32 %v764, %v812
      %v857 = vadd.f32 %v765, %v813
      %v858 = vadd.f32 %v766, %v814
      %v859 = vadd.f32 %v767, %v815
      %v860 = vadd.f32 %v768, %v816
      %v861 = vadd.f32 %v769, %v817
      %v862 = vadd.f32 %v770, %v818
      %v863 = vadd.f32 %v771, %v819
      %v864 = vadd.f32 %v772, %v820
      %v865 = vadd.f32 %v773, %v821
      %v866 = vadd.f32 %v774, %v822
      %v867 = vadd.f32 %v775, %v823
      %v868 = vadd.f32 %v776, %v824
      %v869 = vadd.f32 %v777, %v825
      %v870 = vadd.f32 %v778, %v826
      %v871 = vadd.f32 %v779, %v827
      %v872 = vadd.f32 %v780, %v828
      %v873 = vadd.f32 %v781, %v829
      %v874 = vadd.f32 %v782, %v830
      %v875 = vadd.f32 %v783, %v831
      %v876 = vadd.f32 %v784, %v832
      %v877 = vadd.f32 %v785, %v833
      %v878 = vadd.f32 %v786, %v834
      %v879 = vadd.f32 %v787, %v835
      %v880 = vadd.f32 %v788, %v836
      %v881 = vadd.f32 %v789, %v837
      %v882 = vadd.f32 %v790, %v838
      %v883 = vadd.f32 %v791, %v839
      %v884 = vadd.f32 %v792, %v840
      %v885 = vlaneseq
      %v886 = vshrl.u32 %v885, 7
      %v887 = vsub.s32 1, %v886
      %v888 = vrot.slane %v383, %v887
      %v889 = vmul.f32 %v336, %v888
      %v890 = vmul.f32 %v337, %v888
      %v891 = vmul.f32 %v338, %v888
      %v892 = vmul.f32 %v339, %v888
      %v893 = vmul.f32 %v340, %v888
      %v894 = vmul.f32 %v341, %v888
      %v895 = vmul.f32 %v342, %v888
      %v896 = vmul.f32 %v343, %v888
      %v897 = vmul.f32 %v344, %v888
      %v898 = vmul.f32 %v345, %v888
      %v899 = vmul.f32 %v346, %v888
      %v900 = vmul.f32 %v347, %v888
      %v901 = vmul.f32 %v348, %v888
      %v902 = vmul.f32 %v349, %v888
      %v903 = vmul.f32 %v350, %v888
      %v904 = vmul.f32 %v351, %v888
      %v905 = vmul.f32 %v352, %v888
      %v906 = vmul.f32 %v353, %v888
      %v907 = vmul.f32 %v354, %v888
      %v908 = vmul.f32 %v355, %v888
      %v909 = vmul.f32 %v356, %v888
      %v910 = vmul.f32 %v357, %v888
      %v911 = vmul.f32 %v358, %v888
      %v912 = vmul.f32 %v359, %v888
      %v913 = vmul.f32 %v360, %v888
      %v914 = vmul.f32 %v361, %v888
      %v915 = vmul.f32 %v362, %v888
      %v916 = vmul.f32 %v363, %v888
      %v917 = vmul.f32 %v364, %v888
      %v918 = vmul.f32 %v365, %v888
      %v919 = vmul.f32 %v366, %v888
      %v920 = vmul.f32 %v367, %v888
      %v921 = vmul.f32 %v368, %v888
      %v922 = vmul.f32 %v369, %v888
      %v923 = vmul.f32 %v370, %v888
      %v924 = vmul.f32 %v371, %v888
      %v925 = vmul.f32 %v372, %v888
      %v926 = vmul.f32 %v373, %v888
      %v927 = vmul.f32 %v374, %v888
      %v928 = vmul.f32 %v375, %v888
      %v929 = vmul.f32 %v376, %v888
      %v930 = vmul.f32 %v377, %v888
      %v931 = vmul.f32 %v378, %v888
      %v932 = vmul.f32 %v379, %v888
      %v933 = vadd.f32 %v841, %v889
      %v934 = vadd.f32 %v842, %v890
      %v935 = vadd.f32 %v843, %v891
      %v936 = vadd.f32 %v844, %v892
      %v937 = vadd.f32 %v845, %v893
      %v938 = vadd.f32 %v846, %v894
      %v939 = vadd.f32 %v847, %v895
      %v940 = vadd.f32 %v848, %v896
      %v941 = vadd.f32 %v849, %v897
      %v942 = vadd.f32 %v850, %v898
      %v943 = vadd.f32 %v851, %v899
      %v944 = vadd.f32 %v852, %v900
      %v945 = vadd.f32 %v853, %v901
      %v946 = vadd.f32 %v854, %v902
      %v947 = vadd.f32 %v855, %v903
      %v948 = vadd.f32 %v856, %v904
      %v949 = vadd.f32 %v857, %v905
      %v950 = vadd.f32 %v858, %v906
      %v951 = vadd.f32 %v859, %v907
      %v952 = vadd.f32 %v860, %v908
      %v953 = vadd.f32 %v861, %v909
      %v954 = vadd.f32 %v862, %v910
      %v955 = vadd.f32 %v863, %v911
      %v956 = vadd.f32 %v864, %v912
      %v957 = vadd.f32 %v865, %v913
      %v958 = vadd.f32 %v866, %v914
      %v959 = vadd.f32 %v867, %v915
      %v960 = vadd.f32 %v868, %v916
      %v961 = vadd.f32 %v869, %v917
      %v962 = vadd.f32 %v870, %v918
      %v963 = vadd.f32 %v871, %v919
      %v964 = vadd.f32 %v872, %v920
      %v965 = vadd.f32 %v873, %v921
      %v966 = vadd.f32 %v874, %v922
      %v967 = vadd.f32 %v875, %v923
      %v968 = vadd.f32 %v876, %v924
      %v969 = vadd.f32 %v877, %v925
      %v970 = vadd.f32 %v878, %v926
      %v971 = vadd.f32 %v879, %v927
      %v972 = vadd.f32 %v880, %v928
      %v973 = vadd.f32 %v881, %v929
      %v974 = vadd.f32 %v882, %v930
      %v975 = vadd.f32 %v883, %v931
      %v976 = vadd.f32 %v884, %v932
      %v977 = vlaneseq
      %v978 = vshrl.u32 %v977, 7
      %v979 = vsub.s32 1, %v978
      %v980 = vrot.slane %v384, %v979
      %v981 = vmul.f32 %v338, %v980
      %v982 = vmul.f32 %v339, %v980
      %v983 = vmul.f32 %v340, %v980
      %v984 = vmul.f32 %v341, %v980
      %v985 = vmul.f32 %v342, %v980
      %v986 = vmul.f32 %v343, %v980
      %v987 = vmul.f32 %v344, %v980
      %v988 = vmul.f32 %v345, %v980
      %v989 = vmul.f32 %v346, %v980
      %v990 = vmul.f32 %v347, %v980
      %v991 = vmul.f32 %v348, %v980
      %v992 = vmul.f32 %v349, %v980
      %v993 = vmul.f32 %v350, %v980
      %v994 = vmul.f32 %v351, %v980
      %v995 = vmul.f32 %v352, %v980
      %v996 = vmul.f32 %v353, %v980
      %v997 = vmul.f32 %v354, %v980
      %v998 = vmul.f32 %v355, %v980
      %v999 = vmul.f32 %v356, %v980
      %v1000 = vmul.f32 %v357, %v980
      %v1001 = vmul.f32 %v358, %v980
      %v1002 = vmul.f32 %v359, %v980
      %v1003 = vmul.f32 %v360, %v980
      %v1004 = vmul.f32 %v361, %v980
      %v1005 = vmul.f32 %v362, %v980
      %v1006 = vmul.f32 %v363, %v980
      %v1007 = vmul.f32 %v364, %v980
      %v1008 = vmul.f32 %v365, %v980
      %v1009 = vmul.f32 %v366, %v980
      %v1010 = vmul.f32 %v367, %v980
      %v1011 = vmul.f32 %v368, %v980
      %v1012 = vmul.f32 %v369, %v980
      %v1013 = vmul.f32 %v370, %v980
      %v1014 = vmul.f32 %v371, %v980
      %v1015 = vmul.f32 %v372, %v980
      %v1016 = vmul.f32 %v373, %v980
      %v1017 = vmul.f32 %v374, %v980
      %v1018 = vmul.f32 %v375, %v980
      %v1019 = vmul.f32 %v376, %v980
      %v1020 = vmul.f32 %v377, %v980
      %v1021 = vmul.f32 %v378, %v980
      %v1022 = vmul.f32 %v379, %v980
      %v1023 = vmul.f32 %v380, %v980
      %v1024 = vmul.f32 %v381, %v980
      %v1025 = vadd.f32 %v933, %v981
      %v1026 = vadd.f32 %v934, %v982
      %v1027 = vadd.f32 %v935, %v983
      %v1028 = vadd.f32 %v936, %v984
      %v1029 = vadd.f32 %v937, %v985
      %v1030 = vadd.f32 %v938, %v986
      %v1031 = vadd.f32 %v939, %v987
      %v1032 = vadd.f32 %v940, %v988
      %v1033 = vadd.f32 %v941, %v989
      %v1034 = vadd.f32 %v942, %v990
      %v1035 = vadd.f32 %v943, %v991
      %v1036 = vadd.f32 %v944, %v992
      %v1037 = vadd.f32 %v945, %v993
      %v1038 = vadd.f32 %v946, %v994
      %v1039 = vadd.f32 %v947, %v995
      %v1040 = vadd.f32 %v948, %v996
      %v1041 = vadd.f32 %v949, %v997
      %v1042 = vadd.f32 %v950, %v998
      %v1043 = vadd.f32 %v951, %v999
      %v1044 = vadd.f32 %v952, %v1000
      %v1045 = vadd.f32 %v953, %v1001
      %v1046 = vadd.f32 %v954, %v1002
      %v1047 = vadd.f32 %v955, %v1003
      %v1048 = vadd.f32 %v956, %v1004
      %v1049 = vadd.f32 %v957, %v1005
      %v1050 = vadd.f32 %v958, %v1006
      %v1051 = vadd.f32 %v959, %v1007
      %v1052 = vadd.f32 %v960, %v1008
      %v1053 = vadd.f32 %v961, %v1009
      %v1054 = vadd.f32 %v962, %v1010
      %v1055 = vadd.f32 %v963, %v1011
      %v1056 = vadd.f32 %v964, %v1012
      %v1057 = vadd.f32 %v965, %v1013
      %v1058 = vadd.f32 %v966, %v1014
      %v1059 = vadd.f32 %v967, %v1015
      %v1060 = vadd.f32 %v968, %v1016
      %v1061 = vadd.f32 %v969, %v1017
      %v1062 = vadd.f32 %v970, %v1018
      %v1063 = vadd.f32 %v971, %v1019
      %v1064 = vadd.f32 %v972, %v1020
      %v1065 = vadd.f32 %v973, %v1021
      %v1066 = vadd.f32 %v974, %v1022
      %v1067 = vadd.f32 %v975, %v1023
      %v1068 = vadd.f32 %v976, %v1024
      %v1069 = vrot.slane %v334, 1
      %v1070 = vrot.slane %v336, 1
      %v1071 = vrot.slane %v338, 1
      %v1072 = vrot.slane %v340, 1
      %v1073 = vrot.slane %v342, 1
      %v1074 = vrot.slane %v344, 1
      %v1075 = vrot.slane %v346, 1
      %v1076 = vrot.slane %v348, 1
      %v1077 = vrot.slane %v350, 1
      %v1078 = vrot.slane %v352, 1
      %v1079 = vrot.slane %v354, 1
      %v1080 = vrot.slane %v356, 1
      %v1081 = vrot.slane %v358, 1
      %v1082 = vrot.slane %v360, 1
      %v1083 = vrot.slane %v362, 1
      %v1084 = vrot.slane %v364, 1
      %v1085 = vrot.slane %v366, 1
      %v1086 = vrot.slane %v368, 1
      %v1087 = vrot.slane %v370, 1
      %v1088 = vrot.slane %v372, 1
      %v1089 = vrot.slane %v374, 1
      %v1090 = vrot.slane %v376, 1
      %v1091 = vrot.slane %v378, 1
      %v1092 = vrot.slane %v380, 1
      %v1093 = vrot.slane %v335, 1
      %v1094 = vrot.slane %v337, 1
      %v1095 = vrot.slane %v339, 1
      %v1096 = vrot.slane %v341, 1
      %v1097 = vrot.slane %v343, 1
      %v1098 = vrot.slane %v345, 1
      %v1099 = vrot.slane %v347, 1
      %v1100 = vrot.slane %v349, 1
      %v1101 = vrot.slane %v351, 1
      %v1102 = vrot.slane %v353, 1
      %v1103 = vrot.slane %v355, 1
      %v1104 = vrot.slane %v357, 1
      %v1105 = vrot.slane %v359, 1
      %v1106 = vrot.slane %v361, 1
      %v1107 = vrot.slane %v363, 1
      %v1108 = vrot.slane %v365, 1
      %v1109 = vrot.slane %v367, 1
      %v1110 = vrot.slane %v369, 1
      %v1111 = vrot.slane %v371, 1
      %v1112 = vrot.slane %v373, 1
      %v1113 = vrot.slane %v375, 1
      %v1114 = vrot.slane %v377, 1
      %v1115 = vrot.slane %v379, 1
      %v1116 = vrot.slane %v381, 1
      %vm1117 = vcmp.lt.s32.totalorder %v393, 7
      %v1118 = vsel %vm1117, %v1069, %v1093
      %v1119 = vsel %vm1117, %v1070, %v1094
      %v1120 = vsel %vm1117, %v1071, %v1095
      %v1121 = vsel %vm1117, %v1072, %v1096
      %v1122 = vsel %vm1117, %v1073, %v1097
      %v1123 = vsel %vm1117, %v1074, %v1098
      %v1124 = vsel %vm1117, %v1075, %v1099
      %v1125 = vsel %vm1117, %v1076, %v1100
      %v1126 = vsel %vm1117, %v1077, %v1101
      %v1127 = vsel %vm1117, %v1078, %v1102
      %v1128 = vsel %vm1117, %v1079, %v1103
      %v1129 = vsel %vm1117, %v1080, %v1104
      %v1130 = vsel %vm1117, %v1081, %v1105
      %v1131 = vsel %vm1117, %v1082, %v1106
      %v1132 = vsel %vm1117, %v1083, %v1107
      %v1133 = vsel %vm1117, %v1084, %v1108
      %v1134 = vsel %vm1117, %v1085, %v1109
      %v1135 = vsel %vm1117, %v1086, %v1110
      %v1136 = vsel %vm1117, %v1087, %v1111
      %v1137 = vsel %vm1117, %v1088, %v1112
      %v1138 = vsel %vm1117, %v1089, %v1113
      %v1139 = vsel %vm1117, %v1090, %v1114
      %v1140 = vsel %vm1117, %v1091, %v1115
      %v1141 = vsel %vm1117, %v1092, %v1116
      %v1142 = vsel %vm1117, %v1093, %v1069
      %v1143 = vsel %vm1117, %v1094, %v1070
      %v1144 = vsel %vm1117, %v1095, %v1071
      %v1145 = vsel %vm1117, %v1096, %v1072
      %v1146 = vsel %vm1117, %v1097, %v1073
      %v1147 = vsel %vm1117, %v1098, %v1074
      %v1148 = vsel %vm1117, %v1099, %v1075
      %v1149 = vsel %vm1117, %v1100, %v1076
      %v1150 = vsel %vm1117, %v1101, %v1077
      %v1151 = vsel %vm1117, %v1102, %v1078
      %v1152 = vsel %vm1117, %v1103, %v1079
      %v1153 = vsel %vm1117, %v1104, %v1080
      %v1154 = vsel %vm1117, %v1105, %v1081
      %v1155 = vsel %vm1117, %v1106, %v1082
      %v1156 = vsel %vm1117, %v1107, %v1083
      %v1157 = vsel %vm1117, %v1108, %v1084
      %v1158 = vsel %vm1117, %v1109, %v1085
      %v1159 = vsel %vm1117, %v1110, %v1086
      %v1160 = vsel %vm1117, %v1111, %v1087
      %v1161 = vsel %vm1117, %v1112, %v1088
      %v1162 = vsel %vm1117, %v1113, %v1089
      %v1163 = vsel %vm1117, %v1114, %v1090
      %v1164 = vsel %vm1117, %v1115, %v1091
      %v1165 = vsel %vm1117, %v1116, %v1092
      %v1166 = vadd.s32 %v393, 1
      %v1167 = vadd.s32 %v394, 1
      %vm1168 = vcmp.ge.s32.totalorder %v1166, 0
      %vm1169 = vcmp.ge.s32.totalorder %v1167, 0
      %vm1170 = vcmp.lt.s32.totalorder %v1166, 16
      %vm1171 = vcmp.lt.s32.totalorder %v1167, 16
      %vm1172 = vmand %vm1168, %vm1170
      %vm1173 = vmand %vm1169, %vm1171
      %v1174 = vsel %vm1172, 1, 0
      %v1175 = vsel %vm1173, 1, 0
      %vm1176 = vcmp.eq.s32.totalorder %v1174, 1
      %vm1177 = vcmp.eq.s32.totalorder %v1175, 1
      %v1178 = vlaneseq
      %v1179 = vshrl.u32 %v1178, 7
      %v1180 = vsub.s32 2, %v1179
      %v1181 = vrot.slane %v382, %v1180
      %v1182 = vsel %vm1176, %v1181, 0.0
      %v1183 = vsel %vm1177, %v1181, 0.0
      %v1184 = vmul.f32 %v1118, %v1182
      %v1185 = vmul.f32 %v1142, %v1183
      %v1186 = vmul.f32 %v1119, %v1182
      %v1187 = vmul.f32 %v1143, %v1183
      %v1188 = vmul.f32 %v1120, %v1182
      %v1189 = vmul.f32 %v1144, %v1183
      %v1190 = vmul.f32 %v1121, %v1182
      %v1191 = vmul.f32 %v1145, %v1183
      %v1192 = vmul.f32 %v1122, %v1182
      %v1193 = vmul.f32 %v1146, %v1183
      %v1194 = vmul.f32 %v1123, %v1182
      %v1195 = vmul.f32 %v1147, %v1183
      %v1196 = vmul.f32 %v1124, %v1182
      %v1197 = vmul.f32 %v1148, %v1183
      %v1198 = vmul.f32 %v1125, %v1182
      %v1199 = vmul.f32 %v1149, %v1183
      %v1200 = vmul.f32 %v1126, %v1182
      %v1201 = vmul.f32 %v1150, %v1183
      %v1202 = vmul.f32 %v1127, %v1182
      %v1203 = vmul.f32 %v1151, %v1183
      %v1204 = vmul.f32 %v1128, %v1182
      %v1205 = vmul.f32 %v1152, %v1183
      %v1206 = vmul.f32 %v1129, %v1182
      %v1207 = vmul.f32 %v1153, %v1183
      %v1208 = vmul.f32 %v1130, %v1182
      %v1209 = vmul.f32 %v1154, %v1183
      %v1210 = vmul.f32 %v1131, %v1182
      %v1211 = vmul.f32 %v1155, %v1183
      %v1212 = vmul.f32 %v1132, %v1182
      %v1213 = vmul.f32 %v1156, %v1183
      %v1214 = vmul.f32 %v1133, %v1182
      %v1215 = vmul.f32 %v1157, %v1183
      %v1216 = vmul.f32 %v1134, %v1182
      %v1217 = vmul.f32 %v1158, %v1183
      %v1218 = vmul.f32 %v1135, %v1182
      %v1219 = vmul.f32 %v1159, %v1183
      %v1220 = vmul.f32 %v1136, %v1182
      %v1221 = vmul.f32 %v1160, %v1183
      %v1222 = vmul.f32 %v1137, %v1182
      %v1223 = vmul.f32 %v1161, %v1183
      %v1224 = vmul.f32 %v1138, %v1182
      %v1225 = vmul.f32 %v1162, %v1183
      %v1226 = vmul.f32 %v1139, %v1182
      %v1227 = vmul.f32 %v1163, %v1183
      %v1228 = vadd.f32 %v1025, %v1184
      %v1229 = vadd.f32 %v1026, %v1185
      %v1230 = vadd.f32 %v1027, %v1186
      %v1231 = vadd.f32 %v1028, %v1187
      %v1232 = vadd.f32 %v1029, %v1188
      %v1233 = vadd.f32 %v1030, %v1189
      %v1234 = vadd.f32 %v1031, %v1190
      %v1235 = vadd.f32 %v1032, %v1191
      %v1236 = vadd.f32 %v1033, %v1192
      %v1237 = vadd.f32 %v1034, %v1193
      %v1238 = vadd.f32 %v1035, %v1194
      %v1239 = vadd.f32 %v1036, %v1195
      %v1240 = vadd.f32 %v1037, %v1196
      %v1241 = vadd.f32 %v1038, %v1197
      %v1242 = vadd.f32 %v1039, %v1198
      %v1243 = vadd.f32 %v1040, %v1199
      %v1244 = vadd.f32 %v1041, %v1200
      %v1245 = vadd.f32 %v1042, %v1201
      %v1246 = vadd.f32 %v1043, %v1202
      %v1247 = vadd.f32 %v1044, %v1203
      %v1248 = vadd.f32 %v1045, %v1204
      %v1249 = vadd.f32 %v1046, %v1205
      %v1250 = vadd.f32 %v1047, %v1206
      %v1251 = vadd.f32 %v1048, %v1207
      %v1252 = vadd.f32 %v1049, %v1208
      %v1253 = vadd.f32 %v1050, %v1209
      %v1254 = vadd.f32 %v1051, %v1210
      %v1255 = vadd.f32 %v1052, %v1211
      %v1256 = vadd.f32 %v1053, %v1212
      %v1257 = vadd.f32 %v1054, %v1213
      %v1258 = vadd.f32 %v1055, %v1214
      %v1259 = vadd.f32 %v1056, %v1215
      %v1260 = vadd.f32 %v1057, %v1216
      %v1261 = vadd.f32 %v1058, %v1217
      %v1262 = vadd.f32 %v1059, %v1218
      %v1263 = vadd.f32 %v1060, %v1219
      %v1264 = vadd.f32 %v1061, %v1220
      %v1265 = vadd.f32 %v1062, %v1221
      %v1266 = vadd.f32 %v1063, %v1222
      %v1267 = vadd.f32 %v1064, %v1223
      %v1268 = vadd.f32 %v1065, %v1224
      %v1269 = vadd.f32 %v1066, %v1225
      %v1270 = vadd.f32 %v1067, %v1226
      %v1271 = vadd.f32 %v1068, %v1227
      %v1272 = vlaneseq
      %v1273 = vshrl.u32 %v1272, 7
      %v1274 = vsub.s32 2, %v1273
      %v1275 = vrot.slane %v383, %v1274
      %v1276 = vsel %vm1176, %v1275, 0.0
      %v1277 = vsel %vm1177, %v1275, 0.0
      %v1278 = vmul.f32 %v1119, %v1276
      %v1279 = vmul.f32 %v1143, %v1277
      %v1280 = vmul.f32 %v1120, %v1276
      %v1281 = vmul.f32 %v1144, %v1277
      %v1282 = vmul.f32 %v1121, %v1276
      %v1283 = vmul.f32 %v1145, %v1277
      %v1284 = vmul.f32 %v1122, %v1276
      %v1285 = vmul.f32 %v1146, %v1277
      %v1286 = vmul.f32 %v1123, %v1276
      %v1287 = vmul.f32 %v1147, %v1277
      %v1288 = vmul.f32 %v1124, %v1276
      %v1289 = vmul.f32 %v1148, %v1277
      %v1290 = vmul.f32 %v1125, %v1276
      %v1291 = vmul.f32 %v1149, %v1277
      %v1292 = vmul.f32 %v1126, %v1276
      %v1293 = vmul.f32 %v1150, %v1277
      %v1294 = vmul.f32 %v1127, %v1276
      %v1295 = vmul.f32 %v1151, %v1277
      %v1296 = vmul.f32 %v1128, %v1276
      %v1297 = vmul.f32 %v1152, %v1277
      %v1298 = vmul.f32 %v1129, %v1276
      %v1299 = vmul.f32 %v1153, %v1277
      %v1300 = vmul.f32 %v1130, %v1276
      %v1301 = vmul.f32 %v1154, %v1277
      %v1302 = vmul.f32 %v1131, %v1276
      %v1303 = vmul.f32 %v1155, %v1277
      %v1304 = vmul.f32 %v1132, %v1276
      %v1305 = vmul.f32 %v1156, %v1277
      %v1306 = vmul.f32 %v1133, %v1276
      %v1307 = vmul.f32 %v1157, %v1277
      %v1308 = vmul.f32 %v1134, %v1276
      %v1309 = vmul.f32 %v1158, %v1277
      %v1310 = vmul.f32 %v1135, %v1276
      %v1311 = vmul.f32 %v1159, %v1277
      %v1312 = vmul.f32 %v1136, %v1276
      %v1313 = vmul.f32 %v1160, %v1277
      %v1314 = vmul.f32 %v1137, %v1276
      %v1315 = vmul.f32 %v1161, %v1277
      %v1316 = vmul.f32 %v1138, %v1276
      %v1317 = vmul.f32 %v1162, %v1277
      %v1318 = vmul.f32 %v1139, %v1276
      %v1319 = vmul.f32 %v1163, %v1277
      %v1320 = vmul.f32 %v1140, %v1276
      %v1321 = vmul.f32 %v1164, %v1277
      %v1322 = vadd.f32 %v1228, %v1278
      %v1323 = vadd.f32 %v1229, %v1279
      %v1324 = vadd.f32 %v1230, %v1280
      %v1325 = vadd.f32 %v1231, %v1281
      %v1326 = vadd.f32 %v1232, %v1282
      %v1327 = vadd.f32 %v1233, %v1283
      %v1328 = vadd.f32 %v1234, %v1284
      %v1329 = vadd.f32 %v1235, %v1285
      %v1330 = vadd.f32 %v1236, %v1286
      %v1331 = vadd.f32 %v1237, %v1287
      %v1332 = vadd.f32 %v1238, %v1288
      %v1333 = vadd.f32 %v1239, %v1289
      %v1334 = vadd.f32 %v1240, %v1290
      %v1335 = vadd.f32 %v1241, %v1291
      %v1336 = vadd.f32 %v1242, %v1292
      %v1337 = vadd.f32 %v1243, %v1293
      %v1338 = vadd.f32 %v1244, %v1294
      %v1339 = vadd.f32 %v1245, %v1295
      %v1340 = vadd.f32 %v1246, %v1296
      %v1341 = vadd.f32 %v1247, %v1297
      %v1342 = vadd.f32 %v1248, %v1298
      %v1343 = vadd.f32 %v1249, %v1299
      %v1344 = vadd.f32 %v1250, %v1300
      %v1345 = vadd.f32 %v1251, %v1301
      %v1346 = vadd.f32 %v1252, %v1302
      %v1347 = vadd.f32 %v1253, %v1303
      %v1348 = vadd.f32 %v1254, %v1304
      %v1349 = vadd.f32 %v1255, %v1305
      %v1350 = vadd.f32 %v1256, %v1306
      %v1351 = vadd.f32 %v1257, %v1307
      %v1352 = vadd.f32 %v1258, %v1308
      %v1353 = vadd.f32 %v1259, %v1309
      %v1354 = vadd.f32 %v1260, %v1310
      %v1355 = vadd.f32 %v1261, %v1311
      %v1356 = vadd.f32 %v1262, %v1312
      %v1357 = vadd.f32 %v1263, %v1313
      %v1358 = vadd.f32 %v1264, %v1314
      %v1359 = vadd.f32 %v1265, %v1315
      %v1360 = vadd.f32 %v1266, %v1316
      %v1361 = vadd.f32 %v1267, %v1317
      %v1362 = vadd.f32 %v1268, %v1318
      %v1363 = vadd.f32 %v1269, %v1319
      %v1364 = vadd.f32 %v1270, %v1320
      %v1365 = vadd.f32 %v1271, %v1321
      %v1366 = vlaneseq
      %v1367 = vshrl.u32 %v1366, 7
      %v1368 = vsub.s32 2, %v1367
      %v1369 = vrot.slane %v384, %v1368
      %v1370 = vsel %vm1176, %v1369, 0.0
      %v1371 = vsel %vm1177, %v1369, 0.0
      %v1372 = vmul.f32 %v1120, %v1370
      %v1373 = vmul.f32 %v1144, %v1371
      %v1374 = vmul.f32 %v1121, %v1370
      %v1375 = vmul.f32 %v1145, %v1371
      %v1376 = vmul.f32 %v1122, %v1370
      %v1377 = vmul.f32 %v1146, %v1371
      %v1378 = vmul.f32 %v1123, %v1370
      %v1379 = vmul.f32 %v1147, %v1371
      %v1380 = vmul.f32 %v1124, %v1370
      %v1381 = vmul.f32 %v1148, %v1371
      %v1382 = vmul.f32 %v1125, %v1370
      %v1383 = vmul.f32 %v1149, %v1371
      %v1384 = vmul.f32 %v1126, %v1370
      %v1385 = vmul.f32 %v1150, %v1371
      %v1386 = vmul.f32 %v1127, %v1370
      %v1387 = vmul.f32 %v1151, %v1371
      %v1388 = vmul.f32 %v1128, %v1370
      %v1389 = vmul.f32 %v1152, %v1371
      %v1390 = vmul.f32 %v1129, %v1370
      %v1391 = vmul.f32 %v1153, %v1371
      %v1392 = vmul.f32 %v1130, %v1370
      %v1393 = vmul.f32 %v1154, %v1371
      %v1394 = vmul.f32 %v1131, %v1370
      %v1395 = vmul.f32 %v1155, %v1371
      %v1396 = vmul.f32 %v1132, %v1370
      %v1397 = vmul.f32 %v1156, %v1371
      %v1398 = vmul.f32 %v1133, %v1370
      %v1399 = vmul.f32 %v1157, %v1371
      %v1400 = vmul.f32 %v1134, %v1370
      %v1401 = vmul.f32 %v1158, %v1371
      %v1402 = vmul.f32 %v1135, %v1370
      %v1403 = vmul.f32 %v1159, %v1371
      %v1404 = vmul.f32 %v1136, %v1370
      %v1405 = vmul.f32 %v1160, %v1371
      %v1406 = vmul.f32 %v1137, %v1370
      %v1407 = vmul.f32 %v1161, %v1371
      %v1408 = vmul.f32 %v1138, %v1370
      %v1409 = vmul.f32 %v1162, %v1371
      %v1410 = vmul.f32 %v1139, %v1370
      %v1411 = vmul.f32 %v1163, %v1371
      %v1412 = vmul.f32 %v1140, %v1370
      %v1413 = vmul.f32 %v1164, %v1371
      %v1414 = vmul.f32 %v1141, %v1370
      %v1415 = vmul.f32 %v1165, %v1371
      %v1416 = vadd.f32 %v1322, %v1372
      %v1417 = vadd.f32 %v1323, %v1373
      %v1418 = vadd.f32 %v1324, %v1374
      %v1419 = vadd.f32 %v1325, %v1375
      %v1420 = vadd.f32 %v1326, %v1376
      %v1421 = vadd.f32 %v1327, %v1377
      %v1422 = vadd.f32 %v1328, %v1378
      %v1423 = vadd.f32 %v1329, %v1379
      %v1424 = vadd.f32 %v1330, %v1380
      %v1425 = vadd.f32 %v1331, %v1381
      %v1426 = vadd.f32 %v1332, %v1382
      %v1427 = vadd.f32 %v1333, %v1383
      %v1428 = vadd.f32 %v1334, %v1384
      %v1429 = vadd.f32 %v1335, %v1385
      %v1430 = vadd.f32 %v1336, %v1386
      %v1431 = vadd.f32 %v1337, %v1387
      %v1432 = vadd.f32 %v1338, %v1388
      %v1433 = vadd.f32 %v1339, %v1389
      %v1434 = vadd.f32 %v1340, %v1390
      %v1435 = vadd.f32 %v1341, %v1391
      %v1436 = vadd.f32 %v1342, %v1392
      %v1437 = vadd.f32 %v1343, %v1393
      %v1438 = vadd.f32 %v1344, %v1394
      %v1439 = vadd.f32 %v1345, %v1395
      %v1440 = vadd.f32 %v1346, %v1396
      %v1441 = vadd.f32 %v1347, %v1397
      %v1442 = vadd.f32 %v1348, %v1398
      %v1443 = vadd.f32 %v1349, %v1399
      %v1444 = vadd.f32 %v1350, %v1400
      %v1445 = vadd.f32 %v1351, %v1401
      %v1446 = vadd.f32 %v1352, %v1402
      %v1447 = vadd.f32 %v1353, %v1403
      %v1448 = vadd.f32 %v1354, %v1404
      %v1449 = vadd.f32 %v1355, %v1405
      %v1450 = vadd.f32 %v1356, %v1406
      %v1451 = vadd.f32 %v1357, %v1407
      %v1452 = vadd.f32 %v1358, %v1408
      %v1453 = vadd.f32 %v1359, %v1409
      %v1454 = vadd.f32 %v1360, %v1410
      %v1455 = vadd.f32 %v1361, %v1411
      %v1456 = vadd.f32 %v1362, %v1412
      %v1457 = vadd.f32 %v1363, %v1413
      %v1458 = vadd.f32 %v1364, %v1414
      %v1459 = vadd.f32 %v1365, %v1415
      %s1460 = ssub.s32 %s331, 3
      %v1461 = vstv %s1460
      %v1462 = vadd.s32 %v1461, 1
      %v1463 = vadd.s32 %v1461, 2
      %v1464 = vadd.s32 %v1461, 3
      %v1465 = vadd.s32 %v1461, 4
      %v1466 = vadd.s32 %v1461, 5
      %v1467 = vadd.s32 %v1461, 6
      %v1468 = vadd.s32 %v1461, 7
      %v1469 = vadd.s32 %v1461, 8
      %v1470 = vadd.s32 %v1461, 9
      %v1471 = vadd.s32 %v1461, 10
      %v1472 = vadd.s32 %v1461, 11
      %v1473 = vadd.s32 %v1461, 12
      %v1474 = vadd.s32 %v1461, 13
      %v1475 = vadd.s32 %v1461, 14
      %v1476 = vadd.s32 %v1461, 15
      %v1477 = vadd.s32 %v1461, 16
      %v1478 = vadd.s32 %v1461, 17
      %v1479 = vadd.s32 %v1461, 18
      %v1480 = vadd.s32 %v1461, 19
      %v1481 = vadd.s32 %v1461, 20
      %v1482 = vadd.s32 %v1461, 21
      %vm1483 = vcmp.ge.s32.totalorder %v1461, 0
      %vm1484 = vcmp.ge.s32.totalorder %v1462, 0
      %vm1485 = vcmp.ge.s32.totalorder %v1463, 0
      %vm1486 = vcmp.ge.s32.totalorder %v1464, 0
      %vm1487 = vcmp.ge.s32.totalorder %v1465, 0
      %vm1488 = vcmp.ge.s32.totalorder %v1466, 0
      %vm1489 = vcmp.ge.s32.totalorder %v1467, 0
      %vm1490 = vcmp.ge.s32.totalorder %v1468, 0
      %vm1491 = vcmp.ge.s32.totalorder %v1469, 0
      %vm1492 = vcmp.ge.s32.totalorder %v1470, 0
      %vm1493 = vcmp.ge.s32.totalorder %v1471, 0
      %vm1494 = vcmp.ge.s32.totalorder %v1472, 0
      %vm1495 = vcmp.ge.s32.totalorder %v1473, 0
      %vm1496 = vcmp.ge.s32.totalorder %v1474, 0
      %vm1497 = vcmp.ge.s32.totalorder %v1475, 0
      %vm1498 = vcmp.ge.s32.totalorder %v1476, 0
      %vm1499 = vcmp.ge.s32.totalorder %v1477, 0
      %vm1500 = vcmp.ge.s32.totalorder %v1478, 0
      %vm1501 = vcmp.ge.s32.totalorder %v1479, 0
      %vm1502 = vcmp.ge.s32.totalorder %v1480, 0
      %vm1503 = vcmp.ge.s32.totalorder %v1481, 0
      %vm1504 = vcmp.ge.s32.totalorder %v1482, 0
      %vm1505 = vcmp.lt.s32.totalorder %v1461, 16
      %vm1506 = vcmp.lt.s32.totalorder %v1462, 16
      %vm1507 = vcmp.lt.s32.totalorder %v1463, 16
      %vm1508 = vcmp.lt.s32.totalorder %v1464, 16
      %vm1509 = vcmp.lt.s32.totalorder %v1465, 16
      %vm1510 = vcmp.lt.s32.totalorder %v1466, 16
      %vm1511 = vcmp.lt.s32.totalorder %v1467, 16
      %vm1512 = vcmp.lt.s32.totalorder %v1468, 16
      %vm1513 = vcmp.lt.s32.totalorder %v1469, 16
      %vm1514 = vcmp.lt.s32.totalorder %v1470, 16
      %vm1515 = vcmp.lt.s32.totalorder %v1471, 16
      %vm1516 = vcmp.lt.s32.totalorder %v1472, 16
      %vm1517 = vcmp.lt.s32.totalorder %v1473, 16
      %vm1518 = vcmp.lt.s32.totalorder %v1474, 16
      %vm1519 = vcmp.lt.s32.totalorder %v1475, 16
      %vm1520 = vcmp.lt.s32.totalorder %v1476, 16
      %vm1521 = vcmp.lt.s32.totalorder %v1477, 16
      %vm1522 = vcmp.lt.s32.totalorder %v1478, 16
      %vm1523 = vcmp.lt.s32.totalorder %v1479, 16
      %vm1524 = vcmp.lt.s32.totalorder %v1480, 16
      %vm1525 = vcmp.lt.s32.totalorder %v1481, 16
      %vm1526 = vcmp.lt.s32.totalorder %v1482, 16
      %vm1527 = vmand %vm1483, %vm1505
      %vm1528 = vmand %vm1484, %vm1506
      %vm1529 = vmand %vm1485, %vm1507
      %vm1530 = vmand %vm1486, %vm1508
      %vm1531 = vmand %vm1487, %vm1509
      %vm1532 = vmand %vm1488, %vm1510
      %vm1533 = vmand %vm1489, %vm1511
      %vm1534 = vmand %vm1490, %vm1512
      %vm1535 = vmand %vm1491, %vm1513
      %vm1536 = vmand %vm1492, %vm1514
      %vm1537 = vmand %vm1493, %vm1515
      %vm1538 = vmand %vm1494, %vm1516
      %vm1539 = vmand %vm1495, %vm1517
      %vm1540 = vmand %vm1496, %vm1518
      %vm1541 = vmand %vm1497, %vm1519
      %vm1542 = vmand %vm1498, %vm1520
      %vm1543 = vmand %vm1499, %vm1521
      %vm1544 = vmand %vm1500, %vm1522
      %vm1545 = vmand %vm1501, %vm1523
      %vm1546 = vmand %vm1502, %vm1524
      %vm1547 = vmand %vm1503, %vm1525
      %vm1548 = vmand %vm1504, %vm1526
      %v1549 = vsel %vm1527, 1, 0
      %v1550 = vsel %vm1528, 1, 0
      %v1551 = vsel %vm1529, 1, 0
      %v1552 = vsel %vm1530, 1, 0
      %v1553 = vsel %vm1531, 1, 0
      %v1554 = vsel %vm1532, 1, 0
      %v1555 = vsel %vm1533, 1, 0
      %v1556 = vsel %vm1534, 1, 0
      %v1557 = vsel %vm1535, 1, 0
      %v1558 = vsel %vm1536, 1, 0
      %v1559 = vsel %vm1537, 1, 0
      %v1560 = vsel %vm1538, 1, 0
      %v1561 = vsel %vm1539, 1, 0
      %v1562 = vsel %vm1540, 1, 0
      %v1563 = vsel %vm1541, 1, 0
      %v1564 = vsel %vm1542, 1, 0
      %v1565 = vsel %vm1543, 1, 0
      %v1566 = vsel %vm1544, 1, 0
      %v1567 = vsel %vm1545, 1, 0
      %v1568 = vsel %vm1546, 1, 0
      %v1569 = vsel %vm1547, 1, 0
      %v1570 = vsel %vm1548, 1, 0
      %vm1571 = vcmp.eq.s32.totalorder %v1549, 1
      %vm1572 = vcmp.eq.s32.totalorder %v1550, 1
      %vm1573 = vcmp.eq.s32.totalorder %v1551, 1
      %vm1574 = vcmp.eq.s32.totalorder %v1552, 1
      %vm1575 = vcmp.eq.s32.totalorder %v1553, 1
      %vm1576 = vcmp.eq.s32.totalorder %v1554, 1
      %vm1577 = vcmp.eq.s32.totalorder %v1555, 1
      %vm1578 = vcmp.eq.s32.totalorder %v1556, 1
      %vm1579 = vcmp.eq.s32.totalorder %v1557, 1
      %vm1580 = vcmp.eq.s32.totalorder %v1558, 1
      %vm1581 = vcmp.eq.s32.totalorder %v1559, 1
      %vm1582 = vcmp.eq.s32.totalorder %v1560, 1
      %vm1583 = vcmp.eq.s32.totalorder %v1561, 1
      %vm1584 = vcmp.eq.s32.totalorder %v1562, 1
      %vm1585 = vcmp.eq.s32.totalorder %v1563, 1
      %vm1586 = vcmp.eq.s32.totalorder %v1564, 1
      %vm1587 = vcmp.eq.s32.totalorder %v1565, 1
      %vm1588 = vcmp.eq.s32.totalorder %v1566, 1
      %vm1589 = vcmp.eq.s32.totalorder %v1567, 1
      %vm1590 = vcmp.eq.s32.totalorder %v1568, 1
      %vm1591 = vcmp.eq.s32.totalorder %v1569, 1
      %vm1592 = vcmp.eq.s32.totalorder %v1570, 1
      %v1593 = vsel %vm1571, %v1416, 0.0
      %v1594 = vsel %vm1571, %v1417, 0.0
      %v1595 = vsel %vm1572, %v1418, 0.0
      %v1596 = vsel %vm1572, %v1419, 0.0
      %v1597 = vsel %vm1573, %v1420, 0.0
      %v1598 = vsel %vm1573, %v1421, 0.0
      %v1599 = vsel %vm1574, %v1422, 0.0
      %v1600 = vsel %vm1574, %v1423, 0.0
      %v1601 = vsel %vm1575, %v1424, 0.0
      %v1602 = vsel %vm1575, %v1425, 0.0
      %v1603 = vsel %vm1576, %v1426, 0.0
      %v1604 = vsel %vm1576, %v1427, 0.0
      %v1605 = vsel %vm1577, %v1428, 0.0
      %v1606 = vsel %vm1577, %v1429, 0.0
      %v1607 = vsel %vm1578, %v1430, 0.0
      %v1608 = vsel %vm1578, %v1431, 0.0
      %v1609 = vsel %vm1579, %v1432, 0.0
      %v1610 = vsel %vm1579, %v1433, 0.0
      %v1611 = vsel %vm1580, %v1434, 0.0
      %v1612 = vsel %vm1580, %v1435, 0.0
      %v1613 = vsel %vm1581, %v1436, 0.0
      %v1614 = vsel %vm1581, %v1437, 0.0
      %v1615 = vsel %vm1582, %v1438, 0.0
      %v1616 = vsel %vm1582, %v1439, 0.0
      %v1617 = vsel %vm1583, %v1440, 0.0
      %v1618 = vsel %vm1583, %v1441, 0.0
      %v1619 = vsel %vm1584, %v1442, 0.0
      %v1620 = vsel %vm1584, %v1443, 0.0
      %v1621 = vsel %vm1585, %v1444, 0.0
      %v1622 = vsel %vm1585, %v1445, 0.0
      %v1623 = vsel %vm1586, %v1446, 0.0
      %v1624 = vsel %vm1586, %v1447, 0.0
      %v1625 = vsel %vm1587, %v1448, 0.0
      %v1626 = vsel %vm1587, %v1449, 0.0
      %v1627 = vsel %vm1588, %v1450, 0.0
      %v1628 = vsel %vm1588, %v1451, 0.0
      %v1629 = vsel %vm1589, %v1452, 0.0
      %v1630 = vsel %vm1589, %v1453, 0.0
      %v1631 = vsel %vm1590, %v1454, 0.0
      %v1632 = vsel %vm1590, %v1455, 0.0
      %v1633 = vsel %vm1591, %v1456, 0.0
      %v1634 = vsel %vm1591, %v1457, 0.0
      %v1635 = vsel %vm1592, %v1458, 0.0
      %v1636 = vsel %vm1592, %v1459, 0.0
      %v1637 = vrot.slane %v1593, 5
      %v1638 = vrot.slane %v1595, 5
      %v1639 = vrot.slane %v1597, 5
      %v1640 = vrot.slane %v1599, 5
      %v1641 = vrot.slane %v1601, 5
      %v1642 = vrot.slane %v1603, 5
      %v1643 = vrot.slane %v1605, 5
      %v1644 = vrot.slane %v1607, 5
      %v1645 = vrot.slane %v1609, 5
      %v1646 = vrot.slane %v1611, 5
      %v1647 = vrot.slane %v1613, 5
      %v1648 = vrot.slane %v1615, 5
      %v1649 = vrot.slane %v1617, 5
      %v1650 = vrot.slane %v1619, 5
      %v1651 = vrot.slane %v1621, 5
      %v1652 = vrot.slane %v1623, 5
      %v1653 = vrot.slane %v1625, 5
      %v1654 = vrot.slane %v1627, 5
      %v1655 = vrot.slane %v1629, 5
      %v1656 = vrot.slane %v1631, 5
      %v1657 = vrot.slane %v1633, 5
      %v1658 = vrot.slane %v1635, 5
      %v1659 = vrot.slane %v1594, 5
      %v1660 = vrot.slane %v1596, 5
      %v1661 = vrot.slane %v1598, 5
      %v1662 = vrot.slane %v1600, 5
      %v1663 = vrot.slane %v1602, 5
      %v1664 = vrot.slane %v1604, 5
      %v1665 = vrot.slane %v1606, 5
      %v1666 = vrot.slane %v1608, 5
      %v1667 = vrot.slane %v1610, 5
      %v1668 = vrot.slane %v1612, 5
      %v1669 = vrot.slane %v1614, 5
      %v1670 = vrot.slane %v1616, 5
      %v1671 = vrot.slane %v1618, 5
      %v1672 = vrot.slane %v1620, 5
      %v1673 = vrot.slane %v1622, 5
      %v1674 = vrot.slane %v1624, 5
      %v1675 = vrot.slane %v1626, 5
      %v1676 = vrot.slane %v1628, 5
      %v1677 = vrot.slane %v1630, 5
      %v1678 = vrot.slane %v1632, 5
      %v1679 = vrot.slane %v1634, 5
      %v1680 = vrot.slane %v1636, 5
      %vm1681 = vcmp.lt.s32.totalorder %v393, 3
      %v1682 = vsel %vm1681, %v1637, %v1659
      %v1683 = vsel %vm1681, %v1638, %v1660
      %v1684 = vsel %vm1681, %v1639, %v1661
      %v1685 = vsel %vm1681, %v1640, %v1662
      %v1686 = vsel %vm1681, %v1641, %v1663
      %v1687 = vsel %vm1681, %v1642, %v1664
      %v1688 = vsel %vm1681, %v1643, %v1665
      %v1689 = vsel %vm1681, %v1644, %v1666
      %v1690 = vsel %vm1681, %v1645, %v1667
      %v1691 = vsel %vm1681, %v1646, %v1668
      %v1692 = vsel %vm1681, %v1647, %v1669
      %v1693 = vsel %vm1681, %v1648, %v1670
      %v1694 = vsel %vm1681, %v1649, %v1671
      %v1695 = vsel %vm1681, %v1650, %v1672
      %v1696 = vsel %vm1681, %v1651, %v1673
      %v1697 = vsel %vm1681, %v1652, %v1674
      %v1698 = vsel %vm1681, %v1653, %v1675
      %v1699 = vsel %vm1681, %v1654, %v1676
      %v1700 = vsel %vm1681, %v1655, %v1677
      %v1701 = vsel %vm1681, %v1656, %v1678
      %v1702 = vsel %vm1681, %v1657, %v1679
      %v1703 = vsel %vm1681, %v1658, %v1680
      %v1704 = vsel %vm1681, %v1659, %v1637
      %v1705 = vsel %vm1681, %v1660, %v1638
      %v1706 = vsel %vm1681, %v1661, %v1639
      %v1707 = vsel %vm1681, %v1662, %v1640
      %v1708 = vsel %vm1681, %v1663, %v1641
      %v1709 = vsel %vm1681, %v1664, %v1642
      %v1710 = vsel %vm1681, %v1665, %v1643
      %v1711 = vsel %vm1681, %v1666, %v1644
      %v1712 = vsel %vm1681, %v1667, %v1645
      %v1713 = vsel %vm1681, %v1668, %v1646
      %v1714 = vsel %vm1681, %v1669, %v1647
      %v1715 = vsel %vm1681, %v1670, %v1648
      %v1716 = vsel %vm1681, %v1671, %v1649
      %v1717 = vsel %vm1681, %v1672, %v1650
      %v1718 = vsel %vm1681, %v1673, %v1651
      %v1719 = vsel %vm1681, %v1674, %v1652
      %v1720 = vsel %vm1681, %v1675, %v1653
      %v1721 = vsel %vm1681, %v1676, %v1654
      %v1722 = vsel %vm1681, %v1677, %v1655
      %v1723 = vsel %vm1681, %v1678, %v1656
      %v1724 = vsel %vm1681, %v1679, %v1657
      %v1725 = vsel %vm1681, %v1680, %v1658
      %v1726 = vadd.s32 %v393, 4294967293
      %v1727 = vadd.s32 %v394, 4294967293
      %vm1728 = vcmp.ge.s32.totalorder %v1726, 0
      %vm1729 = vcmp.ge.s32.totalorder %v1727, 0
      %vm1730 = vcmp.lt.s32.totalorder %v1726, 16
      %vm1731 = vcmp.lt.s32.totalorder %v1727, 16
      %vm1732 = vmand %vm1728, %vm1730
      %vm1733 = vmand %vm1729, %vm1731
      %v1734 = vsel %vm1732, 1, 0
      %v1735 = vsel %vm1733, 1, 0
      %vm1736 = vcmp.eq.s32.totalorder %v1734, 1
      %vm1737 = vcmp.eq.s32.totalorder %v1735, 1
      %v1738 = vlaneseq
      %v1739 = vshrl.u32 %v1738, 7
      %v1740 = vsub.s32 0, %v1739
      %v1741 = vrot.slane %v385, %v1740
      %v1742 = vsel %vm1736, %v1741, 0.0
      %v1743 = vsel %vm1737, %v1741, 0.0
      %v1744 = vmul.f32 %v1704, %v1742
      %v1745 = vmul.f32 %v1682, %v1743
      %v1746 = vmul.f32 %v1705, %v1742
      %v1747 = vmul.f32 %v1683, %v1743
      %v1748 = vmul.f32 %v1706, %v1742
      %v1749 = vmul.f32 %v1684, %v1743
      %v1750 = vmul.f32 %v1707, %v1742
      %v1751 = vmul.f32 %v1685, %v1743
      %v1752 = vmul.f32 %v1708, %v1742
      %v1753 = vmul.f32 %v1686, %v1743
      %v1754 = vmul.f32 %v1709, %v1742
      %v1755 = vmul.f32 %v1687, %v1743
      %v1756 = vmul.f32 %v1710, %v1742
      %v1757 = vmul.f32 %v1688, %v1743
      %v1758 = vmul.f32 %v1711, %v1742
      %v1759 = vmul.f32 %v1689, %v1743
      %v1760 = vmul.f32 %v1712, %v1742
      %v1761 = vmul.f32 %v1690, %v1743
      %v1762 = vmul.f32 %v1713, %v1742
      %v1763 = vmul.f32 %v1691, %v1743
      %v1764 = vmul.f32 %v1714, %v1742
      %v1765 = vmul.f32 %v1692, %v1743
      %v1766 = vmul.f32 %v1715, %v1742
      %v1767 = vmul.f32 %v1693, %v1743
      %v1768 = vmul.f32 %v1716, %v1742
      %v1769 = vmul.f32 %v1694, %v1743
      %v1770 = vmul.f32 %v1717, %v1742
      %v1771 = vmul.f32 %v1695, %v1743
      %v1772 = vmul.f32 %v1718, %v1742
      %v1773 = vmul.f32 %v1696, %v1743
      %v1774 = vmul.f32 %v1719, %v1742
      %v1775 = vmul.f32 %v1697, %v1743
      %v1776 = vadd.f32 %v1744, 0.0
      %v1777 = vadd.f32 %v1745, 0.0
      %v1778 = vadd.f32 %v1746, 0.0
      %v1779 = vadd.f32 %v1747, 0.0
      %v1780 = vadd.f32 %v1748, 0.0
      %v1781 = vadd.f32 %v1749, 0.0
      %v1782 = vadd.f32 %v1750, 0.0
      %v1783 = vadd.f32 %v1751, 0.0
      %v1784 = vadd.f32 %v1752, 0.0
      %v1785 = vadd.f32 %v1753, 0.0
      %v1786 = vadd.f32 %v1754, 0.0
      %v1787 = vadd.f32 %v1755, 0.0
      %v1788 = vadd.f32 %v1756, 0.0
      %v1789 = vadd.f32 %v1757, 0.0
      %v1790 = vadd.f32 %v1758, 0.0
      %v1791 = vadd.f32 %v1759, 0.0
      %v1792 = vadd.f32 %v1760, 0.0
      %v1793 = vadd.f32 %v1761, 0.0
      %v1794 = vadd.f32 %v1762, 0.0
      %v1795 = vadd.f32 %v1763, 0.0
      %v1796 = vadd.f32 %v1764, 0.0
      %v1797 = vadd.f32 %v1765, 0.0
      %v1798 = vadd.f32 %v1766, 0.0
      %v1799 = vadd.f32 %v1767, 0.0
      %v1800 = vadd.f32 %v1768, 0.0
      %v1801 = vadd.f32 %v1769, 0.0
      %v1802 = vadd.f32 %v1770, 0.0
      %v1803 = vadd.f32 %v1771, 0.0
      %v1804 = vadd.f32 %v1772, 0.0
      %v1805 = vadd.f32 %v1773, 0.0
      %v1806 = vadd.f32 %v1774, 0.0
      %v1807 = vadd.f32 %v1775, 0.0
      %v1808 = vlaneseq
      %v1809 = vshrl.u32 %v1808, 7
      %v1810 = vsub.s32 0, %v1809
      %v1811 = vrot.slane %v386, %v1810
      %v1812 = vsel %vm1736, %v1811, 0.0
      %v1813 = vsel %vm1737, %v1811, 0.0
      %v1814 = vmul.f32 %v1705, %v1812
      %v1815 = vmul.f32 %v1683, %v1813
      %v1816 = vmul.f32 %v1706, %v1812
      %v1817 = vmul.f32 %v1684, %v1813
      %v1818 = vmul.f32 %v1707, %v1812
      %v1819 = vmul.f32 %v1685, %v1813
      %v1820 = vmul.f32 %v1708, %v1812
      %v1821 = vmul.f32 %v1686, %v1813
      %v1822 = vmul.f32 %v1709, %v1812
      %v1823 = vmul.f32 %v1687, %v1813
      %v1824 = vmul.f32 %v1710, %v1812
      %v1825 = vmul.f32 %v1688, %v1813
      %v1826 = vmul.f32 %v1711, %v1812
      %v1827 = vmul.f32 %v1689, %v1813
      %v1828 = vmul.f32 %v1712, %v1812
      %v1829 = vmul.f32 %v1690, %v1813
      %v1830 = vmul.f32 %v1713, %v1812
      %v1831 = vmul.f32 %v1691, %v1813
      %v1832 = vmul.f32 %v1714, %v1812
      %v1833 = vmul.f32 %v1692, %v1813
      %v1834 = vmul.f32 %v1715, %v1812
      %v1835 = vmul.f32 %v1693, %v1813
      %v1836 = vmul.f32 %v1716, %v1812
      %v1837 = vmul.f32 %v1694, %v1813
      %v1838 = vmul.f32 %v1717, %v1812
      %v1839 = vmul.f32 %v1695, %v1813
      %v1840 = vmul.f32 %v1718, %v1812
      %v1841 = vmul.f32 %v1696, %v1813
      %v1842 = vmul.f32 %v1719, %v1812
      %v1843 = vmul.f32 %v1697, %v1813
      %v1844 = vmul.f32 %v1720, %v1812
      %v1845 = vmul.f32 %v1698, %v1813
      %v1846 = vadd.f32 %v1776, %v1814
      %v1847 = vadd.f32 %v1777, %v1815
      %v1848 = vadd.f32 %v1778, %v1816
      %v1849 = vadd.f32 %v1779, %v1817
      %v1850 = vadd.f32 %v1780, %v1818
      %v1851 = vadd.f32 %v1781, %v1819
      %v1852 = vadd.f32 %v1782, %v1820
      %v1853 = vadd.f32 %v1783, %v1821
      %v1854 = vadd.f32 %v1784, %v1822
      %v1855 = vadd.f32 %v1785, %v1823
      %v1856 = vadd.f32 %v1786, %v1824
      %v1857 = vadd.f32 %v1787, %v1825
      %v1858 = vadd.f32 %v1788, %v1826
      %v1859 = vadd.f32 %v1789, %v1827
      %v1860 = vadd.f32 %v1790, %v1828
      %v1861 = vadd.f32 %v1791, %v1829
      %v1862 = vadd.f32 %v1792, %v1830
      %v1863 = vadd.f32 %v1793, %v1831
      %v1864 = vadd.f32 %v1794, %v1832
      %v1865 = vadd.f32 %v1795, %v1833
      %v1866 = vadd.f32 %v1796, %v1834
      %v1867 = vadd.f32 %v1797, %v1835
      %v1868 = vadd.f32 %v1798, %v1836
      %v1869 = vadd.f32 %v1799, %v1837
      %v1870 = vadd.f32 %v1800, %v1838
      %v1871 = vadd.f32 %v1801, %v1839
      %v1872 = vadd.f32 %v1802, %v1840
      %v1873 = vadd.f32 %v1803, %v1841
      %v1874 = vadd.f32 %v1804, %v1842
      %v1875 = vadd.f32 %v1805, %v1843
      %v1876 = vadd.f32 %v1806, %v1844
      %v1877 = vadd.f32 %v1807, %v1845
      %v1878 = vlaneseq
      %v1879 = vshrl.u32 %v1878, 7
      %v1880 = vsub.s32 0, %v1879
      %v1881 = vrot.slane %v387, %v1880
      %v1882 = vsel %vm1736, %v1881, 0.0
      %v1883 = vsel %vm1737, %v1881, 0.0
      %v1884 = vmul.f32 %v1706, %v1882
      %v1885 = vmul.f32 %v1684, %v1883
      %v1886 = vmul.f32 %v1707, %v1882
      %v1887 = vmul.f32 %v1685, %v1883
      %v1888 = vmul.f32 %v1708, %v1882
      %v1889 = vmul.f32 %v1686, %v1883
      %v1890 = vmul.f32 %v1709, %v1882
      %v1891 = vmul.f32 %v1687, %v1883
      %v1892 = vmul.f32 %v1710, %v1882
      %v1893 = vmul.f32 %v1688, %v1883
      %v1894 = vmul.f32 %v1711, %v1882
      %v1895 = vmul.f32 %v1689, %v1883
      %v1896 = vmul.f32 %v1712, %v1882
      %v1897 = vmul.f32 %v1690, %v1883
      %v1898 = vmul.f32 %v1713, %v1882
      %v1899 = vmul.f32 %v1691, %v1883
      %v1900 = vmul.f32 %v1714, %v1882
      %v1901 = vmul.f32 %v1692, %v1883
      %v1902 = vmul.f32 %v1715, %v1882
      %v1903 = vmul.f32 %v1693, %v1883
      %v1904 = vmul.f32 %v1716, %v1882
      %v1905 = vmul.f32 %v1694, %v1883
      %v1906 = vmul.f32 %v1717, %v1882
      %v1907 = vmul.f32 %v1695, %v1883
      %v1908 = vmul.f32 %v1718, %v1882
      %v1909 = vmul.f32 %v1696, %v1883
      %v1910 = vmul.f32 %v1719, %v1882
      %v1911 = vmul.f32 %v1697, %v1883
      %v1912 = vmul.f32 %v1720, %v1882
      %v1913 = vmul.f32 %v1698, %v1883
      %v1914 = vmul.f32 %v1721, %v1882
      %v1915 = vmul.f32 %v1699, %v1883
      %v1916 = vadd.f32 %v1846, %v1884
      %v1917 = vadd.f32 %v1847, %v1885
      %v1918 = vadd.f32 %v1848, %v1886
      %v1919 = vadd.f32 %v1849, %v1887
      %v1920 = vadd.f32 %v1850, %v1888
      %v1921 = vadd.f32 %v1851, %v1889
      %v1922 = vadd.f32 %v1852, %v1890
      %v1923 = vadd.f32 %v1853, %v1891
      %v1924 = vadd.f32 %v1854, %v1892
      %v1925 = vadd.f32 %v1855, %v1893
      %v1926 = vadd.f32 %v1856, %v1894
      %v1927 = vadd.f32 %v1857, %v1895
      %v1928 = vadd.f32 %v1858, %v1896
      %v1929 = vadd.f32 %v1859, %v1897
      %v1930 = vadd.f32 %v1860, %v1898
      %v1931 = vadd.f32 %v1861, %v1899
      %v1932 = vadd.f32 %v1862, %v1900
      %v1933 = vadd.f32 %v1863, %v1901
      %v1934 = vadd.f32 %v1864, %v1902
      %v1935 = vadd.f32 %v1865, %v1903
      %v1936 = vadd.f32 %v1866, %v1904
      %v1937 = vadd.f32 %v1867, %v1905
      %v1938 = vadd.f32 %v1868, %v1906
      %v1939 = vadd.f32 %v1869, %v1907
      %v1940 = vadd.f32 %v1870, %v1908
      %v1941 = vadd.f32 %v1871, %v1909
      %v1942 = vadd.f32 %v1872, %v1910
      %v1943 = vadd.f32 %v1873, %v1911
      %v1944 = vadd.f32 %v1874, %v1912
      %v1945 = vadd.f32 %v1875, %v1913
      %v1946 = vadd.f32 %v1876, %v1914
      %v1947 = vadd.f32 %v1877, %v1915
      %v1948 = vlaneseq
      %v1949 = vshrl.u32 %v1948, 7
      %v1950 = vsub.s32 0, %v1949
      %v1951 = vrot.slane %v388, %v1950
      %v1952 = vsel %vm1736, %v1951, 0.0
      %v1953 = vsel %vm1737, %v1951, 0.0
      %v1954 = vmul.f32 %v1707, %v1952
      %v1955 = vmul.f32 %v1685, %v1953
      %v1956 = vmul.f32 %v1708, %v1952
      %v1957 = vmul.f32 %v1686, %v1953
      %v1958 = vmul.f32 %v1709, %v1952
      %v1959 = vmul.f32 %v1687, %v1953
      %v1960 = vmul.f32 %v1710, %v1952
      %v1961 = vmul.f32 %v1688, %v1953
      %v1962 = vmul.f32 %v1711, %v1952
      %v1963 = vmul.f32 %v1689, %v1953
      %v1964 = vmul.f32 %v1712, %v1952
      %v1965 = vmul.f32 %v1690, %v1953
      %v1966 = vmul.f32 %v1713, %v1952
      %v1967 = vmul.f32 %v1691, %v1953
      %v1968 = vmul.f32 %v1714, %v1952
      %v1969 = vmul.f32 %v1692, %v1953
      %v1970 = vmul.f32 %v1715, %v1952
      %v1971 = vmul.f32 %v1693, %v1953
      %v1972 = vmul.f32 %v1716, %v1952
      %v1973 = vmul.f32 %v1694, %v1953
      %v1974 = vmul.f32 %v1717, %v1952
      %v1975 = vmul.f32 %v1695, %v1953
      %v1976 = vmul.f32 %v1718, %v1952
      %v1977 = vmul.f32 %v1696, %v1953
      %v1978 = vmul.f32 %v1719, %v1952
      %v1979 = vmul.f32 %v1697, %v1953
      %v1980 = vmul.f32 %v1720, %v1952
      %v1981 = vmul.f32 %v1698, %v1953
      %v1982 = vmul.f32 %v1721, %v1952
      %v1983 = vmul.f32 %v1699, %v1953
      %v1984 = vmul.f32 %v1722, %v1952
      %v1985 = vmul.f32 %v1700, %v1953
      %v1986 = vadd.f32 %v1916, %v1954
      %v1987 = vadd.f32 %v1917, %v1955
      %v1988 = vadd.f32 %v1918, %v1956
      %v1989 = vadd.f32 %v1919, %v1957
      %v1990 = vadd.f32 %v1920, %v1958
      %v1991 = vadd.f32 %v1921, %v1959
      %v1992 = vadd.f32 %v1922, %v1960
      %v1993 = vadd.f32 %v1923, %v1961
      %v1994 = vadd.f32 %v1924, %v1962
      %v1995 = vadd.f32 %v1925, %v1963
      %v1996 = vadd.f32 %v1926, %v1964
      %v1997 = vadd.f32 %v1927, %v1965
      %v1998 = vadd.f32 %v1928, %v1966
      %v1999 = vadd.f32 %v1929, %v1967
      %v2000 = vadd.f32 %v1930, %v1968
      %v2001 = vadd.f32 %v1931, %v1969
      %v2002 = vadd.f32 %v1932, %v1970
      %v2003 = vadd.f32 %v1933, %v1971
      %v2004 = vadd.f32 %v1934, %v1972
      %v2005 = vadd.f32 %v1935, %v1973
      %v2006 = vadd.f32 %v1936, %v1974
      %v2007 = vadd.f32 %v1937, %v1975
      %v2008 = vadd.f32 %v1938, %v1976
      %v2009 = vadd.f32 %v1939, %v1977
      %v2010 = vadd.f32 %v1940, %v1978
      %v2011 = vadd.f32 %v1941, %v1979
      %v2012 = vadd.f32 %v1942, %v1980
      %v2013 = vadd.f32 %v1943, %v1981
      %v2014 = vadd.f32 %v1944, %v1982
      %v2015 = vadd.f32 %v1945, %v1983
      %v2016 = vadd.f32 %v1946, %v1984
      %v2017 = vadd.f32 %v1947, %v1985
      %v2018 = vlaneseq
      %v2019 = vshrl.u32 %v2018, 7
      %v2020 = vsub.s32 0, %v2019
      %v2021 = vrot.slane %v389, %v2020
      %v2022 = vsel %vm1736, %v2021, 0.0
      %v2023 = vsel %vm1737, %v2021, 0.0
      %v2024 = vmul.f32 %v1708, %v2022
      %v2025 = vmul.f32 %v1686, %v2023
      %v2026 = vmul.f32 %v1709, %v2022
      %v2027 = vmul.f32 %v1687, %v2023
      %v2028 = vmul.f32 %v1710, %v2022
      %v2029 = vmul.f32 %v1688, %v2023
      %v2030 = vmul.f32 %v1711, %v2022
      %v2031 = vmul.f32 %v1689, %v2023
      %v2032 = vmul.f32 %v1712, %v2022
      %v2033 = vmul.f32 %v1690, %v2023
      %v2034 = vmul.f32 %v1713, %v2022
      %v2035 = vmul.f32 %v1691, %v2023
      %v2036 = vmul.f32 %v1714, %v2022
      %v2037 = vmul.f32 %v1692, %v2023
      %v2038 = vmul.f32 %v1715, %v2022
      %v2039 = vmul.f32 %v1693, %v2023
      %v2040 = vmul.f32 %v1716, %v2022
      %v2041 = vmul.f32 %v1694, %v2023
      %v2042 = vmul.f32 %v1717, %v2022
      %v2043 = vmul.f32 %v1695, %v2023
      %v2044 = vmul.f32 %v1718, %v2022
      %v2045 = vmul.f32 %v1696, %v2023
      %v2046 = vmul.f32 %v1719, %v2022
      %v2047 = vmul.f32 %v1697, %v2023
      %v2048 = vmul.f32 %v1720, %v2022
      %v2049 = vmul.f32 %v1698, %v2023
      %v2050 = vmul.f32 %v1721, %v2022
      %v2051 = vmul.f32 %v1699, %v2023
      %v2052 = vmul.f32 %v1722, %v2022
      %v2053 = vmul.f32 %v1700, %v2023
      %v2054 = vmul.f32 %v1723, %v2022
      %v2055 = vmul.f32 %v1701, %v2023
      %v2056 = vadd.f32 %v1986, %v2024
      %v2057 = vadd.f32 %v1987, %v2025
      %v2058 = vadd.f32 %v1988, %v2026
      %v2059 = vadd.f32 %v1989, %v2027
      %v2060 = vadd.f32 %v1990, %v2028
      %v2061 = vadd.f32 %v1991, %v2029
      %v2062 = vadd.f32 %v1992, %v2030
      %v2063 = vadd.f32 %v1993, %v2031
      %v2064 = vadd.f32 %v1994, %v2032
      %v2065 = vadd.f32 %v1995, %v2033
      %v2066 = vadd.f32 %v1996, %v2034
      %v2067 = vadd.f32 %v1997, %v2035
      %v2068 = vadd.f32 %v1998, %v2036
      %v2069 = vadd.f32 %v1999, %v2037
      %v2070 = vadd.f32 %v2000, %v2038
      %v2071 = vadd.f32 %v2001, %v2039
      %v2072 = vadd.f32 %v2002, %v2040
      %v2073 = vadd.f32 %v2003, %v2041
      %v2074 = vadd.f32 %v2004, %v2042
      %v2075 = vadd.f32 %v2005, %v2043
      %v2076 = vadd.f32 %v2006, %v2044
      %v2077 = vadd.f32 %v2007, %v2045
      %v2078 = vadd.f32 %v2008, %v2046
      %v2079 = vadd.f32 %v2009, %v2047
      %v2080 = vadd.f32 %v2010, %v2048
      %v2081 = vadd.f32 %v2011, %v2049
      %v2082 = vadd.f32 %v2012, %v2050
      %v2083 = vadd.f32 %v2013, %v2051
      %v2084 = vadd.f32 %v2014, %v2052
      %v2085 = vadd.f32 %v2015, %v2053
      %v2086 = vadd.f32 %v2016, %v2054
      %v2087 = vadd.f32 %v2017, %v2055
      %v2088 = vlaneseq
      %v2089 = vshrl.u32 %v2088, 7
      %v2090 = vsub.s32 0, %v2089
      %v2091 = vrot.slane %v390, %v2090
      %v2092 = vsel %vm1736, %v2091, 0.0
      %v2093 = vsel %vm1737, %v2091, 0.0
      %v2094 = vmul.f32 %v1709, %v2092
      %v2095 = vmul.f32 %v1687, %v2093
      %v2096 = vmul.f32 %v1710, %v2092
      %v2097 = vmul.f32 %v1688, %v2093
      %v2098 = vmul.f32 %v1711, %v2092
      %v2099 = vmul.f32 %v1689, %v2093
      %v2100 = vmul.f32 %v1712, %v2092
      %v2101 = vmul.f32 %v1690, %v2093
      %v2102 = vmul.f32 %v1713, %v2092
      %v2103 = vmul.f32 %v1691, %v2093
      %v2104 = vmul.f32 %v1714, %v2092
      %v2105 = vmul.f32 %v1692, %v2093
      %v2106 = vmul.f32 %v1715, %v2092
      %v2107 = vmul.f32 %v1693, %v2093
      %v2108 = vmul.f32 %v1716, %v2092
      %v2109 = vmul.f32 %v1694, %v2093
      %v2110 = vmul.f32 %v1717, %v2092
      %v2111 = vmul.f32 %v1695, %v2093
      %v2112 = vmul.f32 %v1718, %v2092
      %v2113 = vmul.f32 %v1696, %v2093
      %v2114 = vmul.f32 %v1719, %v2092
      %v2115 = vmul.f32 %v1697, %v2093
      %v2116 = vmul.f32 %v1720, %v2092
      %v2117 = vmul.f32 %v1698, %v2093
      %v2118 = vmul.f32 %v1721, %v2092
      %v2119 = vmul.f32 %v1699, %v2093
      %v2120 = vmul.f32 %v1722, %v2092
      %v2121 = vmul.f32 %v1700, %v2093
      %v2122 = vmul.f32 %v1723, %v2092
      %v2123 = vmul.f32 %v1701, %v2093
      %v2124 = vmul.f32 %v1724, %v2092
      %v2125 = vmul.f32 %v1702, %v2093
      %v2126 = vadd.f32 %v2056, %v2094
      %v2127 = vadd.f32 %v2057, %v2095
      %v2128 = vadd.f32 %v2058, %v2096
      %v2129 = vadd.f32 %v2059, %v2097
      %v2130 = vadd.f32 %v2060, %v2098
      %v2131 = vadd.f32 %v2061, %v2099
      %v2132 = vadd.f32 %v2062, %v2100
      %v2133 = vadd.f32 %v2063, %v2101
      %v2134 = vadd.f32 %v2064, %v2102
      %v2135 = vadd.f32 %v2065, %v2103
      %v2136 = vadd.f32 %v2066, %v2104
      %v2137 = vadd.f32 %v2067, %v2105
      %v2138 = vadd.f32 %v2068, %v2106
      %v2139 = vadd.f32 %v2069, %v2107
      %v2140 = vadd.f32 %v2070, %v2108
      %v2141 = vadd.f32 %v2071, %v2109
      %v2142 = vadd.f32 %v2072, %v2110
      %v2143 = vadd.f32 %v2073, %v2111
      %v2144 = vadd.f32 %v2074, %v2112
      %v2145 = vadd.f32 %v2075, %v2113
      %v2146 = vadd.f32 %v2076, %v2114
      %v2147 = vadd.f32 %v2077, %v2115
      %v2148 = vadd.f32 %v2078, %v2116
      %v2149 = vadd.f32 %v2079, %v2117
      %v2150 = vadd.f32 %v2080, %v2118
      %v2151 = vadd.f32 %v2081, %v2119
      %v2152 = vadd.f32 %v2082, %v2120
      %v2153 = vadd.f32 %v2083, %v2121
      %v2154 = vadd.f32 %v2084, %v2122
      %v2155 = vadd.f32 %v2085, %v2123
      %v2156 = vadd.f32 %v2086, %v2124
      %v2157 = vadd.f32 %v2087, %v2125
      %v2158 = vlaneseq
      %v2159 = vshrl.u32 %v2158, 7
      %v2160 = vsub.s32 0, %v2159
      %v2161 = vrot.slane %v391, %v2160
      %v2162 = vsel %vm1736, %v2161, 0.0
      %v2163 = vsel %vm1737, %v2161, 0.0
      %v2164 = vmul.f32 %v1710, %v2162
      %v2165 = vmul.f32 %v1688, %v2163
      %v2166 = vmul.f32 %v1711, %v2162
      %v2167 = vmul.f32 %v1689, %v2163
      %v2168 = vmul.f32 %v1712, %v2162
      %v2169 = vmul.f32 %v1690, %v2163
      %v2170 = vmul.f32 %v1713, %v2162
      %v2171 = vmul.f32 %v1691, %v2163
      %v2172 = vmul.f32 %v1714, %v2162
      %v2173 = vmul.f32 %v1692, %v2163
      %v2174 = vmul.f32 %v1715, %v2162
      %v2175 = vmul.f32 %v1693, %v2163
      %v2176 = vmul.f32 %v1716, %v2162
      %v2177 = vmul.f32 %v1694, %v2163
      %v2178 = vmul.f32 %v1717, %v2162
      %v2179 = vmul.f32 %v1695, %v2163
      %v2180 = vmul.f32 %v1718, %v2162
      %v2181 = vmul.f32 %v1696, %v2163
      %v2182 = vmul.f32 %v1719, %v2162
      %v2183 = vmul.f32 %v1697, %v2163
      %v2184 = vmul.f32 %v1720, %v2162
      %v2185 = vmul.f32 %v1698, %v2163
      %v2186 = vmul.f32 %v1721, %v2162
      %v2187 = vmul.f32 %v1699, %v2163
      %v2188 = vmul.f32 %v1722, %v2162
      %v2189 = vmul.f32 %v1700, %v2163
      %v2190 = vmul.f32 %v1723, %v2162
      %v2191 = vmul.f32 %v1701, %v2163
      %v2192 = vmul.f32 %v1724, %v2162
      %v2193 = vmul.f32 %v1702, %v2163
      %v2194 = vmul.f32 %v1725, %v2162
      %v2195 = vmul.f32 %v1703, %v2163
      %v2196 = vadd.f32 %v2126, %v2164
      %v2197 = vadd.f32 %v2127, %v2165
      %v2198 = vadd.f32 %v2128, %v2166
      %v2199 = vadd.f32 %v2129, %v2167
      %v2200 = vadd.f32 %v2130, %v2168
      %v2201 = vadd.f32 %v2131, %v2169
      %v2202 = vadd.f32 %v2132, %v2170
      %v2203 = vadd.f32 %v2133, %v2171
      %v2204 = vadd.f32 %v2134, %v2172
      %v2205 = vadd.f32 %v2135, %v2173
      %v2206 = vadd.f32 %v2136, %v2174
      %v2207 = vadd.f32 %v2137, %v2175
      %v2208 = vadd.f32 %v2138, %v2176
      %v2209 = vadd.f32 %v2139, %v2177
      %v2210 = vadd.f32 %v2140, %v2178
      %v2211 = vadd.f32 %v2141, %v2179
      %v2212 = vadd.f32 %v2142, %v2180
      %v2213 = vadd.f32 %v2143, %v2181
      %v2214 = vadd.f32 %v2144, %v2182
      %v2215 = vadd.f32 %v2145, %v2183
      %v2216 = vadd.f32 %v2146, %v2184
      %v2217 = vadd.f32 %v2147, %v2185
      %v2218 = vadd.f32 %v2148, %v2186
      %v2219 = vadd.f32 %v2149, %v2187
      %v2220 = vadd.f32 %v2150, %v2188
      %v2221 = vadd.f32 %v2151, %v2189
      %v2222 = vadd.f32 %v2152, %v2190
      %v2223 = vadd.f32 %v2153, %v2191
      %v2224 = vadd.f32 %v2154, %v2192
      %v2225 = vadd.f32 %v2155, %v2193
      %v2226 = vadd.f32 %v2156, %v2194
      %v2227 = vadd.f32 %v2157, %v2195
      %v2228 = vrot.slane %v1593, 6
      %v2229 = vrot.slane %v1595, 6
      %v2230 = vrot.slane %v1597, 6
      %v2231 = vrot.slane %v1599, 6
      %v2232 = vrot.slane %v1601, 6
      %v2233 = vrot.slane %v1603, 6
      %v2234 = vrot.slane %v1605, 6
      %v2235 = vrot.slane %v1607, 6
      %v2236 = vrot.slane %v1609, 6
      %v2237 = vrot.slane %v1611, 6
      %v2238 = vrot.slane %v1613, 6
      %v2239 = vrot.slane %v1615, 6
      %v2240 = vrot.slane %v1617, 6
      %v2241 = vrot.slane %v1619, 6
      %v2242 = vrot.slane %v1621, 6
      %v2243 = vrot.slane %v1623, 6
      %v2244 = vrot.slane %v1625, 6
      %v2245 = vrot.slane %v1627, 6
      %v2246 = vrot.slane %v1629, 6
      %v2247 = vrot.slane %v1631, 6
      %v2248 = vrot.slane %v1633, 6
      %v2249 = vrot.slane %v1635, 6
      %v2250 = vrot.slane %v1594, 6
      %v2251 = vrot.slane %v1596, 6
      %v2252 = vrot.slane %v1598, 6
      %v2253 = vrot.slane %v1600, 6
      %v2254 = vrot.slane %v1602, 6
      %v2255 = vrot.slane %v1604, 6
      %v2256 = vrot.slane %v1606, 6
      %v2257 = vrot.slane %v1608, 6
      %v2258 = vrot.slane %v1610, 6
      %v2259 = vrot.slane %v1612, 6
      %v2260 = vrot.slane %v1614, 6
      %v2261 = vrot.slane %v1616, 6
      %v2262 = vrot.slane %v1618, 6
      %v2263 = vrot.slane %v1620, 6
      %v2264 = vrot.slane %v1622, 6
      %v2265 = vrot.slane %v1624, 6
      %v2266 = vrot.slane %v1626, 6
      %v2267 = vrot.slane %v1628, 6
      %v2268 = vrot.slane %v1630, 6
      %v2269 = vrot.slane %v1632, 6
      %v2270 = vrot.slane %v1634, 6
      %v2271 = vrot.slane %v1636, 6
      %vm2272 = vcmp.lt.s32.totalorder %v393, 2
      %v2273 = vsel %vm2272, %v2228, %v2250
      %v2274 = vsel %vm2272, %v2229, %v2251
      %v2275 = vsel %vm2272, %v2230, %v2252
      %v2276 = vsel %vm2272, %v2231, %v2253
      %v2277 = vsel %vm2272, %v2232, %v2254
      %v2278 = vsel %vm2272, %v2233, %v2255
      %v2279 = vsel %vm2272, %v2234, %v2256
      %v2280 = vsel %vm2272, %v2235, %v2257
      %v2281 = vsel %vm2272, %v2236, %v2258
      %v2282 = vsel %vm2272, %v2237, %v2259
      %v2283 = vsel %vm2272, %v2238, %v2260
      %v2284 = vsel %vm2272, %v2239, %v2261
      %v2285 = vsel %vm2272, %v2240, %v2262
      %v2286 = vsel %vm2272, %v2241, %v2263
      %v2287 = vsel %vm2272, %v2242, %v2264
      %v2288 = vsel %vm2272, %v2243, %v2265
      %v2289 = vsel %vm2272, %v2244, %v2266
      %v2290 = vsel %vm2272, %v2245, %v2267
      %v2291 = vsel %vm2272, %v2246, %v2268
      %v2292 = vsel %vm2272, %v2247, %v2269
      %v2293 = vsel %vm2272, %v2248, %v2270
      %v2294 = vsel %vm2272, %v2249, %v2271
      %v2295 = vsel %vm2272, %v2250, %v2228
      %v2296 = vsel %vm2272, %v2251, %v2229
      %v2297 = vsel %vm2272, %v2252, %v2230
      %v2298 = vsel %vm2272, %v2253, %v2231
      %v2299 = vsel %vm2272, %v2254, %v2232
      %v2300 = vsel %vm2272, %v2255, %v2233
      %v2301 = vsel %vm2272, %v2256, %v2234
      %v2302 = vsel %vm2272, %v2257, %v2235
      %v2303 = vsel %vm2272, %v2258, %v2236
      %v2304 = vsel %vm2272, %v2259, %v2237
      %v2305 = vsel %vm2272, %v2260, %v2238
      %v2306 = vsel %vm2272, %v2261, %v2239
      %v2307 = vsel %vm2272, %v2262, %v2240
      %v2308 = vsel %vm2272, %v2263, %v2241
      %v2309 = vsel %vm2272, %v2264, %v2242
      %v2310 = vsel %vm2272, %v2265, %v2243
      %v2311 = vsel %vm2272, %v2266, %v2244
      %v2312 = vsel %vm2272, %v2267, %v2245
      %v2313 = vsel %vm2272, %v2268, %v2246
      %v2314 = vsel %vm2272, %v2269, %v2247
      %v2315 = vsel %vm2272, %v2270, %v2248
      %v2316 = vsel %vm2272, %v2271, %v2249
      %v2317 = vadd.s32 %v393, 4294967294
      %v2318 = vadd.s32 %v394, 4294967294
      %vm2319 = vcmp.ge.s32.totalorder %v2317, 0
      %vm2320 = vcmp.ge.s32.totalorder %v2318, 0
      %vm2321 = vcmp.lt.s32.totalorder %v2317, 16
      %vm2322 = vcmp.lt.s32.totalorder %v2318, 16
      %vm2323 = vmand %vm2319, %vm2321
      %vm2324 = vmand %vm2320, %vm2322
      %v2325 = vsel %vm2323, 1, 0
      %v2326 = vsel %vm2324, 1, 0
      %vm2327 = vcmp.eq.s32.totalorder %v2325, 1
      %vm2328 = vcmp.eq.s32.totalorder %v2326, 1
      %v2329 = vlaneseq
      %v2330 = vshrl.u32 %v2329, 7
      %v2331 = vsub.s32 1, %v2330
      %v2332 = vrot.slane %v385, %v2331
      %v2333 = vsel %vm2327, %v2332, 0.0
      %v2334 = vsel %vm2328, %v2332, 0.0
      %v2335 = vmul.f32 %v2295, %v2333
      %v2336 = vmul.f32 %v2273, %v2334
      %v2337 = vmul.f32 %v2296, %v2333
      %v2338 = vmul.f32 %v2274, %v2334
      %v2339 = vmul.f32 %v2297, %v2333
      %v2340 = vmul.f32 %v2275, %v2334
      %v2341 = vmul.f32 %v2298, %v2333
      %v2342 = vmul.f32 %v2276, %v2334
      %v2343 = vmul.f32 %v2299, %v2333
      %v2344 = vmul.f32 %v2277, %v2334
      %v2345 = vmul.f32 %v2300, %v2333
      %v2346 = vmul.f32 %v2278, %v2334
      %v2347 = vmul.f32 %v2301, %v2333
      %v2348 = vmul.f32 %v2279, %v2334
      %v2349 = vmul.f32 %v2302, %v2333
      %v2350 = vmul.f32 %v2280, %v2334
      %v2351 = vmul.f32 %v2303, %v2333
      %v2352 = vmul.f32 %v2281, %v2334
      %v2353 = vmul.f32 %v2304, %v2333
      %v2354 = vmul.f32 %v2282, %v2334
      %v2355 = vmul.f32 %v2305, %v2333
      %v2356 = vmul.f32 %v2283, %v2334
      %v2357 = vmul.f32 %v2306, %v2333
      %v2358 = vmul.f32 %v2284, %v2334
      %v2359 = vmul.f32 %v2307, %v2333
      %v2360 = vmul.f32 %v2285, %v2334
      %v2361 = vmul.f32 %v2308, %v2333
      %v2362 = vmul.f32 %v2286, %v2334
      %v2363 = vmul.f32 %v2309, %v2333
      %v2364 = vmul.f32 %v2287, %v2334
      %v2365 = vmul.f32 %v2310, %v2333
      %v2366 = vmul.f32 %v2288, %v2334
      %v2367 = vadd.f32 %v2196, %v2335
      %v2368 = vadd.f32 %v2197, %v2336
      %v2369 = vadd.f32 %v2198, %v2337
      %v2370 = vadd.f32 %v2199, %v2338
      %v2371 = vadd.f32 %v2200, %v2339
      %v2372 = vadd.f32 %v2201, %v2340
      %v2373 = vadd.f32 %v2202, %v2341
      %v2374 = vadd.f32 %v2203, %v2342
      %v2375 = vadd.f32 %v2204, %v2343
      %v2376 = vadd.f32 %v2205, %v2344
      %v2377 = vadd.f32 %v2206, %v2345
      %v2378 = vadd.f32 %v2207, %v2346
      %v2379 = vadd.f32 %v2208, %v2347
      %v2380 = vadd.f32 %v2209, %v2348
      %v2381 = vadd.f32 %v2210, %v2349
      %v2382 = vadd.f32 %v2211, %v2350
      %v2383 = vadd.f32 %v2212, %v2351
      %v2384 = vadd.f32 %v2213, %v2352
      %v2385 = vadd.f32 %v2214, %v2353
      %v2386 = vadd.f32 %v2215, %v2354
      %v2387 = vadd.f32 %v2216, %v2355
      %v2388 = vadd.f32 %v2217, %v2356
      %v2389 = vadd.f32 %v2218, %v2357
      %v2390 = vadd.f32 %v2219, %v2358
      %v2391 = vadd.f32 %v2220, %v2359
      %v2392 = vadd.f32 %v2221, %v2360
      %v2393 = vadd.f32 %v2222, %v2361
      %v2394 = vadd.f32 %v2223, %v2362
      %v2395 = vadd.f32 %v2224, %v2363
      %v2396 = vadd.f32 %v2225, %v2364
      %v2397 = vadd.f32 %v2226, %v2365
      %v2398 = vadd.f32 %v2227, %v2366
      %v2399 = vlaneseq
      %v2400 = vshrl.u32 %v2399, 7
      %v2401 = vsub.s32 1, %v2400
      %v2402 = vrot.slane %v386, %v2401
      %v2403 = vsel %vm2327, %v2402, 0.0
      %v2404 = vsel %vm2328, %v2402, 0.0
      %v2405 = vmul.f32 %v2296, %v2403
      %v2406 = vmul.f32 %v2274, %v2404
      %v2407 = vmul.f32 %v2297, %v2403
      %v2408 = vmul.f32 %v2275, %v2404
      %v2409 = vmul.f32 %v2298, %v2403
      %v2410 = vmul.f32 %v2276, %v2404
      %v2411 = vmul.f32 %v2299, %v2403
      %v2412 = vmul.f32 %v2277, %v2404
      %v2413 = vmul.f32 %v2300, %v2403
      %v2414 = vmul.f32 %v2278, %v2404
      %v2415 = vmul.f32 %v2301, %v2403
      %v2416 = vmul.f32 %v2279, %v2404
      %v2417 = vmul.f32 %v2302, %v2403
      %v2418 = vmul.f32 %v2280, %v2404
      %v2419 = vmul.f32 %v2303, %v2403
      %v2420 = vmul.f32 %v2281, %v2404
      %v2421 = vmul.f32 %v2304, %v2403
      %v2422 = vmul.f32 %v2282, %v2404
      %v2423 = vmul.f32 %v2305, %v2403
      %v2424 = vmul.f32 %v2283, %v2404
      %v2425 = vmul.f32 %v2306, %v2403
      %v2426 = vmul.f32 %v2284, %v2404
      %v2427 = vmul.f32 %v2307, %v2403
      %v2428 = vmul.f32 %v2285, %v2404
      %v2429 = vmul.f32 %v2308, %v2403
      %v2430 = vmul.f32 %v2286, %v2404
      %v2431 = vmul.f32 %v2309, %v2403
      %v2432 = vmul.f32 %v2287, %v2404
      %v2433 = vmul.f32 %v2310, %v2403
      %v2434 = vmul.f32 %v2288, %v2404
      %v2435 = vmul.f32 %v2311, %v2403
      %v2436 = vmul.f32 %v2289, %v2404
      %v2437 = vadd.f32 %v2367, %v2405
      %v2438 = vadd.f32 %v2368, %v2406
      %v2439 = vadd.f32 %v2369, %v2407
      %v2440 = vadd.f32 %v2370, %v2408
      %v2441 = vadd.f32 %v2371, %v2409
      %v2442 = vadd.f32 %v2372, %v2410
      %v2443 = vadd.f32 %v2373, %v2411
      %v2444 = vadd.f32 %v2374, %v2412
      %v2445 = vadd.f32 %v2375, %v2413
      %v2446 = vadd.f32 %v2376, %v2414
      %v2447 = vadd.f32 %v2377, %v2415
      %v2448 = vadd.f32 %v2378, %v2416
      %v2449 = vadd.f32 %v2379, %v2417
      %v2450 = vadd.f32 %v2380, %v2418
      %v2451 = vadd.f32 %v2381, %v2419
      %v2452 = vadd.f32 %v2382, %v2420
      %v2453 = vadd.f32 %v2383, %v2421
      %v2454 = vadd.f32 %v2384, %v2422
      %v2455 = vadd.f32 %v2385, %v2423
      %v2456 = vadd.f32 %v2386, %v2424
      %v2457 = vadd.f32 %v2387, %v2425
      %v2458 = vadd.f32 %v2388, %v2426
      %v2459 = vadd.f32 %v2389, %v2427
      %v2460 = vadd.f32 %v2390, %v2428
      %v2461 = vadd.f32 %v2391, %v2429
      %v2462 = vadd.f32 %v2392, %v2430
      %v2463 = vadd.f32 %v2393, %v2431
      %v2464 = vadd.f32 %v2394, %v2432
      %v2465 = vadd.f32 %v2395, %v2433
      %v2466 = vadd.f32 %v2396, %v2434
      %v2467 = vadd.f32 %v2397, %v2435
      %v2468 = vadd.f32 %v2398, %v2436
      %v2469 = vlaneseq
      %v2470 = vshrl.u32 %v2469, 7
      %v2471 = vsub.s32 1, %v2470
      %v2472 = vrot.slane %v387, %v2471
      %v2473 = vsel %vm2327, %v2472, 0.0
      %v2474 = vsel %vm2328, %v2472, 0.0
      %v2475 = vmul.f32 %v2297, %v2473
      %v2476 = vmul.f32 %v2275, %v2474
      %v2477 = vmul.f32 %v2298, %v2473
      %v2478 = vmul.f32 %v2276, %v2474
      %v2479 = vmul.f32 %v2299, %v2473
      %v2480 = vmul.f32 %v2277, %v2474
      %v2481 = vmul.f32 %v2300, %v2473
      %v2482 = vmul.f32 %v2278, %v2474
      %v2483 = vmul.f32 %v2301, %v2473
      %v2484 = vmul.f32 %v2279, %v2474
      %v2485 = vmul.f32 %v2302, %v2473
      %v2486 = vmul.f32 %v2280, %v2474
      %v2487 = vmul.f32 %v2303, %v2473
      %v2488 = vmul.f32 %v2281, %v2474
      %v2489 = vmul.f32 %v2304, %v2473
      %v2490 = vmul.f32 %v2282, %v2474
      %v2491 = vmul.f32 %v2305, %v2473
      %v2492 = vmul.f32 %v2283, %v2474
      %v2493 = vmul.f32 %v2306, %v2473
      %v2494 = vmul.f32 %v2284, %v2474
      %v2495 = vmul.f32 %v2307, %v2473
      %v2496 = vmul.f32 %v2285, %v2474
      %v2497 = vmul.f32 %v2308, %v2473
      %v2498 = vmul.f32 %v2286, %v2474
      %v2499 = vmul.f32 %v2309, %v2473
      %v2500 = vmul.f32 %v2287, %v2474
      %v2501 = vmul.f32 %v2310, %v2473
      %v2502 = vmul.f32 %v2288, %v2474
      %v2503 = vmul.f32 %v2311, %v2473
      %v2504 = vmul.f32 %v2289, %v2474
      %v2505 = vmul.f32 %v2312, %v2473
      %v2506 = vmul.f32 %v2290, %v2474
      %v2507 = vadd.f32 %v2437, %v2475
      %v2508 = vadd.f32 %v2438, %v2476
      %v2509 = vadd.f32 %v2439, %v2477
      %v2510 = vadd.f32 %v2440, %v2478
      %v2511 = vadd.f32 %v2441, %v2479
      %v2512 = vadd.f32 %v2442, %v2480
      %v2513 = vadd.f32 %v2443, %v2481
      %v2514 = vadd.f32 %v2444, %v2482
      %v2515 = vadd.f32 %v2445, %v2483
      %v2516 = vadd.f32 %v2446, %v2484
      %v2517 = vadd.f32 %v2447, %v2485
      %v2518 = vadd.f32 %v2448, %v2486
      %v2519 = vadd.f32 %v2449, %v2487
      %v2520 = vadd.f32 %v2450, %v2488
      %v2521 = vadd.f32 %v2451, %v2489
      %v2522 = vadd.f32 %v2452, %v2490
      %v2523 = vadd.f32 %v2453, %v2491
      %v2524 = vadd.f32 %v2454, %v2492
      %v2525 = vadd.f32 %v2455, %v2493
      %v2526 = vadd.f32 %v2456, %v2494
      %v2527 = vadd.f32 %v2457, %v2495
      %v2528 = vadd.f32 %v2458, %v2496
      %v2529 = vadd.f32 %v2459, %v2497
      %v2530 = vadd.f32 %v2460, %v2498
      %v2531 = vadd.f32 %v2461, %v2499
      %v2532 = vadd.f32 %v2462, %v2500
      %v2533 = vadd.f32 %v2463, %v2501
      %v2534 = vadd.f32 %v2464, %v2502
      %v2535 = vadd.f32 %v2465, %v2503
      %v2536 = vadd.f32 %v2466, %v2504
      %v2537 = vadd.f32 %v2467, %v2505
      %v2538 = vadd.f32 %v2468, %v2506
      %v2539 = vlaneseq
      %v2540 = vshrl.u32 %v2539, 7
      %v2541 = vsub.s32 1, %v2540
      %v2542 = vrot.slane %v388, %v2541
      %v2543 = vsel %vm2327, %v2542, 0.0
      %v2544 = vsel %vm2328, %v2542, 0.0
      %v2545 = vmul.f32 %v2298, %v2543
      %v2546 = vmul.f32 %v2276, %v2544
      %v2547 = vmul.f32 %v2299, %v2543
      %v2548 = vmul.f32 %v2277, %v2544
      %v2549 = vmul.f32 %v2300, %v2543
      %v2550 = vmul.f32 %v2278, %v2544
      %v2551 = vmul.f32 %v2301, %v2543
      %v2552 = vmul.f32 %v2279, %v2544
      %v2553 = vmul.f32 %v2302, %v2543
      %v2554 = vmul.f32 %v2280, %v2544
      %v2555 = vmul.f32 %v2303, %v2543
      %v2556 = vmul.f32 %v2281, %v2544
      %v2557 = vmul.f32 %v2304, %v2543
      %v2558 = vmul.f32 %v2282, %v2544
      %v2559 = vmul.f32 %v2305, %v2543
      %v2560 = vmul.f32 %v2283, %v2544
      %v2561 = vmul.f32 %v2306, %v2543
      %v2562 = vmul.f32 %v2284, %v2544
      %v2563 = vmul.f32 %v2307, %v2543
      %v2564 = vmul.f32 %v2285, %v2544
      %v2565 = vmul.f32 %v2308, %v2543
      %v2566 = vmul.f32 %v2286, %v2544
      %v2567 = vmul.f32 %v2309, %v2543
      %v2568 = vmul.f32 %v2287, %v2544
      %v2569 = vmul.f32 %v2310, %v2543
      %v2570 = vmul.f32 %v2288, %v2544
      %v2571 = vmul.f32 %v2311, %v2543
      %v2572 = vmul.f32 %v2289, %v2544
      %v2573 = vmul.f32 %v2312, %v2543
      %v2574 = vmul.f32 %v2290, %v2544
      %v2575 = vmul.f32 %v2313, %v2543
      %v2576 = vmul.f32 %v2291, %v2544
      %v2577 = vadd.f32 %v2507, %v2545
      %v2578 = vadd.f32 %v2508, %v2546
      %v2579 = vadd.f32 %v2509, %v2547
      %v2580 = vadd.f32 %v2510, %v2548
      %v2581 = vadd.f32 %v2511, %v2549
      %v2582 = vadd.f32 %v2512, %v2550
      %v2583 = vadd.f32 %v2513, %v2551
      %v2584 = vadd.f32 %v2514, %v2552
      %v2585 = vadd.f32 %v2515, %v2553
      %v2586 = vadd.f32 %v2516, %v2554
      %v2587 = vadd.f32 %v2517, %v2555
      %v2588 = vadd.f32 %v2518, %v2556
      %v2589 = vadd.f32 %v2519, %v2557
      %v2590 = vadd.f32 %v2520, %v2558
      %v2591 = vadd.f32 %v2521, %v2559
      %v2592 = vadd.f32 %v2522, %v2560
      %v2593 = vadd.f32 %v2523, %v2561
      %v2594 = vadd.f32 %v2524, %v2562
      %v2595 = vadd.f32 %v2525, %v2563
      %v2596 = vadd.f32 %v2526, %v2564
      %v2597 = vadd.f32 %v2527, %v2565
      %v2598 = vadd.f32 %v2528, %v2566
      %v2599 = vadd.f32 %v2529, %v2567
      %v2600 = vadd.f32 %v2530, %v2568
      %v2601 = vadd.f32 %v2531, %v2569
      %v2602 = vadd.f32 %v2532, %v2570
      %v2603 = vadd.f32 %v2533, %v2571
      %v2604 = vadd.f32 %v2534, %v2572
      %v2605 = vadd.f32 %v2535, %v2573
      %v2606 = vadd.f32 %v2536, %v2574
      %v2607 = vadd.f32 %v2537, %v2575
      %v2608 = vadd.f32 %v2538, %v2576
      %v2609 = vlaneseq
      %v2610 = vshrl.u32 %v2609, 7
      %v2611 = vsub.s32 1, %v2610
      %v2612 = vrot.slane %v389, %v2611
      %v2613 = vsel %vm2327, %v2612, 0.0
      %v2614 = vsel %vm2328, %v2612, 0.0
      %v2615 = vmul.f32 %v2299, %v2613
      %v2616 = vmul.f32 %v2277, %v2614
      %v2617 = vmul.f32 %v2300, %v2613
      %v2618 = vmul.f32 %v2278, %v2614
      %v2619 = vmul.f32 %v2301, %v2613
      %v2620 = vmul.f32 %v2279, %v2614
      %v2621 = vmul.f32 %v2302, %v2613
      %v2622 = vmul.f32 %v2280, %v2614
      %v2623 = vmul.f32 %v2303, %v2613
      %v2624 = vmul.f32 %v2281, %v2614
      %v2625 = vmul.f32 %v2304, %v2613
      %v2626 = vmul.f32 %v2282, %v2614
      %v2627 = vmul.f32 %v2305, %v2613
      %v2628 = vmul.f32 %v2283, %v2614
      %v2629 = vmul.f32 %v2306, %v2613
      %v2630 = vmul.f32 %v2284, %v2614
      %v2631 = vmul.f32 %v2307, %v2613
      %v2632 = vmul.f32 %v2285, %v2614
      %v2633 = vmul.f32 %v2308, %v2613
      %v2634 = vmul.f32 %v2286, %v2614
      %v2635 = vmul.f32 %v2309, %v2613
      %v2636 = vmul.f32 %v2287, %v2614
      %v2637 = vmul.f32 %v2310, %v2613
      %v2638 = vmul.f32 %v2288, %v2614
      %v2639 = vmul.f32 %v2311, %v2613
      %v2640 = vmul.f32 %v2289, %v2614
      %v2641 = vmul.f32 %v2312, %v2613
      %v2642 = vmul.f32 %v2290, %v2614
      %v2643 = vmul.f32 %v2313, %v2613
      %v2644 = vmul.f32 %v2291, %v2614
      %v2645 = vmul.f32 %v2314, %v2613
      %v2646 = vmul.f32 %v2292, %v2614
      %v2647 = vadd.f32 %v2577, %v2615
      %v2648 = vadd.f32 %v2578, %v2616
      %v2649 = vadd.f32 %v2579, %v2617
      %v2650 = vadd.f32 %v2580, %v2618
      %v2651 = vadd.f32 %v2581, %v2619
      %v2652 = vadd.f32 %v2582, %v2620
      %v2653 = vadd.f32 %v2583, %v2621
      %v2654 = vadd.f32 %v2584, %v2622
      %v2655 = vadd.f32 %v2585, %v2623
      %v2656 = vadd.f32 %v2586, %v2624
      %v2657 = vadd.f32 %v2587, %v2625
      %v2658 = vadd.f32 %v2588, %v2626
      %v2659 = vadd.f32 %v2589, %v2627
      %v2660 = vadd.f32 %v2590, %v2628
      %v2661 = vadd.f32 %v2591, %v2629
      %v2662 = vadd.f32 %v2592, %v2630
      %v2663 = vadd.f32 %v2593, %v2631
      %v2664 = vadd.f32 %v2594, %v2632
      %v2665 = vadd.f32 %v2595, %v2633
      %v2666 = vadd.f32 %v2596, %v2634
      %v2667 = vadd.f32 %v2597, %v2635
      %v2668 = vadd.f32 %v2598, %v2636
      %v2669 = vadd.f32 %v2599, %v2637
      %v2670 = vadd.f32 %v2600, %v2638
      %v2671 = vadd.f32 %v2601, %v2639
      %v2672 = vadd.f32 %v2602, %v2640
      %v2673 = vadd.f32 %v2603, %v2641
      %v2674 = vadd.f32 %v2604, %v2642
      %v2675 = vadd.f32 %v2605, %v2643
      %v2676 = vadd.f32 %v2606, %v2644
      %v2677 = vadd.f32 %v2607, %v2645
      %v2678 = vadd.f32 %v2608, %v2646
      %v2679 = vlaneseq
      %v2680 = vshrl.u32 %v2679, 7
      %v2681 = vsub.s32 1, %v2680
      %v2682 = vrot.slane %v390, %v2681
      %v2683 = vsel %vm2327, %v2682, 0.0
      %v2684 = vsel %vm2328, %v2682, 0.0
      %v2685 = vmul.f32 %v2300, %v2683
      %v2686 = vmul.f32 %v2278, %v2684
      %v2687 = vmul.f32 %v2301, %v2683
      %v2688 = vmul.f32 %v2279, %v2684
      %v2689 = vmul.f32 %v2302, %v2683
      %v2690 = vmul.f32 %v2280, %v2684
      %v2691 = vmul.f32 %v2303, %v2683
      %v2692 = vmul.f32 %v2281, %v2684
      %v2693 = vmul.f32 %v2304, %v2683
      %v2694 = vmul.f32 %v2282, %v2684
      %v2695 = vmul.f32 %v2305, %v2683
      %v2696 = vmul.f32 %v2283, %v2684
      %v2697 = vmul.f32 %v2306, %v2683
      %v2698 = vmul.f32 %v2284, %v2684
      %v2699 = vmul.f32 %v2307, %v2683
      %v2700 = vmul.f32 %v2285, %v2684
      %v2701 = vmul.f32 %v2308, %v2683
      %v2702 = vmul.f32 %v2286, %v2684
      %v2703 = vmul.f32 %v2309, %v2683
      %v2704 = vmul.f32 %v2287, %v2684
      %v2705 = vmul.f32 %v2310, %v2683
      %v2706 = vmul.f32 %v2288, %v2684
      %v2707 = vmul.f32 %v2311, %v2683
      %v2708 = vmul.f32 %v2289, %v2684
      %v2709 = vmul.f32 %v2312, %v2683
      %v2710 = vmul.f32 %v2290, %v2684
      %v2711 = vmul.f32 %v2313, %v2683
      %v2712 = vmul.f32 %v2291, %v2684
      %v2713 = vmul.f32 %v2314, %v2683
      %v2714 = vmul.f32 %v2292, %v2684
      %v2715 = vmul.f32 %v2315, %v2683
      %v2716 = vmul.f32 %v2293, %v2684
      %v2717 = vadd.f32 %v2647, %v2685
      %v2718 = vadd.f32 %v2648, %v2686
      %v2719 = vadd.f32 %v2649, %v2687
      %v2720 = vadd.f32 %v2650, %v2688
      %v2721 = vadd.f32 %v2651, %v2689
      %v2722 = vadd.f32 %v2652, %v2690
      %v2723 = vadd.f32 %v2653, %v2691
      %v2724 = vadd.f32 %v2654, %v2692
      %v2725 = vadd.f32 %v2655, %v2693
      %v2726 = vadd.f32 %v2656, %v2694
      %v2727 = vadd.f32 %v2657, %v2695
      %v2728 = vadd.f32 %v2658, %v2696
      %v2729 = vadd.f32 %v2659, %v2697
      %v2730 = vadd.f32 %v2660, %v2698
      %v2731 = vadd.f32 %v2661, %v2699
      %v2732 = vadd.f32 %v2662, %v2700
      %v2733 = vadd.f32 %v2663, %v2701
      %v2734 = vadd.f32 %v2664, %v2702
      %v2735 = vadd.f32 %v2665, %v2703
      %v2736 = vadd.f32 %v2666, %v2704
      %v2737 = vadd.f32 %v2667, %v2705
      %v2738 = vadd.f32 %v2668, %v2706
      %v2739 = vadd.f32 %v2669, %v2707
      %v2740 = vadd.f32 %v2670, %v2708
      %v2741 = vadd.f32 %v2671, %v2709
      %v2742 = vadd.f32 %v2672, %v2710
      %v2743 = vadd.f32 %v2673, %v2711
      %v2744 = vadd.f32 %v2674, %v2712
      %v2745 = vadd.f32 %v2675, %v2713
      %v2746 = vadd.f32 %v2676, %v2714
      %v2747 = vadd.f32 %v2677, %v2715
      %v2748 = vadd.f32 %v2678, %v2716
      %v2749 = vlaneseq
      %v2750 = vshrl.u32 %v2749, 7
      %v2751 = vsub.s32 1, %v2750
      %v2752 = vrot.slane %v391, %v2751
      %v2753 = vsel %vm2327, %v2752, 0.0
      %v2754 = vsel %vm2328, %v2752, 0.0
      %v2755 = vmul.f32 %v2301, %v2753
      %v2756 = vmul.f32 %v2279, %v2754
      %v2757 = vmul.f32 %v2302, %v2753
      %v2758 = vmul.f32 %v2280, %v2754
      %v2759 = vmul.f32 %v2303, %v2753
      %v2760 = vmul.f32 %v2281, %v2754
      %v2761 = vmul.f32 %v2304, %v2753
      %v2762 = vmul.f32 %v2282, %v2754
      %v2763 = vmul.f32 %v2305, %v2753
      %v2764 = vmul.f32 %v2283, %v2754
      %v2765 = vmul.f32 %v2306, %v2753
      %v2766 = vmul.f32 %v2284, %v2754
      %v2767 = vmul.f32 %v2307, %v2753
      %v2768 = vmul.f32 %v2285, %v2754
      %v2769 = vmul.f32 %v2308, %v2753
      %v2770 = vmul.f32 %v2286, %v2754
      %v2771 = vmul.f32 %v2309, %v2753
      %v2772 = vmul.f32 %v2287, %v2754
      %v2773 = vmul.f32 %v2310, %v2753
      %v2774 = vmul.f32 %v2288, %v2754
      %v2775 = vmul.f32 %v2311, %v2753
      %v2776 = vmul.f32 %v2289, %v2754
      %v2777 = vmul.f32 %v2312, %v2753
      %v2778 = vmul.f32 %v2290, %v2754
      %v2779 = vmul.f32 %v2313, %v2753
      %v2780 = vmul.f32 %v2291, %v2754
      %v2781 = vmul.f32 %v2314, %v2753
      %v2782 = vmul.f32 %v2292, %v2754
      %v2783 = vmul.f32 %v2315, %v2753
      %v2784 = vmul.f32 %v2293, %v2754
      %v2785 = vmul.f32 %v2316, %v2753
      %v2786 = vmul.f32 %v2294, %v2754
      %v2787 = vadd.f32 %v2717, %v2755
      %v2788 = vadd.f32 %v2718, %v2756
      %v2789 = vadd.f32 %v2719, %v2757
      %v2790 = vadd.f32 %v2720, %v2758
      %v2791 = vadd.f32 %v2721, %v2759
      %v2792 = vadd.f32 %v2722, %v2760
      %v2793 = vadd.f32 %v2723, %v2761
      %v2794 = vadd.f32 %v2724, %v2762
      %v2795 = vadd.f32 %v2725, %v2763
      %v2796 = vadd.f32 %v2726, %v2764
      %v2797 = vadd.f32 %v2727, %v2765
      %v2798 = vadd.f32 %v2728, %v2766
      %v2799 = vadd.f32 %v2729, %v2767
      %v2800 = vadd.f32 %v2730, %v2768
      %v2801 = vadd.f32 %v2731, %v2769
      %v2802 = vadd.f32 %v2732, %v2770
      %v2803 = vadd.f32 %v2733, %v2771
      %v2804 = vadd.f32 %v2734, %v2772
      %v2805 = vadd.f32 %v2735, %v2773
      %v2806 = vadd.f32 %v2736, %v2774
      %v2807 = vadd.f32 %v2737, %v2775
      %v2808 = vadd.f32 %v2738, %v2776
      %v2809 = vadd.f32 %v2739, %v2777
      %v2810 = vadd.f32 %v2740, %v2778
      %v2811 = vadd.f32 %v2741, %v2779
      %v2812 = vadd.f32 %v2742, %v2780
      %v2813 = vadd.f32 %v2743, %v2781
      %v2814 = vadd.f32 %v2744, %v2782
      %v2815 = vadd.f32 %v2745, %v2783
      %v2816 = vadd.f32 %v2746, %v2784
      %v2817 = vadd.f32 %v2747, %v2785
      %v2818 = vadd.f32 %v2748, %v2786
      %v2819 = vrot.slane %v1593, 7
      %v2820 = vrot.slane %v1595, 7
      %v2821 = vrot.slane %v1597, 7
      %v2822 = vrot.slane %v1599, 7
      %v2823 = vrot.slane %v1601, 7
      %v2824 = vrot.slane %v1603, 7
      %v2825 = vrot.slane %v1605, 7
      %v2826 = vrot.slane %v1607, 7
      %v2827 = vrot.slane %v1609, 7
      %v2828 = vrot.slane %v1611, 7
      %v2829 = vrot.slane %v1613, 7
      %v2830 = vrot.slane %v1615, 7
      %v2831 = vrot.slane %v1617, 7
      %v2832 = vrot.slane %v1619, 7
      %v2833 = vrot.slane %v1621, 7
      %v2834 = vrot.slane %v1623, 7
      %v2835 = vrot.slane %v1625, 7
      %v2836 = vrot.slane %v1627, 7
      %v2837 = vrot.slane %v1629, 7
      %v2838 = vrot.slane %v1631, 7
      %v2839 = vrot.slane %v1633, 7
      %v2840 = vrot.slane %v1635, 7
      %v2841 = vrot.slane %v1594, 7
      %v2842 = vrot.slane %v1596, 7
      %v2843 = vrot.slane %v1598, 7
      %v2844 = vrot.slane %v1600, 7
      %v2845 = vrot.slane %v1602, 7
      %v2846 = vrot.slane %v1604, 7
      %v2847 = vrot.slane %v1606, 7
      %v2848 = vrot.slane %v1608, 7
      %v2849 = vrot.slane %v1610, 7
      %v2850 = vrot.slane %v1612, 7
      %v2851 = vrot.slane %v1614, 7
      %v2852 = vrot.slane %v1616, 7
      %v2853 = vrot.slane %v1618, 7
      %v2854 = vrot.slane %v1620, 7
      %v2855 = vrot.slane %v1622, 7
      %v2856 = vrot.slane %v1624, 7
      %v2857 = vrot.slane %v1626, 7
      %v2858 = vrot.slane %v1628, 7
      %v2859 = vrot.slane %v1630, 7
      %v2860 = vrot.slane %v1632, 7
      %v2861 = vrot.slane %v1634, 7
      %v2862 = vrot.slane %v1636, 7
      %v2863 = vsel %vm450, %v2819, %v2841
      %v2864 = vsel %vm450, %v2820, %v2842
      %v2865 = vsel %vm450, %v2821, %v2843
      %v2866 = vsel %vm450, %v2822, %v2844
      %v2867 = vsel %vm450, %v2823, %v2845
      %v2868 = vsel %vm450, %v2824, %v2846
      %v2869 = vsel %vm450, %v2825, %v2847
      %v2870 = vsel %vm450, %v2826, %v2848
      %v2871 = vsel %vm450, %v2827, %v2849
      %v2872 = vsel %vm450, %v2828, %v2850
      %v2873 = vsel %vm450, %v2829, %v2851
      %v2874 = vsel %vm450, %v2830, %v2852
      %v2875 = vsel %vm450, %v2831, %v2853
      %v2876 = vsel %vm450, %v2832, %v2854
      %v2877 = vsel %vm450, %v2833, %v2855
      %v2878 = vsel %vm450, %v2834, %v2856
      %v2879 = vsel %vm450, %v2835, %v2857
      %v2880 = vsel %vm450, %v2836, %v2858
      %v2881 = vsel %vm450, %v2837, %v2859
      %v2882 = vsel %vm450, %v2838, %v2860
      %v2883 = vsel %vm450, %v2839, %v2861
      %v2884 = vsel %vm450, %v2840, %v2862
      %v2885 = vsel %vm450, %v2841, %v2819
      %v2886 = vsel %vm450, %v2842, %v2820
      %v2887 = vsel %vm450, %v2843, %v2821
      %v2888 = vsel %vm450, %v2844, %v2822
      %v2889 = vsel %vm450, %v2845, %v2823
      %v2890 = vsel %vm450, %v2846, %v2824
      %v2891 = vsel %vm450, %v2847, %v2825
      %v2892 = vsel %vm450, %v2848, %v2826
      %v2893 = vsel %vm450, %v2849, %v2827
      %v2894 = vsel %vm450, %v2850, %v2828
      %v2895 = vsel %vm450, %v2851, %v2829
      %v2896 = vsel %vm450, %v2852, %v2830
      %v2897 = vsel %vm450, %v2853, %v2831
      %v2898 = vsel %vm450, %v2854, %v2832
      %v2899 = vsel %vm450, %v2855, %v2833
      %v2900 = vsel %vm450, %v2856, %v2834
      %v2901 = vsel %vm450, %v2857, %v2835
      %v2902 = vsel %vm450, %v2858, %v2836
      %v2903 = vsel %vm450, %v2859, %v2837
      %v2904 = vsel %vm450, %v2860, %v2838
      %v2905 = vsel %vm450, %v2861, %v2839
      %v2906 = vsel %vm450, %v2862, %v2840
      %v2907 = vlaneseq
      %v2908 = vshrl.u32 %v2907, 7
      %v2909 = vsub.s32 2, %v2908
      %v2910 = vrot.slane %v385, %v2909
      %v2911 = vsel %vm509, %v2910, 0.0
      %v2912 = vsel %vm510, %v2910, 0.0
      %v2913 = vmul.f32 %v2885, %v2911
      %v2914 = vmul.f32 %v2863, %v2912
      %v2915 = vmul.f32 %v2886, %v2911
      %v2916 = vmul.f32 %v2864, %v2912
      %v2917 = vmul.f32 %v2887, %v2911
      %v2918 = vmul.f32 %v2865, %v2912
      %v2919 = vmul.f32 %v2888, %v2911
      %v2920 = vmul.f32 %v2866, %v2912
      %v2921 = vmul.f32 %v2889, %v2911
      %v2922 = vmul.f32 %v2867, %v2912
      %v2923 = vmul.f32 %v2890, %v2911
      %v2924 = vmul.f32 %v2868, %v2912
      %v2925 = vmul.f32 %v2891, %v2911
      %v2926 = vmul.f32 %v2869, %v2912
      %v2927 = vmul.f32 %v2892, %v2911
      %v2928 = vmul.f32 %v2870, %v2912
      %v2929 = vmul.f32 %v2893, %v2911
      %v2930 = vmul.f32 %v2871, %v2912
      %v2931 = vmul.f32 %v2894, %v2911
      %v2932 = vmul.f32 %v2872, %v2912
      %v2933 = vmul.f32 %v2895, %v2911
      %v2934 = vmul.f32 %v2873, %v2912
      %v2935 = vmul.f32 %v2896, %v2911
      %v2936 = vmul.f32 %v2874, %v2912
      %v2937 = vmul.f32 %v2897, %v2911
      %v2938 = vmul.f32 %v2875, %v2912
      %v2939 = vmul.f32 %v2898, %v2911
      %v2940 = vmul.f32 %v2876, %v2912
      %v2941 = vmul.f32 %v2899, %v2911
      %v2942 = vmul.f32 %v2877, %v2912
      %v2943 = vmul.f32 %v2900, %v2911
      %v2944 = vmul.f32 %v2878, %v2912
      %v2945 = vadd.f32 %v2787, %v2913
      %v2946 = vadd.f32 %v2788, %v2914
      %v2947 = vadd.f32 %v2789, %v2915
      %v2948 = vadd.f32 %v2790, %v2916
      %v2949 = vadd.f32 %v2791, %v2917
      %v2950 = vadd.f32 %v2792, %v2918
      %v2951 = vadd.f32 %v2793, %v2919
      %v2952 = vadd.f32 %v2794, %v2920
      %v2953 = vadd.f32 %v2795, %v2921
      %v2954 = vadd.f32 %v2796, %v2922
      %v2955 = vadd.f32 %v2797, %v2923
      %v2956 = vadd.f32 %v2798, %v2924
      %v2957 = vadd.f32 %v2799, %v2925
      %v2958 = vadd.f32 %v2800, %v2926
      %v2959 = vadd.f32 %v2801, %v2927
      %v2960 = vadd.f32 %v2802, %v2928
      %v2961 = vadd.f32 %v2803, %v2929
      %v2962 = vadd.f32 %v2804, %v2930
      %v2963 = vadd.f32 %v2805, %v2931
      %v2964 = vadd.f32 %v2806, %v2932
      %v2965 = vadd.f32 %v2807, %v2933
      %v2966 = vadd.f32 %v2808, %v2934
      %v2967 = vadd.f32 %v2809, %v2935
      %v2968 = vadd.f32 %v2810, %v2936
      %v2969 = vadd.f32 %v2811, %v2937
      %v2970 = vadd.f32 %v2812, %v2938
      %v2971 = vadd.f32 %v2813, %v2939
      %v2972 = vadd.f32 %v2814, %v2940
      %v2973 = vadd.f32 %v2815, %v2941
      %v2974 = vadd.f32 %v2816, %v2942
      %v2975 = vadd.f32 %v2817, %v2943
      %v2976 = vadd.f32 %v2818, %v2944
      %v2977 = vlaneseq
      %v2978 = vshrl.u32 %v2977, 7
      %v2979 = vsub.s32 2, %v2978
      %v2980 = vrot.slane %v386, %v2979
      %v2981 = vsel %vm509, %v2980, 0.0
      %v2982 = vsel %vm510, %v2980, 0.0
      %v2983 = vmul.f32 %v2886, %v2981
      %v2984 = vmul.f32 %v2864, %v2982
      %v2985 = vmul.f32 %v2887, %v2981
      %v2986 = vmul.f32 %v2865, %v2982
      %v2987 = vmul.f32 %v2888, %v2981
      %v2988 = vmul.f32 %v2866, %v2982
      %v2989 = vmul.f32 %v2889, %v2981
      %v2990 = vmul.f32 %v2867, %v2982
      %v2991 = vmul.f32 %v2890, %v2981
      %v2992 = vmul.f32 %v2868, %v2982
      %v2993 = vmul.f32 %v2891, %v2981
      %v2994 = vmul.f32 %v2869, %v2982
      %v2995 = vmul.f32 %v2892, %v2981
      %v2996 = vmul.f32 %v2870, %v2982
      %v2997 = vmul.f32 %v2893, %v2981
      %v2998 = vmul.f32 %v2871, %v2982
      %v2999 = vmul.f32 %v2894, %v2981
      %v3000 = vmul.f32 %v2872, %v2982
      %v3001 = vmul.f32 %v2895, %v2981
      %v3002 = vmul.f32 %v2873, %v2982
      %v3003 = vmul.f32 %v2896, %v2981
      %v3004 = vmul.f32 %v2874, %v2982
      %v3005 = vmul.f32 %v2897, %v2981
      %v3006 = vmul.f32 %v2875, %v2982
      %v3007 = vmul.f32 %v2898, %v2981
      %v3008 = vmul.f32 %v2876, %v2982
      %v3009 = vmul.f32 %v2899, %v2981
      %v3010 = vmul.f32 %v2877, %v2982
      %v3011 = vmul.f32 %v2900, %v2981
      %v3012 = vmul.f32 %v2878, %v2982
      %v3013 = vmul.f32 %v2901, %v2981
      %v3014 = vmul.f32 %v2879, %v2982
      %v3015 = vadd.f32 %v2945, %v2983
      %v3016 = vadd.f32 %v2946, %v2984
      %v3017 = vadd.f32 %v2947, %v2985
      %v3018 = vadd.f32 %v2948, %v2986
      %v3019 = vadd.f32 %v2949, %v2987
      %v3020 = vadd.f32 %v2950, %v2988
      %v3021 = vadd.f32 %v2951, %v2989
      %v3022 = vadd.f32 %v2952, %v2990
      %v3023 = vadd.f32 %v2953, %v2991
      %v3024 = vadd.f32 %v2954, %v2992
      %v3025 = vadd.f32 %v2955, %v2993
      %v3026 = vadd.f32 %v2956, %v2994
      %v3027 = vadd.f32 %v2957, %v2995
      %v3028 = vadd.f32 %v2958, %v2996
      %v3029 = vadd.f32 %v2959, %v2997
      %v3030 = vadd.f32 %v2960, %v2998
      %v3031 = vadd.f32 %v2961, %v2999
      %v3032 = vadd.f32 %v2962, %v3000
      %v3033 = vadd.f32 %v2963, %v3001
      %v3034 = vadd.f32 %v2964, %v3002
      %v3035 = vadd.f32 %v2965, %v3003
      %v3036 = vadd.f32 %v2966, %v3004
      %v3037 = vadd.f32 %v2967, %v3005
      %v3038 = vadd.f32 %v2968, %v3006
      %v3039 = vadd.f32 %v2969, %v3007
      %v3040 = vadd.f32 %v2970, %v3008
      %v3041 = vadd.f32 %v2971, %v3009
      %v3042 = vadd.f32 %v2972, %v3010
      %v3043 = vadd.f32 %v2973, %v3011
      %v3044 = vadd.f32 %v2974, %v3012
      %v3045 = vadd.f32 %v2975, %v3013
      %v3046 = vadd.f32 %v2976, %v3014
      %v3047 = vlaneseq
      %v3048 = vshrl.u32 %v3047, 7
      %v3049 = vsub.s32 2, %v3048
      %v3050 = vrot.slane %v387, %v3049
      %v3051 = vsel %vm509, %v3050, 0.0
      %v3052 = vsel %vm510, %v3050, 0.0
      %v3053 = vmul.f32 %v2887, %v3051
      %v3054 = vmul.f32 %v2865, %v3052
      %v3055 = vmul.f32 %v2888, %v3051
      %v3056 = vmul.f32 %v2866, %v3052
      %v3057 = vmul.f32 %v2889, %v3051
      %v3058 = vmul.f32 %v2867, %v3052
      %v3059 = vmul.f32 %v2890, %v3051
      %v3060 = vmul.f32 %v2868, %v3052
      %v3061 = vmul.f32 %v2891, %v3051
      %v3062 = vmul.f32 %v2869, %v3052
      %v3063 = vmul.f32 %v2892, %v3051
      %v3064 = vmul.f32 %v2870, %v3052
      %v3065 = vmul.f32 %v2893, %v3051
      %v3066 = vmul.f32 %v2871, %v3052
      %v3067 = vmul.f32 %v2894, %v3051
      %v3068 = vmul.f32 %v2872, %v3052
      %v3069 = vmul.f32 %v2895, %v3051
      %v3070 = vmul.f32 %v2873, %v3052
      %v3071 = vmul.f32 %v2896, %v3051
      %v3072 = vmul.f32 %v2874, %v3052
      %v3073 = vmul.f32 %v2897, %v3051
      %v3074 = vmul.f32 %v2875, %v3052
      %v3075 = vmul.f32 %v2898, %v3051
      %v3076 = vmul.f32 %v2876, %v3052
      %v3077 = vmul.f32 %v2899, %v3051
      %v3078 = vmul.f32 %v2877, %v3052
      %v3079 = vmul.f32 %v2900, %v3051
      %v3080 = vmul.f32 %v2878, %v3052
      %v3081 = vmul.f32 %v2901, %v3051
      %v3082 = vmul.f32 %v2879, %v3052
      %v3083 = vmul.f32 %v2902, %v3051
      %v3084 = vmul.f32 %v2880, %v3052
      %v3085 = vadd.f32 %v3015, %v3053
      %v3086 = vadd.f32 %v3016, %v3054
      %v3087 = vadd.f32 %v3017, %v3055
      %v3088 = vadd.f32 %v3018, %v3056
      %v3089 = vadd.f32 %v3019, %v3057
      %v3090 = vadd.f32 %v3020, %v3058
      %v3091 = vadd.f32 %v3021, %v3059
      %v3092 = vadd.f32 %v3022, %v3060
      %v3093 = vadd.f32 %v3023, %v3061
      %v3094 = vadd.f32 %v3024, %v3062
      %v3095 = vadd.f32 %v3025, %v3063
      %v3096 = vadd.f32 %v3026, %v3064
      %v3097 = vadd.f32 %v3027, %v3065
      %v3098 = vadd.f32 %v3028, %v3066
      %v3099 = vadd.f32 %v3029, %v3067
      %v3100 = vadd.f32 %v3030, %v3068
      %v3101 = vadd.f32 %v3031, %v3069
      %v3102 = vadd.f32 %v3032, %v3070
      %v3103 = vadd.f32 %v3033, %v3071
      %v3104 = vadd.f32 %v3034, %v3072
      %v3105 = vadd.f32 %v3035, %v3073
      %v3106 = vadd.f32 %v3036, %v3074
      %v3107 = vadd.f32 %v3037, %v3075
      %v3108 = vadd.f32 %v3038, %v3076
      %v3109 = vadd.f32 %v3039, %v3077
      %v3110 = vadd.f32 %v3040, %v3078
      %v3111 = vadd.f32 %v3041, %v3079
      %v3112 = vadd.f32 %v3042, %v3080
      %v3113 = vadd.f32 %v3043, %v3081
      %v3114 = vadd.f32 %v3044, %v3082
      %v3115 = vadd.f32 %v3045, %v3083
      %v3116 = vadd.f32 %v3046, %v3084
      %v3117 = vlaneseq
      %v3118 = vshrl.u32 %v3117, 7
      %v3119 = vsub.s32 2, %v3118
      %v3120 = vrot.slane %v388, %v3119
      %v3121 = vsel %vm509, %v3120, 0.0
      %v3122 = vsel %vm510, %v3120, 0.0
      %v3123 = vmul.f32 %v2888, %v3121
      %v3124 = vmul.f32 %v2866, %v3122
      %v3125 = vmul.f32 %v2889, %v3121
      %v3126 = vmul.f32 %v2867, %v3122
      %v3127 = vmul.f32 %v2890, %v3121
      %v3128 = vmul.f32 %v2868, %v3122
      %v3129 = vmul.f32 %v2891, %v3121
      %v3130 = vmul.f32 %v2869, %v3122
      %v3131 = vmul.f32 %v2892, %v3121
      %v3132 = vmul.f32 %v2870, %v3122
      %v3133 = vmul.f32 %v2893, %v3121
      %v3134 = vmul.f32 %v2871, %v3122
      %v3135 = vmul.f32 %v2894, %v3121
      %v3136 = vmul.f32 %v2872, %v3122
      %v3137 = vmul.f32 %v2895, %v3121
      %v3138 = vmul.f32 %v2873, %v3122
      %v3139 = vmul.f32 %v2896, %v3121
      %v3140 = vmul.f32 %v2874, %v3122
      %v3141 = vmul.f32 %v2897, %v3121
      %v3142 = vmul.f32 %v2875, %v3122
      %v3143 = vmul.f32 %v2898, %v3121
      %v3144 = vmul.f32 %v2876, %v3122
      %v3145 = vmul.f32 %v2899, %v3121
      %v3146 = vmul.f32 %v2877, %v3122
      %v3147 = vmul.f32 %v2900, %v3121
      %v3148 = vmul.f32 %v2878, %v3122
      %v3149 = vmul.f32 %v2901, %v3121
      %v3150 = vmul.f32 %v2879, %v3122
      %v3151 = vmul.f32 %v2902, %v3121
      %v3152 = vmul.f32 %v2880, %v3122
      %v3153 = vmul.f32 %v2903, %v3121
      %v3154 = vmul.f32 %v2881, %v3122
      %v3155 = vadd.f32 %v3085, %v3123
      %v3156 = vadd.f32 %v3086, %v3124
      %v3157 = vadd.f32 %v3087, %v3125
      %v3158 = vadd.f32 %v3088, %v3126
      %v3159 = vadd.f32 %v3089, %v3127
      %v3160 = vadd.f32 %v3090, %v3128
      %v3161 = vadd.f32 %v3091, %v3129
      %v3162 = vadd.f32 %v3092, %v3130
      %v3163 = vadd.f32 %v3093, %v3131
      %v3164 = vadd.f32 %v3094, %v3132
      %v3165 = vadd.f32 %v3095, %v3133
      %v3166 = vadd.f32 %v3096, %v3134
      %v3167 = vadd.f32 %v3097, %v3135
      %v3168 = vadd.f32 %v3098, %v3136
      %v3169 = vadd.f32 %v3099, %v3137
      %v3170 = vadd.f32 %v3100, %v3138
      %v3171 = vadd.f32 %v3101, %v3139
      %v3172 = vadd.f32 %v3102, %v3140
      %v3173 = vadd.f32 %v3103, %v3141
      %v3174 = vadd.f32 %v3104, %v3142
      %v3175 = vadd.f32 %v3105, %v3143
      %v3176 = vadd.f32 %v3106, %v3144
      %v3177 = vadd.f32 %v3107, %v3145
      %v3178 = vadd.f32 %v3108, %v3146
      %v3179 = vadd.f32 %v3109, %v3147
      %v3180 = vadd.f32 %v3110, %v3148
      %v3181 = vadd.f32 %v3111, %v3149
      %v3182 = vadd.f32 %v3112, %v3150
      %v3183 = vadd.f32 %v3113, %v3151
      %v3184 = vadd.f32 %v3114, %v3152
      %v3185 = vadd.f32 %v3115, %v3153
      %v3186 = vadd.f32 %v3116, %v3154
      %v3187 = vlaneseq
      %v3188 = vshrl.u32 %v3187, 7
      %v3189 = vsub.s32 2, %v3188
      %v3190 = vrot.slane %v389, %v3189
      %v3191 = vsel %vm509, %v3190, 0.0
      %v3192 = vsel %vm510, %v3190, 0.0
      %v3193 = vmul.f32 %v2889, %v3191
      %v3194 = vmul.f32 %v2867, %v3192
      %v3195 = vmul.f32 %v2890, %v3191
      %v3196 = vmul.f32 %v2868, %v3192
      %v3197 = vmul.f32 %v2891, %v3191
      %v3198 = vmul.f32 %v2869, %v3192
      %v3199 = vmul.f32 %v2892, %v3191
      %v3200 = vmul.f32 %v2870, %v3192
      %v3201 = vmul.f32 %v2893, %v3191
      %v3202 = vmul.f32 %v2871, %v3192
      %v3203 = vmul.f32 %v2894, %v3191
      %v3204 = vmul.f32 %v2872, %v3192
      %v3205 = vmul.f32 %v2895, %v3191
      %v3206 = vmul.f32 %v2873, %v3192
      %v3207 = vmul.f32 %v2896, %v3191
      %v3208 = vmul.f32 %v2874, %v3192
      %v3209 = vmul.f32 %v2897, %v3191
      %v3210 = vmul.f32 %v2875, %v3192
      %v3211 = vmul.f32 %v2898, %v3191
      %v3212 = vmul.f32 %v2876, %v3192
      %v3213 = vmul.f32 %v2899, %v3191
      %v3214 = vmul.f32 %v2877, %v3192
      %v3215 = vmul.f32 %v2900, %v3191
      %v3216 = vmul.f32 %v2878, %v3192
      %v3217 = vmul.f32 %v2901, %v3191
      %v3218 = vmul.f32 %v2879, %v3192
      %v3219 = vmul.f32 %v2902, %v3191
      %v3220 = vmul.f32 %v2880, %v3192
      %v3221 = vmul.f32 %v2903, %v3191
      %v3222 = vmul.f32 %v2881, %v3192
      %v3223 = vmul.f32 %v2904, %v3191
      %v3224 = vmul.f32 %v2882, %v3192
      %v3225 = vadd.f32 %v3155, %v3193
      %v3226 = vadd.f32 %v3156, %v3194
      %v3227 = vadd.f32 %v3157, %v3195
      %v3228 = vadd.f32 %v3158, %v3196
      %v3229 = vadd.f32 %v3159, %v3197
      %v3230 = vadd.f32 %v3160, %v3198
      %v3231 = vadd.f32 %v3161, %v3199
      %v3232 = vadd.f32 %v3162, %v3200
      %v3233 = vadd.f32 %v3163, %v3201
      %v3234 = vadd.f32 %v3164, %v3202
      %v3235 = vadd.f32 %v3165, %v3203
      %v3236 = vadd.f32 %v3166, %v3204
      %v3237 = vadd.f32 %v3167, %v3205
      %v3238 = vadd.f32 %v3168, %v3206
      %v3239 = vadd.f32 %v3169, %v3207
      %v3240 = vadd.f32 %v3170, %v3208
      %v3241 = vadd.f32 %v3171, %v3209
      %v3242 = vadd.f32 %v3172, %v3210
      %v3243 = vadd.f32 %v3173, %v3211
      %v3244 = vadd.f32 %v3174, %v3212
      %v3245 = vadd.f32 %v3175, %v3213
      %v3246 = vadd.f32 %v3176, %v3214
      %v3247 = vadd.f32 %v3177, %v3215
      %v3248 = vadd.f32 %v3178, %v3216
      %v3249 = vadd.f32 %v3179, %v3217
      %v3250 = vadd.f32 %v3180, %v3218
      %v3251 = vadd.f32 %v3181, %v3219
      %v3252 = vadd.f32 %v3182, %v3220
      %v3253 = vadd.f32 %v3183, %v3221
      %v3254 = vadd.f32 %v3184, %v3222
      %v3255 = vadd.f32 %v3185, %v3223
      %v3256 = vadd.f32 %v3186, %v3224
      %v3257 = vlaneseq
      %v3258 = vshrl.u32 %v3257, 7
      %v3259 = vsub.s32 2, %v3258
      %v3260 = vrot.slane %v390, %v3259
      %v3261 = vsel %vm509, %v3260, 0.0
      %v3262 = vsel %vm510, %v3260, 0.0
      %v3263 = vmul.f32 %v2890, %v3261
      %v3264 = vmul.f32 %v2868, %v3262
      %v3265 = vmul.f32 %v2891, %v3261
      %v3266 = vmul.f32 %v2869, %v3262
      %v3267 = vmul.f32 %v2892, %v3261
      %v3268 = vmul.f32 %v2870, %v3262
      %v3269 = vmul.f32 %v2893, %v3261
      %v3270 = vmul.f32 %v2871, %v3262
      %v3271 = vmul.f32 %v2894, %v3261
      %v3272 = vmul.f32 %v2872, %v3262
      %v3273 = vmul.f32 %v2895, %v3261
      %v3274 = vmul.f32 %v2873, %v3262
      %v3275 = vmul.f32 %v2896, %v3261
      %v3276 = vmul.f32 %v2874, %v3262
      %v3277 = vmul.f32 %v2897, %v3261
      %v3278 = vmul.f32 %v2875, %v3262
      %v3279 = vmul.f32 %v2898, %v3261
      %v3280 = vmul.f32 %v2876, %v3262
      %v3281 = vmul.f32 %v2899, %v3261
      %v3282 = vmul.f32 %v2877, %v3262
      %v3283 = vmul.f32 %v2900, %v3261
      %v3284 = vmul.f32 %v2878, %v3262
      %v3285 = vmul.f32 %v2901, %v3261
      %v3286 = vmul.f32 %v2879, %v3262
      %v3287 = vmul.f32 %v2902, %v3261
      %v3288 = vmul.f32 %v2880, %v3262
      %v3289 = vmul.f32 %v2903, %v3261
      %v3290 = vmul.f32 %v2881, %v3262
      %v3291 = vmul.f32 %v2904, %v3261
      %v3292 = vmul.f32 %v2882, %v3262
      %v3293 = vmul.f32 %v2905, %v3261
      %v3294 = vmul.f32 %v2883, %v3262
      %v3295 = vadd.f32 %v3225, %v3263
      %v3296 = vadd.f32 %v3226, %v3264
      %v3297 = vadd.f32 %v3227, %v3265
      %v3298 = vadd.f32 %v3228, %v3266
      %v3299 = vadd.f32 %v3229, %v3267
      %v3300 = vadd.f32 %v3230, %v3268
      %v3301 = vadd.f32 %v3231, %v3269
      %v3302 = vadd.f32 %v3232, %v3270
      %v3303 = vadd.f32 %v3233, %v3271
      %v3304 = vadd.f32 %v3234, %v3272
      %v3305 = vadd.f32 %v3235, %v3273
      %v3306 = vadd.f32 %v3236, %v3274
      %v3307 = vadd.f32 %v3237, %v3275
      %v3308 = vadd.f32 %v3238, %v3276
      %v3309 = vadd.f32 %v3239, %v3277
      %v3310 = vadd.f32 %v3240, %v3278
      %v3311 = vadd.f32 %v3241, %v3279
      %v3312 = vadd.f32 %v3242, %v3280
      %v3313 = vadd.f32 %v3243, %v3281
      %v3314 = vadd.f32 %v3244, %v3282
      %v3315 = vadd.f32 %v3245, %v3283
      %v3316 = vadd.f32 %v3246, %v3284
      %v3317 = vadd.f32 %v3247, %v3285
      %v3318 = vadd.f32 %v3248, %v3286
      %v3319 = vadd.f32 %v3249, %v3287
      %v3320 = vadd.f32 %v3250, %v3288
      %v3321 = vadd.f32 %v3251, %v3289
      %v3322 = vadd.f32 %v3252, %v3290
      %v3323 = vadd.f32 %v3253, %v3291
      %v3324 = vadd.f32 %v3254, %v3292
      %v3325 = vadd.f32 %v3255, %v3293
      %v3326 = vadd.f32 %v3256, %v3294
      %v3327 = vlaneseq
      %v3328 = vshrl.u32 %v3327, 7
      %v3329 = vsub.s32 2, %v3328
      %v3330 = vrot.slane %v391, %v3329
      %v3331 = vsel %vm509, %v3330, 0.0
      %v3332 = vsel %vm510, %v3330, 0.0
      %v3333 = vmul.f32 %v2891, %v3331
      %v3334 = vmul.f32 %v2869, %v3332
      %v3335 = vmul.f32 %v2892, %v3331
      %v3336 = vmul.f32 %v2870, %v3332
      %v3337 = vmul.f32 %v2893, %v3331
      %v3338 = vmul.f32 %v2871, %v3332
      %v3339 = vmul.f32 %v2894, %v3331
      %v3340 = vmul.f32 %v2872, %v3332
      %v3341 = vmul.f32 %v2895, %v3331
      %v3342 = vmul.f32 %v2873, %v3332
      %v3343 = vmul.f32 %v2896, %v3331
      %v3344 = vmul.f32 %v2874, %v3332
      %v3345 = vmul.f32 %v2897, %v3331
      %v3346 = vmul.f32 %v2875, %v3332
      %v3347 = vmul.f32 %v2898, %v3331
      %v3348 = vmul.f32 %v2876, %v3332
      %v3349 = vmul.f32 %v2899, %v3331
      %v3350 = vmul.f32 %v2877, %v3332
      %v3351 = vmul.f32 %v2900, %v3331
      %v3352 = vmul.f32 %v2878, %v3332
      %v3353 = vmul.f32 %v2901, %v3331
      %v3354 = vmul.f32 %v2879, %v3332
      %v3355 = vmul.f32 %v2902, %v3331
      %v3356 = vmul.f32 %v2880, %v3332
      %v3357 = vmul.f32 %v2903, %v3331
      %v3358 = vmul.f32 %v2881, %v3332
      %v3359 = vmul.f32 %v2904, %v3331
      %v3360 = vmul.f32 %v2882, %v3332
      %v3361 = vmul.f32 %v2905, %v3331
      %v3362 = vmul.f32 %v2883, %v3332
      %v3363 = vmul.f32 %v2906, %v3331
      %v3364 = vmul.f32 %v2884, %v3332
      %v3365 = vadd.f32 %v3295, %v3333
      %v3366 = vadd.f32 %v3296, %v3334
      %v3367 = vadd.f32 %v3297, %v3335
      %v3368 = vadd.f32 %v3298, %v3336
      %v3369 = vadd.f32 %v3299, %v3337
      %v3370 = vadd.f32 %v3300, %v3338
      %v3371 = vadd.f32 %v3301, %v3339
      %v3372 = vadd.f32 %v3302, %v3340
      %v3373 = vadd.f32 %v3303, %v3341
      %v3374 = vadd.f32 %v3304, %v3342
      %v3375 = vadd.f32 %v3305, %v3343
      %v3376 = vadd.f32 %v3306, %v3344
      %v3377 = vadd.f32 %v3307, %v3345
      %v3378 = vadd.f32 %v3308, %v3346
      %v3379 = vadd.f32 %v3309, %v3347
      %v3380 = vadd.f32 %v3310, %v3348
      %v3381 = vadd.f32 %v3311, %v3349
      %v3382 = vadd.f32 %v3312, %v3350
      %v3383 = vadd.f32 %v3313, %v3351
      %v3384 = vadd.f32 %v3314, %v3352
      %v3385 = vadd.f32 %v3315, %v3353
      %v3386 = vadd.f32 %v3316, %v3354
      %v3387 = vadd.f32 %v3317, %v3355
      %v3388 = vadd.f32 %v3318, %v3356
      %v3389 = vadd.f32 %v3319, %v3357
      %v3390 = vadd.f32 %v3320, %v3358
      %v3391 = vadd.f32 %v3321, %v3359
      %v3392 = vadd.f32 %v3322, %v3360
      %v3393 = vadd.f32 %v3323, %v3361
      %v3394 = vadd.f32 %v3324, %v3362
      %v3395 = vadd.f32 %v3325, %v3363
      %v3396 = vadd.f32 %v3326, %v3364
      %v3397 = vlaneseq
      %v3398 = vshrl.u32 %v3397, 7
      %v3399 = vsub.s32 3, %v3398
      %v3400 = vrot.slane %v385, %v3399
      %v3401 = vmul.f32 %v1593, %v3400
      %v3402 = vmul.f32 %v1594, %v3400
      %v3403 = vmul.f32 %v1595, %v3400
      %v3404 = vmul.f32 %v1596, %v3400
      %v3405 = vmul.f32 %v1597, %v3400
      %v3406 = vmul.f32 %v1598, %v3400
      %v3407 = vmul.f32 %v1599, %v3400
      %v3408 = vmul.f32 %v1600, %v3400
      %v3409 = vmul.f32 %v1601, %v3400
      %v3410 = vmul.f32 %v1602, %v3400
      %v3411 = vmul.f32 %v1603, %v3400
      %v3412 = vmul.f32 %v1604, %v3400
      %v3413 = vmul.f32 %v1605, %v3400
      %v3414 = vmul.f32 %v1606, %v3400
      %v3415 = vmul.f32 %v1607, %v3400
      %v3416 = vmul.f32 %v1608, %v3400
      %v3417 = vmul.f32 %v1609, %v3400
      %v3418 = vmul.f32 %v1610, %v3400
      %v3419 = vmul.f32 %v1611, %v3400
      %v3420 = vmul.f32 %v1612, %v3400
      %v3421 = vmul.f32 %v1613, %v3400
      %v3422 = vmul.f32 %v1614, %v3400
      %v3423 = vmul.f32 %v1615, %v3400
      %v3424 = vmul.f32 %v1616, %v3400
      %v3425 = vmul.f32 %v1617, %v3400
      %v3426 = vmul.f32 %v1618, %v3400
      %v3427 = vmul.f32 %v1619, %v3400
      %v3428 = vmul.f32 %v1620, %v3400
      %v3429 = vmul.f32 %v1621, %v3400
      %v3430 = vmul.f32 %v1622, %v3400
      %v3431 = vmul.f32 %v1623, %v3400
      %v3432 = vmul.f32 %v1624, %v3400
      %v3433 = vadd.f32 %v3365, %v3401
      %v3434 = vadd.f32 %v3366, %v3402
      %v3435 = vadd.f32 %v3367, %v3403
      %v3436 = vadd.f32 %v3368, %v3404
      %v3437 = vadd.f32 %v3369, %v3405
      %v3438 = vadd.f32 %v3370, %v3406
      %v3439 = vadd.f32 %v3371, %v3407
      %v3440 = vadd.f32 %v3372, %v3408
      %v3441 = vadd.f32 %v3373, %v3409
      %v3442 = vadd.f32 %v3374, %v3410
      %v3443 = vadd.f32 %v3375, %v3411
      %v3444 = vadd.f32 %v3376, %v3412
      %v3445 = vadd.f32 %v3377, %v3413
      %v3446 = vadd.f32 %v3378, %v3414
      %v3447 = vadd.f32 %v3379, %v3415
      %v3448 = vadd.f32 %v3380, %v3416
      %v3449 = vadd.f32 %v3381, %v3417
      %v3450 = vadd.f32 %v3382, %v3418
      %v3451 = vadd.f32 %v3383, %v3419
      %v3452 = vadd.f32 %v3384, %v3420
      %v3453 = vadd.f32 %v3385, %v3421
      %v3454 = vadd.f32 %v3386, %v3422
      %v3455 = vadd.f32 %v3387, %v3423
      %v3456 = vadd.f32 %v3388, %v3424
      %v3457 = vadd.f32 %v3389, %v3425
      %v3458 = vadd.f32 %v3390, %v3426
      %v3459 = vadd.f32 %v3391, %v3427
      %v3460 = vadd.f32 %v3392, %v3428
      %v3461 = vadd.f32 %v3393, %v3429
      %v3462 = vadd.f32 %v3394, %v3430
      %v3463 = vadd.f32 %v3395, %v3431
      %v3464 = vadd.f32 %v3396, %v3432
      %v3465 = vlaneseq
      %v3466 = vshrl.u32 %v3465, 7
      %v3467 = vsub.s32 3, %v3466
      %v3468 = vrot.slane %v386, %v3467
      %v3469 = vmul.f32 %v1595, %v3468
      %v3470 = vmul.f32 %v1596, %v3468
      %v3471 = vmul.f32 %v1597, %v3468
      %v3472 = vmul.f32 %v1598, %v3468
      %v3473 = vmul.f32 %v1599, %v3468
      %v3474 = vmul.f32 %v1600, %v3468
      %v3475 = vmul.f32 %v1601, %v3468
      %v3476 = vmul.f32 %v1602, %v3468
      %v3477 = vmul.f32 %v1603, %v3468
      %v3478 = vmul.f32 %v1604, %v3468
      %v3479 = vmul.f32 %v1605, %v3468
      %v3480 = vmul.f32 %v1606, %v3468
      %v3481 = vmul.f32 %v1607, %v3468
      %v3482 = vmul.f32 %v1608, %v3468
      %v3483 = vmul.f32 %v1609, %v3468
      %v3484 = vmul.f32 %v1610, %v3468
      %v3485 = vmul.f32 %v1611, %v3468
      %v3486 = vmul.f32 %v1612, %v3468
      %v3487 = vmul.f32 %v1613, %v3468
      %v3488 = vmul.f32 %v1614, %v3468
      %v3489 = vmul.f32 %v1615, %v3468
      %v3490 = vmul.f32 %v1616, %v3468
      %v3491 = vmul.f32 %v1617, %v3468
      %v3492 = vmul.f32 %v1618, %v3468
      %v3493 = vmul.f32 %v1619, %v3468
      %v3494 = vmul.f32 %v1620, %v3468
      %v3495 = vmul.f32 %v1621, %v3468
      %v3496 = vmul.f32 %v1622, %v3468
      %v3497 = vmul.f32 %v1623, %v3468
      %v3498 = vmul.f32 %v1624, %v3468
      %v3499 = vmul.f32 %v1625, %v3468
      %v3500 = vmul.f32 %v1626, %v3468
      %v3501 = vadd.f32 %v3433, %v3469
      %v3502 = vadd.f32 %v3434, %v3470
      %v3503 = vadd.f32 %v3435, %v3471
      %v3504 = vadd.f32 %v3436, %v3472
      %v3505 = vadd.f32 %v3437, %v3473
      %v3506 = vadd.f32 %v3438, %v3474
      %v3507 = vadd.f32 %v3439, %v3475
      %v3508 = vadd.f32 %v3440, %v3476
      %v3509 = vadd.f32 %v3441, %v3477
      %v3510 = vadd.f32 %v3442, %v3478
      %v3511 = vadd.f32 %v3443, %v3479
      %v3512 = vadd.f32 %v3444, %v3480
      %v3513 = vadd.f32 %v3445, %v3481
      %v3514 = vadd.f32 %v3446, %v3482
      %v3515 = vadd.f32 %v3447, %v3483
      %v3516 = vadd.f32 %v3448, %v3484
      %v3517 = vadd.f32 %v3449, %v3485
      %v3518 = vadd.f32 %v3450, %v3486
      %v3519 = vadd.f32 %v3451, %v3487
      %v3520 = vadd.f32 %v3452, %v3488
      %v3521 = vadd.f32 %v3453, %v3489
      %v3522 = vadd.f32 %v3454, %v3490
      %v3523 = vadd.f32 %v3455, %v3491
      %v3524 = vadd.f32 %v3456, %v3492
      %v3525 = vadd.f32 %v3457, %v3493
      %v3526 = vadd.f32 %v3458, %v3494
      %v3527 = vadd.f32 %v3459, %v3495
      %v3528 = vadd.f32 %v3460, %v3496
      %v3529 = vadd.f32 %v3461, %v3497
      %v3530 = vadd.f32 %v3462, %v3498
      %v3531 = vadd.f32 %v3463, %v3499
      %v3532 = vadd.f32 %v3464, %v3500
      %v3533 = vlaneseq
      %v3534 = vshrl.u32 %v3533, 7
      %v3535 = vsub.s32 3, %v3534
      %v3536 = vrot.slane %v387, %v3535
      %v3537 = vmul.f32 %v1597, %v3536
      %v3538 = vmul.f32 %v1598, %v3536
      %v3539 = vmul.f32 %v1599, %v3536
      %v3540 = vmul.f32 %v1600, %v3536
      %v3541 = vmul.f32 %v1601, %v3536
      %v3542 = vmul.f32 %v1602, %v3536
      %v3543 = vmul.f32 %v1603, %v3536
      %v3544 = vmul.f32 %v1604, %v3536
      %v3545 = vmul.f32 %v1605, %v3536
      %v3546 = vmul.f32 %v1606, %v3536
      %v3547 = vmul.f32 %v1607, %v3536
      %v3548 = vmul.f32 %v1608, %v3536
      %v3549 = vmul.f32 %v1609, %v3536
      %v3550 = vmul.f32 %v1610, %v3536
      %v3551 = vmul.f32 %v1611, %v3536
      %v3552 = vmul.f32 %v1612, %v3536
      %v3553 = vmul.f32 %v1613, %v3536
      %v3554 = vmul.f32 %v1614, %v3536
      %v3555 = vmul.f32 %v1615, %v3536
      %v3556 = vmul.f32 %v1616, %v3536
      %v3557 = vmul.f32 %v1617, %v3536
      %v3558 = vmul.f32 %v1618, %v3536
      %v3559 = vmul.f32 %v1619, %v3536
      %v3560 = vmul.f32 %v1620, %v3536
      %v3561 = vmul.f32 %v1621, %v3536
      %v3562 = vmul.f32 %v1622, %v3536
      %v3563 = vmul.f32 %v1623, %v3536
      %v3564 = vmul.f32 %v1624, %v3536
      %v3565 = vmul.f32 %v1625, %v3536
      %v3566 = vmul.f32 %v1626, %v3536
      %v3567 = vmul.f32 %v1627, %v3536
      %v3568 = vmul.f32 %v1628, %v3536
      %v3569 = vadd.f32 %v3501, %v3537
      %v3570 = vadd.f32 %v3502, %v3538
      %v3571 = vadd.f32 %v3503, %v3539
      %v3572 = vadd.f32 %v3504, %v3540
      %v3573 = vadd.f32 %v3505, %v3541
      %v3574 = vadd.f32 %v3506, %v3542
      %v3575 = vadd.f32 %v3507, %v3543
      %v3576 = vadd.f32 %v3508, %v3544
      %v3577 = vadd.f32 %v3509, %v3545
      %v3578 = vadd.f32 %v3510, %v3546
      %v3579 = vadd.f32 %v3511, %v3547
      %v3580 = vadd.f32 %v3512, %v3548
      %v3581 = vadd.f32 %v3513, %v3549
      %v3582 = vadd.f32 %v3514, %v3550
      %v3583 = vadd.f32 %v3515, %v3551
      %v3584 = vadd.f32 %v3516, %v3552
      %v3585 = vadd.f32 %v3517, %v3553
      %v3586 = vadd.f32 %v3518, %v3554
      %v3587 = vadd.f32 %v3519, %v3555
      %v3588 = vadd.f32 %v3520, %v3556
      %v3589 = vadd.f32 %v3521, %v3557
      %v3590 = vadd.f32 %v3522, %v3558
      %v3591 = vadd.f32 %v3523, %v3559
      %v3592 = vadd.f32 %v3524, %v3560
      %v3593 = vadd.f32 %v3525, %v3561
      %v3594 = vadd.f32 %v3526, %v3562
      %v3595 = vadd.f32 %v3527, %v3563
      %v3596 = vadd.f32 %v3528, %v3564
      %v3597 = vadd.f32 %v3529, %v3565
      %v3598 = vadd.f32 %v3530, %v3566
      %v3599 = vadd.f32 %v3531, %v3567
      %v3600 = vadd.f32 %v3532, %v3568
      %v3601 = vlaneseq
      %v3602 = vshrl.u32 %v3601, 7
      %v3603 = vsub.s32 3, %v3602
      %v3604 = vrot.slane %v388, %v3603
      %v3605 = vmul.f32 %v1599, %v3604
      %v3606 = vmul.f32 %v1600, %v3604
      %v3607 = vmul.f32 %v1601, %v3604
      %v3608 = vmul.f32 %v1602, %v3604
      %v3609 = vmul.f32 %v1603, %v3604
      %v3610 = vmul.f32 %v1604, %v3604
      %v3611 = vmul.f32 %v1605, %v3604
      %v3612 = vmul.f32 %v1606, %v3604
      %v3613 = vmul.f32 %v1607, %v3604
      %v3614 = vmul.f32 %v1608, %v3604
      %v3615 = vmul.f32 %v1609, %v3604
      %v3616 = vmul.f32 %v1610, %v3604
      %v3617 = vmul.f32 %v1611, %v3604
      %v3618 = vmul.f32 %v1612, %v3604
      %v3619 = vmul.f32 %v1613, %v3604
      %v3620 = vmul.f32 %v1614, %v3604
      %v3621 = vmul.f32 %v1615, %v3604
      %v3622 = vmul.f32 %v1616, %v3604
      %v3623 = vmul.f32 %v1617, %v3604
      %v3624 = vmul.f32 %v1618, %v3604
      %v3625 = vmul.f32 %v1619, %v3604
      %v3626 = vmul.f32 %v1620, %v3604
      %v3627 = vmul.f32 %v1621, %v3604
      %v3628 = vmul.f32 %v1622, %v3604
      %v3629 = vmul.f32 %v1623, %v3604
      %v3630 = vmul.f32 %v1624, %v3604
      %v3631 = vmul.f32 %v1625, %v3604
      %v3632 = vmul.f32 %v1626, %v3604
      %v3633 = vmul.f32 %v1627, %v3604
      %v3634 = vmul.f32 %v1628, %v3604
      %v3635 = vmul.f32 %v1629, %v3604
      %v3636 = vmul.f32 %v1630, %v3604
      %v3637 = vadd.f32 %v3569, %v3605
      %v3638 = vadd.f32 %v3570, %v3606
      %v3639 = vadd.f32 %v3571, %v3607
      %v3640 = vadd.f32 %v3572, %v3608
      %v3641 = vadd.f32 %v3573, %v3609
      %v3642 = vadd.f32 %v3574, %v3610
      %v3643 = vadd.f32 %v3575, %v3611
      %v3644 = vadd.f32 %v3576, %v3612
      %v3645 = vadd.f32 %v3577, %v3613
      %v3646 = vadd.f32 %v3578, %v3614
      %v3647 = vadd.f32 %v3579, %v3615
      %v3648 = vadd.f32 %v3580, %v3616
      %v3649 = vadd.f32 %v3581, %v3617
      %v3650 = vadd.f32 %v3582, %v3618
      %v3651 = vadd.f32 %v3583, %v3619
      %v3652 = vadd.f32 %v3584, %v3620
      %v3653 = vadd.f32 %v3585, %v3621
      %v3654 = vadd.f32 %v3586, %v3622
      %v3655 = vadd.f32 %v3587, %v3623
      %v3656 = vadd.f32 %v3588, %v3624
      %v3657 = vadd.f32 %v3589, %v3625
      %v3658 = vadd.f32 %v3590, %v3626
      %v3659 = vadd.f32 %v3591, %v3627
      %v3660 = vadd.f32 %v3592, %v3628
      %v3661 = vadd.f32 %v3593, %v3629
      %v3662 = vadd.f32 %v3594, %v3630
      %v3663 = vadd.f32 %v3595, %v3631
      %v3664 = vadd.f32 %v3596, %v3632
      %v3665 = vadd.f32 %v3597, %v3633
      %v3666 = vadd.f32 %v3598, %v3634
      %v3667 = vadd.f32 %v3599, %v3635
      %v3668 = vadd.f32 %v3600, %v3636
      %v3669 = vlaneseq
      %v3670 = vshrl.u32 %v3669, 7
      %v3671 = vsub.s32 3, %v3670
      %v3672 = vrot.slane %v389, %v3671
      %v3673 = vmul.f32 %v1601, %v3672
      %v3674 = vmul.f32 %v1602, %v3672
      %v3675 = vmul.f32 %v1603, %v3672
      %v3676 = vmul.f32 %v1604, %v3672
      %v3677 = vmul.f32 %v1605, %v3672
      %v3678 = vmul.f32 %v1606, %v3672
      %v3679 = vmul.f32 %v1607, %v3672
      %v3680 = vmul.f32 %v1608, %v3672
      %v3681 = vmul.f32 %v1609, %v3672
      %v3682 = vmul.f32 %v1610, %v3672
      %v3683 = vmul.f32 %v1611, %v3672
      %v3684 = vmul.f32 %v1612, %v3672
      %v3685 = vmul.f32 %v1613, %v3672
      %v3686 = vmul.f32 %v1614, %v3672
      %v3687 = vmul.f32 %v1615, %v3672
      %v3688 = vmul.f32 %v1616, %v3672
      %v3689 = vmul.f32 %v1617, %v3672
      %v3690 = vmul.f32 %v1618, %v3672
      %v3691 = vmul.f32 %v1619, %v3672
      %v3692 = vmul.f32 %v1620, %v3672
      %v3693 = vmul.f32 %v1621, %v3672
      %v3694 = vmul.f32 %v1622, %v3672
      %v3695 = vmul.f32 %v1623, %v3672
      %v3696 = vmul.f32 %v1624, %v3672
      %v3697 = vmul.f32 %v1625, %v3672
      %v3698 = vmul.f32 %v1626, %v3672
      %v3699 = vmul.f32 %v1627, %v3672
      %v3700 = vmul.f32 %v1628, %v3672
      %v3701 = vmul.f32 %v1629, %v3672
      %v3702 = vmul.f32 %v1630, %v3672
      %v3703 = vmul.f32 %v1631, %v3672
      %v3704 = vmul.f32 %v1632, %v3672
      %v3705 = vadd.f32 %v3637, %v3673
      %v3706 = vadd.f32 %v3638, %v3674
      %v3707 = vadd.f32 %v3639, %v3675
      %v3708 = vadd.f32 %v3640, %v3676
      %v3709 = vadd.f32 %v3641, %v3677
      %v3710 = vadd.f32 %v3642, %v3678
      %v3711 = vadd.f32 %v3643, %v3679
      %v3712 = vadd.f32 %v3644, %v3680
      %v3713 = vadd.f32 %v3645, %v3681
      %v3714 = vadd.f32 %v3646, %v3682
      %v3715 = vadd.f32 %v3647, %v3683
      %v3716 = vadd.f32 %v3648, %v3684
      %v3717 = vadd.f32 %v3649, %v3685
      %v3718 = vadd.f32 %v3650, %v3686
      %v3719 = vadd.f32 %v3651, %v3687
      %v3720 = vadd.f32 %v3652, %v3688
      %v3721 = vadd.f32 %v3653, %v3689
      %v3722 = vadd.f32 %v3654, %v3690
      %v3723 = vadd.f32 %v3655, %v3691
      %v3724 = vadd.f32 %v3656, %v3692
      %v3725 = vadd.f32 %v3657, %v3693
      %v3726 = vadd.f32 %v3658, %v3694
      %v3727 = vadd.f32 %v3659, %v3695
      %v3728 = vadd.f32 %v3660, %v3696
      %v3729 = vadd.f32 %v3661, %v3697
      %v3730 = vadd.f32 %v3662, %v3698
      %v3731 = vadd.f32 %v3663, %v3699
      %v3732 = vadd.f32 %v3664, %v3700
      %v3733 = vadd.f32 %v3665, %v3701
      %v3734 = vadd.f32 %v3666, %v3702
      %v3735 = vadd.f32 %v3667, %v3703
      %v3736 = vadd.f32 %v3668, %v3704
      %v3737 = vlaneseq
      %v3738 = vshrl.u32 %v3737, 7
      %v3739 = vsub.s32 3, %v3738
      %v3740 = vrot.slane %v390, %v3739
      %v3741 = vmul.f32 %v1603, %v3740
      %v3742 = vmul.f32 %v1604, %v3740
      %v3743 = vmul.f32 %v1605, %v3740
      %v3744 = vmul.f32 %v1606, %v3740
      %v3745 = vmul.f32 %v1607, %v3740
      %v3746 = vmul.f32 %v1608, %v3740
      %v3747 = vmul.f32 %v1609, %v3740
      %v3748 = vmul.f32 %v1610, %v3740
      %v3749 = vmul.f32 %v1611, %v3740
      %v3750 = vmul.f32 %v1612, %v3740
      %v3751 = vmul.f32 %v1613, %v3740
      %v3752 = vmul.f32 %v1614, %v3740
      %v3753 = vmul.f32 %v1615, %v3740
      %v3754 = vmul.f32 %v1616, %v3740
      %v3755 = vmul.f32 %v1617, %v3740
      %v3756 = vmul.f32 %v1618, %v3740
      %v3757 = vmul.f32 %v1619, %v3740
      %v3758 = vmul.f32 %v1620, %v3740
      %v3759 = vmul.f32 %v1621, %v3740
      %v3760 = vmul.f32 %v1622, %v3740
      %v3761 = vmul.f32 %v1623, %v3740
      %v3762 = vmul.f32 %v1624, %v3740
      %v3763 = vmul.f32 %v1625, %v3740
      %v3764 = vmul.f32 %v1626, %v3740
      %v3765 = vmul.f32 %v1627, %v3740
      %v3766 = vmul.f32 %v1628, %v3740
      %v3767 = vmul.f32 %v1629, %v3740
      %v3768 = vmul.f32 %v1630, %v3740
      %v3769 = vmul.f32 %v1631, %v3740
      %v3770 = vmul.f32 %v1632, %v3740
      %v3771 = vmul.f32 %v1633, %v3740
      %v3772 = vmul.f32 %v1634, %v3740
      %v3773 = vadd.f32 %v3705, %v3741
      %v3774 = vadd.f32 %v3706, %v3742
      %v3775 = vadd.f32 %v3707, %v3743
      %v3776 = vadd.f32 %v3708, %v3744
      %v3777 = vadd.f32 %v3709, %v3745
      %v3778 = vadd.f32 %v3710, %v3746
      %v3779 = vadd.f32 %v3711, %v3747
      %v3780 = vadd.f32 %v3712, %v3748
      %v3781 = vadd.f32 %v3713, %v3749
      %v3782 = vadd.f32 %v3714, %v3750
      %v3783 = vadd.f32 %v3715, %v3751
      %v3784 = vadd.f32 %v3716, %v3752
      %v3785 = vadd.f32 %v3717, %v3753
      %v3786 = vadd.f32 %v3718, %v3754
      %v3787 = vadd.f32 %v3719, %v3755
      %v3788 = vadd.f32 %v3720, %v3756
      %v3789 = vadd.f32 %v3721, %v3757
      %v3790 = vadd.f32 %v3722, %v3758
      %v3791 = vadd.f32 %v3723, %v3759
      %v3792 = vadd.f32 %v3724, %v3760
      %v3793 = vadd.f32 %v3725, %v3761
      %v3794 = vadd.f32 %v3726, %v3762
      %v3795 = vadd.f32 %v3727, %v3763
      %v3796 = vadd.f32 %v3728, %v3764
      %v3797 = vadd.f32 %v3729, %v3765
      %v3798 = vadd.f32 %v3730, %v3766
      %v3799 = vadd.f32 %v3731, %v3767
      %v3800 = vadd.f32 %v3732, %v3768
      %v3801 = vadd.f32 %v3733, %v3769
      %v3802 = vadd.f32 %v3734, %v3770
      %v3803 = vadd.f32 %v3735, %v3771
      %v3804 = vadd.f32 %v3736, %v3772
      %v3805 = vlaneseq
      %v3806 = vshrl.u32 %v3805, 7
      %v3807 = vsub.s32 3, %v3806
      %v3808 = vrot.slane %v391, %v3807
      %v3809 = vmul.f32 %v1605, %v3808
      %v3810 = vmul.f32 %v1606, %v3808
      %v3811 = vmul.f32 %v1607, %v3808
      %v3812 = vmul.f32 %v1608, %v3808
      %v3813 = vmul.f32 %v1609, %v3808
      %v3814 = vmul.f32 %v1610, %v3808
      %v3815 = vmul.f32 %v1611, %v3808
      %v3816 = vmul.f32 %v1612, %v3808
      %v3817 = vmul.f32 %v1613, %v3808
      %v3818 = vmul.f32 %v1614, %v3808
      %v3819 = vmul.f32 %v1615, %v3808
      %v3820 = vmul.f32 %v1616, %v3808
      %v3821 = vmul.f32 %v1617, %v3808
      %v3822 = vmul.f32 %v1618, %v3808
      %v3823 = vmul.f32 %v1619, %v3808
      %v3824 = vmul.f32 %v1620, %v3808
      %v3825 = vmul.f32 %v1621, %v3808
      %v3826 = vmul.f32 %v1622, %v3808
      %v3827 = vmul.f32 %v1623, %v3808
      %v3828 = vmul.f32 %v1624, %v3808
      %v3829 = vmul.f32 %v1625, %v3808
      %v3830 = vmul.f32 %v1626, %v3808
      %v3831 = vmul.f32 %v1627, %v3808
      %v3832 = vmul.f32 %v1628, %v3808
      %v3833 = vmul.f32 %v1629, %v3808
      %v3834 = vmul.f32 %v1630, %v3808
      %v3835 = vmul.f32 %v1631, %v3808
      %v3836 = vmul.f32 %v1632, %v3808
      %v3837 = vmul.f32 %v1633, %v3808
      %v3838 = vmul.f32 %v1634, %v3808
      %v3839 = vmul.f32 %v1635, %v3808
      %v3840 = vmul.f32 %v1636, %v3808
      %v3841 = vadd.f32 %v3773, %v3809
      %v3842 = vadd.f32 %v3774, %v3810
      %v3843 = vadd.f32 %v3775, %v3811
      %v3844 = vadd.f32 %v3776, %v3812
      %v3845 = vadd.f32 %v3777, %v3813
      %v3846 = vadd.f32 %v3778, %v3814
      %v3847 = vadd.f32 %v3779, %v3815
      %v3848 = vadd.f32 %v3780, %v3816
      %v3849 = vadd.f32 %v3781, %v3817
      %v3850 = vadd.f32 %v3782, %v3818
      %v3851 = vadd.f32 %v3783, %v3819
      %v3852 = vadd.f32 %v3784, %v3820
      %v3853 = vadd.f32 %v3785, %v3821
      %v3854 = vadd.f32 %v3786, %v3822
      %v3855 = vadd.f32 %v3787, %v3823
      %v3856 = vadd.f32 %v3788, %v3824
      %v3857 = vadd.f32 %v3789, %v3825
      %v3858 = vadd.f32 %v3790, %v3826
      %v3859 = vadd.f32 %v3791, %v3827
      %v3860 = vadd.f32 %v3792, %v3828
      %v3861 = vadd.f32 %v3793, %v3829
      %v3862 = vadd.f32 %v3794, %v3830
      %v3863 = vadd.f32 %v3795, %v3831
      %v3864 = vadd.f32 %v3796, %v3832
      %v3865 = vadd.f32 %v3797, %v3833
      %v3866 = vadd.f32 %v3798, %v3834
      %v3867 = vadd.f32 %v3799, %v3835
      %v3868 = vadd.f32 %v3800, %v3836
      %v3869 = vadd.f32 %v3801, %v3837
      %v3870 = vadd.f32 %v3802, %v3838
      %v3871 = vadd.f32 %v3803, %v3839
      %v3872 = vadd.f32 %v3804, %v3840
      %v3873 = vrot.slane %v1593, 1
      %v3874 = vrot.slane %v1595, 1
      %v3875 = vrot.slane %v1597, 1
      %v3876 = vrot.slane %v1599, 1
      %v3877 = vrot.slane %v1601, 1
      %v3878 = vrot.slane %v1603, 1
      %v3879 = vrot.slane %v1605, 1
      %v3880 = vrot.slane %v1607, 1
      %v3881 = vrot.slane %v1609, 1
      %v3882 = vrot.slane %v1611, 1
      %v3883 = vrot.slane %v1613, 1
      %v3884 = vrot.slane %v1615, 1
      %v3885 = vrot.slane %v1617, 1
      %v3886 = vrot.slane %v1619, 1
      %v3887 = vrot.slane %v1621, 1
      %v3888 = vrot.slane %v1623, 1
      %v3889 = vrot.slane %v1625, 1
      %v3890 = vrot.slane %v1627, 1
      %v3891 = vrot.slane %v1629, 1
      %v3892 = vrot.slane %v1631, 1
      %v3893 = vrot.slane %v1633, 1
      %v3894 = vrot.slane %v1635, 1
      %v3895 = vrot.slane %v1594, 1
      %v3896 = vrot.slane %v1596, 1
      %v3897 = vrot.slane %v1598, 1
      %v3898 = vrot.slane %v1600, 1
      %v3899 = vrot.slane %v1602, 1
      %v3900 = vrot.slane %v1604, 1
      %v3901 = vrot.slane %v1606, 1
      %v3902 = vrot.slane %v1608, 1
      %v3903 = vrot.slane %v1610, 1
      %v3904 = vrot.slane %v1612, 1
      %v3905 = vrot.slane %v1614, 1
      %v3906 = vrot.slane %v1616, 1
      %v3907 = vrot.slane %v1618, 1
      %v3908 = vrot.slane %v1620, 1
      %v3909 = vrot.slane %v1622, 1
      %v3910 = vrot.slane %v1624, 1
      %v3911 = vrot.slane %v1626, 1
      %v3912 = vrot.slane %v1628, 1
      %v3913 = vrot.slane %v1630, 1
      %v3914 = vrot.slane %v1632, 1
      %v3915 = vrot.slane %v1634, 1
      %v3916 = vrot.slane %v1636, 1
      %v3917 = vsel %vm1117, %v3873, %v3895
      %v3918 = vsel %vm1117, %v3874, %v3896
      %v3919 = vsel %vm1117, %v3875, %v3897
      %v3920 = vsel %vm1117, %v3876, %v3898
      %v3921 = vsel %vm1117, %v3877, %v3899
      %v3922 = vsel %vm1117, %v3878, %v3900
      %v3923 = vsel %vm1117, %v3879, %v3901
      %v3924 = vsel %vm1117, %v3880, %v3902
      %v3925 = vsel %vm1117, %v3881, %v3903
      %v3926 = vsel %vm1117, %v3882, %v3904
      %v3927 = vsel %vm1117, %v3883, %v3905
      %v3928 = vsel %vm1117, %v3884, %v3906
      %v3929 = vsel %vm1117, %v3885, %v3907
      %v3930 = vsel %vm1117, %v3886, %v3908
      %v3931 = vsel %vm1117, %v3887, %v3909
      %v3932 = vsel %vm1117, %v3888, %v3910
      %v3933 = vsel %vm1117, %v3889, %v3911
      %v3934 = vsel %vm1117, %v3890, %v3912
      %v3935 = vsel %vm1117, %v3891, %v3913
      %v3936 = vsel %vm1117, %v3892, %v3914
      %v3937 = vsel %vm1117, %v3893, %v3915
      %v3938 = vsel %vm1117, %v3894, %v3916
      %v3939 = vsel %vm1117, %v3895, %v3873
      %v3940 = vsel %vm1117, %v3896, %v3874
      %v3941 = vsel %vm1117, %v3897, %v3875
      %v3942 = vsel %vm1117, %v3898, %v3876
      %v3943 = vsel %vm1117, %v3899, %v3877
      %v3944 = vsel %vm1117, %v3900, %v3878
      %v3945 = vsel %vm1117, %v3901, %v3879
      %v3946 = vsel %vm1117, %v3902, %v3880
      %v3947 = vsel %vm1117, %v3903, %v3881
      %v3948 = vsel %vm1117, %v3904, %v3882
      %v3949 = vsel %vm1117, %v3905, %v3883
      %v3950 = vsel %vm1117, %v3906, %v3884
      %v3951 = vsel %vm1117, %v3907, %v3885
      %v3952 = vsel %vm1117, %v3908, %v3886
      %v3953 = vsel %vm1117, %v3909, %v3887
      %v3954 = vsel %vm1117, %v3910, %v3888
      %v3955 = vsel %vm1117, %v3911, %v3889
      %v3956 = vsel %vm1117, %v3912, %v3890
      %v3957 = vsel %vm1117, %v3913, %v3891
      %v3958 = vsel %vm1117, %v3914, %v3892
      %v3959 = vsel %vm1117, %v3915, %v3893
      %v3960 = vsel %vm1117, %v3916, %v3894
      %v3961 = vlaneseq
      %v3962 = vshrl.u32 %v3961, 7
      %v3963 = vsub.s32 4, %v3962
      %v3964 = vrot.slane %v385, %v3963
      %v3965 = vsel %vm1176, %v3964, 0.0
      %v3966 = vsel %vm1177, %v3964, 0.0
      %v3967 = vmul.f32 %v3917, %v3965
      %v3968 = vmul.f32 %v3939, %v3966
      %v3969 = vmul.f32 %v3918, %v3965
      %v3970 = vmul.f32 %v3940, %v3966
      %v3971 = vmul.f32 %v3919, %v3965
      %v3972 = vmul.f32 %v3941, %v3966
      %v3973 = vmul.f32 %v3920, %v3965
      %v3974 = vmul.f32 %v3942, %v3966
      %v3975 = vmul.f32 %v3921, %v3965
      %v3976 = vmul.f32 %v3943, %v3966
      %v3977 = vmul.f32 %v3922, %v3965
      %v3978 = vmul.f32 %v3944, %v3966
      %v3979 = vmul.f32 %v3923, %v3965
      %v3980 = vmul.f32 %v3945, %v3966
      %v3981 = vmul.f32 %v3924, %v3965
      %v3982 = vmul.f32 %v3946, %v3966
      %v3983 = vmul.f32 %v3925, %v3965
      %v3984 = vmul.f32 %v3947, %v3966
      %v3985 = vmul.f32 %v3926, %v3965
      %v3986 = vmul.f32 %v3948, %v3966
      %v3987 = vmul.f32 %v3927, %v3965
      %v3988 = vmul.f32 %v3949, %v3966
      %v3989 = vmul.f32 %v3928, %v3965
      %v3990 = vmul.f32 %v3950, %v3966
      %v3991 = vmul.f32 %v3929, %v3965
      %v3992 = vmul.f32 %v3951, %v3966
      %v3993 = vmul.f32 %v3930, %v3965
      %v3994 = vmul.f32 %v3952, %v3966
      %v3995 = vmul.f32 %v3931, %v3965
      %v3996 = vmul.f32 %v3953, %v3966
      %v3997 = vmul.f32 %v3932, %v3965
      %v3998 = vmul.f32 %v3954, %v3966
      %v3999 = vadd.f32 %v3841, %v3967
      %v4000 = vadd.f32 %v3842, %v3968
      %v4001 = vadd.f32 %v3843, %v3969
      %v4002 = vadd.f32 %v3844, %v3970
      %v4003 = vadd.f32 %v3845, %v3971
      %v4004 = vadd.f32 %v3846, %v3972
      %v4005 = vadd.f32 %v3847, %v3973
      %v4006 = vadd.f32 %v3848, %v3974
      %v4007 = vadd.f32 %v3849, %v3975
      %v4008 = vadd.f32 %v3850, %v3976
      %v4009 = vadd.f32 %v3851, %v3977
      %v4010 = vadd.f32 %v3852, %v3978
      %v4011 = vadd.f32 %v3853, %v3979
      %v4012 = vadd.f32 %v3854, %v3980
      %v4013 = vadd.f32 %v3855, %v3981
      %v4014 = vadd.f32 %v3856, %v3982
      %v4015 = vadd.f32 %v3857, %v3983
      %v4016 = vadd.f32 %v3858, %v3984
      %v4017 = vadd.f32 %v3859, %v3985
      %v4018 = vadd.f32 %v3860, %v3986
      %v4019 = vadd.f32 %v3861, %v3987
      %v4020 = vadd.f32 %v3862, %v3988
      %v4021 = vadd.f32 %v3863, %v3989
      %v4022 = vadd.f32 %v3864, %v3990
      %v4023 = vadd.f32 %v3865, %v3991
      %v4024 = vadd.f32 %v3866, %v3992
      %v4025 = vadd.f32 %v3867, %v3993
      %v4026 = vadd.f32 %v3868, %v3994
      %v4027 = vadd.f32 %v3869, %v3995
      %v4028 = vadd.f32 %v3870, %v3996
      %v4029 = vadd.f32 %v3871, %v3997
      %v4030 = vadd.f32 %v3872, %v3998
      %v4031 = vlaneseq
      %v4032 = vshrl.u32 %v4031, 7
      %v4033 = vsub.s32 4, %v4032
      %v4034 = vrot.slane %v386, %v4033
      %v4035 = vsel %vm1176, %v4034, 0.0
      %v4036 = vsel %vm1177, %v4034, 0.0
      %v4037 = vmul.f32 %v3918, %v4035
      %v4038 = vmul.f32 %v3940, %v4036
      %v4039 = vmul.f32 %v3919, %v4035
      %v4040 = vmul.f32 %v3941, %v4036
      %v4041 = vmul.f32 %v3920, %v4035
      %v4042 = vmul.f32 %v3942, %v4036
      %v4043 = vmul.f32 %v3921, %v4035
      %v4044 = vmul.f32 %v3943, %v4036
      %v4045 = vmul.f32 %v3922, %v4035
      %v4046 = vmul.f32 %v3944, %v4036
      %v4047 = vmul.f32 %v3923, %v4035
      %v4048 = vmul.f32 %v3945, %v4036
      %v4049 = vmul.f32 %v3924, %v4035
      %v4050 = vmul.f32 %v3946, %v4036
      %v4051 = vmul.f32 %v3925, %v4035
      %v4052 = vmul.f32 %v3947, %v4036
      %v4053 = vmul.f32 %v3926, %v4035
      %v4054 = vmul.f32 %v3948, %v4036
      %v4055 = vmul.f32 %v3927, %v4035
      %v4056 = vmul.f32 %v3949, %v4036
      %v4057 = vmul.f32 %v3928, %v4035
      %v4058 = vmul.f32 %v3950, %v4036
      %v4059 = vmul.f32 %v3929, %v4035
      %v4060 = vmul.f32 %v3951, %v4036
      %v4061 = vmul.f32 %v3930, %v4035
      %v4062 = vmul.f32 %v3952, %v4036
      %v4063 = vmul.f32 %v3931, %v4035
      %v4064 = vmul.f32 %v3953, %v4036
      %v4065 = vmul.f32 %v3932, %v4035
      %v4066 = vmul.f32 %v3954, %v4036
      %v4067 = vmul.f32 %v3933, %v4035
      %v4068 = vmul.f32 %v3955, %v4036
      %v4069 = vadd.f32 %v3999, %v4037
      %v4070 = vadd.f32 %v4000, %v4038
      %v4071 = vadd.f32 %v4001, %v4039
      %v4072 = vadd.f32 %v4002, %v4040
      %v4073 = vadd.f32 %v4003, %v4041
      %v4074 = vadd.f32 %v4004, %v4042
      %v4075 = vadd.f32 %v4005, %v4043
      %v4076 = vadd.f32 %v4006, %v4044
      %v4077 = vadd.f32 %v4007, %v4045
      %v4078 = vadd.f32 %v4008, %v4046
      %v4079 = vadd.f32 %v4009, %v4047
      %v4080 = vadd.f32 %v4010, %v4048
      %v4081 = vadd.f32 %v4011, %v4049
      %v4082 = vadd.f32 %v4012, %v4050
      %v4083 = vadd.f32 %v4013, %v4051
      %v4084 = vadd.f32 %v4014, %v4052
      %v4085 = vadd.f32 %v4015, %v4053
      %v4086 = vadd.f32 %v4016, %v4054
      %v4087 = vadd.f32 %v4017, %v4055
      %v4088 = vadd.f32 %v4018, %v4056
      %v4089 = vadd.f32 %v4019, %v4057
      %v4090 = vadd.f32 %v4020, %v4058
      %v4091 = vadd.f32 %v4021, %v4059
      %v4092 = vadd.f32 %v4022, %v4060
      %v4093 = vadd.f32 %v4023, %v4061
      %v4094 = vadd.f32 %v4024, %v4062
      %v4095 = vadd.f32 %v4025, %v4063
      %v4096 = vadd.f32 %v4026, %v4064
      %v4097 = vadd.f32 %v4027, %v4065
      %v4098 = vadd.f32 %v4028, %v4066
      %v4099 = vadd.f32 %v4029, %v4067
      %v4100 = vadd.f32 %v4030, %v4068
      %v4101 = vlaneseq
      %v4102 = vshrl.u32 %v4101, 7
      %v4103 = vsub.s32 4, %v4102
      %v4104 = vrot.slane %v387, %v4103
      %v4105 = vsel %vm1176, %v4104, 0.0
      %v4106 = vsel %vm1177, %v4104, 0.0
      %v4107 = vmul.f32 %v3919, %v4105
      %v4108 = vmul.f32 %v3941, %v4106
      %v4109 = vmul.f32 %v3920, %v4105
      %v4110 = vmul.f32 %v3942, %v4106
      %v4111 = vmul.f32 %v3921, %v4105
      %v4112 = vmul.f32 %v3943, %v4106
      %v4113 = vmul.f32 %v3922, %v4105
      %v4114 = vmul.f32 %v3944, %v4106
      %v4115 = vmul.f32 %v3923, %v4105
      %v4116 = vmul.f32 %v3945, %v4106
      %v4117 = vmul.f32 %v3924, %v4105
      %v4118 = vmul.f32 %v3946, %v4106
      %v4119 = vmul.f32 %v3925, %v4105
      %v4120 = vmul.f32 %v3947, %v4106
      %v4121 = vmul.f32 %v3926, %v4105
      %v4122 = vmul.f32 %v3948, %v4106
      %v4123 = vmul.f32 %v3927, %v4105
      %v4124 = vmul.f32 %v3949, %v4106
      %v4125 = vmul.f32 %v3928, %v4105
      %v4126 = vmul.f32 %v3950, %v4106
      %v4127 = vmul.f32 %v3929, %v4105
      %v4128 = vmul.f32 %v3951, %v4106
      %v4129 = vmul.f32 %v3930, %v4105
      %v4130 = vmul.f32 %v3952, %v4106
      %v4131 = vmul.f32 %v3931, %v4105
      %v4132 = vmul.f32 %v3953, %v4106
      %v4133 = vmul.f32 %v3932, %v4105
      %v4134 = vmul.f32 %v3954, %v4106
      %v4135 = vmul.f32 %v3933, %v4105
      %v4136 = vmul.f32 %v3955, %v4106
      %v4137 = vmul.f32 %v3934, %v4105
      %v4138 = vmul.f32 %v3956, %v4106
      %v4139 = vadd.f32 %v4069, %v4107
      %v4140 = vadd.f32 %v4070, %v4108
      %v4141 = vadd.f32 %v4071, %v4109
      %v4142 = vadd.f32 %v4072, %v4110
      %v4143 = vadd.f32 %v4073, %v4111
      %v4144 = vadd.f32 %v4074, %v4112
      %v4145 = vadd.f32 %v4075, %v4113
      %v4146 = vadd.f32 %v4076, %v4114
      %v4147 = vadd.f32 %v4077, %v4115
      %v4148 = vadd.f32 %v4078, %v4116
      %v4149 = vadd.f32 %v4079, %v4117
      %v4150 = vadd.f32 %v4080, %v4118
      %v4151 = vadd.f32 %v4081, %v4119
      %v4152 = vadd.f32 %v4082, %v4120
      %v4153 = vadd.f32 %v4083, %v4121
      %v4154 = vadd.f32 %v4084, %v4122
      %v4155 = vadd.f32 %v4085, %v4123
      %v4156 = vadd.f32 %v4086, %v4124
      %v4157 = vadd.f32 %v4087, %v4125
      %v4158 = vadd.f32 %v4088, %v4126
      %v4159 = vadd.f32 %v4089, %v4127
      %v4160 = vadd.f32 %v4090, %v4128
      %v4161 = vadd.f32 %v4091, %v4129
      %v4162 = vadd.f32 %v4092, %v4130
      %v4163 = vadd.f32 %v4093, %v4131
      %v4164 = vadd.f32 %v4094, %v4132
      %v4165 = vadd.f32 %v4095, %v4133
      %v4166 = vadd.f32 %v4096, %v4134
      %v4167 = vadd.f32 %v4097, %v4135
      %v4168 = vadd.f32 %v4098, %v4136
      %v4169 = vadd.f32 %v4099, %v4137
      %v4170 = vadd.f32 %v4100, %v4138
      %v4171 = vlaneseq
      %v4172 = vshrl.u32 %v4171, 7
      %v4173 = vsub.s32 4, %v4172
      %v4174 = vrot.slane %v388, %v4173
      %v4175 = vsel %vm1176, %v4174, 0.0
      %v4176 = vsel %vm1177, %v4174, 0.0
      %v4177 = vmul.f32 %v3920, %v4175
      %v4178 = vmul.f32 %v3942, %v4176
      %v4179 = vmul.f32 %v3921, %v4175
      %v4180 = vmul.f32 %v3943, %v4176
      %v4181 = vmul.f32 %v3922, %v4175
      %v4182 = vmul.f32 %v3944, %v4176
      %v4183 = vmul.f32 %v3923, %v4175
      %v4184 = vmul.f32 %v3945, %v4176
      %v4185 = vmul.f32 %v3924, %v4175
      %v4186 = vmul.f32 %v3946, %v4176
      %v4187 = vmul.f32 %v3925, %v4175
      %v4188 = vmul.f32 %v3947, %v4176
      %v4189 = vmul.f32 %v3926, %v4175
      %v4190 = vmul.f32 %v3948, %v4176
      %v4191 = vmul.f32 %v3927, %v4175
      %v4192 = vmul.f32 %v3949, %v4176
      %v4193 = vmul.f32 %v3928, %v4175
      %v4194 = vmul.f32 %v3950, %v4176
      %v4195 = vmul.f32 %v3929, %v4175
      %v4196 = vmul.f32 %v3951, %v4176
      %v4197 = vmul.f32 %v3930, %v4175
      %v4198 = vmul.f32 %v3952, %v4176
      %v4199 = vmul.f32 %v3931, %v4175
      %v4200 = vmul.f32 %v3953, %v4176
      %v4201 = vmul.f32 %v3932, %v4175
      %v4202 = vmul.f32 %v3954, %v4176
      %v4203 = vmul.f32 %v3933, %v4175
      %v4204 = vmul.f32 %v3955, %v4176
      %v4205 = vmul.f32 %v3934, %v4175
      %v4206 = vmul.f32 %v3956, %v4176
      %v4207 = vmul.f32 %v3935, %v4175
      %v4208 = vmul.f32 %v3957, %v4176
      %v4209 = vadd.f32 %v4139, %v4177
      %v4210 = vadd.f32 %v4140, %v4178
      %v4211 = vadd.f32 %v4141, %v4179
      %v4212 = vadd.f32 %v4142, %v4180
      %v4213 = vadd.f32 %v4143, %v4181
      %v4214 = vadd.f32 %v4144, %v4182
      %v4215 = vadd.f32 %v4145, %v4183
      %v4216 = vadd.f32 %v4146, %v4184
      %v4217 = vadd.f32 %v4147, %v4185
      %v4218 = vadd.f32 %v4148, %v4186
      %v4219 = vadd.f32 %v4149, %v4187
      %v4220 = vadd.f32 %v4150, %v4188
      %v4221 = vadd.f32 %v4151, %v4189
      %v4222 = vadd.f32 %v4152, %v4190
      %v4223 = vadd.f32 %v4153, %v4191
      %v4224 = vadd.f32 %v4154, %v4192
      %v4225 = vadd.f32 %v4155, %v4193
      %v4226 = vadd.f32 %v4156, %v4194
      %v4227 = vadd.f32 %v4157, %v4195
      %v4228 = vadd.f32 %v4158, %v4196
      %v4229 = vadd.f32 %v4159, %v4197
      %v4230 = vadd.f32 %v4160, %v4198
      %v4231 = vadd.f32 %v4161, %v4199
      %v4232 = vadd.f32 %v4162, %v4200
      %v4233 = vadd.f32 %v4163, %v4201
      %v4234 = vadd.f32 %v4164, %v4202
      %v4235 = vadd.f32 %v4165, %v4203
      %v4236 = vadd.f32 %v4166, %v4204
      %v4237 = vadd.f32 %v4167, %v4205
      %v4238 = vadd.f32 %v4168, %v4206
      %v4239 = vadd.f32 %v4169, %v4207
      %v4240 = vadd.f32 %v4170, %v4208
      %v4241 = vlaneseq
      %v4242 = vshrl.u32 %v4241, 7
      %v4243 = vsub.s32 4, %v4242
      %v4244 = vrot.slane %v389, %v4243
      %v4245 = vsel %vm1176, %v4244, 0.0
      %v4246 = vsel %vm1177, %v4244, 0.0
      %v4247 = vmul.f32 %v3921, %v4245
      %v4248 = vmul.f32 %v3943, %v4246
      %v4249 = vmul.f32 %v3922, %v4245
      %v4250 = vmul.f32 %v3944, %v4246
      %v4251 = vmul.f32 %v3923, %v4245
      %v4252 = vmul.f32 %v3945, %v4246
      %v4253 = vmul.f32 %v3924, %v4245
      %v4254 = vmul.f32 %v3946, %v4246
      %v4255 = vmul.f32 %v3925, %v4245
      %v4256 = vmul.f32 %v3947, %v4246
      %v4257 = vmul.f32 %v3926, %v4245
      %v4258 = vmul.f32 %v3948, %v4246
      %v4259 = vmul.f32 %v3927, %v4245
      %v4260 = vmul.f32 %v3949, %v4246
      %v4261 = vmul.f32 %v3928, %v4245
      %v4262 = vmul.f32 %v3950, %v4246
      %v4263 = vmul.f32 %v3929, %v4245
      %v4264 = vmul.f32 %v3951, %v4246
      %v4265 = vmul.f32 %v3930, %v4245
      %v4266 = vmul.f32 %v3952, %v4246
      %v4267 = vmul.f32 %v3931, %v4245
      %v4268 = vmul.f32 %v3953, %v4246
      %v4269 = vmul.f32 %v3932, %v4245
      %v4270 = vmul.f32 %v3954, %v4246
      %v4271 = vmul.f32 %v3933, %v4245
      %v4272 = vmul.f32 %v3955, %v4246
      %v4273 = vmul.f32 %v3934, %v4245
      %v4274 = vmul.f32 %v3956, %v4246
      %v4275 = vmul.f32 %v3935, %v4245
      %v4276 = vmul.f32 %v3957, %v4246
      %v4277 = vmul.f32 %v3936, %v4245
      %v4278 = vmul.f32 %v3958, %v4246
      %v4279 = vadd.f32 %v4209, %v4247
      %v4280 = vadd.f32 %v4210, %v4248
      %v4281 = vadd.f32 %v4211, %v4249
      %v4282 = vadd.f32 %v4212, %v4250
      %v4283 = vadd.f32 %v4213, %v4251
      %v4284 = vadd.f32 %v4214, %v4252
      %v4285 = vadd.f32 %v4215, %v4253
      %v4286 = vadd.f32 %v4216, %v4254
      %v4287 = vadd.f32 %v4217, %v4255
      %v4288 = vadd.f32 %v4218, %v4256
      %v4289 = vadd.f32 %v4219, %v4257
      %v4290 = vadd.f32 %v4220, %v4258
      %v4291 = vadd.f32 %v4221, %v4259
      %v4292 = vadd.f32 %v4222, %v4260
      %v4293 = vadd.f32 %v4223, %v4261
      %v4294 = vadd.f32 %v4224, %v4262
      %v4295 = vadd.f32 %v4225, %v4263
      %v4296 = vadd.f32 %v4226, %v4264
      %v4297 = vadd.f32 %v4227, %v4265
      %v4298 = vadd.f32 %v4228, %v4266
      %v4299 = vadd.f32 %v4229, %v4267
      %v4300 = vadd.f32 %v4230, %v4268
      %v4301 = vadd.f32 %v4231, %v4269
      %v4302 = vadd.f32 %v4232, %v4270
      %v4303 = vadd.f32 %v4233, %v4271
      %v4304 = vadd.f32 %v4234, %v4272
      %v4305 = vadd.f32 %v4235, %v4273
      %v4306 = vadd.f32 %v4236, %v4274
      %v4307 = vadd.f32 %v4237, %v4275
      %v4308 = vadd.f32 %v4238, %v4276
      %v4309 = vadd.f32 %v4239, %v4277
      %v4310 = vadd.f32 %v4240, %v4278
      %v4311 = vlaneseq
      %v4312 = vshrl.u32 %v4311, 7
      %v4313 = vsub.s32 4, %v4312
      %v4314 = vrot.slane %v390, %v4313
      %v4315 = vsel %vm1176, %v4314, 0.0
      %v4316 = vsel %vm1177, %v4314, 0.0
      %v4317 = vmul.f32 %v3922, %v4315
      %v4318 = vmul.f32 %v3944, %v4316
      %v4319 = vmul.f32 %v3923, %v4315
      %v4320 = vmul.f32 %v3945, %v4316
      %v4321 = vmul.f32 %v3924, %v4315
      %v4322 = vmul.f32 %v3946, %v4316
      %v4323 = vmul.f32 %v3925, %v4315
      %v4324 = vmul.f32 %v3947, %v4316
      %v4325 = vmul.f32 %v3926, %v4315
      %v4326 = vmul.f32 %v3948, %v4316
      %v4327 = vmul.f32 %v3927, %v4315
      %v4328 = vmul.f32 %v3949, %v4316
      %v4329 = vmul.f32 %v3928, %v4315
      %v4330 = vmul.f32 %v3950, %v4316
      %v4331 = vmul.f32 %v3929, %v4315
      %v4332 = vmul.f32 %v3951, %v4316
      %v4333 = vmul.f32 %v3930, %v4315
      %v4334 = vmul.f32 %v3952, %v4316
      %v4335 = vmul.f32 %v3931, %v4315
      %v4336 = vmul.f32 %v3953, %v4316
      %v4337 = vmul.f32 %v3932, %v4315
      %v4338 = vmul.f32 %v3954, %v4316
      %v4339 = vmul.f32 %v3933, %v4315
      %v4340 = vmul.f32 %v3955, %v4316
      %v4341 = vmul.f32 %v3934, %v4315
      %v4342 = vmul.f32 %v3956, %v4316
      %v4343 = vmul.f32 %v3935, %v4315
      %v4344 = vmul.f32 %v3957, %v4316
      %v4345 = vmul.f32 %v3936, %v4315
      %v4346 = vmul.f32 %v3958, %v4316
      %v4347 = vmul.f32 %v3937, %v4315
      %v4348 = vmul.f32 %v3959, %v4316
      %v4349 = vadd.f32 %v4279, %v4317
      %v4350 = vadd.f32 %v4280, %v4318
      %v4351 = vadd.f32 %v4281, %v4319
      %v4352 = vadd.f32 %v4282, %v4320
      %v4353 = vadd.f32 %v4283, %v4321
      %v4354 = vadd.f32 %v4284, %v4322
      %v4355 = vadd.f32 %v4285, %v4323
      %v4356 = vadd.f32 %v4286, %v4324
      %v4357 = vadd.f32 %v4287, %v4325
      %v4358 = vadd.f32 %v4288, %v4326
      %v4359 = vadd.f32 %v4289, %v4327
      %v4360 = vadd.f32 %v4290, %v4328
      %v4361 = vadd.f32 %v4291, %v4329
      %v4362 = vadd.f32 %v4292, %v4330
      %v4363 = vadd.f32 %v4293, %v4331
      %v4364 = vadd.f32 %v4294, %v4332
      %v4365 = vadd.f32 %v4295, %v4333
      %v4366 = vadd.f32 %v4296, %v4334
      %v4367 = vadd.f32 %v4297, %v4335
      %v4368 = vadd.f32 %v4298, %v4336
      %v4369 = vadd.f32 %v4299, %v4337
      %v4370 = vadd.f32 %v4300, %v4338
      %v4371 = vadd.f32 %v4301, %v4339
      %v4372 = vadd.f32 %v4302, %v4340
      %v4373 = vadd.f32 %v4303, %v4341
      %v4374 = vadd.f32 %v4304, %v4342
      %v4375 = vadd.f32 %v4305, %v4343
      %v4376 = vadd.f32 %v4306, %v4344
      %v4377 = vadd.f32 %v4307, %v4345
      %v4378 = vadd.f32 %v4308, %v4346
      %v4379 = vadd.f32 %v4309, %v4347
      %v4380 = vadd.f32 %v4310, %v4348
      %v4381 = vlaneseq
      %v4382 = vshrl.u32 %v4381, 7
      %v4383 = vsub.s32 4, %v4382
      %v4384 = vrot.slane %v391, %v4383
      %v4385 = vsel %vm1176, %v4384, 0.0
      %v4386 = vsel %vm1177, %v4384, 0.0
      %v4387 = vmul.f32 %v3923, %v4385
      %v4388 = vmul.f32 %v3945, %v4386
      %v4389 = vmul.f32 %v3924, %v4385
      %v4390 = vmul.f32 %v3946, %v4386
      %v4391 = vmul.f32 %v3925, %v4385
      %v4392 = vmul.f32 %v3947, %v4386
      %v4393 = vmul.f32 %v3926, %v4385
      %v4394 = vmul.f32 %v3948, %v4386
      %v4395 = vmul.f32 %v3927, %v4385
      %v4396 = vmul.f32 %v3949, %v4386
      %v4397 = vmul.f32 %v3928, %v4385
      %v4398 = vmul.f32 %v3950, %v4386
      %v4399 = vmul.f32 %v3929, %v4385
      %v4400 = vmul.f32 %v3951, %v4386
      %v4401 = vmul.f32 %v3930, %v4385
      %v4402 = vmul.f32 %v3952, %v4386
      %v4403 = vmul.f32 %v3931, %v4385
      %v4404 = vmul.f32 %v3953, %v4386
      %v4405 = vmul.f32 %v3932, %v4385
      %v4406 = vmul.f32 %v3954, %v4386
      %v4407 = vmul.f32 %v3933, %v4385
      %v4408 = vmul.f32 %v3955, %v4386
      %v4409 = vmul.f32 %v3934, %v4385
      %v4410 = vmul.f32 %v3956, %v4386
      %v4411 = vmul.f32 %v3935, %v4385
      %v4412 = vmul.f32 %v3957, %v4386
      %v4413 = vmul.f32 %v3936, %v4385
      %v4414 = vmul.f32 %v3958, %v4386
      %v4415 = vmul.f32 %v3937, %v4385
      %v4416 = vmul.f32 %v3959, %v4386
      %v4417 = vmul.f32 %v3938, %v4385
      %v4418 = vmul.f32 %v3960, %v4386
      %v4419 = vadd.f32 %v4349, %v4387
      %v4420 = vadd.f32 %v4350, %v4388
      %v4421 = vadd.f32 %v4351, %v4389
      %v4422 = vadd.f32 %v4352, %v4390
      %v4423 = vadd.f32 %v4353, %v4391
      %v4424 = vadd.f32 %v4354, %v4392
      %v4425 = vadd.f32 %v4355, %v4393
      %v4426 = vadd.f32 %v4356, %v4394
      %v4427 = vadd.f32 %v4357, %v4395
      %v4428 = vadd.f32 %v4358, %v4396
      %v4429 = vadd.f32 %v4359, %v4397
      %v4430 = vadd.f32 %v4360, %v4398
      %v4431 = vadd.f32 %v4361, %v4399
      %v4432 = vadd.f32 %v4362, %v4400
      %v4433 = vadd.f32 %v4363, %v4401
      %v4434 = vadd.f32 %v4364, %v4402
      %v4435 = vadd.f32 %v4365, %v4403
      %v4436 = vadd.f32 %v4366, %v4404
      %v4437 = vadd.f32 %v4367, %v4405
      %v4438 = vadd.f32 %v4368, %v4406
      %v4439 = vadd.f32 %v4369, %v4407
      %v4440 = vadd.f32 %v4370, %v4408
      %v4441 = vadd.f32 %v4371, %v4409
      %v4442 = vadd.f32 %v4372, %v4410
      %v4443 = vadd.f32 %v4373, %v4411
      %v4444 = vadd.f32 %v4374, %v4412
      %v4445 = vadd.f32 %v4375, %v4413
      %v4446 = vadd.f32 %v4376, %v4414
      %v4447 = vadd.f32 %v4377, %v4415
      %v4448 = vadd.f32 %v4378, %v4416
      %v4449 = vadd.f32 %v4379, %v4417
      %v4450 = vadd.f32 %v4380, %v4418
      %v4451 = vrot.slane %v1593, 2
      %v4452 = vrot.slane %v1595, 2
      %v4453 = vrot.slane %v1597, 2
      %v4454 = vrot.slane %v1599, 2
      %v4455 = vrot.slane %v1601, 2
      %v4456 = vrot.slane %v1603, 2
      %v4457 = vrot.slane %v1605, 2
      %v4458 = vrot.slane %v1607, 2
      %v4459 = vrot.slane %v1609, 2
      %v4460 = vrot.slane %v1611, 2
      %v4461 = vrot.slane %v1613, 2
      %v4462 = vrot.slane %v1615, 2
      %v4463 = vrot.slane %v1617, 2
      %v4464 = vrot.slane %v1619, 2
      %v4465 = vrot.slane %v1621, 2
      %v4466 = vrot.slane %v1623, 2
      %v4467 = vrot.slane %v1625, 2
      %v4468 = vrot.slane %v1627, 2
      %v4469 = vrot.slane %v1629, 2
      %v4470 = vrot.slane %v1631, 2
      %v4471 = vrot.slane %v1633, 2
      %v4472 = vrot.slane %v1635, 2
      %v4473 = vrot.slane %v1594, 2
      %v4474 = vrot.slane %v1596, 2
      %v4475 = vrot.slane %v1598, 2
      %v4476 = vrot.slane %v1600, 2
      %v4477 = vrot.slane %v1602, 2
      %v4478 = vrot.slane %v1604, 2
      %v4479 = vrot.slane %v1606, 2
      %v4480 = vrot.slane %v1608, 2
      %v4481 = vrot.slane %v1610, 2
      %v4482 = vrot.slane %v1612, 2
      %v4483 = vrot.slane %v1614, 2
      %v4484 = vrot.slane %v1616, 2
      %v4485 = vrot.slane %v1618, 2
      %v4486 = vrot.slane %v1620, 2
      %v4487 = vrot.slane %v1622, 2
      %v4488 = vrot.slane %v1624, 2
      %v4489 = vrot.slane %v1626, 2
      %v4490 = vrot.slane %v1628, 2
      %v4491 = vrot.slane %v1630, 2
      %v4492 = vrot.slane %v1632, 2
      %v4493 = vrot.slane %v1634, 2
      %v4494 = vrot.slane %v1636, 2
      %vm4495 = vcmp.lt.s32.totalorder %v393, 6
      %v4496 = vsel %vm4495, %v4451, %v4473
      %v4497 = vsel %vm4495, %v4452, %v4474
      %v4498 = vsel %vm4495, %v4453, %v4475
      %v4499 = vsel %vm4495, %v4454, %v4476
      %v4500 = vsel %vm4495, %v4455, %v4477
      %v4501 = vsel %vm4495, %v4456, %v4478
      %v4502 = vsel %vm4495, %v4457, %v4479
      %v4503 = vsel %vm4495, %v4458, %v4480
      %v4504 = vsel %vm4495, %v4459, %v4481
      %v4505 = vsel %vm4495, %v4460, %v4482
      %v4506 = vsel %vm4495, %v4461, %v4483
      %v4507 = vsel %vm4495, %v4462, %v4484
      %v4508 = vsel %vm4495, %v4463, %v4485
      %v4509 = vsel %vm4495, %v4464, %v4486
      %v4510 = vsel %vm4495, %v4465, %v4487
      %v4511 = vsel %vm4495, %v4466, %v4488
      %v4512 = vsel %vm4495, %v4467, %v4489
      %v4513 = vsel %vm4495, %v4468, %v4490
      %v4514 = vsel %vm4495, %v4469, %v4491
      %v4515 = vsel %vm4495, %v4470, %v4492
      %v4516 = vsel %vm4495, %v4471, %v4493
      %v4517 = vsel %vm4495, %v4472, %v4494
      %v4518 = vsel %vm4495, %v4473, %v4451
      %v4519 = vsel %vm4495, %v4474, %v4452
      %v4520 = vsel %vm4495, %v4475, %v4453
      %v4521 = vsel %vm4495, %v4476, %v4454
      %v4522 = vsel %vm4495, %v4477, %v4455
      %v4523 = vsel %vm4495, %v4478, %v4456
      %v4524 = vsel %vm4495, %v4479, %v4457
      %v4525 = vsel %vm4495, %v4480, %v4458
      %v4526 = vsel %vm4495, %v4481, %v4459
      %v4527 = vsel %vm4495, %v4482, %v4460
      %v4528 = vsel %vm4495, %v4483, %v4461
      %v4529 = vsel %vm4495, %v4484, %v4462
      %v4530 = vsel %vm4495, %v4485, %v4463
      %v4531 = vsel %vm4495, %v4486, %v4464
      %v4532 = vsel %vm4495, %v4487, %v4465
      %v4533 = vsel %vm4495, %v4488, %v4466
      %v4534 = vsel %vm4495, %v4489, %v4467
      %v4535 = vsel %vm4495, %v4490, %v4468
      %v4536 = vsel %vm4495, %v4491, %v4469
      %v4537 = vsel %vm4495, %v4492, %v4470
      %v4538 = vsel %vm4495, %v4493, %v4471
      %v4539 = vsel %vm4495, %v4494, %v4472
      %v4540 = vadd.s32 %v393, 2
      %v4541 = vadd.s32 %v394, 2
      %vm4542 = vcmp.ge.s32.totalorder %v4540, 0
      %vm4543 = vcmp.ge.s32.totalorder %v4541, 0
      %vm4544 = vcmp.lt.s32.totalorder %v4540, 16
      %vm4545 = vcmp.lt.s32.totalorder %v4541, 16
      %vm4546 = vmand %vm4542, %vm4544
      %vm4547 = vmand %vm4543, %vm4545
      %v4548 = vsel %vm4546, 1, 0
      %v4549 = vsel %vm4547, 1, 0
      %vm4550 = vcmp.eq.s32.totalorder %v4548, 1
      %vm4551 = vcmp.eq.s32.totalorder %v4549, 1
      %v4552 = vlaneseq
      %v4553 = vshrl.u32 %v4552, 7
      %v4554 = vsub.s32 5, %v4553
      %v4555 = vrot.slane %v385, %v4554
      %v4556 = vsel %vm4550, %v4555, 0.0
      %v4557 = vsel %vm4551, %v4555, 0.0
      %v4558 = vmul.f32 %v4496, %v4556
      %v4559 = vmul.f32 %v4518, %v4557
      %v4560 = vmul.f32 %v4497, %v4556
      %v4561 = vmul.f32 %v4519, %v4557
      %v4562 = vmul.f32 %v4498, %v4556
      %v4563 = vmul.f32 %v4520, %v4557
      %v4564 = vmul.f32 %v4499, %v4556
      %v4565 = vmul.f32 %v4521, %v4557
      %v4566 = vmul.f32 %v4500, %v4556
      %v4567 = vmul.f32 %v4522, %v4557
      %v4568 = vmul.f32 %v4501, %v4556
      %v4569 = vmul.f32 %v4523, %v4557
      %v4570 = vmul.f32 %v4502, %v4556
      %v4571 = vmul.f32 %v4524, %v4557
      %v4572 = vmul.f32 %v4503, %v4556
      %v4573 = vmul.f32 %v4525, %v4557
      %v4574 = vmul.f32 %v4504, %v4556
      %v4575 = vmul.f32 %v4526, %v4557
      %v4576 = vmul.f32 %v4505, %v4556
      %v4577 = vmul.f32 %v4527, %v4557
      %v4578 = vmul.f32 %v4506, %v4556
      %v4579 = vmul.f32 %v4528, %v4557
      %v4580 = vmul.f32 %v4507, %v4556
      %v4581 = vmul.f32 %v4529, %v4557
      %v4582 = vmul.f32 %v4508, %v4556
      %v4583 = vmul.f32 %v4530, %v4557
      %v4584 = vmul.f32 %v4509, %v4556
      %v4585 = vmul.f32 %v4531, %v4557
      %v4586 = vmul.f32 %v4510, %v4556
      %v4587 = vmul.f32 %v4532, %v4557
      %v4588 = vmul.f32 %v4511, %v4556
      %v4589 = vmul.f32 %v4533, %v4557
      %v4590 = vadd.f32 %v4419, %v4558
      %v4591 = vadd.f32 %v4420, %v4559
      %v4592 = vadd.f32 %v4421, %v4560
      %v4593 = vadd.f32 %v4422, %v4561
      %v4594 = vadd.f32 %v4423, %v4562
      %v4595 = vadd.f32 %v4424, %v4563
      %v4596 = vadd.f32 %v4425, %v4564
      %v4597 = vadd.f32 %v4426, %v4565
      %v4598 = vadd.f32 %v4427, %v4566
      %v4599 = vadd.f32 %v4428, %v4567
      %v4600 = vadd.f32 %v4429, %v4568
      %v4601 = vadd.f32 %v4430, %v4569
      %v4602 = vadd.f32 %v4431, %v4570
      %v4603 = vadd.f32 %v4432, %v4571
      %v4604 = vadd.f32 %v4433, %v4572
      %v4605 = vadd.f32 %v4434, %v4573
      %v4606 = vadd.f32 %v4435, %v4574
      %v4607 = vadd.f32 %v4436, %v4575
      %v4608 = vadd.f32 %v4437, %v4576
      %v4609 = vadd.f32 %v4438, %v4577
      %v4610 = vadd.f32 %v4439, %v4578
      %v4611 = vadd.f32 %v4440, %v4579
      %v4612 = vadd.f32 %v4441, %v4580
      %v4613 = vadd.f32 %v4442, %v4581
      %v4614 = vadd.f32 %v4443, %v4582
      %v4615 = vadd.f32 %v4444, %v4583
      %v4616 = vadd.f32 %v4445, %v4584
      %v4617 = vadd.f32 %v4446, %v4585
      %v4618 = vadd.f32 %v4447, %v4586
      %v4619 = vadd.f32 %v4448, %v4587
      %v4620 = vadd.f32 %v4449, %v4588
      %v4621 = vadd.f32 %v4450, %v4589
      %v4622 = vlaneseq
      %v4623 = vshrl.u32 %v4622, 7
      %v4624 = vsub.s32 5, %v4623
      %v4625 = vrot.slane %v386, %v4624
      %v4626 = vsel %vm4550, %v4625, 0.0
      %v4627 = vsel %vm4551, %v4625, 0.0
      %v4628 = vmul.f32 %v4497, %v4626
      %v4629 = vmul.f32 %v4519, %v4627
      %v4630 = vmul.f32 %v4498, %v4626
      %v4631 = vmul.f32 %v4520, %v4627
      %v4632 = vmul.f32 %v4499, %v4626
      %v4633 = vmul.f32 %v4521, %v4627
      %v4634 = vmul.f32 %v4500, %v4626
      %v4635 = vmul.f32 %v4522, %v4627
      %v4636 = vmul.f32 %v4501, %v4626
      %v4637 = vmul.f32 %v4523, %v4627
      %v4638 = vmul.f32 %v4502, %v4626
      %v4639 = vmul.f32 %v4524, %v4627
      %v4640 = vmul.f32 %v4503, %v4626
      %v4641 = vmul.f32 %v4525, %v4627
      %v4642 = vmul.f32 %v4504, %v4626
      %v4643 = vmul.f32 %v4526, %v4627
      %v4644 = vmul.f32 %v4505, %v4626
      %v4645 = vmul.f32 %v4527, %v4627
      %v4646 = vmul.f32 %v4506, %v4626
      %v4647 = vmul.f32 %v4528, %v4627
      %v4648 = vmul.f32 %v4507, %v4626
      %v4649 = vmul.f32 %v4529, %v4627
      %v4650 = vmul.f32 %v4508, %v4626
      %v4651 = vmul.f32 %v4530, %v4627
      %v4652 = vmul.f32 %v4509, %v4626
      %v4653 = vmul.f32 %v4531, %v4627
      %v4654 = vmul.f32 %v4510, %v4626
      %v4655 = vmul.f32 %v4532, %v4627
      %v4656 = vmul.f32 %v4511, %v4626
      %v4657 = vmul.f32 %v4533, %v4627
      %v4658 = vmul.f32 %v4512, %v4626
      %v4659 = vmul.f32 %v4534, %v4627
      %v4660 = vadd.f32 %v4590, %v4628
      %v4661 = vadd.f32 %v4591, %v4629
      %v4662 = vadd.f32 %v4592, %v4630
      %v4663 = vadd.f32 %v4593, %v4631
      %v4664 = vadd.f32 %v4594, %v4632
      %v4665 = vadd.f32 %v4595, %v4633
      %v4666 = vadd.f32 %v4596, %v4634
      %v4667 = vadd.f32 %v4597, %v4635
      %v4668 = vadd.f32 %v4598, %v4636
      %v4669 = vadd.f32 %v4599, %v4637
      %v4670 = vadd.f32 %v4600, %v4638
      %v4671 = vadd.f32 %v4601, %v4639
      %v4672 = vadd.f32 %v4602, %v4640
      %v4673 = vadd.f32 %v4603, %v4641
      %v4674 = vadd.f32 %v4604, %v4642
      %v4675 = vadd.f32 %v4605, %v4643
      %v4676 = vadd.f32 %v4606, %v4644
      %v4677 = vadd.f32 %v4607, %v4645
      %v4678 = vadd.f32 %v4608, %v4646
      %v4679 = vadd.f32 %v4609, %v4647
      %v4680 = vadd.f32 %v4610, %v4648
      %v4681 = vadd.f32 %v4611, %v4649
      %v4682 = vadd.f32 %v4612, %v4650
      %v4683 = vadd.f32 %v4613, %v4651
      %v4684 = vadd.f32 %v4614, %v4652
      %v4685 = vadd.f32 %v4615, %v4653
      %v4686 = vadd.f32 %v4616, %v4654
      %v4687 = vadd.f32 %v4617, %v4655
      %v4688 = vadd.f32 %v4618, %v4656
      %v4689 = vadd.f32 %v4619, %v4657
      %v4690 = vadd.f32 %v4620, %v4658
      %v4691 = vadd.f32 %v4621, %v4659
      %v4692 = vlaneseq
      %v4693 = vshrl.u32 %v4692, 7
      %v4694 = vsub.s32 5, %v4693
      %v4695 = vrot.slane %v387, %v4694
      %v4696 = vsel %vm4550, %v4695, 0.0
      %v4697 = vsel %vm4551, %v4695, 0.0
      %v4698 = vmul.f32 %v4498, %v4696
      %v4699 = vmul.f32 %v4520, %v4697
      %v4700 = vmul.f32 %v4499, %v4696
      %v4701 = vmul.f32 %v4521, %v4697
      %v4702 = vmul.f32 %v4500, %v4696
      %v4703 = vmul.f32 %v4522, %v4697
      %v4704 = vmul.f32 %v4501, %v4696
      %v4705 = vmul.f32 %v4523, %v4697
      %v4706 = vmul.f32 %v4502, %v4696
      %v4707 = vmul.f32 %v4524, %v4697
      %v4708 = vmul.f32 %v4503, %v4696
      %v4709 = vmul.f32 %v4525, %v4697
      %v4710 = vmul.f32 %v4504, %v4696
      %v4711 = vmul.f32 %v4526, %v4697
      %v4712 = vmul.f32 %v4505, %v4696
      %v4713 = vmul.f32 %v4527, %v4697
      %v4714 = vmul.f32 %v4506, %v4696
      %v4715 = vmul.f32 %v4528, %v4697
      %v4716 = vmul.f32 %v4507, %v4696
      %v4717 = vmul.f32 %v4529, %v4697
      %v4718 = vmul.f32 %v4508, %v4696
      %v4719 = vmul.f32 %v4530, %v4697
      %v4720 = vmul.f32 %v4509, %v4696
      %v4721 = vmul.f32 %v4531, %v4697
      %v4722 = vmul.f32 %v4510, %v4696
      %v4723 = vmul.f32 %v4532, %v4697
      %v4724 = vmul.f32 %v4511, %v4696
      %v4725 = vmul.f32 %v4533, %v4697
      %v4726 = vmul.f32 %v4512, %v4696
      %v4727 = vmul.f32 %v4534, %v4697
      %v4728 = vmul.f32 %v4513, %v4696
      %v4729 = vmul.f32 %v4535, %v4697
      %v4730 = vadd.f32 %v4660, %v4698
      %v4731 = vadd.f32 %v4661, %v4699
      %v4732 = vadd.f32 %v4662, %v4700
      %v4733 = vadd.f32 %v4663, %v4701
      %v4734 = vadd.f32 %v4664, %v4702
      %v4735 = vadd.f32 %v4665, %v4703
      %v4736 = vadd.f32 %v4666, %v4704
      %v4737 = vadd.f32 %v4667, %v4705
      %v4738 = vadd.f32 %v4668, %v4706
      %v4739 = vadd.f32 %v4669, %v4707
      %v4740 = vadd.f32 %v4670, %v4708
      %v4741 = vadd.f32 %v4671, %v4709
      %v4742 = vadd.f32 %v4672, %v4710
      %v4743 = vadd.f32 %v4673, %v4711
      %v4744 = vadd.f32 %v4674, %v4712
      %v4745 = vadd.f32 %v4675, %v4713
      %v4746 = vadd.f32 %v4676, %v4714
      %v4747 = vadd.f32 %v4677, %v4715
      %v4748 = vadd.f32 %v4678, %v4716
      %v4749 = vadd.f32 %v4679, %v4717
      %v4750 = vadd.f32 %v4680, %v4718
      %v4751 = vadd.f32 %v4681, %v4719
      %v4752 = vadd.f32 %v4682, %v4720
      %v4753 = vadd.f32 %v4683, %v4721
      %v4754 = vadd.f32 %v4684, %v4722
      %v4755 = vadd.f32 %v4685, %v4723
      %v4756 = vadd.f32 %v4686, %v4724
      %v4757 = vadd.f32 %v4687, %v4725
      %v4758 = vadd.f32 %v4688, %v4726
      %v4759 = vadd.f32 %v4689, %v4727
      %v4760 = vadd.f32 %v4690, %v4728
      %v4761 = vadd.f32 %v4691, %v4729
      %v4762 = vlaneseq
      %v4763 = vshrl.u32 %v4762, 7
      %v4764 = vsub.s32 5, %v4763
      %v4765 = vrot.slane %v388, %v4764
      %v4766 = vsel %vm4550, %v4765, 0.0
      %v4767 = vsel %vm4551, %v4765, 0.0
      %v4768 = vmul.f32 %v4499, %v4766
      %v4769 = vmul.f32 %v4521, %v4767
      %v4770 = vmul.f32 %v4500, %v4766
      %v4771 = vmul.f32 %v4522, %v4767
      %v4772 = vmul.f32 %v4501, %v4766
      %v4773 = vmul.f32 %v4523, %v4767
      %v4774 = vmul.f32 %v4502, %v4766
      %v4775 = vmul.f32 %v4524, %v4767
      %v4776 = vmul.f32 %v4503, %v4766
      %v4777 = vmul.f32 %v4525, %v4767
      %v4778 = vmul.f32 %v4504, %v4766
      %v4779 = vmul.f32 %v4526, %v4767
      %v4780 = vmul.f32 %v4505, %v4766
      %v4781 = vmul.f32 %v4527, %v4767
      %v4782 = vmul.f32 %v4506, %v4766
      %v4783 = vmul.f32 %v4528, %v4767
      %v4784 = vmul.f32 %v4507, %v4766
      %v4785 = vmul.f32 %v4529, %v4767
      %v4786 = vmul.f32 %v4508, %v4766
      %v4787 = vmul.f32 %v4530, %v4767
      %v4788 = vmul.f32 %v4509, %v4766
      %v4789 = vmul.f32 %v4531, %v4767
      %v4790 = vmul.f32 %v4510, %v4766
      %v4791 = vmul.f32 %v4532, %v4767
      %v4792 = vmul.f32 %v4511, %v4766
      %v4793 = vmul.f32 %v4533, %v4767
      %v4794 = vmul.f32 %v4512, %v4766
      %v4795 = vmul.f32 %v4534, %v4767
      %v4796 = vmul.f32 %v4513, %v4766
      %v4797 = vmul.f32 %v4535, %v4767
      %v4798 = vmul.f32 %v4514, %v4766
      %v4799 = vmul.f32 %v4536, %v4767
      %v4800 = vadd.f32 %v4730, %v4768
      %v4801 = vadd.f32 %v4731, %v4769
      %v4802 = vadd.f32 %v4732, %v4770
      %v4803 = vadd.f32 %v4733, %v4771
      %v4804 = vadd.f32 %v4734, %v4772
      %v4805 = vadd.f32 %v4735, %v4773
      %v4806 = vadd.f32 %v4736, %v4774
      %v4807 = vadd.f32 %v4737, %v4775
      %v4808 = vadd.f32 %v4738, %v4776
      %v4809 = vadd.f32 %v4739, %v4777
      %v4810 = vadd.f32 %v4740, %v4778
      %v4811 = vadd.f32 %v4741, %v4779
      %v4812 = vadd.f32 %v4742, %v4780
      %v4813 = vadd.f32 %v4743, %v4781
      %v4814 = vadd.f32 %v4744, %v4782
      %v4815 = vadd.f32 %v4745, %v4783
      %v4816 = vadd.f32 %v4746, %v4784
      %v4817 = vadd.f32 %v4747, %v4785
      %v4818 = vadd.f32 %v4748, %v4786
      %v4819 = vadd.f32 %v4749, %v4787
      %v4820 = vadd.f32 %v4750, %v4788
      %v4821 = vadd.f32 %v4751, %v4789
      %v4822 = vadd.f32 %v4752, %v4790
      %v4823 = vadd.f32 %v4753, %v4791
      %v4824 = vadd.f32 %v4754, %v4792
      %v4825 = vadd.f32 %v4755, %v4793
      %v4826 = vadd.f32 %v4756, %v4794
      %v4827 = vadd.f32 %v4757, %v4795
      %v4828 = vadd.f32 %v4758, %v4796
      %v4829 = vadd.f32 %v4759, %v4797
      %v4830 = vadd.f32 %v4760, %v4798
      %v4831 = vadd.f32 %v4761, %v4799
      %v4832 = vlaneseq
      %v4833 = vshrl.u32 %v4832, 7
      %v4834 = vsub.s32 5, %v4833
      %v4835 = vrot.slane %v389, %v4834
      %v4836 = vsel %vm4550, %v4835, 0.0
      %v4837 = vsel %vm4551, %v4835, 0.0
      %v4838 = vmul.f32 %v4500, %v4836
      %v4839 = vmul.f32 %v4522, %v4837
      %v4840 = vmul.f32 %v4501, %v4836
      %v4841 = vmul.f32 %v4523, %v4837
      %v4842 = vmul.f32 %v4502, %v4836
      %v4843 = vmul.f32 %v4524, %v4837
      %v4844 = vmul.f32 %v4503, %v4836
      %v4845 = vmul.f32 %v4525, %v4837
      %v4846 = vmul.f32 %v4504, %v4836
      %v4847 = vmul.f32 %v4526, %v4837
      %v4848 = vmul.f32 %v4505, %v4836
      %v4849 = vmul.f32 %v4527, %v4837
      %v4850 = vmul.f32 %v4506, %v4836
      %v4851 = vmul.f32 %v4528, %v4837
      %v4852 = vmul.f32 %v4507, %v4836
      %v4853 = vmul.f32 %v4529, %v4837
      %v4854 = vmul.f32 %v4508, %v4836
      %v4855 = vmul.f32 %v4530, %v4837
      %v4856 = vmul.f32 %v4509, %v4836
      %v4857 = vmul.f32 %v4531, %v4837
      %v4858 = vmul.f32 %v4510, %v4836
      %v4859 = vmul.f32 %v4532, %v4837
      %v4860 = vmul.f32 %v4511, %v4836
      %v4861 = vmul.f32 %v4533, %v4837
      %v4862 = vmul.f32 %v4512, %v4836
      %v4863 = vmul.f32 %v4534, %v4837
      %v4864 = vmul.f32 %v4513, %v4836
      %v4865 = vmul.f32 %v4535, %v4837
      %v4866 = vmul.f32 %v4514, %v4836
      %v4867 = vmul.f32 %v4536, %v4837
      %v4868 = vmul.f32 %v4515, %v4836
      %v4869 = vmul.f32 %v4537, %v4837
      %v4870 = vadd.f32 %v4800, %v4838
      %v4871 = vadd.f32 %v4801, %v4839
      %v4872 = vadd.f32 %v4802, %v4840
      %v4873 = vadd.f32 %v4803, %v4841
      %v4874 = vadd.f32 %v4804, %v4842
      %v4875 = vadd.f32 %v4805, %v4843
      %v4876 = vadd.f32 %v4806, %v4844
      %v4877 = vadd.f32 %v4807, %v4845
      %v4878 = vadd.f32 %v4808, %v4846
      %v4879 = vadd.f32 %v4809, %v4847
      %v4880 = vadd.f32 %v4810, %v4848
      %v4881 = vadd.f32 %v4811, %v4849
      %v4882 = vadd.f32 %v4812, %v4850
      %v4883 = vadd.f32 %v4813, %v4851
      %v4884 = vadd.f32 %v4814, %v4852
      %v4885 = vadd.f32 %v4815, %v4853
      %v4886 = vadd.f32 %v4816, %v4854
      %v4887 = vadd.f32 %v4817, %v4855
      %v4888 = vadd.f32 %v4818, %v4856
      %v4889 = vadd.f32 %v4819, %v4857
      %v4890 = vadd.f32 %v4820, %v4858
      %v4891 = vadd.f32 %v4821, %v4859
      %v4892 = vadd.f32 %v4822, %v4860
      %v4893 = vadd.f32 %v4823, %v4861
      %v4894 = vadd.f32 %v4824, %v4862
      %v4895 = vadd.f32 %v4825, %v4863
      %v4896 = vadd.f32 %v4826, %v4864
      %v4897 = vadd.f32 %v4827, %v4865
      %v4898 = vadd.f32 %v4828, %v4866
      %v4899 = vadd.f32 %v4829, %v4867
      %v4900 = vadd.f32 %v4830, %v4868
      %v4901 = vadd.f32 %v4831, %v4869
      %v4902 = vlaneseq
      %v4903 = vshrl.u32 %v4902, 7
      %v4904 = vsub.s32 5, %v4903
      %v4905 = vrot.slane %v390, %v4904
      %v4906 = vsel %vm4550, %v4905, 0.0
      %v4907 = vsel %vm4551, %v4905, 0.0
      %v4908 = vmul.f32 %v4501, %v4906
      %v4909 = vmul.f32 %v4523, %v4907
      %v4910 = vmul.f32 %v4502, %v4906
      %v4911 = vmul.f32 %v4524, %v4907
      %v4912 = vmul.f32 %v4503, %v4906
      %v4913 = vmul.f32 %v4525, %v4907
      %v4914 = vmul.f32 %v4504, %v4906
      %v4915 = vmul.f32 %v4526, %v4907
      %v4916 = vmul.f32 %v4505, %v4906
      %v4917 = vmul.f32 %v4527, %v4907
      %v4918 = vmul.f32 %v4506, %v4906
      %v4919 = vmul.f32 %v4528, %v4907
      %v4920 = vmul.f32 %v4507, %v4906
      %v4921 = vmul.f32 %v4529, %v4907
      %v4922 = vmul.f32 %v4508, %v4906
      %v4923 = vmul.f32 %v4530, %v4907
      %v4924 = vmul.f32 %v4509, %v4906
      %v4925 = vmul.f32 %v4531, %v4907
      %v4926 = vmul.f32 %v4510, %v4906
      %v4927 = vmul.f32 %v4532, %v4907
      %v4928 = vmul.f32 %v4511, %v4906
      %v4929 = vmul.f32 %v4533, %v4907
      %v4930 = vmul.f32 %v4512, %v4906
      %v4931 = vmul.f32 %v4534, %v4907
      %v4932 = vmul.f32 %v4513, %v4906
      %v4933 = vmul.f32 %v4535, %v4907
      %v4934 = vmul.f32 %v4514, %v4906
      %v4935 = vmul.f32 %v4536, %v4907
      %v4936 = vmul.f32 %v4515, %v4906
      %v4937 = vmul.f32 %v4537, %v4907
      %v4938 = vmul.f32 %v4516, %v4906
      %v4939 = vmul.f32 %v4538, %v4907
      %v4940 = vadd.f32 %v4870, %v4908
      %v4941 = vadd.f32 %v4871, %v4909
      %v4942 = vadd.f32 %v4872, %v4910
      %v4943 = vadd.f32 %v4873, %v4911
      %v4944 = vadd.f32 %v4874, %v4912
      %v4945 = vadd.f32 %v4875, %v4913
      %v4946 = vadd.f32 %v4876, %v4914
      %v4947 = vadd.f32 %v4877, %v4915
      %v4948 = vadd.f32 %v4878, %v4916
      %v4949 = vadd.f32 %v4879, %v4917
      %v4950 = vadd.f32 %v4880, %v4918
      %v4951 = vadd.f32 %v4881, %v4919
      %v4952 = vadd.f32 %v4882, %v4920
      %v4953 = vadd.f32 %v4883, %v4921
      %v4954 = vadd.f32 %v4884, %v4922
      %v4955 = vadd.f32 %v4885, %v4923
      %v4956 = vadd.f32 %v4886, %v4924
      %v4957 = vadd.f32 %v4887, %v4925
      %v4958 = vadd.f32 %v4888, %v4926
      %v4959 = vadd.f32 %v4889, %v4927
      %v4960 = vadd.f32 %v4890, %v4928
      %v4961 = vadd.f32 %v4891, %v4929
      %v4962 = vadd.f32 %v4892, %v4930
      %v4963 = vadd.f32 %v4893, %v4931
      %v4964 = vadd.f32 %v4894, %v4932
      %v4965 = vadd.f32 %v4895, %v4933
      %v4966 = vadd.f32 %v4896, %v4934
      %v4967 = vadd.f32 %v4897, %v4935
      %v4968 = vadd.f32 %v4898, %v4936
      %v4969 = vadd.f32 %v4899, %v4937
      %v4970 = vadd.f32 %v4900, %v4938
      %v4971 = vadd.f32 %v4901, %v4939
      %v4972 = vlaneseq
      %v4973 = vshrl.u32 %v4972, 7
      %v4974 = vsub.s32 5, %v4973
      %v4975 = vrot.slane %v391, %v4974
      %v4976 = vsel %vm4550, %v4975, 0.0
      %v4977 = vsel %vm4551, %v4975, 0.0
      %v4978 = vmul.f32 %v4502, %v4976
      %v4979 = vmul.f32 %v4524, %v4977
      %v4980 = vmul.f32 %v4503, %v4976
      %v4981 = vmul.f32 %v4525, %v4977
      %v4982 = vmul.f32 %v4504, %v4976
      %v4983 = vmul.f32 %v4526, %v4977
      %v4984 = vmul.f32 %v4505, %v4976
      %v4985 = vmul.f32 %v4527, %v4977
      %v4986 = vmul.f32 %v4506, %v4976
      %v4987 = vmul.f32 %v4528, %v4977
      %v4988 = vmul.f32 %v4507, %v4976
      %v4989 = vmul.f32 %v4529, %v4977
      %v4990 = vmul.f32 %v4508, %v4976
      %v4991 = vmul.f32 %v4530, %v4977
      %v4992 = vmul.f32 %v4509, %v4976
      %v4993 = vmul.f32 %v4531, %v4977
      %v4994 = vmul.f32 %v4510, %v4976
      %v4995 = vmul.f32 %v4532, %v4977
      %v4996 = vmul.f32 %v4511, %v4976
      %v4997 = vmul.f32 %v4533, %v4977
      %v4998 = vmul.f32 %v4512, %v4976
      %v4999 = vmul.f32 %v4534, %v4977
      %v5000 = vmul.f32 %v4513, %v4976
      %v5001 = vmul.f32 %v4535, %v4977
      %v5002 = vmul.f32 %v4514, %v4976
      %v5003 = vmul.f32 %v4536, %v4977
      %v5004 = vmul.f32 %v4515, %v4976
      %v5005 = vmul.f32 %v4537, %v4977
      %v5006 = vmul.f32 %v4516, %v4976
      %v5007 = vmul.f32 %v4538, %v4977
      %v5008 = vmul.f32 %v4517, %v4976
      %v5009 = vmul.f32 %v4539, %v4977
      %v5010 = vadd.f32 %v4940, %v4978
      %v5011 = vadd.f32 %v4941, %v4979
      %v5012 = vadd.f32 %v4942, %v4980
      %v5013 = vadd.f32 %v4943, %v4981
      %v5014 = vadd.f32 %v4944, %v4982
      %v5015 = vadd.f32 %v4945, %v4983
      %v5016 = vadd.f32 %v4946, %v4984
      %v5017 = vadd.f32 %v4947, %v4985
      %v5018 = vadd.f32 %v4948, %v4986
      %v5019 = vadd.f32 %v4949, %v4987
      %v5020 = vadd.f32 %v4950, %v4988
      %v5021 = vadd.f32 %v4951, %v4989
      %v5022 = vadd.f32 %v4952, %v4990
      %v5023 = vadd.f32 %v4953, %v4991
      %v5024 = vadd.f32 %v4954, %v4992
      %v5025 = vadd.f32 %v4955, %v4993
      %v5026 = vadd.f32 %v4956, %v4994
      %v5027 = vadd.f32 %v4957, %v4995
      %v5028 = vadd.f32 %v4958, %v4996
      %v5029 = vadd.f32 %v4959, %v4997
      %v5030 = vadd.f32 %v4960, %v4998
      %v5031 = vadd.f32 %v4961, %v4999
      %v5032 = vadd.f32 %v4962, %v5000
      %v5033 = vadd.f32 %v4963, %v5001
      %v5034 = vadd.f32 %v4964, %v5002
      %v5035 = vadd.f32 %v4965, %v5003
      %v5036 = vadd.f32 %v4966, %v5004
      %v5037 = vadd.f32 %v4967, %v5005
      %v5038 = vadd.f32 %v4968, %v5006
      %v5039 = vadd.f32 %v4969, %v5007
      %v5040 = vadd.f32 %v4970, %v5008
      %v5041 = vadd.f32 %v4971, %v5009
      %v5042 = vrot.slane %v1593, 3
      %v5043 = vrot.slane %v1595, 3
      %v5044 = vrot.slane %v1597, 3
      %v5045 = vrot.slane %v1599, 3
      %v5046 = vrot.slane %v1601, 3
      %v5047 = vrot.slane %v1603, 3
      %v5048 = vrot.slane %v1605, 3
      %v5049 = vrot.slane %v1607, 3
      %v5050 = vrot.slane %v1609, 3
      %v5051 = vrot.slane %v1611, 3
      %v5052 = vrot.slane %v1613, 3
      %v5053 = vrot.slane %v1615, 3
      %v5054 = vrot.slane %v1617, 3
      %v5055 = vrot.slane %v1619, 3
      %v5056 = vrot.slane %v1621, 3
      %v5057 = vrot.slane %v1623, 3
      %v5058 = vrot.slane %v1625, 3
      %v5059 = vrot.slane %v1627, 3
      %v5060 = vrot.slane %v1629, 3
      %v5061 = vrot.slane %v1631, 3
      %v5062 = vrot.slane %v1633, 3
      %v5063 = vrot.slane %v1635, 3
      %v5064 = vrot.slane %v1594, 3
      %v5065 = vrot.slane %v1596, 3
      %v5066 = vrot.slane %v1598, 3
      %v5067 = vrot.slane %v1600, 3
      %v5068 = vrot.slane %v1602, 3
      %v5069 = vrot.slane %v1604, 3
      %v5070 = vrot.slane %v1606, 3
      %v5071 = vrot.slane %v1608, 3
      %v5072 = vrot.slane %v1610, 3
      %v5073 = vrot.slane %v1612, 3
      %v5074 = vrot.slane %v1614, 3
      %v5075 = vrot.slane %v1616, 3
      %v5076 = vrot.slane %v1618, 3
      %v5077 = vrot.slane %v1620, 3
      %v5078 = vrot.slane %v1622, 3
      %v5079 = vrot.slane %v1624, 3
      %v5080 = vrot.slane %v1626, 3
      %v5081 = vrot.slane %v1628, 3
      %v5082 = vrot.slane %v1630, 3
      %v5083 = vrot.slane %v1632, 3
      %v5084 = vrot.slane %v1634, 3
      %v5085 = vrot.slane %v1636, 3
      %vm5086 = vcmp.lt.s32.totalorder %v393, 5
      %v5087 = vsel %vm5086, %v5042, %v5064
      %v5088 = vsel %vm5086, %v5043, %v5065
      %v5089 = vsel %vm5086, %v5044, %v5066
      %v5090 = vsel %vm5086, %v5045, %v5067
      %v5091 = vsel %vm5086, %v5046, %v5068
      %v5092 = vsel %vm5086, %v5047, %v5069
      %v5093 = vsel %vm5086, %v5048, %v5070
      %v5094 = vsel %vm5086, %v5049, %v5071
      %v5095 = vsel %vm5086, %v5050, %v5072
      %v5096 = vsel %vm5086, %v5051, %v5073
      %v5097 = vsel %vm5086, %v5052, %v5074
      %v5098 = vsel %vm5086, %v5053, %v5075
      %v5099 = vsel %vm5086, %v5054, %v5076
      %v5100 = vsel %vm5086, %v5055, %v5077
      %v5101 = vsel %vm5086, %v5056, %v5078
      %v5102 = vsel %vm5086, %v5057, %v5079
      %v5103 = vsel %vm5086, %v5058, %v5080
      %v5104 = vsel %vm5086, %v5059, %v5081
      %v5105 = vsel %vm5086, %v5060, %v5082
      %v5106 = vsel %vm5086, %v5061, %v5083
      %v5107 = vsel %vm5086, %v5062, %v5084
      %v5108 = vsel %vm5086, %v5063, %v5085
      %v5109 = vsel %vm5086, %v5064, %v5042
      %v5110 = vsel %vm5086, %v5065, %v5043
      %v5111 = vsel %vm5086, %v5066, %v5044
      %v5112 = vsel %vm5086, %v5067, %v5045
      %v5113 = vsel %vm5086, %v5068, %v5046
      %v5114 = vsel %vm5086, %v5069, %v5047
      %v5115 = vsel %vm5086, %v5070, %v5048
      %v5116 = vsel %vm5086, %v5071, %v5049
      %v5117 = vsel %vm5086, %v5072, %v5050
      %v5118 = vsel %vm5086, %v5073, %v5051
      %v5119 = vsel %vm5086, %v5074, %v5052
      %v5120 = vsel %vm5086, %v5075, %v5053
      %v5121 = vsel %vm5086, %v5076, %v5054
      %v5122 = vsel %vm5086, %v5077, %v5055
      %v5123 = vsel %vm5086, %v5078, %v5056
      %v5124 = vsel %vm5086, %v5079, %v5057
      %v5125 = vsel %vm5086, %v5080, %v5058
      %v5126 = vsel %vm5086, %v5081, %v5059
      %v5127 = vsel %vm5086, %v5082, %v5060
      %v5128 = vsel %vm5086, %v5083, %v5061
      %v5129 = vsel %vm5086, %v5084, %v5062
      %v5130 = vsel %vm5086, %v5085, %v5063
      %v5131 = vadd.s32 %v393, 3
      %v5132 = vadd.s32 %v394, 3
      %vm5133 = vcmp.ge.s32.totalorder %v5131, 0
      %vm5134 = vcmp.ge.s32.totalorder %v5132, 0
      %vm5135 = vcmp.lt.s32.totalorder %v5131, 16
      %vm5136 = vcmp.lt.s32.totalorder %v5132, 16
      %vm5137 = vmand %vm5133, %vm5135
      %vm5138 = vmand %vm5134, %vm5136
      %v5139 = vsel %vm5137, 1, 0
      %v5140 = vsel %vm5138, 1, 0
      %vm5141 = vcmp.eq.s32.totalorder %v5139, 1
      %vm5142 = vcmp.eq.s32.totalorder %v5140, 1
      %v5143 = vlaneseq
      %v5144 = vshrl.u32 %v5143, 7
      %v5145 = vsub.s32 6, %v5144
      %v5146 = vrot.slane %v385, %v5145
      %v5147 = vsel %vm5141, %v5146, 0.0
      %v5148 = vsel %vm5142, %v5146, 0.0
      %v5149 = vmul.f32 %v5087, %v5147
      %v5150 = vmul.f32 %v5109, %v5148
      %v5151 = vmul.f32 %v5088, %v5147
      %v5152 = vmul.f32 %v5110, %v5148
      %v5153 = vmul.f32 %v5089, %v5147
      %v5154 = vmul.f32 %v5111, %v5148
      %v5155 = vmul.f32 %v5090, %v5147
      %v5156 = vmul.f32 %v5112, %v5148
      %v5157 = vmul.f32 %v5091, %v5147
      %v5158 = vmul.f32 %v5113, %v5148
      %v5159 = vmul.f32 %v5092, %v5147
      %v5160 = vmul.f32 %v5114, %v5148
      %v5161 = vmul.f32 %v5093, %v5147
      %v5162 = vmul.f32 %v5115, %v5148
      %v5163 = vmul.f32 %v5094, %v5147
      %v5164 = vmul.f32 %v5116, %v5148
      %v5165 = vmul.f32 %v5095, %v5147
      %v5166 = vmul.f32 %v5117, %v5148
      %v5167 = vmul.f32 %v5096, %v5147
      %v5168 = vmul.f32 %v5118, %v5148
      %v5169 = vmul.f32 %v5097, %v5147
      %v5170 = vmul.f32 %v5119, %v5148
      %v5171 = vmul.f32 %v5098, %v5147
      %v5172 = vmul.f32 %v5120, %v5148
      %v5173 = vmul.f32 %v5099, %v5147
      %v5174 = vmul.f32 %v5121, %v5148
      %v5175 = vmul.f32 %v5100, %v5147
      %v5176 = vmul.f32 %v5122, %v5148
      %v5177 = vmul.f32 %v5101, %v5147
      %v5178 = vmul.f32 %v5123, %v5148
      %v5179 = vmul.f32 %v5102, %v5147
      %v5180 = vmul.f32 %v5124, %v5148
      %v5181 = vadd.f32 %v5010, %v5149
      %v5182 = vadd.f32 %v5011, %v5150
      %v5183 = vadd.f32 %v5012, %v5151
      %v5184 = vadd.f32 %v5013, %v5152
      %v5185 = vadd.f32 %v5014, %v5153
      %v5186 = vadd.f32 %v5015, %v5154
      %v5187 = vadd.f32 %v5016, %v5155
      %v5188 = vadd.f32 %v5017, %v5156
      %v5189 = vadd.f32 %v5018, %v5157
      %v5190 = vadd.f32 %v5019, %v5158
      %v5191 = vadd.f32 %v5020, %v5159
      %v5192 = vadd.f32 %v5021, %v5160
      %v5193 = vadd.f32 %v5022, %v5161
      %v5194 = vadd.f32 %v5023, %v5162
      %v5195 = vadd.f32 %v5024, %v5163
      %v5196 = vadd.f32 %v5025, %v5164
      %v5197 = vadd.f32 %v5026, %v5165
      %v5198 = vadd.f32 %v5027, %v5166
      %v5199 = vadd.f32 %v5028, %v5167
      %v5200 = vadd.f32 %v5029, %v5168
      %v5201 = vadd.f32 %v5030, %v5169
      %v5202 = vadd.f32 %v5031, %v5170
      %v5203 = vadd.f32 %v5032, %v5171
      %v5204 = vadd.f32 %v5033, %v5172
      %v5205 = vadd.f32 %v5034, %v5173
      %v5206 = vadd.f32 %v5035, %v5174
      %v5207 = vadd.f32 %v5036, %v5175
      %v5208 = vadd.f32 %v5037, %v5176
      %v5209 = vadd.f32 %v5038, %v5177
      %v5210 = vadd.f32 %v5039, %v5178
      %v5211 = vadd.f32 %v5040, %v5179
      %v5212 = vadd.f32 %v5041, %v5180
      %v5213 = vlaneseq
      %v5214 = vshrl.u32 %v5213, 7
      %v5215 = vsub.s32 6, %v5214
      %v5216 = vrot.slane %v386, %v5215
      %v5217 = vsel %vm5141, %v5216, 0.0
      %v5218 = vsel %vm5142, %v5216, 0.0
      %v5219 = vmul.f32 %v5088, %v5217
      %v5220 = vmul.f32 %v5110, %v5218
      %v5221 = vmul.f32 %v5089, %v5217
      %v5222 = vmul.f32 %v5111, %v5218
      %v5223 = vmul.f32 %v5090, %v5217
      %v5224 = vmul.f32 %v5112, %v5218
      %v5225 = vmul.f32 %v5091, %v5217
      %v5226 = vmul.f32 %v5113, %v5218
      %v5227 = vmul.f32 %v5092, %v5217
      %v5228 = vmul.f32 %v5114, %v5218
      %v5229 = vmul.f32 %v5093, %v5217
      %v5230 = vmul.f32 %v5115, %v5218
      %v5231 = vmul.f32 %v5094, %v5217
      %v5232 = vmul.f32 %v5116, %v5218
      %v5233 = vmul.f32 %v5095, %v5217
      %v5234 = vmul.f32 %v5117, %v5218
      %v5235 = vmul.f32 %v5096, %v5217
      %v5236 = vmul.f32 %v5118, %v5218
      %v5237 = vmul.f32 %v5097, %v5217
      %v5238 = vmul.f32 %v5119, %v5218
      %v5239 = vmul.f32 %v5098, %v5217
      %v5240 = vmul.f32 %v5120, %v5218
      %v5241 = vmul.f32 %v5099, %v5217
      %v5242 = vmul.f32 %v5121, %v5218
      %v5243 = vmul.f32 %v5100, %v5217
      %v5244 = vmul.f32 %v5122, %v5218
      %v5245 = vmul.f32 %v5101, %v5217
      %v5246 = vmul.f32 %v5123, %v5218
      %v5247 = vmul.f32 %v5102, %v5217
      %v5248 = vmul.f32 %v5124, %v5218
      %v5249 = vmul.f32 %v5103, %v5217
      %v5250 = vmul.f32 %v5125, %v5218
      %v5251 = vadd.f32 %v5181, %v5219
      %v5252 = vadd.f32 %v5182, %v5220
      %v5253 = vadd.f32 %v5183, %v5221
      %v5254 = vadd.f32 %v5184, %v5222
      %v5255 = vadd.f32 %v5185, %v5223
      %v5256 = vadd.f32 %v5186, %v5224
      %v5257 = vadd.f32 %v5187, %v5225
      %v5258 = vadd.f32 %v5188, %v5226
      %v5259 = vadd.f32 %v5189, %v5227
      %v5260 = vadd.f32 %v5190, %v5228
      %v5261 = vadd.f32 %v5191, %v5229
      %v5262 = vadd.f32 %v5192, %v5230
      %v5263 = vadd.f32 %v5193, %v5231
      %v5264 = vadd.f32 %v5194, %v5232
      %v5265 = vadd.f32 %v5195, %v5233
      %v5266 = vadd.f32 %v5196, %v5234
      %v5267 = vadd.f32 %v5197, %v5235
      %v5268 = vadd.f32 %v5198, %v5236
      %v5269 = vadd.f32 %v5199, %v5237
      %v5270 = vadd.f32 %v5200, %v5238
      %v5271 = vadd.f32 %v5201, %v5239
      %v5272 = vadd.f32 %v5202, %v5240
      %v5273 = vadd.f32 %v5203, %v5241
      %v5274 = vadd.f32 %v5204, %v5242
      %v5275 = vadd.f32 %v5205, %v5243
      %v5276 = vadd.f32 %v5206, %v5244
      %v5277 = vadd.f32 %v5207, %v5245
      %v5278 = vadd.f32 %v5208, %v5246
      %v5279 = vadd.f32 %v5209, %v5247
      %v5280 = vadd.f32 %v5210, %v5248
      %v5281 = vadd.f32 %v5211, %v5249
      %v5282 = vadd.f32 %v5212, %v5250
      %v5283 = vlaneseq
      %v5284 = vshrl.u32 %v5283, 7
      %v5285 = vsub.s32 6, %v5284
      %v5286 = vrot.slane %v387, %v5285
      %v5287 = vsel %vm5141, %v5286, 0.0
      %v5288 = vsel %vm5142, %v5286, 0.0
      %v5289 = vmul.f32 %v5089, %v5287
      %v5290 = vmul.f32 %v5111, %v5288
      %v5291 = vmul.f32 %v5090, %v5287
      %v5292 = vmul.f32 %v5112, %v5288
      %v5293 = vmul.f32 %v5091, %v5287
      %v5294 = vmul.f32 %v5113, %v5288
      %v5295 = vmul.f32 %v5092, %v5287
      %v5296 = vmul.f32 %v5114, %v5288
      %v5297 = vmul.f32 %v5093, %v5287
      %v5298 = vmul.f32 %v5115, %v5288
      %v5299 = vmul.f32 %v5094, %v5287
      %v5300 = vmul.f32 %v5116, %v5288
      %v5301 = vmul.f32 %v5095, %v5287
      %v5302 = vmul.f32 %v5117, %v5288
      %v5303 = vmul.f32 %v5096, %v5287
      %v5304 = vmul.f32 %v5118, %v5288
      %v5305 = vmul.f32 %v5097, %v5287
      %v5306 = vmul.f32 %v5119, %v5288
      %v5307 = vmul.f32 %v5098, %v5287
      %v5308 = vmul.f32 %v5120, %v5288
      %v5309 = vmul.f32 %v5099, %v5287
      %v5310 = vmul.f32 %v5121, %v5288
      %v5311 = vmul.f32 %v5100, %v5287
      %v5312 = vmul.f32 %v5122, %v5288
      %v5313 = vmul.f32 %v5101, %v5287
      %v5314 = vmul.f32 %v5123, %v5288
      %v5315 = vmul.f32 %v5102, %v5287
      %v5316 = vmul.f32 %v5124, %v5288
      %v5317 = vmul.f32 %v5103, %v5287
      %v5318 = vmul.f32 %v5125, %v5288
      %v5319 = vmul.f32 %v5104, %v5287
      %v5320 = vmul.f32 %v5126, %v5288
      %v5321 = vadd.f32 %v5251, %v5289
      %v5322 = vadd.f32 %v5252, %v5290
      %v5323 = vadd.f32 %v5253, %v5291
      %v5324 = vadd.f32 %v5254, %v5292
      %v5325 = vadd.f32 %v5255, %v5293
      %v5326 = vadd.f32 %v5256, %v5294
      %v5327 = vadd.f32 %v5257, %v5295
      %v5328 = vadd.f32 %v5258, %v5296
      %v5329 = vadd.f32 %v5259, %v5297
      %v5330 = vadd.f32 %v5260, %v5298
      %v5331 = vadd.f32 %v5261, %v5299
      %v5332 = vadd.f32 %v5262, %v5300
      %v5333 = vadd.f32 %v5263, %v5301
      %v5334 = vadd.f32 %v5264, %v5302
      %v5335 = vadd.f32 %v5265, %v5303
      %v5336 = vadd.f32 %v5266, %v5304
      %v5337 = vadd.f32 %v5267, %v5305
      %v5338 = vadd.f32 %v5268, %v5306
      %v5339 = vadd.f32 %v5269, %v5307
      %v5340 = vadd.f32 %v5270, %v5308
      %v5341 = vadd.f32 %v5271, %v5309
      %v5342 = vadd.f32 %v5272, %v5310
      %v5343 = vadd.f32 %v5273, %v5311
      %v5344 = vadd.f32 %v5274, %v5312
      %v5345 = vadd.f32 %v5275, %v5313
      %v5346 = vadd.f32 %v5276, %v5314
      %v5347 = vadd.f32 %v5277, %v5315
      %v5348 = vadd.f32 %v5278, %v5316
      %v5349 = vadd.f32 %v5279, %v5317
      %v5350 = vadd.f32 %v5280, %v5318
      %v5351 = vadd.f32 %v5281, %v5319
      %v5352 = vadd.f32 %v5282, %v5320
      %v5353 = vlaneseq
      %v5354 = vshrl.u32 %v5353, 7
      %v5355 = vsub.s32 6, %v5354
      %v5356 = vrot.slane %v388, %v5355
      %v5357 = vsel %vm5141, %v5356, 0.0
      %v5358 = vsel %vm5142, %v5356, 0.0
      %v5359 = vmul.f32 %v5090, %v5357
      %v5360 = vmul.f32 %v5112, %v5358
      %v5361 = vmul.f32 %v5091, %v5357
      %v5362 = vmul.f32 %v5113, %v5358
      %v5363 = vmul.f32 %v5092, %v5357
      %v5364 = vmul.f32 %v5114, %v5358
      %v5365 = vmul.f32 %v5093, %v5357
      %v5366 = vmul.f32 %v5115, %v5358
      %v5367 = vmul.f32 %v5094, %v5357
      %v5368 = vmul.f32 %v5116, %v5358
      %v5369 = vmul.f32 %v5095, %v5357
      %v5370 = vmul.f32 %v5117, %v5358
      %v5371 = vmul.f32 %v5096, %v5357
      %v5372 = vmul.f32 %v5118, %v5358
      %v5373 = vmul.f32 %v5097, %v5357
      %v5374 = vmul.f32 %v5119, %v5358
      %v5375 = vmul.f32 %v5098, %v5357
      %v5376 = vmul.f32 %v5120, %v5358
      %v5377 = vmul.f32 %v5099, %v5357
      %v5378 = vmul.f32 %v5121, %v5358
      %v5379 = vmul.f32 %v5100, %v5357
      %v5380 = vmul.f32 %v5122, %v5358
      %v5381 = vmul.f32 %v5101, %v5357
      %v5382 = vmul.f32 %v5123, %v5358
      %v5383 = vmul.f32 %v5102, %v5357
      %v5384 = vmul.f32 %v5124, %v5358
      %v5385 = vmul.f32 %v5103, %v5357
      %v5386 = vmul.f32 %v5125, %v5358
      %v5387 = vmul.f32 %v5104, %v5357
      %v5388 = vmul.f32 %v5126, %v5358
      %v5389 = vmul.f32 %v5105, %v5357
      %v5390 = vmul.f32 %v5127, %v5358
      %v5391 = vadd.f32 %v5321, %v5359
      %v5392 = vadd.f32 %v5322, %v5360
      %v5393 = vadd.f32 %v5323, %v5361
      %v5394 = vadd.f32 %v5324, %v5362
      %v5395 = vadd.f32 %v5325, %v5363
      %v5396 = vadd.f32 %v5326, %v5364
      %v5397 = vadd.f32 %v5327, %v5365
      %v5398 = vadd.f32 %v5328, %v5366
      %v5399 = vadd.f32 %v5329, %v5367
      %v5400 = vadd.f32 %v5330, %v5368
      %v5401 = vadd.f32 %v5331, %v5369
      %v5402 = vadd.f32 %v5332, %v5370
      %v5403 = vadd.f32 %v5333, %v5371
      %v5404 = vadd.f32 %v5334, %v5372
      %v5405 = vadd.f32 %v5335, %v5373
      %v5406 = vadd.f32 %v5336, %v5374
      %v5407 = vadd.f32 %v5337, %v5375
      %v5408 = vadd.f32 %v5338, %v5376
      %v5409 = vadd.f32 %v5339, %v5377
      %v5410 = vadd.f32 %v5340, %v5378
      %v5411 = vadd.f32 %v5341, %v5379
      %v5412 = vadd.f32 %v5342, %v5380
      %v5413 = vadd.f32 %v5343, %v5381
      %v5414 = vadd.f32 %v5344, %v5382
      %v5415 = vadd.f32 %v5345, %v5383
      %v5416 = vadd.f32 %v5346, %v5384
      %v5417 = vadd.f32 %v5347, %v5385
      %v5418 = vadd.f32 %v5348, %v5386
      %v5419 = vadd.f32 %v5349, %v5387
      %v5420 = vadd.f32 %v5350, %v5388
      %v5421 = vadd.f32 %v5351, %v5389
      %v5422 = vadd.f32 %v5352, %v5390
      %v5423 = vlaneseq
      %v5424 = vshrl.u32 %v5423, 7
      %v5425 = vsub.s32 6, %v5424
      %v5426 = vrot.slane %v389, %v5425
      %v5427 = vsel %vm5141, %v5426, 0.0
      %v5428 = vsel %vm5142, %v5426, 0.0
      %v5429 = vmul.f32 %v5091, %v5427
      %v5430 = vmul.f32 %v5113, %v5428
      %v5431 = vmul.f32 %v5092, %v5427
      %v5432 = vmul.f32 %v5114, %v5428
      %v5433 = vmul.f32 %v5093, %v5427
      %v5434 = vmul.f32 %v5115, %v5428
      %v5435 = vmul.f32 %v5094, %v5427
      %v5436 = vmul.f32 %v5116, %v5428
      %v5437 = vmul.f32 %v5095, %v5427
      %v5438 = vmul.f32 %v5117, %v5428
      %v5439 = vmul.f32 %v5096, %v5427
      %v5440 = vmul.f32 %v5118, %v5428
      %v5441 = vmul.f32 %v5097, %v5427
      %v5442 = vmul.f32 %v5119, %v5428
      %v5443 = vmul.f32 %v5098, %v5427
      %v5444 = vmul.f32 %v5120, %v5428
      %v5445 = vmul.f32 %v5099, %v5427
      %v5446 = vmul.f32 %v5121, %v5428
      %v5447 = vmul.f32 %v5100, %v5427
      %v5448 = vmul.f32 %v5122, %v5428
      %v5449 = vmul.f32 %v5101, %v5427
      %v5450 = vmul.f32 %v5123, %v5428
      %v5451 = vmul.f32 %v5102, %v5427
      %v5452 = vmul.f32 %v5124, %v5428
      %v5453 = vmul.f32 %v5103, %v5427
      %v5454 = vmul.f32 %v5125, %v5428
      %v5455 = vmul.f32 %v5104, %v5427
      %v5456 = vmul.f32 %v5126, %v5428
      %v5457 = vmul.f32 %v5105, %v5427
      %v5458 = vmul.f32 %v5127, %v5428
      %v5459 = vmul.f32 %v5106, %v5427
      %v5460 = vmul.f32 %v5128, %v5428
      %v5461 = vadd.f32 %v5391, %v5429
      %v5462 = vadd.f32 %v5392, %v5430
      %v5463 = vadd.f32 %v5393, %v5431
      %v5464 = vadd.f32 %v5394, %v5432
      %v5465 = vadd.f32 %v5395, %v5433
      %v5466 = vadd.f32 %v5396, %v5434
      %v5467 = vadd.f32 %v5397, %v5435
      %v5468 = vadd.f32 %v5398, %v5436
      %v5469 = vadd.f32 %v5399, %v5437
      %v5470 = vadd.f32 %v5400, %v5438
      %v5471 = vadd.f32 %v5401, %v5439
      %v5472 = vadd.f32 %v5402, %v5440
      %v5473 = vadd.f32 %v5403, %v5441
      %v5474 = vadd.f32 %v5404, %v5442
      %v5475 = vadd.f32 %v5405, %v5443
      %v5476 = vadd.f32 %v5406, %v5444
      %v5477 = vadd.f32 %v5407, %v5445
      %v5478 = vadd.f32 %v5408, %v5446
      %v5479 = vadd.f32 %v5409, %v5447
      %v5480 = vadd.f32 %v5410, %v5448
      %v5481 = vadd.f32 %v5411, %v5449
      %v5482 = vadd.f32 %v5412, %v5450
      %v5483 = vadd.f32 %v5413, %v5451
      %v5484 = vadd.f32 %v5414, %v5452
      %v5485 = vadd.f32 %v5415, %v5453
      %v5486 = vadd.f32 %v5416, %v5454
      %v5487 = vadd.f32 %v5417, %v5455
      %v5488 = vadd.f32 %v5418, %v5456
      %v5489 = vadd.f32 %v5419, %v5457
      %v5490 = vadd.f32 %v5420, %v5458
      %v5491 = vadd.f32 %v5421, %v5459
      %v5492 = vadd.f32 %v5422, %v5460
      %v5493 = vlaneseq
      %v5494 = vshrl.u32 %v5493, 7
      %v5495 = vsub.s32 6, %v5494
      %v5496 = vrot.slane %v390, %v5495
      %v5497 = vsel %vm5141, %v5496, 0.0
      %v5498 = vsel %vm5142, %v5496, 0.0
      %v5499 = vmul.f32 %v5092, %v5497
      %v5500 = vmul.f32 %v5114, %v5498
      %v5501 = vmul.f32 %v5093, %v5497
      %v5502 = vmul.f32 %v5115, %v5498
      %v5503 = vmul.f32 %v5094, %v5497
      %v5504 = vmul.f32 %v5116, %v5498
      %v5505 = vmul.f32 %v5095, %v5497
      %v5506 = vmul.f32 %v5117, %v5498
      %v5507 = vmul.f32 %v5096, %v5497
      %v5508 = vmul.f32 %v5118, %v5498
      %v5509 = vmul.f32 %v5097, %v5497
      %v5510 = vmul.f32 %v5119, %v5498
      %v5511 = vmul.f32 %v5098, %v5497
      %v5512 = vmul.f32 %v5120, %v5498
      %v5513 = vmul.f32 %v5099, %v5497
      %v5514 = vmul.f32 %v5121, %v5498
      %v5515 = vmul.f32 %v5100, %v5497
      %v5516 = vmul.f32 %v5122, %v5498
      %v5517 = vmul.f32 %v5101, %v5497
      %v5518 = vmul.f32 %v5123, %v5498
      %v5519 = vmul.f32 %v5102, %v5497
      %v5520 = vmul.f32 %v5124, %v5498
      %v5521 = vmul.f32 %v5103, %v5497
      %v5522 = vmul.f32 %v5125, %v5498
      %v5523 = vmul.f32 %v5104, %v5497
      %v5524 = vmul.f32 %v5126, %v5498
      %v5525 = vmul.f32 %v5105, %v5497
      %v5526 = vmul.f32 %v5127, %v5498
      %v5527 = vmul.f32 %v5106, %v5497
      %v5528 = vmul.f32 %v5128, %v5498
      %v5529 = vmul.f32 %v5107, %v5497
      %v5530 = vmul.f32 %v5129, %v5498
      %v5531 = vadd.f32 %v5461, %v5499
      %v5532 = vadd.f32 %v5462, %v5500
      %v5533 = vadd.f32 %v5463, %v5501
      %v5534 = vadd.f32 %v5464, %v5502
      %v5535 = vadd.f32 %v5465, %v5503
      %v5536 = vadd.f32 %v5466, %v5504
      %v5537 = vadd.f32 %v5467, %v5505
      %v5538 = vadd.f32 %v5468, %v5506
      %v5539 = vadd.f32 %v5469, %v5507
      %v5540 = vadd.f32 %v5470, %v5508
      %v5541 = vadd.f32 %v5471, %v5509
      %v5542 = vadd.f32 %v5472, %v5510
      %v5543 = vadd.f32 %v5473, %v5511
      %v5544 = vadd.f32 %v5474, %v5512
      %v5545 = vadd.f32 %v5475, %v5513
      %v5546 = vadd.f32 %v5476, %v5514
      %v5547 = vadd.f32 %v5477, %v5515
      %v5548 = vadd.f32 %v5478, %v5516
      %v5549 = vadd.f32 %v5479, %v5517
      %v5550 = vadd.f32 %v5480, %v5518
      %v5551 = vadd.f32 %v5481, %v5519
      %v5552 = vadd.f32 %v5482, %v5520
      %v5553 = vadd.f32 %v5483, %v5521
      %v5554 = vadd.f32 %v5484, %v5522
      %v5555 = vadd.f32 %v5485, %v5523
      %v5556 = vadd.f32 %v5486, %v5524
      %v5557 = vadd.f32 %v5487, %v5525
      %v5558 = vadd.f32 %v5488, %v5526
      %v5559 = vadd.f32 %v5489, %v5527
      %v5560 = vadd.f32 %v5490, %v5528
      %v5561 = vadd.f32 %v5491, %v5529
      %v5562 = vadd.f32 %v5492, %v5530
      %v5563 = vlaneseq
      %v5564 = vshrl.u32 %v5563, 7
      %v5565 = vsub.s32 6, %v5564
      %v5566 = vrot.slane %v391, %v5565
      %v5567 = vsel %vm5141, %v5566, 0.0
      %v5568 = vsel %vm5142, %v5566, 0.0
      %v5569 = vmul.f32 %v5093, %v5567
      %v5570 = vmul.f32 %v5115, %v5568
      %v5571 = vmul.f32 %v5094, %v5567
      %v5572 = vmul.f32 %v5116, %v5568
      %v5573 = vmul.f32 %v5095, %v5567
      %v5574 = vmul.f32 %v5117, %v5568
      %v5575 = vmul.f32 %v5096, %v5567
      %v5576 = vmul.f32 %v5118, %v5568
      %v5577 = vmul.f32 %v5097, %v5567
      %v5578 = vmul.f32 %v5119, %v5568
      %v5579 = vmul.f32 %v5098, %v5567
      %v5580 = vmul.f32 %v5120, %v5568
      %v5581 = vmul.f32 %v5099, %v5567
      %v5582 = vmul.f32 %v5121, %v5568
      %v5583 = vmul.f32 %v5100, %v5567
      %v5584 = vmul.f32 %v5122, %v5568
      %v5585 = vmul.f32 %v5101, %v5567
      %v5586 = vmul.f32 %v5123, %v5568
      %v5587 = vmul.f32 %v5102, %v5567
      %v5588 = vmul.f32 %v5124, %v5568
      %v5589 = vmul.f32 %v5103, %v5567
      %v5590 = vmul.f32 %v5125, %v5568
      %v5591 = vmul.f32 %v5104, %v5567
      %v5592 = vmul.f32 %v5126, %v5568
      %v5593 = vmul.f32 %v5105, %v5567
      %v5594 = vmul.f32 %v5127, %v5568
      %v5595 = vmul.f32 %v5106, %v5567
      %v5596 = vmul.f32 %v5128, %v5568
      %v5597 = vmul.f32 %v5107, %v5567
      %v5598 = vmul.f32 %v5129, %v5568
      %v5599 = vmul.f32 %v5108, %v5567
      %v5600 = vmul.f32 %v5130, %v5568
      %v5601 = vadd.f32 %v5531, %v5569
      %v5602 = vadd.f32 %v5532, %v5570
      %v5603 = vadd.f32 %v5533, %v5571
      %v5604 = vadd.f32 %v5534, %v5572
      %v5605 = vadd.f32 %v5535, %v5573
      %v5606 = vadd.f32 %v5536, %v5574
      %v5607 = vadd.f32 %v5537, %v5575
      %v5608 = vadd.f32 %v5538, %v5576
      %v5609 = vadd.f32 %v5539, %v5577
      %v5610 = vadd.f32 %v5540, %v5578
      %v5611 = vadd.f32 %v5541, %v5579
      %v5612 = vadd.f32 %v5542, %v5580
      %v5613 = vadd.f32 %v5543, %v5581
      %v5614 = vadd.f32 %v5544, %v5582
      %v5615 = vadd.f32 %v5545, %v5583
      %v5616 = vadd.f32 %v5546, %v5584
      %v5617 = vadd.f32 %v5547, %v5585
      %v5618 = vadd.f32 %v5548, %v5586
      %v5619 = vadd.f32 %v5549, %v5587
      %v5620 = vadd.f32 %v5550, %v5588
      %v5621 = vadd.f32 %v5551, %v5589
      %v5622 = vadd.f32 %v5552, %v5590
      %v5623 = vadd.f32 %v5553, %v5591
      %v5624 = vadd.f32 %v5554, %v5592
      %v5625 = vadd.f32 %v5555, %v5593
      %v5626 = vadd.f32 %v5556, %v5594
      %v5627 = vadd.f32 %v5557, %v5595
      %v5628 = vadd.f32 %v5558, %v5596
      %v5629 = vadd.f32 %v5559, %v5597
      %v5630 = vadd.f32 %v5560, %v5598
      %v5631 = vadd.f32 %v5561, %v5599
      %v5632 = vadd.f32 %v5562, %v5600
      %v5633 = vld [vmem:[%s4] sm:$0xf]
      %v5634 = vld [vmem:[%s5] sm:$0x1]
      %v5636 = vlaneseq
      %v5637 = vshrl.u32 %v5636, 7
      %v5638 = vsub.s32 0, %v5637
      %v5639 = vrot.slane %v5634, %v5638
      %vm5641 = vcmask 31744
      %v5643 = vsel %vm5641, %v5601, 0
      %v5646 = vsel %vm5641, %v5602, 0
      %v5649 = vsel %vm5641, %v5603, 0
      %v5652 = vsel %vm5641, %v5604, 0
      %v5655 = vsel %vm5641, %v5605, 0
      %v5658 = vsel %vm5641, %v5606, 0
      %v5661 = vsel %vm5641, %v5607, 0
      %v5664 = vsel %vm5641, %v5608, 0
      %v5667 = vsel %vm5641, %v5609, 0
      %v5670 = vsel %vm5641, %v5610, 0
      %v5673 = vsel %vm5641, %v5611, 0
      %v5676 = vsel %vm5641, %v5612, 0
      %v5679 = vsel %vm5641, %v5613, 0
      %v5682 = vsel %vm5641, %v5614, 0
      %v5685 = vsel %vm5641, %v5615, 0
      %v5688 = vsel %vm5641, %v5616, 0
      %v5691 = vsel %vm5641, %v5617, 0
      %v5694 = vsel %vm5641, %v5618, 0
      %v5697 = vsel %vm5641, %v5619, 0
      %v5700 = vsel %vm5641, %v5620, 0
      %v5703 = vsel %vm5641, %v5621, 0
      %v5706 = vsel %vm5641, %v5622, 0
      %v5709 = vsel %vm5641, %v5623, 0
      %v5712 = vsel %vm5641, %v5624, 0
      %v5715 = vsel %vm5641, %v5625, 0
      %v5718 = vsel %vm5641, %v5626, 0
      %v5721 = vsel %vm5641, %v5627, 0
      %v5724 = vsel %vm5641, %v5628, 0
      %v5727 = vsel %vm5641, %v5629, 0
      %v5730 = vsel %vm5641, %v5630, 0
      %v5733 = vsel %vm5641, %v5631, 0
      %v5736 = vsel %vm5641, %v5632, 0
      %vm5738 = vcmask 1043456
      %v5740 = vsel %vm5738, %v5633, 0
      %5742 = vmatprep.subr.mxu0 0.0
      %5743 = vmatpush1.msra.mxu0 0.0
      %5744 = vmatprep.subr.mxu0 0.0
      %5745 = vmatpush1.msra.mxu0 0.0
      %5746 = vmatprep.subr.mxu0 0.0
      %5747 = vmatpush1.msra.mxu0 0.0
      %5748 = vmatprep.subr.mxu0 0.0
      %5749 = vmatpush1.msra.mxu0 0.0
      %5750 = vmatprep.subr.mxu0 0.0
      %5751 = vmatpush1.msra.mxu0 0.0
      %5752 = vmatprep.subr.mxu0 0.0
      %5753 = vmatpush1.msra.mxu0 0.0
      %5754 = vmatprep.subr.mxu0 0.0
      %5755 = vmatpush1.msra.mxu0 0.0
      %5756 = vmatprep.subr.mxu0 0.0
      %5757 = vmatpush1.msra.mxu0 0.0
      %5758 = vmatprep.subr.mxu0 0.0
      %5759 = vmatpush1.msra.mxu0 0.0
      %5760 = vmatprep.subr.mxu0 0.0
      %5761 = vmatpush1.msra.mxu0 0.0
      %5762 = vmatprep.subr.mxu0 0.0
      %5763 = vmatpush1.msra.mxu0 0.0
      %5764 = vmatprep.subr.mxu0 0.0
      %5765 = vmatpush1.msra.mxu0 0.0
      %5766 = vmatprep.subr.mxu0 0.0
      %5767 = vmatpush1.msra.mxu0 0.0
      %5768 = vmatprep.subr.mxu0 0.0
      %5769 = vmatpush1.msra.mxu0 0.0
      %5770 = vmatprep.subr.mxu0 0.0
      %5771 = vmatpush1.msra.mxu0 0.0
      %5772 = vmatprep.subr.mxu0 0.0
      %5773 = vmatpush1.msra.mxu0 %v5740
      %5774 = vmatprep.subr.mxu0 0.0
      %5775 = vmatpush2.msra.mxu0 0.0
      %5776 = vmatprep.subr.mxu0 0.0
      %5777 = vmatpush2.msra.mxu0 0.0
      %5778 = vmatprep.subr.mxu0 0.0
      %5779 = vmatpush2.msra.mxu0 0.0
      %5780 = vmatprep.subr.mxu0 0.0
      %5781 = vmatpush2.msra.mxu0 0.0
      %5782 = vmatprep.subr.mxu0 0.0
      %5783 = vmatpush2.msra.mxu0 0.0
      %5784 = vmatprep.subr.mxu0 0.0
      %5785 = vmatpush2.msra.mxu0 0.0
      %5786 = vmatprep.subr.mxu0 0.0
      %5787 = vmatpush2.msra.mxu0 0.0
      %5788 = vmatprep.subr.mxu0 0.0
      %5789 = vmatpush2.msra.mxu0 0.0
      %5790 = vmatprep.subr.mxu0 0.0
      %5791 = vmatpush2.msra.mxu0 0.0
      %5792 = vmatprep.subr.mxu0 0.0
      %5793 = vmatpush2.msra.mxu0 0.0
      %5794 = vmatprep.subr.mxu0 0.0
      %5795 = vmatpush2.msra.mxu0 0.0
      %5796 = vmatprep.subr.mxu0 0.0
      %5797 = vmatpush2.msra.mxu0 0.0
      %5798 = vmatprep.subr.mxu0 0.0
      %5799 = vmatpush2.msra.mxu0 0.0
      %5800 = vmatprep.subr.mxu0 0.0
      %5801 = vmatpush2.msra.mxu0 0.0
      %5802 = vmatprep.subr.mxu0 0.0
      %5803 = vmatpush2.msra.mxu0 0.0
      %5804 = vmatprep.subr.mxu0 0.0
      %5805 = vmatpush2.msra.mxu0 0.0
      %5806 = vmatprep.mubr.f32.mxu0 0.0
      %5807 = vmatmul.mubr.f32.gmra.mxu0 %v5643
      %v5808 = vpop.f32.mrf.mxu0
      %v5809 = vadd.f32 %v5639, %v5808
      %v5810 = vpop.f32.mrf.mxu0
      %5811 = vmatprep.mubr.f32.mxu0 0.0
      %5812 = vmatmul.mubr.f32.gmra.mxu0 %v5646
      %v5813 = vpop.f32.mrf.mxu0
      %v5814 = vadd.f32 %v5639, %v5813
      %v5815 = vpop.f32.mrf.mxu0
      %5816 = vmatprep.mubr.f32.mxu0 0.0
      %5817 = vmatmul.mubr.f32.gmra.mxu0 %v5649
      %v5818 = vpop.f32.mrf.mxu0
      %v5819 = vadd.f32 %v5639, %v5818
      %v5820 = vpop.f32.mrf.mxu0
      %5821 = vmatprep.mubr.f32.mxu0 0.0
      %5822 = vmatmul.mubr.f32.gmra.mxu0 %v5652
      %v5823 = vpop.f32.mrf.mxu0
      %v5824 = vadd.f32 %v5639, %v5823
      %v5825 = vpop.f32.mrf.mxu0
      %5826 = vmatprep.mubr.f32.mxu0 0.0
      %5827 = vmatmul.mubr.f32.gmra.mxu0 %v5655
      %v5828 = vpop.f32.mrf.mxu0
      %v5829 = vadd.f32 %v5639, %v5828
      %v5830 = vpop.f32.mrf.mxu0
      %5831 = vmatprep.mubr.f32.mxu0 0.0
      %5832 = vmatmul.mubr.f32.gmra.mxu0 %v5658
      %v5833 = vpop.f32.mrf.mxu0
      %v5834 = vadd.f32 %v5639, %v5833
      %v5835 = vpop.f32.mrf.mxu0
      %5836 = vmatprep.mubr.f32.mxu0 0.0
      %5837 = vmatmul.mubr.f32.gmra.mxu0 %v5661
      %v5838 = vpop.f32.mrf.mxu0
      %v5839 = vadd.f32 %v5639, %v5838
      %v5840 = vpop.f32.mrf.mxu0
      %5841 = vmatprep.mubr.f32.mxu0 0.0
      %5842 = vmatmul.mubr.f32.gmra.mxu0 %v5664
      %v5843 = vpop.f32.mrf.mxu0
      %v5844 = vadd.f32 %v5639, %v5843
      %v5845 = vpop.f32.mrf.mxu0
      %5846 = vmatprep.mubr.f32.mxu0 0.0
      %5847 = vmatmul.mubr.f32.gmra.mxu0 %v5667
      %v5848 = vpop.f32.mrf.mxu0
      %v5849 = vadd.f32 %v5639, %v5848
      %v5850 = vpop.f32.mrf.mxu0
      %5851 = vmatprep.mubr.f32.mxu0 0.0
      %5852 = vmatmul.mubr.f32.gmra.mxu0 %v5670
      %v5853 = vpop.f32.mrf.mxu0
      %v5854 = vadd.f32 %v5639, %v5853
      %v5855 = vpop.f32.mrf.mxu0
      %5856 = vmatprep.mubr.f32.mxu0 0.0
      %5857 = vmatmul.mubr.f32.gmra.mxu0 %v5673
      %v5858 = vpop.f32.mrf.mxu0
      %v5859 = vadd.f32 %v5639, %v5858
      %v5860 = vpop.f32.mrf.mxu0
      %5861 = vmatprep.mubr.f32.mxu0 0.0
      %5862 = vmatmul.mubr.f32.gmra.mxu0 %v5676
      %v5863 = vpop.f32.mrf.mxu0
      %v5864 = vadd.f32 %v5639, %v5863
      %v5865 = vpop.f32.mrf.mxu0
      %5866 = vmatprep.mubr.f32.mxu0 0.0
      %5867 = vmatmul.mubr.f32.gmra.mxu0 %v5679
      %v5868 = vpop.f32.mrf.mxu0
      %v5869 = vadd.f32 %v5639, %v5868
      %v5870 = vpop.f32.mrf.mxu0
      %5871 = vmatprep.mubr.f32.mxu0 0.0
      %5872 = vmatmul.mubr.f32.gmra.mxu0 %v5682
      %v5873 = vpop.f32.mrf.mxu0
      %v5874 = vadd.f32 %v5639, %v5873
      %v5875 = vpop.f32.mrf.mxu0
      %5876 = vmatprep.mubr.f32.mxu0 0.0
      %5877 = vmatmul.mubr.f32.gmra.mxu0 %v5685
      %v5878 = vpop.f32.mrf.mxu0
      %v5879 = vadd.f32 %v5639, %v5878
      %v5880 = vpop.f32.mrf.mxu0
      %5881 = vmatprep.mubr.f32.mxu0 0.0
      %5882 = vmatmul.mubr.f32.gmra.mxu0 %v5688
      %v5883 = vpop.f32.mrf.mxu0
      %v5884 = vadd.f32 %v5639, %v5883
      %v5885 = vpop.f32.mrf.mxu0
      %5886 = vmatprep.mubr.f32.mxu0 0.0
      %5887 = vmatmul.mubr.f32.gmra.mxu0 %v5691
      %v5888 = vpop.f32.mrf.mxu0
      %v5889 = vadd.f32 %v5639, %v5888
      %v5890 = vpop.f32.mrf.mxu0
      %5891 = vmatprep.mubr.f32.mxu0 0.0
      %5892 = vmatmul.mubr.f32.gmra.mxu0 %v5694
      %v5893 = vpop.f32.mrf.mxu0
      %v5894 = vadd.f32 %v5639, %v5893
      %v5895 = vpop.f32.mrf.mxu0
      %5896 = vmatprep.mubr.f32.mxu0 0.0
      %5897 = vmatmul.mubr.f32.gmra.mxu0 %v5697
      %v5898 = vpop.f32.mrf.mxu0
      %v5899 = vadd.f32 %v5639, %v5898
      %v5900 = vpop.f32.mrf.mxu0
      %5901 = vmatprep.mubr.f32.mxu0 0.0
      %5902 = vmatmul.mubr.f32.gmra.mxu0 %v5700
      %v5903 = vpop.f32.mrf.mxu0
      %v5904 = vadd.f32 %v5639, %v5903
      %v5905 = vpop.f32.mrf.mxu0
      %5906 = vmatprep.mubr.f32.mxu0 0.0
      %5907 = vmatmul.mubr.f32.gmra.mxu0 %v5703
      %v5908 = vpop.f32.mrf.mxu0
      %v5909 = vadd.f32 %v5639, %v5908
      %v5910 = vpop.f32.mrf.mxu0
      %5911 = vmatprep.mubr.f32.mxu0 0.0
      %5912 = vmatmul.mubr.f32.gmra.mxu0 %v5706
      %v5913 = vpop.f32.mrf.mxu0
      %v5914 = vadd.f32 %v5639, %v5913
      %v5915 = vpop.f32.mrf.mxu0
      %5916 = vmatprep.mubr.f32.mxu0 0.0
      %5917 = vmatmul.mubr.f32.gmra.mxu0 %v5709
      %v5918 = vpop.f32.mrf.mxu0
      %v5919 = vadd.f32 %v5639, %v5918
      %v5920 = vpop.f32.mrf.mxu0
      %5921 = vmatprep.mubr.f32.mxu0 0.0
      %5922 = vmatmul.mubr.f32.gmra.mxu0 %v5712
      %v5923 = vpop.f32.mrf.mxu0
      %v5924 = vadd.f32 %v5639, %v5923
      %v5925 = vpop.f32.mrf.mxu0
      %5926 = vmatprep.mubr.f32.mxu0 0.0
      %5927 = vmatmul.mubr.f32.gmra.mxu0 %v5715
      %v5928 = vpop.f32.mrf.mxu0
      %v5929 = vadd.f32 %v5639, %v5928
      %v5930 = vpop.f32.mrf.mxu0
      %5931 = vmatprep.mubr.f32.mxu0 0.0
      %5932 = vmatmul.mubr.f32.gmra.mxu0 %v5718
      %v5933 = vpop.f32.mrf.mxu0
      %v5934 = vadd.f32 %v5639, %v5933
      %v5935 = vpop.f32.mrf.mxu0
      %5936 = vmatprep.mubr.f32.mxu0 0.0
      %5937 = vmatmul.mubr.f32.gmra.mxu0 %v5721
      %v5938 = vpop.f32.mrf.mxu0
      %v5939 = vadd.f32 %v5639, %v5938
      %v5940 = vpop.f32.mrf.mxu0
      %5941 = vmatprep.mubr.f32.mxu0 0.0
      %5942 = vmatmul.mubr.f32.gmra.mxu0 %v5724
      %v5943 = vpop.f32.mrf.mxu0
      %v5944 = vadd.f32 %v5639, %v5943
      %v5945 = vpop.f32.mrf.mxu0
      %5946 = vmatprep.mubr.f32.mxu0 0.0
      %5947 = vmatmul.mubr.f32.gmra.mxu0 %v5727
      %v5948 = vpop.f32.mrf.mxu0
      %v5949 = vadd.f32 %v5639, %v5948
      %v5950 = vpop.f32.mrf.mxu0
      %5951 = vmatprep.mubr.f32.mxu0 0.0
      %5952 = vmatmul.mubr.f32.gmra.mxu0 %v5730
      %v5953 = vpop.f32.mrf.mxu0
      %v5954 = vadd.f32 %v5639, %v5953
      %v5955 = vpop.f32.mrf.mxu0
      %5956 = vmatprep.mubr.f32.mxu0 0.0
      %5957 = vmatmul.mubr.f32.gmra.mxu0 %v5733
      %v5958 = vpop.f32.mrf.mxu0
      %v5959 = vadd.f32 %v5639, %v5958
      %v5960 = vpop.f32.mrf.mxu0
      %5961 = vmatprep.mubr.f32.mxu0 0.0
      %5962 = vmatmul.mubr.f32.gmra.mxu0 %v5736
      %v5963 = vpop.f32.mrf.mxu0
      %v5964 = vadd.f32 %v5639, %v5963
      %v5965 = vpop.f32.mrf.mxu0
      %5966 = vdwg.mxu0
      %v5967 = vmul.f32 %v5809, 0.5
      %v5968 = vmul.f32 %v5814, 0.5
      %v5969 = vmul.f32 %v5819, 0.5
      %v5970 = vmul.f32 %v5824, 0.5
      %v5971 = vmul.f32 %v5829, 0.5
      %v5972 = vmul.f32 %v5834, 0.5
      %v5973 = vmul.f32 %v5839, 0.5
      %v5974 = vmul.f32 %v5844, 0.5
      %v5975 = vmul.f32 %v5849, 0.5
      %v5976 = vmul.f32 %v5854, 0.5
      %v5977 = vmul.f32 %v5859, 0.5
      %v5978 = vmul.f32 %v5864, 0.5
      %v5979 = vmul.f32 %v5869, 0.5
      %v5980 = vmul.f32 %v5874, 0.5
      %v5981 = vmul.f32 %v5879, 0.5
      %v5982 = vmul.f32 %v5884, 0.5
      %v5983 = vmul.f32 %v5889, 0.5
      %v5984 = vmul.f32 %v5894, 0.5
      %v5985 = vmul.f32 %v5899, 0.5
      %v5986 = vmul.f32 %v5904, 0.5
      %v5987 = vmul.f32 %v5909, 0.5
      %v5988 = vmul.f32 %v5914, 0.5
      %v5989 = vmul.f32 %v5919, 0.5
      %v5990 = vmul.f32 %v5924, 0.5
      %v5991 = vmul.f32 %v5929, 0.5
      %v5992 = vmul.f32 %v5934, 0.5
      %v5993 = vmul.f32 %v5939, 0.5
      %v5994 = vmul.f32 %v5944, 0.5
      %v5995 = vmul.f32 %v5949, 0.5
      %v5996 = vmul.f32 %v5954, 0.5
      %v5997 = vmul.f32 %v5959, 0.5
      %v5998 = vmul.f32 %v5964, 0.5
      %v5999 = vrcp.pop 1.4142135
      %v6000 = vmul.f32 %v5809, %v5999
      %v6001 = vmul.f32 %v5814, %v5999
      %v6002 = vmul.f32 %v5819, %v5999
      %v6003 = vmul.f32 %v5824, %v5999
      %v6004 = vmul.f32 %v5829, %v5999
      %v6005 = vmul.f32 %v5834, %v5999
      %v6006 = vmul.f32 %v5839, %v5999
      %v6007 = vmul.f32 %v5844, %v5999
      %v6008 = vmul.f32 %v5849, %v5999
      %v6009 = vmul.f32 %v5854, %v5999
      %v6010 = vmul.f32 %v5859, %v5999
      %v6011 = vmul.f32 %v5864, %v5999
      %v6012 = vmul.f32 %v5869, %v5999
      %v6013 = vmul.f32 %v5874, %v5999
      %v6014 = vmul.f32 %v5879, %v5999
      %v6015 = vmul.f32 %v5884, %v5999
      %v6016 = vmul.f32 %v5889, %v5999
      %v6017 = vmul.f32 %v5894, %v5999
      %v6018 = vmul.f32 %v5899, %v5999
      %v6019 = vmul.f32 %v5904, %v5999
      %v6020 = vmul.f32 %v5909, %v5999
      %v6021 = vmul.f32 %v5914, %v5999
      %v6022 = vmul.f32 %v5919, %v5999
      %v6023 = vmul.f32 %v5924, %v5999
      %v6024 = vmul.f32 %v5929, %v5999
      %v6025 = vmul.f32 %v5934, %v5999
      %v6026 = vmul.f32 %v5939, %v5999
      %v6027 = vmul.f32 %v5944, %v5999
      %v6028 = vmul.f32 %v5949, %v5999
      %v6029 = vmul.f32 %v5954, %v5999
      %v6030 = vmul.f32 %v5959, %v5999
      %v6031 = vmul.f32 %v5964, %v5999
      %v6032 = verf.f32.pop %v6000
      %v6033 = verf.f32.pop %v6001
      %v6034 = verf.f32.pop %v6002
      %v6035 = verf.f32.pop %v6003
      %v6036 = verf.f32.pop %v6004
      %v6037 = verf.f32.pop %v6005
      %v6038 = verf.f32.pop %v6006
      %v6039 = verf.f32.pop %v6007
      %v6040 = verf.f32.pop %v6008
      %v6041 = verf.f32.pop %v6009
      %v6042 = verf.f32.pop %v6010
      %v6043 = verf.f32.pop %v6011
      %v6044 = verf.f32.pop %v6012
      %v6045 = verf.f32.pop %v6013
      %v6046 = verf.f32.pop %v6014
      %v6047 = verf.f32.pop %v6015
      %v6048 = verf.f32.pop %v6016
      %v6049 = verf.f32.pop %v6017
      %v6050 = verf.f32.pop %v6018
      %v6051 = verf.f32.pop %v6019
      %v6052 = verf.f32.pop %v6020
      %v6053 = verf.f32.pop %v6021
      %v6054 = verf.f32.pop %v6022
      %v6055 = verf.f32.pop %v6023
      %v6056 = verf.f32.pop %v6024
      %v6057 = verf.f32.pop %v6025
      %v6058 = verf.f32.pop %v6026
      %v6059 = verf.f32.pop %v6027
      %v6060 = verf.f32.pop %v6028
      %v6061 = verf.f32.pop %v6029
      %v6062 = verf.f32.pop %v6030
      %v6063 = verf.f32.pop %v6031
      %v6064 = vadd.f32 %v6032, 1.0
      %v6065 = vadd.f32 %v6033, 1.0
      %v6066 = vadd.f32 %v6034, 1.0
      %v6067 = vadd.f32 %v6035, 1.0
      %v6068 = vadd.f32 %v6036, 1.0
      %v6069 = vadd.f32 %v6037, 1.0
      %v6070 = vadd.f32 %v6038, 1.0
      %v6071 = vadd.f32 %v6039, 1.0
      %v6072 = vadd.f32 %v6040, 1.0
      %v6073 = vadd.f32 %v6041, 1.0
      %v6074 = vadd.f32 %v6042, 1.0
      %v6075 = vadd.f32 %v6043, 1.0
      %v6076 = vadd.f32 %v6044, 1.0
      %v6077 = vadd.f32 %v6045, 1.0
      %v6078 = vadd.f32 %v6046, 1.0
      %v6079 = vadd.f32 %v6047, 1.0
      %v6080 = vadd.f32 %v6048, 1.0
      %v6081 = vadd.f32 %v6049, 1.0
      %v6082 = vadd.f32 %v6050, 1.0
      %v6083 = vadd.f32 %v6051, 1.0
      %v6084 = vadd.f32 %v6052, 1.0
      %v6085 = vadd.f32 %v6053, 1.0
      %v6086 = vadd.f32 %v6054, 1.0
      %v6087 = vadd.f32 %v6055, 1.0
      %v6088 = vadd.f32 %v6056, 1.0
      %v6089 = vadd.f32 %v6057, 1.0
      %v6090 = vadd.f32 %v6058, 1.0
      %v6091 = vadd.f32 %v6059, 1.0
      %v6092 = vadd.f32 %v6060, 1.0
      %v6093 = vadd.f32 %v6061, 1.0
      %v6094 = vadd.f32 %v6062, 1.0
      %v6095 = vadd.f32 %v6063, 1.0
      %v6096 = vmul.f32 %v5967, %v6064
      %v6097 = vmul.f32 %v5968, %v6065
      %v6098 = vmul.f32 %v5969, %v6066
      %v6099 = vmul.f32 %v5970, %v6067
      %v6100 = vmul.f32 %v5971, %v6068
      %v6101 = vmul.f32 %v5972, %v6069
      %v6102 = vmul.f32 %v5973, %v6070
      %v6103 = vmul.f32 %v5974, %v6071
      %v6104 = vmul.f32 %v5975, %v6072
      %v6105 = vmul.f32 %v5976, %v6073
      %v6106 = vmul.f32 %v5977, %v6074
      %v6107 = vmul.f32 %v5978, %v6075
      %v6108 = vmul.f32 %v5979, %v6076
      %v6109 = vmul.f32 %v5980, %v6077
      %v6110 = vmul.f32 %v5981, %v6078
      %v6111 = vmul.f32 %v5982, %v6079
      %v6112 = vmul.f32 %v5983, %v6080
      %v6113 = vmul.f32 %v5984, %v6081
      %v6114 = vmul.f32 %v5985, %v6082
      %v6115 = vmul.f32 %v5986, %v6083
      %v6116 = vmul.f32 %v5987, %v6084
      %v6117 = vmul.f32 %v5988, %v6085
      %v6118 = vmul.f32 %v5989, %v6086
      %v6119 = vmul.f32 %v5990, %v6087
      %v6120 = vmul.f32 %v5991, %v6088
      %v6121 = vmul.f32 %v5992, %v6089
      %v6122 = vmul.f32 %v5993, %v6090
      %v6123 = vmul.f32 %v5994, %v6091
      %v6124 = vmul.f32 %v5995, %v6092
      %v6125 = vmul.f32 %v5996, %v6093
      %v6126 = vmul.f32 %v5997, %v6094
      %v6127 = vmul.f32 %v5998, %v6095
      %v6128 = vld [vmem:[%s6] sm:$0xff]
      %v6129 = vld [vmem:[%s6 + $0x8] sm:$0xff]
      %v6130 = vld [vmem:[%s7] sm:$0x1]
      %v6132 = vlaneseq
      %v6133 = vshrl.u32 %v6132, 7
      %v6134 = vsub.s32 0, %v6133
      %v6135 = vrot.slane %v6130, %v6134
      %vm6137 = vcmask 130048
      %v6139 = vsel %vm6137, %v6096, 0
      %v6142 = vsel %vm6137, %v6097, 0
      %v6145 = vsel %vm6137, %v6098, 0
      %v6148 = vsel %vm6137, %v6099, 0
      %v6151 = vsel %vm6137, %v6100, 0
      %v6154 = vsel %vm6137, %v6101, 0
      %v6157 = vsel %vm6137, %v6102, 0
      %v6160 = vsel %vm6137, %v6103, 0
      %v6163 = vsel %vm6137, %v6104, 0
      %v6166 = vsel %vm6137, %v6105, 0
      %v6169 = vsel %vm6137, %v6106, 0
      %v6172 = vsel %vm6137, %v6107, 0
      %v6175 = vsel %vm6137, %v6108, 0
      %v6178 = vsel %vm6137, %v6109, 0
      %v6181 = vsel %vm6137, %v6110, 0
      %v6184 = vsel %vm6137, %v6111, 0
      %v6187 = vsel %vm6137, %v6112, 0
      %v6190 = vsel %vm6137, %v6113, 0
      %v6193 = vsel %vm6137, %v6114, 0
      %v6196 = vsel %vm6137, %v6115, 0
      %v6199 = vsel %vm6137, %v6116, 0
      %v6202 = vsel %vm6137, %v6117, 0
      %v6205 = vsel %vm6137, %v6118, 0
      %v6208 = vsel %vm6137, %v6119, 0
      %v6211 = vsel %vm6137, %v6120, 0
      %v6214 = vsel %vm6137, %v6121, 0
      %v6217 = vsel %vm6137, %v6122, 0
      %v6220 = vsel %vm6137, %v6123, 0
      %v6223 = vsel %vm6137, %v6124, 0
      %v6226 = vsel %vm6137, %v6125, 0
      %v6229 = vsel %vm6137, %v6126, 0
      %v6232 = vsel %vm6137, %v6127, 0
      %6234 = vmatprep.subr.mxu0 0.0
      %6235 = vmatpush1.msra.mxu0 0.0
      %6236 = vmatprep.subr.mxu0 0.0
      %6237 = vmatpush1.msra.mxu0 0.0
      %6238 = vmatprep.subr.mxu0 0.0
      %6239 = vmatpush1.msra.mxu0 0.0
      %6240 = vmatprep.subr.mxu0 0.0
      %6241 = vmatpush1.msra.mxu0 0.0
      %6242 = vmatprep.subr.mxu0 0.0
      %6243 = vmatpush1.msra.mxu0 0.0
      %6244 = vmatprep.subr.mxu0 0.0
      %6245 = vmatpush1.msra.mxu0 0.0
      %6246 = vmatprep.subr.mxu0 0.0
      %6247 = vmatpush1.msra.mxu0 0.0
      %6248 = vmatprep.subr.mxu0 0.0
      %6249 = vmatpush1.msra.mxu0 0.0
      %6250 = vmatprep.subr.mxu0 0.0
      %6251 = vmatpush1.msra.mxu0 0.0
      %6252 = vmatprep.subr.mxu0 0.0
      %6253 = vmatpush1.msra.mxu0 0.0
      %6254 = vmatprep.subr.mxu0 0.0
      %6255 = vmatpush1.msra.mxu0 0.0
      %6256 = vmatprep.subr.mxu0 0.0
      %6257 = vmatpush1.msra.mxu0 0.0
      %6258 = vmatprep.subr.mxu0 0.0
      %6259 = vmatpush1.msra.mxu0 0.0
      %6260 = vmatprep.subr.mxu0 0.0
      %6261 = vmatpush1.msra.mxu0 0.0
      %6262 = vmatprep.subr.mxu0 0.0
      %6263 = vmatpush1.msra.mxu0 %v6129
      %6264 = vmatprep.subr.mxu0 0.0
      %6265 = vmatpush1.msra.mxu0 %v6128
      %6266 = vmatprep.subr.mxu0 0.0
      %6267 = vmatpush2.msra.mxu0 0.0
      %6268 = vmatprep.subr.mxu0 0.0
      %6269 = vmatpush2.msra.mxu0 0.0
      %6270 = vmatprep.subr.mxu0 0.0
      %6271 = vmatpush2.msra.mxu0 0.0
      %6272 = vmatprep.subr.mxu0 0.0
      %6273 = vmatpush2.msra.mxu0 0.0
      %6274 = vmatprep.subr.mxu0 0.0
      %6275 = vmatpush2.msra.mxu0 0.0
      %6276 = vmatprep.subr.mxu0 0.0
      %6277 = vmatpush2.msra.mxu0 0.0
      %6278 = vmatprep.subr.mxu0 0.0
      %6279 = vmatpush2.msra.mxu0 0.0
      %6280 = vmatprep.subr.mxu0 0.0
      %6281 = vmatpush2.msra.mxu0 0.0
      %6282 = vmatprep.subr.mxu0 0.0
      %6283 = vmatpush2.msra.mxu0 0.0
      %6284 = vmatprep.subr.mxu0 0.0
      %6285 = vmatpush2.msra.mxu0 0.0
      %6286 = vmatprep.subr.mxu0 0.0
      %6287 = vmatpush2.msra.mxu0 0.0
      %6288 = vmatprep.subr.mxu0 0.0
      %6289 = vmatpush2.msra.mxu0 0.0
      %6290 = vmatprep.subr.mxu0 0.0
      %6291 = vmatpush2.msra.mxu0 0.0
      %6292 = vmatprep.subr.mxu0 0.0
      %6293 = vmatpush2.msra.mxu0 0.0
      %6294 = vmatprep.subr.mxu0 0.0
      %6295 = vmatpush2.msra.mxu0 0.0
      %6296 = vmatprep.subr.mxu0 0.0
      %6297 = vmatpush2.msra.mxu0 0.0
      %6298 = vmatprep.mubr.f32.mxu0 0.0
      %6299 = vmatmul.mubr.f32.gmra.mxu0 %v6139
      %v6300 = vpop.f32.mrf.mxu0
      %v6301 = vadd.f32 %v6135, %v6300
      %v6302 = vpop.f32.mrf.mxu0
      %6303 = vmatprep.mubr.f32.mxu0 0.0
      %6304 = vmatmul.mubr.f32.gmra.mxu0 %v6142
      %v6305 = vpop.f32.mrf.mxu0
      %v6306 = vadd.f32 %v6135, %v6305
      %v6307 = vpop.f32.mrf.mxu0
      %6308 = vmatprep.mubr.f32.mxu0 0.0
      %6309 = vmatmul.mubr.f32.gmra.mxu0 %v6145
      %v6310 = vpop.f32.mrf.mxu0
      %v6311 = vadd.f32 %v6135, %v6310
      %v6312 = vpop.f32.mrf.mxu0
      %6313 = vmatprep.mubr.f32.mxu0 0.0
      %6314 = vmatmul.mubr.f32.gmra.mxu0 %v6148
      %v6315 = vpop.f32.mrf.mxu0
      %v6316 = vadd.f32 %v6135, %v6315
      %v6317 = vpop.f32.mrf.mxu0
      %6318 = vmatprep.mubr.f32.mxu0 0.0
      %6319 = vmatmul.mubr.f32.gmra.mxu0 %v6151
      %v6320 = vpop.f32.mrf.mxu0
      %v6321 = vadd.f32 %v6135, %v6320
      %v6322 = vpop.f32.mrf.mxu0
      %6323 = vmatprep.mubr.f32.mxu0 0.0
      %6324 = vmatmul.mubr.f32.gmra.mxu0 %v6154
      %v6325 = vpop.f32.mrf.mxu0
      %v6326 = vadd.f32 %v6135, %v6325
      %v6327 = vpop.f32.mrf.mxu0
      %6328 = vmatprep.mubr.f32.mxu0 0.0
      %6329 = vmatmul.mubr.f32.gmra.mxu0 %v6157
      %v6330 = vpop.f32.mrf.mxu0
      %v6331 = vadd.f32 %v6135, %v6330
      %v6332 = vpop.f32.mrf.mxu0
      %6333 = vmatprep.mubr.f32.mxu0 0.0
      %6334 = vmatmul.mubr.f32.gmra.mxu0 %v6160
      %v6335 = vpop.f32.mrf.mxu0
      %v6336 = vadd.f32 %v6135, %v6335
      %v6337 = vpop.f32.mrf.mxu0
      %6338 = vmatprep.mubr.f32.mxu0 0.0
      %6339 = vmatmul.mubr.f32.gmra.mxu0 %v6163
      %v6340 = vpop.f32.mrf.mxu0
      %v6341 = vadd.f32 %v6135, %v6340
      %v6342 = vpop.f32.mrf.mxu0
      %6343 = vmatprep.mubr.f32.mxu0 0.0
      %6344 = vmatmul.mubr.f32.gmra.mxu0 %v6166
      %v6345 = vpop.f32.mrf.mxu0
      %v6346 = vadd.f32 %v6135, %v6345
      %v6347 = vpop.f32.mrf.mxu0
      %6348 = vmatprep.mubr.f32.mxu0 0.0
      %6349 = vmatmul.mubr.f32.gmra.mxu0 %v6169
      %v6350 = vpop.f32.mrf.mxu0
      %v6351 = vadd.f32 %v6135, %v6350
      %v6352 = vpop.f32.mrf.mxu0
      %6353 = vmatprep.mubr.f32.mxu0 0.0
      %6354 = vmatmul.mubr.f32.gmra.mxu0 %v6172
      %v6355 = vpop.f32.mrf.mxu0
      %v6356 = vadd.f32 %v6135, %v6355
      %v6357 = vpop.f32.mrf.mxu0
      %6358 = vmatprep.mubr.f32.mxu0 0.0
      %6359 = vmatmul.mubr.f32.gmra.mxu0 %v6175
      %v6360 = vpop.f32.mrf.mxu0
      %v6361 = vadd.f32 %v6135, %v6360
      %v6362 = vpop.f32.mrf.mxu0
      %6363 = vmatprep.mubr.f32.mxu0 0.0
      %6364 = vmatmul.mubr.f32.gmra.mxu0 %v6178
      %v6365 = vpop.f32.mrf.mxu0
      %v6366 = vadd.f32 %v6135, %v6365
      %v6367 = vpop.f32.mrf.mxu0
      %6368 = vmatprep.mubr.f32.mxu0 0.0
      %6369 = vmatmul.mubr.f32.gmra.mxu0 %v6181
      %v6370 = vpop.f32.mrf.mxu0
      %v6371 = vadd.f32 %v6135, %v6370
      %v6372 = vpop.f32.mrf.mxu0
      %6373 = vmatprep.mubr.f32.mxu0 0.0
      %6374 = vmatmul.mubr.f32.gmra.mxu0 %v6184
      %v6375 = vpop.f32.mrf.mxu0
      %v6376 = vadd.f32 %v6135, %v6375
      %v6377 = vpop.f32.mrf.mxu0
      %6378 = vmatprep.mubr.f32.mxu0 0.0
      %6379 = vmatmul.mubr.f32.gmra.mxu0 %v6187
      %v6380 = vpop.f32.mrf.mxu0
      %v6381 = vadd.f32 %v6135, %v6380
      %v6382 = vpop.f32.mrf.mxu0
      %6383 = vmatprep.mubr.f32.mxu0 0.0
      %6384 = vmatmul.mubr.f32.gmra.mxu0 %v6190
      %v6385 = vpop.f32.mrf.mxu0
      %v6386 = vadd.f32 %v6135, %v6385
      %v6387 = vpop.f32.mrf.mxu0
      %6388 = vmatprep.mubr.f32.mxu0 0.0
      %6389 = vmatmul.mubr.f32.gmra.mxu0 %v6193
      %v6390 = vpop.f32.mrf.mxu0
      %v6391 = vadd.f32 %v6135, %v6390
      %v6392 = vpop.f32.mrf.mxu0
      %6393 = vmatprep.mubr.f32.mxu0 0.0
      %6394 = vmatmul.mubr.f32.gmra.mxu0 %v6196
      %v6395 = vpop.f32.mrf.mxu0
      %v6396 = vadd.f32 %v6135, %v6395
      %v6397 = vpop.f32.mrf.mxu0
      %6398 = vmatprep.mubr.f32.mxu0 0.0
      %6399 = vmatmul.mubr.f32.gmra.mxu0 %v6199
      %v6400 = vpop.f32.mrf.mxu0
      %v6401 = vadd.f32 %v6135, %v6400
      %v6402 = vpop.f32.mrf.mxu0
      %6403 = vmatprep.mubr.f32.mxu0 0.0
      %6404 = vmatmul.mubr.f32.gmra.mxu0 %v6202
      %v6405 = vpop.f32.mrf.mxu0
      %v6406 = vadd.f32 %v6135, %v6405
      %v6407 = vpop.f32.mrf.mxu0
      %6408 = vmatprep.mubr.f32.mxu0 0.0
      %6409 = vmatmul.mubr.f32.gmra.mxu0 %v6205
      %v6410 = vpop.f32.mrf.mxu0
      %v6411 = vadd.f32 %v6135, %v6410
      %v6412 = vpop.f32.mrf.mxu0
      %6413 = vmatprep.mubr.f32.mxu0 0.0
      %6414 = vmatmul.mubr.f32.gmra.mxu0 %v6208
      %v6415 = vpop.f32.mrf.mxu0
      %v6416 = vadd.f32 %v6135, %v6415
      %v6417 = vpop.f32.mrf.mxu0
      %6418 = vmatprep.mubr.f32.mxu0 0.0
      %6419 = vmatmul.mubr.f32.gmra.mxu0 %v6211
      %v6420 = vpop.f32.mrf.mxu0
      %v6421 = vadd.f32 %v6135, %v6420
      %v6422 = vpop.f32.mrf.mxu0
      %6423 = vmatprep.mubr.f32.mxu0 0.0
      %6424 = vmatmul.mubr.f32.gmra.mxu0 %v6214
      %v6425 = vpop.f32.mrf.mxu0
      %v6426 = vadd.f32 %v6135, %v6425
      %v6427 = vpop.f32.mrf.mxu0
      %6428 = vmatprep.mubr.f32.mxu0 0.0
      %6429 = vmatmul.mubr.f32.gmra.mxu0 %v6217
      %v6430 = vpop.f32.mrf.mxu0
      %v6431 = vadd.f32 %v6135, %v6430
      %v6432 = vpop.f32.mrf.mxu0
      %6433 = vmatprep.mubr.f32.mxu0 0.0
      %6434 = vmatmul.mubr.f32.gmra.mxu0 %v6220
      %v6435 = vpop.f32.mrf.mxu0
      %v6436 = vadd.f32 %v6135, %v6435
      %v6437 = vpop.f32.mrf.mxu0
      %6438 = vmatprep.mubr.f32.mxu0 0.0
      %6439 = vmatmul.mubr.f32.gmra.mxu0 %v6223
      %v6440 = vpop.f32.mrf.mxu0
      %v6441 = vadd.f32 %v6135, %v6440
      %v6442 = vpop.f32.mrf.mxu0
      %6443 = vmatprep.mubr.f32.mxu0 0.0
      %6444 = vmatmul.mubr.f32.gmra.mxu0 %v6226
      %v6445 = vpop.f32.mrf.mxu0
      %v6446 = vadd.f32 %v6135, %v6445
      %v6447 = vpop.f32.mrf.mxu0
      %6448 = vmatprep.mubr.f32.mxu0 0.0
      %6449 = vmatmul.mubr.f32.gmra.mxu0 %v6229
      %v6450 = vpop.f32.mrf.mxu0
      %v6451 = vadd.f32 %v6135, %v6450
      %v6452 = vpop.f32.mrf.mxu0
      %6453 = vmatprep.mubr.f32.mxu0 0.0
      %6454 = vmatmul.mubr.f32.gmra.mxu0 %v6232
      %v6455 = vpop.f32.mrf.mxu0
      %v6456 = vadd.f32 %v6135, %v6455
      %v6457 = vpop.f32.mrf.mxu0
      %6458 = vdwg.mxu0
      %v6459 = vadd.f32 %v1599, %v6301
      %v6460 = vadd.f32 %v1600, %v6306
      %v6461 = vadd.f32 %v1601, %v6311
      %v6462 = vadd.f32 %v1602, %v6316
      %v6463 = vadd.f32 %v1603, %v6321
      %v6464 = vadd.f32 %v1604, %v6326
      %v6465 = vadd.f32 %v1605, %v6331
      %v6466 = vadd.f32 %v1606, %v6336
      %v6467 = vadd.f32 %v1607, %v6341
      %v6468 = vadd.f32 %v1608, %v6346
      %v6469 = vadd.f32 %v1609, %v6351
      %v6470 = vadd.f32 %v1610, %v6356
      %v6471 = vadd.f32 %v1611, %v6361
      %v6472 = vadd.f32 %v1612, %v6366
      %v6473 = vadd.f32 %v1613, %v6371
      %v6474 = vadd.f32 %v1614, %v6376
      %v6475 = vadd.f32 %v1615, %v6381
      %v6476 = vadd.f32 %v1616, %v6386
      %v6477 = vadd.f32 %v1617, %v6391
      %v6478 = vadd.f32 %v1618, %v6396
      %v6479 = vadd.f32 %v1619, %v6401
      %v6480 = vadd.f32 %v1620, %v6406
      %v6481 = vadd.f32 %v1621, %v6411
      %v6482 = vadd.f32 %v1622, %v6416
      %v6483 = vadd.f32 %v1623, %v6421
      %v6484 = vadd.f32 %v1624, %v6426
      %v6485 = vadd.f32 %v1625, %v6431
      %v6486 = vadd.f32 %v1626, %v6436
      %v6487 = vadd.f32 %v1627, %v6441
      %v6488 = vadd.f32 %v1628, %v6446
      %v6489 = vadd.f32 %v1629, %v6451
      %v6490 = vadd.f32 %v1630, %v6456
      %6491 = vst.msk [vmem:[%s329] sm:$0xff] %vm5641, %v6459
      %6492 = vst.msk [vmem:[%s329 + $0x8] sm:$0xff] %vm5641, %v6460
      %6493 = vst.msk [vmem:[%s329 + $0x10] sm:$0xff] %vm5641, %v6461
      %6494 = vst.msk [vmem:[%s329 + $0x18] sm:$0xff] %vm5641, %v6462
      %6495 = vst.msk [vmem:[%s329 + $0x20] sm:$0xff] %vm5641, %v6463
      %6496 = vst.msk [vmem:[%s329 + $0x28] sm:$0xff] %vm5641, %v6464
      %6497 = vst.msk [vmem:[%s329 + $0x30] sm:$0xff] %vm5641, %v6465
      %6498 = vst.msk [vmem:[%s329 + $0x38] sm:$0xff] %vm5641, %v6466
      %6499 = vst.msk [vmem:[%s329 + $0x40] sm:$0xff] %vm5641, %v6467
      %6500 = vst.msk [vmem:[%s329 + $0x48] sm:$0xff] %vm5641, %v6468
      %6501 = vst.msk [vmem:[%s329 + $0x50] sm:$0xff] %vm5641, %v6469
      %6502 = vst.msk [vmem:[%s329 + $0x58] sm:$0xff] %vm5641, %v6470
      %6503 = vst.msk [vmem:[%s329 + $0x60] sm:$0xff] %vm5641, %v6471
      %6504 = vst.msk [vmem:[%s329 + $0x68] sm:$0xff] %vm5641, %v6472
      %6505 = vst.msk [vmem:[%s329 + $0x70] sm:$0xff] %vm5641, %v6473
      %6506 = vst.msk [vmem:[%s329 + $0x78] sm:$0xff] %vm5641, %v6474
      %6507 = vst.msk [vmem:[%s329 + $0x80] sm:$0xff] %vm5641, %v6475
      %6508 = vst.msk [vmem:[%s329 + $0x88] sm:$0xff] %vm5641, %v6476
      %6509 = vst.msk [vmem:[%s329 + $0x90] sm:$0xff] %vm5641, %v6477
      %6510 = vst.msk [vmem:[%s329 + $0x98] sm:$0xff] %vm5641, %v6478
      %6511 = vst.msk [vmem:[%s329 + $0xa0] sm:$0xff] %vm5641, %v6479
      %6512 = vst.msk [vmem:[%s329 + $0xa8] sm:$0xff] %vm5641, %v6480
      %6513 = vst.msk [vmem:[%s329 + $0xb0] sm:$0xff] %vm5641, %v6481
      %6514 = vst.msk [vmem:[%s329 + $0xb8] sm:$0xff] %vm5641, %v6482
      %6515 = vst.msk [vmem:[%s329 + $0xc0] sm:$0xff] %vm5641, %v6483
      %6516 = vst.msk [vmem:[%s329 + $0xc8] sm:$0xff] %vm5641, %v6484
      %6517 = vst.msk [vmem:[%s329 + $0xd0] sm:$0xff] %vm5641, %v6485
      %6518 = vst.msk [vmem:[%s329 + $0xd8] sm:$0xff] %vm5641, %v6486
      %6519 = vst.msk [vmem:[%s329 + $0xe0] sm:$0xff] %vm5641, %v6487
      %6520 = vst.msk [vmem:[%s329 + $0xe8] sm:$0xff] %vm5641, %v6488
      %6521 = vst.msk [vmem:[%s329 + $0xf0] sm:$0xff] %vm5641, %v6489
      %6522 = vst.msk [vmem:[%s329 + $0xf8] sm:$0xff] %vm5641, %v6490
      %s6523 = smul.u32 16, %s24
      %p6524 = scmp.lt.s32.totalorder %s23, 1
      %s6525 = scalar_select %p6524, %s23, 1
      %p6526 = scmp.lt.s32.totalorder %s6523, 15
      %s6527 = scalar_select %p6526, %s6523, 15
      %s6528 = smul.addr %s6527, 2
      %s6529 = smul.addr %s6525, 32
      %s6530 = sadd.s32 %s6528, %s6529
      %s6531 = smul.addr %s6530, 8
      %s6532 = scalar_lea.vmem %s8, %s6531
      // Predicated region
      $region53: #{tpu_custom_call.1} parent=51 // pred_check
        %p6533 = pneg %p224
      $region54: #{tpu_custom_call.1} parent=51 // pred_check_branch
        %6535 = sbr.rel (%p6533) target = $region56
      $region55: #{tpu_custom_call.1} parent=51 // pred_region
        %s6536 = smul.u32 16, %s24
      $region56: #{tpu_custom_call.1} parent=51 // pred_fallthru
        _
    $region52: #{tpu_custom_call.1} parent=5 // pred_fallthru
      _
    %p6537 = scmp.le.s32.totalorder 2, %s14
    // Predicated region
    $region57: #{tpu_custom_call.1} parent=5 // pred_check
      %p6538 = pneg %p6537
    $region58: #{tpu_custom_call.1} parent=5 // pred_check_branch
      %6540 = sbr.rel (%p6538) target = $region60
    $region59: #{tpu_custom_call.1} parent=5 // pred_region
      %s6541 = ssub.s32 %s14, 2
      // Predicated region
      $region61: #{tpu_custom_call.1} parent=59 // pred_check
        %p6542 = pneg %p230
      $region62: #{tpu_custom_call.1} parent=59 // pred_check_branch
        %6544 = sbr.rel (%p6542) target = $region64
      $region63: #{tpu_custom_call.1} parent=59 // pred_region
        %s6545 = smul.u32 16, %s26
        %p6546 = scmp.lt.s32.totalorder %s25, 1
        %s6547 = scalar_select %p6546, %s25, 1
        %p6548 = scmp.lt.s32.totalorder %s6545, 15
        %s6549 = scalar_select %p6548, %s6545, 15
        %s6550 = smul.addr %s6549, 2
        %s6551 = smul.addr %s6547, 32
        %s6552 = sadd.s32 %s6550, %s6551
        %s6553 = smul.addr %s6552, 8
        %s6554 = scalar_lea.vmem %s8, %s6553
      $region64: #{tpu_custom_call.1} parent=59 // pred_fallthru
        _
    $region60: #{tpu_custom_call.1} parent=5 // pred_fallthru
      _
  $region6: #{tpu_custom_call.1} parent=0 // loop_footer
    %s18 = sadd.s32 1, %s14
  $region7: #{tpu_custom_call.1} parent=0 // loop_footer_branch
    %13 = sbr.rel target = $region3
  $region8: #{tpu_custom_call.1} parent=0 // loop_exit
    _

</llo_original>
